<compile_context>
chip_gen: v6e
topology: v6e:2x2x1
jax: 0.10.0
libtpu: 0.0.40
codegen_flags: <defaults>
</compile_context>

<pallas_src>
import functools

import jax
import jax.numpy as jnp
from jax import lax
from jax.experimental import pallas as pl
from jax.experimental.pallas import tpu as pltpu


_COMPILER_PARAMS = pltpu.CompilerParams(
    dimension_semantics=("parallel",),       # row-tile / image axis; 2 TCs on v7x
    vmem_limit_bytes=48 * 1024 * 1024,       # headroom under v7x's 64 MiB/TC
)


def _pick_tile_r(R, cap=1024):
    """Largest power-of-two row tile (multiple of 8, <= cap) dividing R."""
    t = cap
    while t >= 8:
        if t <= R and R % t == 0:
            return t
        t //= 2
    return R                                  # fallback: single full block


# --------------------------------------------------------------------------- #
# Kernels
# --------------------------------------------------------------------------- #
def _conv1_stats_kernel(x_ref, w1_ref, h1p_ref, s1_ref, q1_ref):
    """1x1 conv (bf16 MXU) + one-pass BN1 partial statistics for one row tile."""
    x = x_ref[...].astype(jnp.bfloat16)                                  # [T, Cin]
    h1 = jnp.dot(x, w1_ref[...], preferred_element_type=jnp.float32)    # [T, Cp] f32
    h1p_ref[...] = h1.astype(jnp.bfloat16)
    s1_ref[0] = jnp.sum(h1, axis=0, keepdims=True)
    q1_ref[0] = jnp.sum(h1 * h1, axis=0, keepdims=True)


def _conv2_kernel(HW, W, Cp,
                  h1p_ref, scale1_ref, shift1_ref, w2_ref,
                  h2p_ref, s2_ref, q2_ref,
                  acc_ref):
    """bn1 + relu + 3x3 conv (stride=1, pad=1, dil=1) as 9 accumulating matmuls.

    Each tap (dy, dx) of the flattened [HW, Cp] image is a pltpu.roll by
    dy*W + dx (XLU) times an edge mask; wrapped rows are always masked out, so
    no padded staging buffer and no im2col slab are needed.
    """
    h1 = h1p_ref[0].astype(jnp.float32) * scale1_ref[...] + shift1_ref[...]
    h1 = jnp.maximum(h1, 0.0)                                            # [HW, Cp] f32

    # In-kernel edge masks (hoisted once per grid step): [HW, 1] f32.
    r = lax.broadcasted_iota(jnp.int32, (HW, 1), 0)
    col = r % W
    m_left = (col > 0).astype(jnp.float32)        # valid source for dx = -1
    m_right = (col < W - 1).astype(jnp.float32)   # valid source for dx = +1
    m_top = (r >= W).astype(jnp.float32)          # valid source for dy = -1
    m_bot = (r < HW - W).astype(jnp.float32)      # valid source for dy = +1

    acc_ref[...] = jnp.zeros_like(acc_ref)
    k = 0
    for dy in (-1, 0, 1):
        for dx in (-1, 0, 1):
            off = dy * W + dx
            tap = h1 if off == 0 else pltpu.roll(h1, shift=(-off) % HW, axis=0)
            m = None
            if dy < 0:
                m = m_top
            elif dy > 0:
                m = m_bot
            if dx < 0:
                m = m_left if m is None else m * m_left
            elif dx > 0:
                m = m_right if m is None else m * m_right
            if m is not None:
                tap = tap * m
            acc_ref[...] += jnp.dot(tap.astype(jnp.bfloat16), w2_ref[k],
                                    preferred_element_type=jnp.float32)
            k += 1

    h2 = acc_ref[...]
    h2p_ref[0] = h2.astype(jnp.bfloat16)
    s2_ref[0] = jnp.sum(h2, axis=0, keepdims=True)
    q2_ref[0] = jnp.sum(h2 * h2, axis=0, keepdims=True)


def _conv3_stats_kernel(h2p_ref, scale2_ref, shift2_ref, w3_ref, s3_ref, q3_ref):
    """bn2 + relu + 1x1 conv3 -> BN3 partial statistics (h3 is recomputed later)."""
    h2 = h2p_ref[...].astype(jnp.float32) * scale2_ref[...] + shift2_ref[...]
    h2 = jnp.maximum(h2, 0.0).astype(jnp.bfloat16)
    h3 = jnp.dot(h2, w3_ref[...], preferred_element_type=jnp.float32)
    s3_ref[0] = jnp.sum(h3, axis=0, keepdims=True)
    q3_ref[0] = jnp.sum(h3 * h3, axis=0, keepdims=True)


def _final_kernel(h2p_ref, x_ref, scale2_ref, shift2_ref, shift3_ref, w3s_ref,
                  o_ref):
    """bn2 + relu + conv3 (scale3 pre-folded into w3) + shift3 + residual + relu."""
    h2 = h2p_ref[...].astype(jnp.float32) * scale2_ref[...] + shift2_ref[...]
    h2 = jnp.maximum(h2, 0.0).astype(jnp.bfloat16)
    h3 = jnp.dot(h2, w3s_ref[...], preferred_element_type=jnp.float32)
    h3 = h3 + shift3_ref[...]
    o_ref[...] = jnp.maximum(h3 + x_ref[...], 0.0).astype(o_ref.dtype)
    # TODO(synk): the PyTorch forward's `print('------------')` side effect is
    # intentionally not reproduced inside the kernel.


# --------------------------------------------------------------------------- #
# Wrapper
# --------------------------------------------------------------------------- #
def _bn_affine(part_sum, part_sq, gamma, beta, count, eps):
    """Fold training-mode batch stats (biased var) + BN affine into scale/shift.
    TODO(synk): one-pass E[x^2]-E[x]^2 can cancel for |mean| >> std at huge R;
    switch to a shifted two-pass reduction if tolerance is ever tightened."""
    mean = jnp.sum(part_sum, axis=(0, 1)) / count
    var = jnp.sum(part_sq, axis=(0, 1)) / count - mean * mean
    inv = lax.rsqrt(var + eps)
    scale = gamma * inv
    shift = beta - mean * scale
    return (scale.reshape(1, -1).astype(jnp.float32),
            shift.reshape(1, -1).astype(jnp.float32))


def bottleneck_forward_nhwc(x_nhwc, w1_pt, w2_pt, w3_pt,
                            g1, b1, g2, b2, g3, b3, eps=1e-5):
    """Channels-last forward.  x_nhwc: [N, H, W, Cin] float32 -> [N, H, W, Cout]."""
    N, H, W, Cin = x_nhwc.shape
    Cp = w1_pt.shape[0]
    Cout = w3_pt.shape[0]
    assert Cout == Cin, "downsample=None requires inplanes == planes * 4"
    HW = H * W
    R = N * HW
    TILE_R = _pick_tile_r(R)
    G = R // TILE_R

    x_rows = x_nhwc.reshape(R, Cin)

    # PyTorch OIHW conv weights -> bf16 matmul layouts.
    w1 = jnp.transpose(w1_pt.reshape(Cp, Cin), (1, 0)).astype(jnp.bfloat16)    # [Cin, Cp]
    # [co, ci, ky, kx] -> [ky*kx, ci, co]; tap k = (dy+1)*3 + (dx+1)
    w2 = jnp.transpose(w2_pt, (2, 3, 1, 0)).reshape(9, Cp, Cp).astype(jnp.bfloat16)
    w3_f32 = jnp.transpose(w3_pt.reshape(Cout, Cp), (1, 0))                     # [Cp, Cout]
    w3 = w3_f32.astype(jnp.bfloat16)

    def row_spec(C):                     # flattened row tile (stages 1/3/4)
        return pl.BlockSpec((TILE_R, C), lambda i: (i, 0))

    def img_spec(C):                     # whole image per step (stage 2 halo)
        return pl.BlockSpec((1, HW, C), lambda n: (n, 0, 0))

    def rep_spec(shape):                 # small resident parameter
        return pl.BlockSpec(shape, lambda i: (0,) * len(shape))

    def stat_spec(C):                    # per-step partial statistics
        return pl.BlockSpec((1, 1, C), lambda i: (i, 0, 0))

    # ---- stage 1: conv1 + BN1 stats (row-tiled) ----------------------------
    h1p, s1, q1 = pl.pallas_call(
        _conv1_stats_kernel,
        grid=(G,),
        in_specs=[row_spec(Cin), rep_spec((Cin, Cp))],
        out_specs=(row_spec(Cp), stat_spec(Cp), stat_spec(Cp)),
        out_shape=(jax.ShapeDtypeStruct((R, Cp), jnp.bfloat16),
                   jax.ShapeDtypeStruct((G, 1, Cp), jnp.float32),
                   jax.ShapeDtypeStruct((G, 1, Cp), jnp.float32)),
        compiler_params=_COMPILER_PARAMS,
    )(x_rows, w1)
    scale1, shift1 = _bn_affine(s1, q1, g1, b1, R, eps)

    # ---- stage 2: bn1 + relu + 3x3 conv2 + BN2 stats (per image) -----------
    h2p, s2, q2 = pl.pallas_call(
        functools.partial(_conv2_kernel, HW, W, Cp),
        grid=(N,),
        in_specs=[img_spec(Cp), rep_spec((1, Cp)), rep_spec((1, Cp)),
                  rep_spec((9, Cp, Cp))],
        out_specs=(img_spec(Cp), stat_spec(Cp), stat_spec(Cp)),
        out_shape=(jax.ShapeDtypeStruct((N, HW, Cp), jnp.bfloat16),
                   jax.ShapeDtypeStruct((N, 1, Cp), jnp.float32),
                   jax.ShapeDtypeStruct((N, 1, Cp), jnp.float32)),
        scratch_shapes=[pltpu.VMEM((HW, Cp), jnp.float32)],   # conv2 f32 accumulator
        compiler_params=_COMPILER_PARAMS,
    )(h1p.reshape(N, HW, Cp), scale1, shift1, w2)
    scale2, shift2 = _bn_affine(s2, q2, g2, b2, R, eps)

    h2p_rows = h2p.reshape(R, Cp)

    # ---- stage 3: bn2 + relu + conv3 -> BN3 stats (row-tiled) --------------
    s3, q3 = pl.pallas_call(
        _conv3_stats_kernel,
        grid=(G,),
        in_specs=[row_spec(Cp), rep_spec((1, Cp)), rep_spec((1, Cp)),
                  rep_spec((Cp, Cout))],
        out_specs=(stat_spec(Cout), stat_spec(Cout)),
        out_shape=(jax.ShapeDtypeStruct((G, 1, Cout), jnp.float32),
                   jax.ShapeDtypeStruct((G, 1, Cout), jnp.float32)),
        compiler_params=_COMPILER_PARAMS,
    )(h2p_rows, scale2, shift2, w3)
    scale3, shift3 = _bn_affine(s3, q3, g3, b3, R, eps)

    # Fold scale3 into w3 (tiny XLA op) so stage 4 skips a [rows, Cout] multiply.
    w3s = (w3_f32 * scale3).astype(jnp.bfloat16)

    # ---- stage 4: bn2 + relu + conv3 + bn3 + residual + relu (row-tiled) ---
    out = pl.pallas_call(
        _final_kernel,
        grid=(G,),
        in_specs=[row_spec(Cp), row_spec(Cin), rep_spec((1, Cp)), rep_spec((1, Cp)),
                  rep_spec((1, Cout)), rep_spec((Cp, Cout))],
        out_specs=row_spec(Cout),
        out_shape=jax.ShapeDtypeStruct((R, Cout), jnp.float32),
        compiler_params=_COMPILER_PARAMS,
    )(h2p_rows, x_rows, scale2, shift2, shift3, w3s)

    # TODO(synk): emit bf16 output here if the downstream consumer allows it
    # (halves the stage-4 HBM write on the memory-bound generations).
    return out.reshape(N, H, W, Cout)


@jax.jit
def bottleneck_forward(x_nchw, w1_pt, w2_pt, w3_pt,
                       g1, b1, g2, b2, g3, b3, eps=1e-5):
    """NCHW (PyTorch layout) wrapper.
    TODO(synk): a channels-last caller should use bottleneck_forward_nhwc
    directly and skip the two extra HBM transpose passes below."""
    out_nhwc = bottleneck_forward_nhwc(
        jnp.transpose(x_nchw, (0, 2, 3, 1)), w1_pt, w2_pt, w3_pt,
        g1, b1, g2, b2, g3, b3, eps)
    return jnp.transpose(out_nhwc, (0, 3, 1, 2))


# --------------------------------------------------------------------------- #
# Pure-JAX (XLA conv, f32) reference of the same forward, for verification.
# --------------------------------------------------------------------------- #
def _reference_forward(x, w1_pt, w2_pt, w3_pt, g1, b1, g2, b2, g3, b3, eps=1e-5):
    def conv(v, w, pad):
        return lax.conv_general_dilated(
            v, w, window_strides=(1, 1), padding=[(pad, pad), (pad, pad)],
            dimension_numbers=("NCHW", "OIHW", "NCHW"))

    def bn(v, g, b):
        mean = jnp.mean(v, axis=(0, 2, 3), keepdims=True)
        var = jnp.mean((v - mean) ** 2, axis=(0, 2, 3), keepdims=True)
        return ((v - mean) / jnp.sqrt(var + eps)) * g.reshape(1, -1, 1, 1) \
            + b.reshape(1, -1, 1, 1)

    out = jax.nn.relu(bn(conv(x, w1_pt, 0), g1, b1))
    out = jax.nn.relu(bn(conv(out, w2_pt, 1), g2, b2))
    out = bn(conv(out, w3_pt, 0), g3, b3)
    return jax.nn.relu(out + x)


if __name__ == "__main__":
    # Default Bottleneck args: stride=1, downsample=None, dilation=1
    # -> residual add requires inplanes == planes * expansion(4).
    N, inplanes, planes, H, W = 2, 32, 8, 16, 16
    Cout = planes * 4  # == inplanes

    keys = jax.random.split(jax.random.PRNGKey(0), 10)
    x = jax.random.normal(keys[0], (N, inplanes, H, W), jnp.float32)

    # deterministic synthetic parameters (PyTorch weight layouts)
    w1_pt = 0.1 * jax.random.normal(keys[1], (planes, inplanes, 1, 1), jnp.float32)
    w2_pt = 0.1 * jax.random.normal(keys[2], (planes, planes, 3, 3), jnp.float32)
    w3_pt = 0.1 * jax.random.normal(keys[3], (Cout, planes, 1, 1), jnp.float32)
    g1 = 1.0 + 0.1 * jax.random.normal(keys[4], (planes,), jnp.float32)
    b1 = 0.1 * jax.random.normal(keys[5], (planes,), jnp.float32)
    g2 = 1.0 + 0.1 * jax.random.normal(keys[6], (planes,), jnp.float32)
    b2 = 0.1 * jax.random.normal(keys[7], (planes,), jnp.float32)
    g3 = 1.0 + 0.1 * jax.random.normal(keys[8], (Cout,), jnp.float32)
    b3 = 0.1 * jax.random.normal(keys[9], (Cout,), jnp.float32)

    out = bottleneck_forward(x, w1_pt, w2_pt, w3_pt, g1, b1, g2, b2, g3, b3)
    out = jax.block_until_ready(out)
    assert out.shape == (N, Cout, H, W)

    ref = _reference_forward(x, w1_pt, w2_pt, w3_pt, g1, b1, g2, b2, g3, b3)
    ref = jax.block_until_ready(ref)
    err = jnp.max(jnp.abs(out - ref))
    # bf16 MXU operands + bf16-staged intermediates -> tolerance loosened vs f32 ref.
    assert jnp.allclose(out, ref, atol=5e-2, rtol=5e-2), f"max abs err = {err}"

    print("KERNEL_OK")
</pallas_src>

<mosaic_0001>
module attributes {stable_mosaic.version = 11 : i64} {
  func.func @_conv1_stats_kernel(%arg0: i32, %arg1: memref<512x32xf32, #tpu.memory_space<vmem>>, %arg2: memref<32x8xbf16, #tpu.memory_space<vmem>>, %arg3: memref<512x8xbf16, #tpu.memory_space<vmem>>, %arg4: memref<1x1x8xf32, #tpu.memory_space<vmem>>, %arg5: memref<1x1x8xf32, #tpu.memory_space<vmem>>) attributes {dimension_semantics = [#tpu.dimension_semantics<parallel>], iteration_bounds = array<i64: 1>, scalar_prefetch = 0 : i64, scratch_operands = 0 : i64, tpu.core_type = #tpu.core_type<tc>, window_params = [{transform_indices = @transform_0, window_bounds = array<i64: 512, 32>}, {pipeline_mode = #tpu.pipeline_mode<synchronous>, transform_indices = @transform_1, window_bounds = array<i64: 32, 8>}, {transform_indices = @transform_2, window_bounds = array<i64: 512, 8>}, {transform_indices = @transform_3, window_bounds = array<i64: 1, 1, 8>}, {transform_indices = @transform_4, window_bounds = array<i64: 1, 1, 8>}]} {
    %c0 = arith.constant 0 : index
    %c0_0 = arith.constant 0 : index
    %0 = vector.load %arg1[%c0, %c0_0] : memref<512x32xf32, #tpu.memory_space<vmem>>, vector<512x32xf32>
    %1 = arith.truncf %0 : vector<512x32xf32> to vector<512x32xbf16>
    %c0_1 = arith.constant 0 : index
    %c0_2 = arith.constant 0 : index
    %2 = vector.load %arg2[%c0_1, %c0_2] : memref<32x8xbf16, #tpu.memory_space<vmem>>, vector<32x8xbf16>
    %cst = arith.constant dense<0.000000e+00> : vector<512x8xf32>
    %3 = tpu.matmul %1, %2, %cst {dimension_numbers = #tpu.dot_dimension_numbers<[1], [0], [0], [1], [0, 0, 1, 1], [], []>} : vector<512x32xbf16>, vector<32x8xbf16>, vector<512x8xf32> -> vector<512x8xf32>
    %4 = arith.truncf %3 : vector<512x8xf32> to vector<512x8xbf16>
    %c0_3 = arith.constant 0 : index
    %c0_4 = arith.constant 0 : index
    %5 = vector.load %arg3[%c0_3, %c0_4] : memref<512x8xbf16, #tpu.memory_space<vmem>>, vector<512x8xbf16>
    tpu.vector_store %arg3[%c0_3, %c0_4], %4 {strides = array<i32>} : memref<512x8xbf16, #tpu.memory_space<vmem>>, vector<512x8xbf16>,
    %cst_5 = arith.constant dense<0.000000e+00> : vector<8xf32>
    %6 = vector.multi_reduction <add>, %3, %cst_5 [0] : vector<512x8xf32> to vector<8xf32>
    %7 = vector.shape_cast %6 : vector<8xf32> to vector<1x8xf32>
    %c0_6 = arith.constant 0 : index
    %c0_7 = arith.constant 0 : index
    %c0_8 = arith.constant 0 : index
    %8 = vector.load %arg4[%c0_6, %c0_7, %c0_8] : memref<1x1x8xf32, #tpu.memory_space<vmem>>, vector<1x1x8xf32>
    %9 = vector.shape_cast %8 : vector<1x1x8xf32> to vector<1x8xf32>
    %10 = vector.shape_cast %7 : vector<1x8xf32> to vector<1x1x8xf32>
    tpu.vector_store %arg4[%c0_6, %c0_7, %c0_8], %10 {strides = array<i32>} : memref<1x1x8xf32, #tpu.memory_space<vmem>>, vector<1x1x8xf32>,
    %11 = arith.mulf %3, %3 : vector<512x8xf32>
    %cst_9 = arith.constant dense<0.000000e+00> : vector<8xf32>
    %12 = vector.multi_reduction <add>, %11, %cst_9 [0] : vector<512x8xf32> to vector<8xf32>
    %13 = vector.shape_cast %12 : vector<8xf32> to vector<1x8xf32>
    %c0_10 = arith.constant 0 : index
    %c0_11 = arith.constant 0 : index
    %c0_12 = arith.constant 0 : index
    %14 = vector.load %arg5[%c0_10, %c0_11, %c0_12] : memref<1x1x8xf32, #tpu.memory_space<vmem>>, vector<1x1x8xf32>
    %15 = vector.shape_cast %14 : vector<1x1x8xf32> to vector<1x8xf32>
    %16 = vector.shape_cast %13 : vector<1x8xf32> to vector<1x1x8xf32>
    tpu.vector_store %arg5[%c0_10, %c0_11, %c0_12], %16 {strides = array<i32>} : memref<1x1x8xf32, #tpu.memory_space<vmem>>, vector<1x1x8xf32>,
    return
  }
  func.func @transform_0(%arg0: i32) -> (i32, i32) {
    %c0_i32 = arith.constant 0 : i32
    %c0_i32_0 = arith.constant 0 : i32
    return %arg0, %c0_i32 : i32, i32
  }
  func.func @transform_1(%arg0: i32) -> (i32, i32) {
    %c0_i32 = arith.constant 0 : i32
    %c0_i32_0 = arith.constant 0 : i32
    %c0_i32_1 = arith.constant 0 : i32
    return %c0_i32, %c0_i32_0 : i32, i32
  }
  func.func @transform_2(%arg0: i32) -> (i32, i32) {
    %c0_i32 = arith.constant 0 : i32
    %c0_i32_0 = arith.constant 0 : i32
    return %arg0, %c0_i32 : i32, i32
  }
  func.func @transform_3(%arg0: i32) -> (i32, i32, i32) {
    %c0_i32 = arith.constant 0 : i32
    %c0_i32_0 = arith.constant 0 : i32
    %c0_i32_1 = arith.constant 0 : i32
    return %arg0, %c0_i32, %c0_i32_0 : i32, i32, i32
  }
  func.func @transform_4(%arg0: i32) -> (i32, i32, i32) {
    %c0_i32 = arith.constant 0 : i32
    %c0_i32_0 = arith.constant 0 : i32
    %c0_i32_1 = arith.constant 0 : i32
    return %arg0, %c0_i32, %c0_i32_0 : i32, i32, i32
  }
}

module attributes {stable_mosaic.version = 11 : i64} {
  func.func @_conv2_kernel(%arg0: i32, %arg1: memref<1x256x8xbf16, #tpu.memory_space<vmem>>, %arg2: memref<1x8xf32, #tpu.memory_space<vmem>>, %arg3: memref<1x8xf32, #tpu.memory_space<vmem>>, %arg4: memref<9x8x8xbf16, #tpu.memory_space<vmem>>, %arg5: memref<1x256x8xbf16, #tpu.memory_space<vmem>>, %arg6: memref<1x1x8xf32, #tpu.memory_space<vmem>>, %arg7: memref<1x1x8xf32, #tpu.memory_space<vmem>>, %arg8: memref<256x8xf32, #tpu.memory_space<vmem>>) attributes {dimension_semantics = [#tpu.dimension_semantics<parallel>], iteration_bounds = array<i64: 2>, scalar_prefetch = 0 : i64, scratch_operands = 1 : i64, tpu.core_type = #tpu.core_type<tc>, window_params = [{transform_indices = @transform_0, window_bounds = array<i64: 1, 256, 8>}, {pipeline_mode = #tpu.pipeline_mode<synchronous>, transform_indices = @transform_1, window_bounds = array<i64: 1, 8>}, {pipeline_mode = #tpu.pipeline_mode<synchronous>, transform_indices = @transform_2, window_bounds = array<i64: 1, 8>}, {pipeline_mode = #tpu.pipeline_mode<synchronous>, transform_indices = @transform_3, window_bounds = array<i64: 9, 8, 8>}, {transform_indices = @transform_4, window_bounds = array<i64: 1, 256, 8>}, {transform_indices = @transform_5, window_bounds = array<i64: 1, 1, 8>}, {transform_indices = @transform_6, window_bounds = array<i64: 1, 1, 8>}]} {
    %c0 = arith.constant 0 : index
    %c0_0 = arith.constant 0 : index
    %c0_1 = arith.constant 0 : index
    %0 = vector.load %arg1[%c0, %c0_0, %c0_1] : memref<1x256x8xbf16, #tpu.memory_space<vmem>>, vector<1x256x8xbf16>
    %1 = vector.shape_cast %0 : vector<1x256x8xbf16> to vector<256x8xbf16>
    %2 = arith.extf %1 : vector<256x8xbf16> to vector<256x8xf32>
    %c0_2 = arith.constant 0 : index
    %c0_3 = arith.constant 0 : index
    %3 = vector.load %arg2[%c0_2, %c0_3] : memref<1x8xf32, #tpu.memory_space<vmem>>, vector<1x8xf32>
    %4 = vector.broadcast %3 : vector<1x8xf32> to vector<256x8xf32>
    %5 = arith.mulf %2, %4 : vector<256x8xf32>
    %c0_4 = arith.constant 0 : index
    %c0_5 = arith.constant 0 : index
    %6 = vector.load %arg3[%c0_4, %c0_5] : memref<1x8xf32, #tpu.memory_space<vmem>>, vector<1x8xf32>
    %7 = vector.broadcast %6 : vector<1x8xf32> to vector<256x8xf32>
    %8 = arith.addf %5, %7 : vector<256x8xf32>
    %cst = arith.constant 0.000000e+00 : f32
    %9 = vector.broadcast %cst : f32 to vector<256x8xf32>
    %10 = arith.maximumf %8, %9 : vector<256x8xf32>
    %11 = tpu.iota {dimensions = array<i32: 0>} : vector<256x1xi32>
    %c16_i32 = arith.constant 16 : i32
    %c0_i32 = arith.constant 0 : i32
    %12 = arith.cmpi eq, %c16_i32, %c0_i32 : i32
    %c1_i32 = arith.constant 1 : i32
    %13 = arith.select %12, %c1_i32, %c16_i32 : i32
    %14 = vector.broadcast %13 : i32 to vector<256x1xi32>
    %15 = arith.remsi %11, %14 : vector<256x1xi32>
    %c0_i32_6 = arith.constant 0 : i32
    %16 = vector.broadcast %c0_i32_6 : i32 to vector<256x1xi32>
    %17 = arith.cmpi ne, %15, %16 : vector<256x1xi32>
    %c0_i32_7 = arith.constant 0 : i32
    %18 = vector.broadcast %c0_i32_7 : i32 to vector<256x1xi32>
    %19 = arith.cmpi slt, %15, %18 : vector<256x1xi32>
    %c0_i32_8 = arith.constant 0 : i32
    %20 = arith.cmpi slt, %13, %c0_i32_8 : i32
    %21 = vector.broadcast %20 : i1 to vector<256x1xi1>
    %22 = vector.broadcast %21 : vector<256x1xi1> to vector<256x1xi1>
    %23 = arith.xori %19, %22 : vector<256x1xi1>
    %24 = arith.andi %23, %17 : vector<256x1xi1>
    %25 = vector.broadcast %13 : i32 to vector<256x1xi32>
    %26 = arith.addi %15, %25 : vector<256x1xi32>
    %27 = arith.select %24, %26, %15 : vector<256x1xi1>, vector<256x1xi32>
    %c0_i32_9 = arith.constant 0 : i32
    %28 = vector.broadcast %c0_i32_9 : i32 to vector<256x1xi32>
    %29 = arith.cmpi sgt, %27, %28 : vector<256x1xi32>
    %30 = arith.extui %29 : vector<256x1xi1> to vector<256x1xi32>
    %31 = arith.sitofp %30 : vector<256x1xi32> to vector<256x1xf32>
    %c15_i32 = arith.constant 15 : i32
    %32 = vector.broadcast %c15_i32 : i32 to vector<256x1xi32>
    %33 = arith.cmpi slt, %27, %32 : vector<256x1xi32>
    %34 = arith.extui %33 : vector<256x1xi1> to vector<256x1xi32>
    %35 = arith.sitofp %34 : vector<256x1xi32> to vector<256x1xf32>
    %c16_i32_10 = arith.constant 16 : i32
    %36 = vector.broadcast %c16_i32_10 : i32 to vector<256x1xi32>
    %37 = arith.cmpi sge, %11, %36 : vector<256x1xi32>
    %38 = arith.extui %37 : vector<256x1xi1> to vector<256x1xi32>
    %39 = arith.sitofp %38 : vector<256x1xi32> to vector<256x1xf32>
    %c240_i32 = arith.constant 240 : i32
    %40 = vector.broadcast %c240_i32 : i32 to vector<256x1xi32>
    %41 = arith.cmpi slt, %11, %40 : vector<256x1xi32>
    %42 = arith.extui %41 : vector<256x1xi1> to vector<256x1xi32>
    %43 = arith.sitofp %42 : vector<256x1xi32> to vector<256x1xf32>
    %cst_11 = arith.constant 0.000000e+00 : f32
    %44 = vector.broadcast %cst_11 : f32 to vector<256x8xf32>
    %c0_12 = arith.constant 0 : index
    %c0_13 = arith.constant 0 : index
    %45 = vector.load %arg8[%c0_12, %c0_13] : memref<256x8xf32, #tpu.memory_space<vmem>>, vector<256x8xf32>
    tpu.vector_store %arg8[%c0_12, %c0_13], %44 {strides = array<i32>} : memref<256x8xf32, #tpu.memory_space<vmem>>, vector<256x8xf32>,
    %c17_i32 = arith.constant 17 : i32
    %46 = tpu.dynamic_rotate %10 by %c17_i32 dim 0 : vector<256x8xf32>, i32 -> vector<256x8xf32>
    %47 = arith.mulf %39, %31 : vector<256x1xf32>
    %48 = vector.broadcast %47 : vector<256x1xf32> to vector<256x8xf32>
    %49 = arith.mulf %46, %48 : vector<256x8xf32>
    %c0_14 = arith.constant 0 : index
    %c0_15 = arith.constant 0 : index
    %50 = vector.load %arg8[%c0_14, %c0_15] : memref<256x8xf32, #tpu.memory_space<vmem>>, vector<256x8xf32>
    %51 = arith.truncf %49 : vector<256x8xf32> to vector<256x8xbf16>
    %c0_16 = arith.constant 0 : index
    %c0_17 = arith.constant 0 : index
    %c0_18 = arith.constant 0 : index
    %52 = vector.load %arg4[%c0_16, %c0_17, %c0_18] : memref<9x8x8xbf16, #tpu.memory_space<vmem>>, vector<1x8x8xbf16>
    %53 = vector.shape_cast %52 : vector<1x8x8xbf16> to vector<8x8xbf16>
    %cst_19 = arith.constant dense<0.000000e+00> : vector<256x8xf32>
    %54 = tpu.matmul %51, %53, %cst_19 {dimension_numbers = #tpu.dot_dimension_numbers<[1], [0], [0], [1], [0, 0, 1, 1], [], []>} : vector<256x8xbf16>, vector<8x8xbf16>, vector<256x8xf32> -> vector<256x8xf32>
    %55 = arith.addf %50, %54 : vector<256x8xf32>
    %c0_20 = arith.constant 0 : index
    %c0_21 = arith.constant 0 : index
    %56 = vector.load %arg8[%c0_20, %c0_21] : memref<256x8xf32, #tpu.memory_space<vmem>>, vector<256x8xf32>
    tpu.vector_store %arg8[%c0_20, %c0_21], %55 {strides = array<i32>} : memref<256x8xf32, #tpu.memory_space<vmem>>, vector<256x8xf32>,
    %c16_i32_22 = arith.constant 16 : i32
    %57 = tpu.dynamic_rotate %10 by %c16_i32_22 dim 0 : vector<256x8xf32>, i32 -> vector<256x8xf32>
    %58 = vector.broadcast %39 : vector<256x1xf32> to vector<256x8xf32>
    %59 = arith.mulf %57, %58 : vector<256x8xf32>
    %c0_23 = arith.constant 0 : index
    %c0_24 = arith.constant 0 : index
    %60 = vector.load %arg8[%c0_23, %c0_24] : memref<256x8xf32, #tpu.memory_space<vmem>>, vector<256x8xf32>
    %61 = arith.truncf %59 : vector<256x8xf32> to vector<256x8xbf16>
    %c1 = arith.constant 1 : index
    %c0_25 = arith.constant 0 : index
    %c0_26 = arith.constant 0 : index
    %62 = vector.load %arg4[%c1, %c0_25, %c0_26] : memref<9x8x8xbf16, #tpu.memory_space<vmem>>, vector<1x8x8xbf16>
    %63 = vector.shape_cast %62 : vector<1x8x8xbf16> to vector<8x8xbf16>
    %cst_27 = arith.constant dense<0.000000e+00> : vector<256x8xf32>
    %64 = tpu.matmul %61, %63, %cst_27 {dimension_numbers = #tpu.dot_dimension_numbers<[1], [0], [0], [1], [0, 0, 1, 1], [], []>} : vector<256x8xbf16>, vector<8x8xbf16>, vector<256x8xf32> -> vector<256x8xf32>
    %65 = arith.addf %60, %64 : vector<256x8xf32>
    %c0_28 = arith.constant 0 : index
    %c0_29 = arith.constant 0 : index
    %66 = vector.load %arg8[%c0_28, %c0_29] : memref<256x8xf32, #tpu.memory_space<vmem>>, vector<256x8xf32>
    tpu.vector_store %arg8[%c0_28, %c0_29], %65 {strides = array<i32>} : memref<256x8xf32, #tpu.memory_space<vmem>>, vector<256x8xf32>,
    %c15_i32_30 = arith.constant 15 : i32
    %67 = tpu.dynamic_rotate %10 by %c15_i32_30 dim 0 : vector<256x8xf32>, i32 -> vector<256x8xf32>
    %68 = arith.mulf %39, %35 : vector<256x1xf32>
    %69 = vector.broadcast %68 : vector<256x1xf32> to vector<256x8xf32>
    %70 = arith.mulf %67, %69 : vector<256x8xf32>
    %c0_31 = arith.constant 0 : index
    %c0_32 = arith.constant 0 : index
    %71 = vector.load %arg8[%c0_31, %c0_32] : memref<256x8xf32, #tpu.memory_space<vmem>>, vector<256x8xf32>
    %72 = arith.truncf %70 : vector<256x8xf32> to vector<256x8xbf16>
    %c2 = arith.constant 2 : index
    %c0_33 = arith.constant 0 : index
    %c0_34 = arith.constant 0 : index
    %73 = vector.load %arg4[%c2, %c0_33, %c0_34] : memref<9x8x8xbf16, #tpu.memory_space<vmem>>, vector<1x8x8xbf16>
    %74 = vector.shape_cast %73 : vector<1x8x8xbf16> to vector<8x8xbf16>
    %cst_35 = arith.constant dense<0.000000e+00> : vector<256x8xf32>
    %75 = tpu.matmul %72, %74, %cst_35 {dimension_numbers = #tpu.dot_dimension_numbers<[1], [0], [0], [1], [0, 0, 1, 1], [], []>} : vector<256x8xbf16>, vector<8x8xbf16>, vector<256x8xf32> -> vector<256x8xf32>
    %76 = arith.addf %71, %75 : vector<256x8xf32>
    %c0_36 = arith.constant 0 : index
    %c0_37 = arith.constant 0 : index
    %77 = vector.load %arg8[%c0_36, %c0_37] : memref<256x8xf32, #tpu.memory_space<vmem>>, vector<256x8xf32>
    tpu.vector_store %arg8[%c0_36, %c0_37], %76 {strides = array<i32>} : memref<256x8xf32, #tpu.memory_space<vmem>>, vector<256x8xf32>,
    %c1_i32_38 = arith.constant 1 : i32
    %78 = tpu.dynamic_rotate %10 by %c1_i32_38 dim 0 : vector<256x8xf32>, i32 -> vector<256x8xf32>
    %79 = vector.broadcast %31 : vector<256x1xf32> to vector<256x8xf32>
    %80 = arith.mulf %78, %79 : vector<256x8xf32>
    %c0_39 = arith.constant 0 : index
    %c0_40 = arith.constant 0 : index
    %81 = vector.load %arg8[%c0_39, %c0_40] : memref<256x8xf32, #tpu.memory_space<vmem>>, vector<256x8xf32>
    %82 = arith.truncf %80 : vector<256x8xf32> to vector<256x8xbf16>
    %c3 = arith.constant 3 : index
    %c0_41 = arith.constant 0 : index
    %c0_42 = arith.constant 0 : index
    %83 = vector.load %arg4[%c3, %c0_41, %c0_42] : memref<9x8x8xbf16, #tpu.memory_space<vmem>>, vector<1x8x8xbf16>
    %84 = vector.shape_cast %83 : vector<1x8x8xbf16> to vector<8x8xbf16>
    %cst_43 = arith.constant dense<0.000000e+00> : vector<256x8xf32>
    %85 = tpu.matmul %82, %84, %cst_43 {dimension_numbers = #tpu.dot_dimension_numbers<[1], [0], [0], [1], [0, 0, 1, 1], [], []>} : vector<256x8xbf16>, vector<8x8xbf16>, vector<256x8xf32> -> vector<256x8xf32>
    %86 = arith.addf %81, %85 : vector<256x8xf32>
    %c0_44 = arith.constant 0 : index
    %c0_45 = arith.constant 0 : index
    %87 = vector.load %arg8[%c0_44, %c0_45] : memref<256x8xf32, #tpu.memory_space<vmem>>, vector<256x8xf32>
    tpu.vector_store %arg8[%c0_44, %c0_45], %86 {strides = array<i32>} : memref<256x8xf32, #tpu.memory_space<vmem>>, vector<256x8xf32>,
    %c0_46 = arith.constant 0 : index
    %c0_47 = arith.constant 0 : index
    %88 = vector.load %arg8[%c0_46, %c0_47] : memref<256x8xf32, #tpu.memory_space<vmem>>, vector<256x8xf32>
    %89 = arith.truncf %10 : vector<256x8xf32> to vector<256x8xbf16>
    %c4 = arith.constant 4 : index
    %c0_48 = arith.constant 0 : index
    %c0_49 = arith.constant 0 : index
    %90 = vector.load %arg4[%c4, %c0_48, %c0_49] : memref<9x8x8xbf16, #tpu.memory_space<vmem>>, vector<1x8x8xbf16>
    %91 = vector.shape_cast %90 : vector<1x8x8xbf16> to vector<8x8xbf16>
    %cst_50 = arith.constant dense<0.000000e+00> : vector<256x8xf32>
    %92 = tpu.matmul %89, %91, %cst_50 {dimension_numbers = #tpu.dot_dimension_numbers<[1], [0], [0], [1], [0, 0, 1, 1], [], []>} : vector<256x8xbf16>, vector<8x8xbf16>, vector<256x8xf32> -> vector<256x8xf32>
    %93 = arith.addf %88, %92 : vector<256x8xf32>
    %c0_51 = arith.constant 0 : index
    %c0_52 = arith.constant 0 : index
    %94 = vector.load %arg8[%c0_51, %c0_52] : memref<256x8xf32, #tpu.memory_space<vmem>>, vector<256x8xf32>
    tpu.vector_store %arg8[%c0_51, %c0_52], %93 {strides = array<i32>} : memref<256x8xf32, #tpu.memory_space<vmem>>, vector<256x8xf32>,
    %c255_i32 = arith.constant 255 : i32
    %95 = tpu.dynamic_rotate %10 by %c255_i32 dim 0 : vector<256x8xf32>, i32 -> vector<256x8xf32>
    %96 = vector.broadcast %35 : vector<256x1xf32> to vector<256x8xf32>
    %97 = arith.mulf %95, %96 : vector<256x8xf32>
    %c0_53 = arith.constant 0 : index
    %c0_54 = arith.constant 0 : index
    %98 = vector.load %arg8[%c0_53, %c0_54] : memref<256x8xf32, #tpu.memory_space<vmem>>, vector<256x8xf32>
    %99 = arith.truncf %97 : vector<256x8xf32> to vector<256x8xbf16>
    %c5 = arith.constant 5 : index
    %c0_55 = arith.constant 0 : index
    %c0_56 = arith.constant 0 : index
    %100 = vector.load %arg4[%c5, %c0_55, %c0_56] : memref<9x8x8xbf16, #tpu.memory_space<vmem>>, vector<1x8x8xbf16>
    %101 = vector.shape_cast %100 : vector<1x8x8xbf16> to vector<8x8xbf16>
    %cst_57 = arith.constant dense<0.000000e+00> : vector<256x8xf32>
    %102 = tpu.matmul %99, %101, %cst_57 {dimension_numbers = #tpu.dot_dimension_numbers<[1], [0], [0], [1], [0, 0, 1, 1], [], []>} : vector<256x8xbf16>, vector<8x8xbf16>, vector<256x8xf32> -> vector<256x8xf32>
    %103 = arith.addf %98, %102 : vector<256x8xf32>
    %c0_58 = arith.constant 0 : index
    %c0_59 = arith.constant 0 : index
    %104 = vector.load %arg8[%c0_58, %c0_59] : memref<256x8xf32, #tpu.memory_space<vmem>>, vector<256x8xf32>
    tpu.vector_store %arg8[%c0_58, %c0_59], %103 {strides = array<i32>} : memref<256x8xf32, #tpu.memory_space<vmem>>, vector<256x8xf32>,
    %c241_i32 = arith.constant 241 : i32
    %105 = tpu.dynamic_rotate %10 by %c241_i32 dim 0 : vector<256x8xf32>, i32 -> vector<256x8xf32>
    %106 = arith.mulf %43, %31 : vector<256x1xf32>
    %107 = vector.broadcast %106 : vector<256x1xf32> to vector<256x8xf32>
    %108 = arith.mulf %105, %107 : vector<256x8xf32>
    %c0_60 = arith.constant 0 : index
    %c0_61 = arith.constant 0 : index
    %109 = vector.load %arg8[%c0_60, %c0_61] : memref<256x8xf32, #tpu.memory_space<vmem>>, vector<256x8xf32>
    %110 = arith.truncf %108 : vector<256x8xf32> to vector<256x8xbf16>
    %c6 = arith.constant 6 : index
    %c0_62 = arith.constant 0 : index
    %c0_63 = arith.constant 0 : index
    %111 = vector.load %arg4[%c6, %c0_62, %c0_63] : memref<9x8x8xbf16, #tpu.memory_space<vmem>>, vector<1x8x8xbf16>
    %112 = vector.shape_cast %111 : vector<1x8x8xbf16> to vector<8x8xbf16>
    %cst_64 = arith.constant dense<0.000000e+00> : vector<256x8xf32>
    %113 = tpu.matmul %110, %112, %cst_64 {dimension_numbers = #tpu.dot_dimension_numbers<[1], [0], [0], [1], [0, 0, 1, 1], [], []>} : vector<256x8xbf16>, vector<8x8xbf16>, vector<256x8xf32> -> vector<256x8xf32>
    %114 = arith.addf %109, %113 : vector<256x8xf32>
    %c0_65 = arith.constant 0 : index
    %c0_66 = arith.constant 0 : index
    %115 = vector.load %arg8[%c0_65, %c0_66] : memref<256x8xf32, #tpu.memory_space<vmem>>, vector<256x8xf32>
    tpu.vector_store %arg8[%c0_65, %c0_66], %114 {strides = array<i32>} : memref<256x8xf32, #tpu.memory_space<vmem>>, vector<256x8xf32>,
    %c240_i32_67 = arith.constant 240 : i32
    %116 = tpu.dynamic_rotate %10 by %c240_i32_67 dim 0 : vector<256x8xf32>, i32 -> vector<256x8xf32>
    %117 = vector.broadcast %43 : vector<256x1xf32> to vector<256x8xf32>
    %118 = arith.mulf %116, %117 : vector<256x8xf32>
    %c0_68 = arith.constant 0 : index
    %c0_69 = arith.constant 0 : index
    %119 = vector.load %arg8[%c0_68, %c0_69] : memref<256x8xf32, #tpu.memory_space<vmem>>, vector<256x8xf32>
    %120 = arith.truncf %118 : vector<256x8xf32> to vector<256x8xbf16>
    %c7 = arith.constant 7 : index
    %c0_70 = arith.constant 0 : index
    %c0_71 = arith.constant 0 : index
    %121 = vector.load %arg4[%c7, %c0_70, %c0_71] : memref<9x8x8xbf16, #tpu.memory_space<vmem>>, vector<1x8x8xbf16>
    %122 = vector.shape_cast %121 : vector<1x8x8xbf16> to vector<8x8xbf16>
    %cst_72 = arith.constant dense<0.000000e+00> : vector<256x8xf32>
    %123 = tpu.matmul %120, %122, %cst_72 {dimension_numbers = #tpu.dot_dimension_numbers<[1], [0], [0], [1], [0, 0, 1, 1], [], []>} : vector<256x8xbf16>, vector<8x8xbf16>, vector<256x8xf32> -> vector<256x8xf32>
    %124 = arith.addf %119, %123 : vector<256x8xf32>
    %c0_73 = arith.constant 0 : index
    %c0_74 = arith.constant 0 : index
    %125 = vector.load %arg8[%c0_73, %c0_74] : memref<256x8xf32, #tpu.memory_space<vmem>>, vector<256x8xf32>
    tpu.vector_store %arg8[%c0_73, %c0_74], %124 {strides = array<i32>} : memref<256x8xf32, #tpu.memory_space<vmem>>, vector<256x8xf32>,
    %c239_i32 = arith.constant 239 : i32
    %126 = tpu.dynamic_rotate %10 by %c239_i32 dim 0 : vector<256x8xf32>, i32 -> vector<256x8xf32>
    %127 = arith.mulf %43, %35 : vector<256x1xf32>
    %128 = vector.broadcast %127 : vector<256x1xf32> to vector<256x8xf32>
    %129 = arith.mulf %126, %128 : vector<256x8xf32>
    %c0_75 = arith.constant 0 : index
    %c0_76 = arith.constant 0 : index
    %130 = vector.load %arg8[%c0_75, %c0_76] : memref<256x8xf32, #tpu.memory_space<vmem>>, vector<256x8xf32>
    %131 = arith.truncf %129 : vector<256x8xf32> to vector<256x8xbf16>
    %c8 = arith.constant 8 : index
    %c0_77 = arith.constant 0 : index
    %c0_78 = arith.constant 0 : index
    %132 = vector.load %arg4[%c8, %c0_77, %c0_78] : memref<9x8x8xbf16, #tpu.memory_space<vmem>>, vector<1x8x8xbf16>
    %133 = vector.shape_cast %132 : vector<1x8x8xbf16> to vector<8x8xbf16>
    %cst_79 = arith.constant dense<0.000000e+00> : vector<256x8xf32>
    %134 = tpu.matmul %131, %133, %cst_79 {dimension_numbers = #tpu.dot_dimension_numbers<[1], [0], [0], [1], [0, 0, 1, 1], [], []>} : vector<256x8xbf16>, vector<8x8xbf16>, vector<256x8xf32> -> vector<256x8xf32>
    %135 = arith.addf %130, %134 : vector<256x8xf32>
    %c0_80 = arith.constant 0 : index
    %c0_81 = arith.constant 0 : index
    %136 = vector.load %arg8[%c0_80, %c0_81] : memref<256x8xf32, #tpu.memory_space<vmem>>, vector<256x8xf32>
    tpu.vector_store %arg8[%c0_80, %c0_81], %135 {strides = array<i32>} : memref<256x8xf32, #tpu.memory_space<vmem>>, vector<256x8xf32>,
    %c0_82 = arith.constant 0 : index
    %c0_83 = arith.constant 0 : index
    %137 = vector.load %arg8[%c0_82, %c0_83] : memref<256x8xf32, #tpu.memory_space<vmem>>, vector<256x8xf32>
    %138 = arith.truncf %137 : vector<256x8xf32> to vector<256x8xbf16>
    %c0_84 = arith.constant 0 : index
    %c0_85 = arith.constant 0 : index
    %c0_86 = arith.constant 0 : index
    %139 = vector.load %arg5[%c0_84, %c0_85, %c0_86] : memref<1x256x8xbf16, #tpu.memory_space<vmem>>, vector<1x256x8xbf16>
    %140 = vector.shape_cast %139 : vector<1x256x8xbf16> to vector<256x8xbf16>
    %141 = vector.shape_cast %138 : vector<256x8xbf16> to vector<1x256x8xbf16>
    tpu.vector_store %arg5[%c0_84, %c0_85, %c0_86], %141 {strides = array<i32>} : memref<1x256x8xbf16, #tpu.memory_space<vmem>>, vector<1x256x8xbf16>,
    %cst_87 = arith.constant dense<0.000000e+00> : vector<8xf32>
    %142 = vector.multi_reduction <add>, %137, %cst_87 [0] : vector<256x8xf32> to vector<8xf32>
    %143 = vector.shape_cast %142 : vector<8xf32> to vector<1x8xf32>
    %c0_88 = arith.constant 0 : index
    %c0_89 = arith.constant 0 : index
    %c0_90 = arith.constant 0 : index
    %144 = vector.load %arg6[%c0_88, %c0_89, %c0_90] : memref<1x1x8xf32, #tpu.memory_space<vmem>>, vector<1x1x8xf32>
    %145 = vector.shape_cast %144 : vector<1x1x8xf32> to vector<1x8xf32>
    %146 = vector.shape_cast %143 : vector<1x8xf32> to vector<1x1x8xf32>
    tpu.vector_store %arg6[%c0_88, %c0_89, %c0_90], %146 {strides = array<i32>} : memref<1x1x8xf32, #tpu.memory_space<vmem>>, vector<1x1x8xf32>,
    %147 = arith.mulf %137, %137 : vector<256x8xf32>
    %cst_91 = arith.constant dense<0.000000e+00> : vector<8xf32>
    %148 = vector.multi_reduction <add>, %147, %cst_91 [0] : vector<256x8xf32> to vector<8xf32>
    %149 = vector.shape_cast %148 : vector<8xf32> to vector<1x8xf32>
    %c0_92 = arith.constant 0 : index
    %c0_93 = arith.constant 0 : index
    %c0_94 = arith.constant 0 : index
    %150 = vector.load %arg7[%c0_92, %c0_93, %c0_94] : memref<1x1x8xf32, #tpu.memory_space<vmem>>, vector<1x1x8xf32>
    %151 = vector.shape_cast %150 : vector<1x1x8xf32> to vector<1x8xf32>
    %152 = vector.shape_cast %149 : vector<1x8xf32> to vector<1x1x8xf32>
    tpu.vector_store %arg7[%c0_92, %c0_93, %c0_94], %152 {strides = array<i32>} : memref<1x1x8xf32, #tpu.memory_space<vmem>>, vector<1x1x8xf32>,
    return
  }
  func.func @transform_0(%arg0: i32) -> (i32, i32, i32) {
    %c0_i32 = arith.constant 0 : i32
    %c0_i32_0 = arith.constant 0 : i32
    %c0_i32_1 = arith.constant 0 : i32
    return %arg0, %c0_i32, %c0_i32_0 : i32, i32, i32
  }
  func.func @transform_1(%arg0: i32) -> (i32, i32) {
    %c0_i32 = arith.constant 0 : i32
    %c0_i32_0 = arith.constant 0 : i32
    %c0_i32_1 = arith.constant 0 : i32
    return %c0_i32, %c0_i32_0 : i32, i32
  }
  func.func @transform_2(%arg0: i32) -> (i32, i32) {
    %c0_i32 = arith.constant 0 : i32
    %c0_i32_0 = arith.constant 0 : i32
    %c0_i32_1 = arith.constant 0 : i32
    return %c0_i32, %c0_i32_0 : i32, i32
  }
  func.func @transform_3(%arg0: i32) -> (i32, i32, i32) {
    %c0_i32 = arith.constant 0 : i32
    %c0_i32_0 = arith.constant 0 : i32
    %c0_i32_1 = arith.constant 0 : i32
    %c0_i32_2 = arith.constant 0 : i32
    return %c0_i32, %c0_i32_0, %c0_i32_1 : i32, i32, i32
  }
  func.func @transform_4(%arg0: i32) -> (i32, i32, i32) {
    %c0_i32 = arith.constant 0 : i32
    %c0_i32_0 = arith.constant 0 : i32
    %c0_i32_1 = arith.constant 0 : i32
    return %arg0, %c0_i32, %c0_i32_0 : i32, i32, i32
  }
  func.func @transform_5(%arg0: i32) -> (i32, i32, i32) {
    %c0_i32 = arith.constant 0 : i32
    %c0_i32_0 = arith.constant 0 : i32
    %c0_i32_1 = arith.constant 0 : i32
    return %arg0, %c0_i32, %c0_i32_0 : i32, i32, i32
  }
  func.func @transform_6(%arg0: i32) -> (i32, i32, i32) {
    %c0_i32 = arith.constant 0 : i32
    %c0_i32_0 = arith.constant 0 : i32
    %c0_i32_1 = arith.constant 0 : i32
    return %arg0, %c0_i32, %c0_i32_0 : i32, i32, i32
  }
}

module attributes {stable_mosaic.version = 11 : i64} {
  func.func @_conv3_stats_kernel(%arg0: i32, %arg1: memref<512x8xbf16, #tpu.memory_space<vmem>>, %arg2: memref<1x8xf32, #tpu.memory_space<vmem>>, %arg3: memref<1x8xf32, #tpu.memory_space<vmem>>, %arg4: memref<8x32xbf16, #tpu.memory_space<vmem>>, %arg5: memref<1x1x32xf32, #tpu.memory_space<vmem>>, %arg6: memref<1x1x32xf32, #tpu.memory_space<vmem>>) attributes {dimension_semantics = [#tpu.dimension_semantics<parallel>], iteration_bounds = array<i64: 1>, scalar_prefetch = 0 : i64, scratch_operands = 0 : i64, tpu.core_type = #tpu.core_type<tc>, window_params = [{transform_indices = @transform_0, window_bounds = array<i64: 512, 8>}, {pipeline_mode = #tpu.pipeline_mode<synchronous>, transform_indices = @transform_1, window_bounds = array<i64: 1, 8>}, {pipeline_mode = #tpu.pipeline_mode<synchronous>, transform_indices = @transform_2, window_bounds = array<i64: 1, 8>}, {pipeline_mode = #tpu.pipeline_mode<synchronous>, transform_indices = @transform_3, window_bounds = array<i64: 8, 32>}, {transform_indices = @transform_4, window_bounds = array<i64: 1, 1, 32>}, {transform_indices = @transform_5, window_bounds = array<i64: 1, 1, 32>}]} {
    %c0 = arith.constant 0 : index
    %c0_0 = arith.constant 0 : index
    %0 = vector.load %arg1[%c0, %c0_0] : memref<512x8xbf16, #tpu.memory_space<vmem>>, vector<512x8xbf16>
    %1 = arith.extf %0 : vector<512x8xbf16> to vector<512x8xf32>
    %c0_1 = arith.constant 0 : index
    %c0_2 = arith.constant 0 : index
    %2 = vector.load %arg2[%c0_1, %c0_2] : memref<1x8xf32, #tpu.memory_space<vmem>>, vector<1x8xf32>
    %3 = vector.broadcast %2 : vector<1x8xf32> to vector<512x8xf32>
    %4 = arith.mulf %1, %3 : vector<512x8xf32>
    %c0_3 = arith.constant 0 : index
    %c0_4 = arith.constant 0 : index
    %5 = vector.load %arg3[%c0_3, %c0_4] : memref<1x8xf32, #tpu.memory_space<vmem>>, vector<1x8xf32>
    %6 = vector.broadcast %5 : vector<1x8xf32> to vector<512x8xf32>
    %7 = arith.addf %4, %6 : vector<512x8xf32>
    %cst = arith.constant 0.000000e+00 : f32
    %8 = vector.broadcast %cst : f32 to vector<512x8xf32>
    %9 = arith.maximumf %7, %8 : vector<512x8xf32>
    %10 = arith.truncf %9 : vector<512x8xf32> to vector<512x8xbf16>
    %c0_5 = arith.constant 0 : index
    %c0_6 = arith.constant 0 : index
    %11 = vector.load %arg4[%c0_5, %c0_6] : memref<8x32xbf16, #tpu.memory_space<vmem>>, vector<8x32xbf16>
    %cst_7 = arith.constant dense<0.000000e+00> : vector<512x32xf32>
    %12 = tpu.matmul %10, %11, %cst_7 {dimension_numbers = #tpu.dot_dimension_numbers<[1], [0], [0], [1], [0, 0, 1, 1], [], []>} : vector<512x8xbf16>, vector<8x32xbf16>, vector<512x32xf32> -> vector<512x32xf32>
    %cst_8 = arith.constant dense<0.000000e+00> : vector<32xf32>
    %13 = vector.multi_reduction <add>, %12, %cst_8 [0] : vector<512x32xf32> to vector<32xf32>
    %14 = vector.shape_cast %13 : vector<32xf32> to vector<1x32xf32>
    %c0_9 = arith.constant 0 : index
    %c0_10 = arith.constant 0 : index
    %c0_11 = arith.constant 0 : index
    %15 = vector.load %arg5[%c0_9, %c0_10, %c0_11] : memref<1x1x32xf32, #tpu.memory_space<vmem>>, vector<1x1x32xf32>
    %16 = vector.shape_cast %15 : vector<1x1x32xf32> to vector<1x32xf32>
    %17 = vector.shape_cast %14 : vector<1x32xf32> to vector<1x1x32xf32>
    tpu.vector_store %arg5[%c0_9, %c0_10, %c0_11], %17 {strides = array<i32>} : memref<1x1x32xf32, #tpu.memory_space<vmem>>, vector<1x1x32xf32>,
    %18 = arith.mulf %12, %12 : vector<512x32xf32>
    %cst_12 = arith.constant dense<0.000000e+00> : vector<32xf32>
    %19 = vector.multi_reduction <add>, %18, %cst_12 [0] : vector<512x32xf32> to vector<32xf32>
    %20 = vector.shape_cast %19 : vector<32xf32> to vector<1x32xf32>
    %c0_13 = arith.constant 0 : index
    %c0_14 = arith.constant 0 : index
    %c0_15 = arith.constant 0 : index
    %21 = vector.load %arg6[%c0_13, %c0_14, %c0_15] : memref<1x1x32xf32, #tpu.memory_space<vmem>>, vector<1x1x32xf32>
    %22 = vector.shape_cast %21 : vector<1x1x32xf32> to vector<1x32xf32>
    %23 = vector.shape_cast %20 : vector<1x32xf32> to vector<1x1x32xf32>
    tpu.vector_store %arg6[%c0_13, %c0_14, %c0_15], %23 {strides = array<i32>} : memref<1x1x32xf32, #tpu.memory_space<vmem>>, vector<1x1x32xf32>,
    return
  }
  func.func @transform_0(%arg0: i32) -> (i32, i32) {
    %c0_i32 = arith.constant 0 : i32
    %c0_i32_0 = arith.constant 0 : i32
    return %arg0, %c0_i32 : i32, i32
  }
  func.func @transform_1(%arg0: i32) -> (i32, i32) {
    %c0_i32 = arith.constant 0 : i32
    %c0_i32_0 = arith.constant 0 : i32
    %c0_i32_1 = arith.constant 0 : i32
    return %c0_i32, %c0_i32_0 : i32, i32
  }
  func.func @transform_2(%arg0: i32) -> (i32, i32) {
    %c0_i32 = arith.constant 0 : i32
    %c0_i32_0 = arith.constant 0 : i32
    %c0_i32_1 = arith.constant 0 : i32
    return %c0_i32, %c0_i32_0 : i32, i32
  }
  func.func @transform_3(%arg0: i32) -> (i32, i32) {
    %c0_i32 = arith.constant 0 : i32
    %c0_i32_0 = arith.constant 0 : i32
    %c0_i32_1 = arith.constant 0 : i32
    return %c0_i32, %c0_i32_0 : i32, i32
  }
  func.func @transform_4(%arg0: i32) -> (i32, i32, i32) {
    %c0_i32 = arith.constant 0 : i32
    %c0_i32_0 = arith.constant 0 : i32
    %c0_i32_1 = arith.constant 0 : i32
    return %arg0, %c0_i32, %c0_i32_0 : i32, i32, i32
  }
  func.func @transform_5(%arg0: i32) -> (i32, i32, i32) {
    %c0_i32 = arith.constant 0 : i32
    %c0_i32_0 = arith.constant 0 : i32
    %c0_i32_1 = arith.constant 0 : i32
    return %arg0, %c0_i32, %c0_i32_0 : i32, i32, i32
  }
}

module attributes {stable_mosaic.version = 11 : i64} {
  func.func @_final_kernel(%arg0: i32, %arg1: memref<512x8xbf16, #tpu.memory_space<vmem>>, %arg2: memref<512x32xf32, #tpu.memory_space<vmem>>, %arg3: memref<1x8xf32, #tpu.memory_space<vmem>>, %arg4: memref<1x8xf32, #tpu.memory_space<vmem>>, %arg5: memref<1x32xf32, #tpu.memory_space<vmem>>, %arg6: memref<8x32xbf16, #tpu.memory_space<vmem>>, %arg7: memref<512x32xf32, #tpu.memory_space<vmem>>) attributes {dimension_semantics = [#tpu.dimension_semantics<parallel>], iteration_bounds = array<i64: 1>, scalar_prefetch = 0 : i64, scratch_operands = 0 : i64, tpu.core_type = #tpu.core_type<tc>, window_params = [{transform_indices = @transform_0, window_bounds = array<i64: 512, 8>}, {transform_indices = @transform_1, window_bounds = array<i64: 512, 32>}, {pipeline_mode = #tpu.pipeline_mode<synchronous>, transform_indices = @transform_2, window_bounds = array<i64: 1, 8>}, {pipeline_mode = #tpu.pipeline_mode<synchronous>, transform_indices = @transform_3, window_bounds = array<i64: 1, 8>}, {pipeline_mode = #tpu.pipeline_mode<synchronous>, transform_indices = @transform_4, window_bounds = array<i64: 1, 32>}, {pipeline_mode = #tpu.pipeline_mode<synchronous>, transform_indices = @transform_5, window_bounds = array<i64: 8, 32>}, {transform_indices = @transform_6, window_bounds = array<i64: 512, 32>}]} {
    %c0 = arith.constant 0 : index
    %c0_0 = arith.constant 0 : index
    %0 = vector.load %arg1[%c0, %c0_0] : memref<512x8xbf16, #tpu.memory_space<vmem>>, vector<512x8xbf16>
    %1 = arith.extf %0 : vector<512x8xbf16> to vector<512x8xf32>
    %c0_1 = arith.constant 0 : index
    %c0_2 = arith.constant 0 : index
    %2 = vector.load %arg3[%c0_1, %c0_2] : memref<1x8xf32, #tpu.memory_space<vmem>>, vector<1x8xf32>
    %3 = vector.broadcast %2 : vector<1x8xf32> to vector<512x8xf32>
    %4 = arith.mulf %1, %3 : vector<512x8xf32>
    %c0_3 = arith.constant 0 : index
    %c0_4 = arith.constant 0 : index
    %5 = vector.load %arg4[%c0_3, %c0_4] : memref<1x8xf32, #tpu.memory_space<vmem>>, vector<1x8xf32>
    %6 = vector.broadcast %5 : vector<1x8xf32> to vector<512x8xf32>
    %7 = arith.addf %4, %6 : vector<512x8xf32>
    %cst = arith.constant 0.000000e+00 : f32
    %8 = vector.broadcast %cst : f32 to vector<512x8xf32>
    %9 = arith.maximumf %7, %8 : vector<512x8xf32>
    %10 = arith.truncf %9 : vector<512x8xf32> to vector<512x8xbf16>
    %c0_5 = arith.constant 0 : index
    %c0_6 = arith.constant 0 : index
    %11 = vector.load %arg6[%c0_5, %c0_6] : memref<8x32xbf16, #tpu.memory_space<vmem>>, vector<8x32xbf16>
    %cst_7 = arith.constant dense<0.000000e+00> : vector<512x32xf32>
    %12 = tpu.matmul %10, %11, %cst_7 {dimension_numbers = #tpu.dot_dimension_numbers<[1], [0], [0], [1], [0, 0, 1, 1], [], []>} : vector<512x8xbf16>, vector<8x32xbf16>, vector<512x32xf32> -> vector<512x32xf32>
    %c0_8 = arith.constant 0 : index
    %c0_9 = arith.constant 0 : index
    %13 = vector.load %arg5[%c0_8, %c0_9] : memref<1x32xf32, #tpu.memory_space<vmem>>, vector<1x32xf32>
    %14 = vector.broadcast %13 : vector<1x32xf32> to vector<512x32xf32>
    %15 = arith.addf %12, %14 : vector<512x32xf32>
    %c0_10 = arith.constant 0 : index
    %c0_11 = arith.constant 0 : index
    %16 = vector.load %arg2[%c0_10, %c0_11] : memref<512x32xf32, #tpu.memory_space<vmem>>, vector<512x32xf32>
    %17 = arith.addf %15, %16 : vector<512x32xf32>
    %cst_12 = arith.constant 0.000000e+00 : f32
    %18 = vector.broadcast %cst_12 : f32 to vector<512x32xf32>
    %19 = arith.maximumf %17, %18 : vector<512x32xf32>
    %c0_13 = arith.constant 0 : index
    %c0_14 = arith.constant 0 : index
    %20 = vector.load %arg7[%c0_13, %c0_14] : memref<512x32xf32, #tpu.memory_space<vmem>>, vector<512x32xf32>
    tpu.vector_store %arg7[%c0_13, %c0_14], %19 {strides = array<i32>} : memref<512x32xf32, #tpu.memory_space<vmem>>, vector<512x32xf32>,
    return
  }
  func.func @transform_0(%arg0: i32) -> (i32, i32) {
    %c0_i32 = arith.constant 0 : i32
    %c0_i32_0 = arith.constant 0 : i32
    return %arg0, %c0_i32 : i32, i32
  }
  func.func @transform_1(%arg0: i32) -> (i32, i32) {
    %c0_i32 = arith.constant 0 : i32
    %c0_i32_0 = arith.constant 0 : i32
    return %arg0, %c0_i32 : i32, i32
  }
  func.func @transform_2(%arg0: i32) -> (i32, i32) {
    %c0_i32 = arith.constant 0 : i32
    %c0_i32_0 = arith.constant 0 : i32
    %c0_i32_1 = arith.constant 0 : i32
    return %c0_i32, %c0_i32_0 : i32, i32
  }
  func.func @transform_3(%arg0: i32) -> (i32, i32) {
    %c0_i32 = arith.constant 0 : i32
    %c0_i32_0 = arith.constant 0 : i32
    %c0_i32_1 = arith.constant 0 : i32
    return %c0_i32, %c0_i32_0 : i32, i32
  }
  func.func @transform_4(%arg0: i32) -> (i32, i32) {
    %c0_i32 = arith.constant 0 : i32
    %c0_i32_0 = arith.constant 0 : i32
    %c0_i32_1 = arith.constant 0 : i32
    return %c0_i32, %c0_i32_0 : i32, i32
  }
  func.func @transform_5(%arg0: i32) -> (i32, i32) {
    %c0_i32 = arith.constant 0 : i32
    %c0_i32_0 = arith.constant 0 : i32
    %c0_i32_1 = arith.constant 0 : i32
    return %c0_i32, %c0_i32_0 : i32, i32
  }
  func.func @transform_6(%arg0: i32) -> (i32, i32) {
    %c0_i32 = arith.constant 0 : i32
    %c0_i32_0 = arith.constant 0 : i32
    return %arg0, %c0_i32 : i32, i32
  }
}

</mosaic_0001>

<llo_original>
// kernel: bottleneck_forward.4
$region0: #{bottleneck_forward.4}
  #allocation0 [shape = 'u32[]', space=smem, size = 0x4, offset = 0x4, fixed_abs, tag = 'smem constant byte address 0x4 - core index']
  #allocation1 [shape = 'u32[144,128]{1,0:T(1,128)}', space=vmem, size = 0x12000, scoped, tag = 'internal scratch']
  %s0 = inlined_call_operand.hbm [shape: f32[512,32], index: 0, kind: input, shape index: {}]
  %s1 = inlined_call_operand.vmem [shape: bf16[32,8], index: 1, kind: input, shape index: {}]
  %s2 = inlined_call_operand.vmem [shape: bf16[512,8], index: 2, kind: output, shape index: {0}]
  %s3 = inlined_call_operand.vmem [shape: f32[1,1,8], index: 3, kind: output, shape index: {1}]
  %s4 = inlined_call_operand.vmem [shape: f32[1,1,8], index: 4, kind: output, shape index: {2}]
  %5 = xla_tuple %s2, %s3, %s4
  %s6 = sld [smem:[#allocation0]]
  $region38: #{bottleneck_forward.4} parent=0
    _
  %s8 = ssub.s32 1, %s6
  %s9 = scalar_select 0, %s8, %s6
  $region1: #{bottleneck_forward.4} parent=0
    #allocation2 [shape = 'u8[262144]{0}', space=vmem, size = 0x40000, scoped, tag = 'input window, operand 0, single buffered']
    #allocation3 [shape = 's32[1]{0}', space=sflag, size = 0x4, scoped, tag = 'scoped memory for bottleneck_forward.4']
    %10 = vsyncpa [#allocation3], 0
    // Predicated region
    $region2: #{bottleneck_forward.4} parent=1 // pred_check
      _
    $region3: #{bottleneck_forward.4} parent=1 // pred_check_branch
      %12 = sbr.rel (0) target = $region5
    $region4: #{bottleneck_forward.4} parent=1 // pred_region
      %s14 = ssub.s32 8192, 8192
      %15 = vsyncadd [#allocation3], %s14
      %s16 = sshll.u32 [#allocation2], 4
      %s17 = int_to_ptr.vmem [resolvable:$true] %s16
      %22 = dma.hbm_to_vmem [thread:$0]  %s0, 8192, %s17, [#allocation3], 128, 128, 8
    $region5: #{bottleneck_forward.4} parent=1 // pred_fallthru
      _
    // Predicated region
    $region6: #{bottleneck_forward.4} parent=1 // pred_check
      _
    $region7: #{bottleneck_forward.4} parent=1 // pred_check_branch
      %24 = sbr.rel (0) target = $region9
    $region8: #{bottleneck_forward.4} parent=1 // pred_region
      _
    $region9: #{bottleneck_forward.4} parent=1 // pred_fallthru
      _
    // Predicated region
    $region10: #{bottleneck_forward.4} parent=1 // pred_check
      _
    $region11: #{bottleneck_forward.4} parent=1 // pred_check_branch
      %26 = sbr.rel (0) target = $region13
    $region12: #{bottleneck_forward.4} parent=1 // pred_region
      %27 = dma.done [#allocation3], 8192
    $region13: #{bottleneck_forward.4} parent=1 // pred_fallthru
      _
    %v29 = vld [vmem:[#allocation2] sm:$0xff]
    %v30 = vld [vmem:[#allocation2 + $0x8] sm:$0xff]
    %v31 = vld [vmem:[#allocation2 + $0x10] sm:$0xff]
    %v32 = vld [vmem:[#allocation2 + $0x18] sm:$0xff]
    %v33 = vld [vmem:[#allocation2 + $0x20] sm:$0xff]
    %v34 = vld [vmem:[#allocation2 + $0x28] sm:$0xff]
    %v35 = vld [vmem:[#allocation2 + $0x30] sm:$0xff]
    %v36 = vld [vmem:[#allocation2 + $0x38] sm:$0xff]
    %v37 = vld [vmem:[#allocation2 + $0x40] sm:$0xff]
    %v38 = vld [vmem:[#allocation2 + $0x48] sm:$0xff]
    %v39 = vld [vmem:[#allocation2 + $0x50] sm:$0xff]
    %v40 = vld [vmem:[#allocation2 + $0x58] sm:$0xff]
    %v41 = vld [vmem:[#allocation2 + $0x60] sm:$0xff]
    %v42 = vld [vmem:[#allocation2 + $0x68] sm:$0xff]
    %v43 = vld [vmem:[#allocation2 + $0x70] sm:$0xff]
    %v44 = vld [vmem:[#allocation2 + $0x78] sm:$0xff]
    %v45 = vld [vmem:[#allocation2 + $0x80] sm:$0xff]
    %v46 = vld [vmem:[#allocation2 + $0x88] sm:$0xff]
    %v47 = vld [vmem:[#allocation2 + $0x90] sm:$0xff]
    %v48 = vld [vmem:[#allocation2 + $0x98] sm:$0xff]
    %v49 = vld [vmem:[#allocation2 + $0xa0] sm:$0xff]
    %v50 = vld [vmem:[#allocation2 + $0xa8] sm:$0xff]
    %v51 = vld [vmem:[#allocation2 + $0xb0] sm:$0xff]
    %v52 = vld [vmem:[#allocation2 + $0xb8] sm:$0xff]
    %v53 = vld [vmem:[#allocation2 + $0xc0] sm:$0xff]
    %v54 = vld [vmem:[#allocation2 + $0xc8] sm:$0xff]
    %v55 = vld [vmem:[#allocation2 + $0xd0] sm:$0xff]
    %v56 = vld [vmem:[#allocation2 + $0xd8] sm:$0xff]
    %v57 = vld [vmem:[#allocation2 + $0xe0] sm:$0xff]
    %v58 = vld [vmem:[#allocation2 + $0xe8] sm:$0xff]
    %v59 = vld [vmem:[#allocation2 + $0xf0] sm:$0xff]
    %v60 = vld [vmem:[#allocation2 + $0xf8] sm:$0xff]
    %v61 = vld [vmem:[#allocation2 + $0x100] sm:$0xff]
    %v62 = vld [vmem:[#allocation2 + $0x108] sm:$0xff]
    %v63 = vld [vmem:[#allocation2 + $0x110] sm:$0xff]
    %v64 = vld [vmem:[#allocation2 + $0x118] sm:$0xff]
    %v65 = vld [vmem:[#allocation2 + $0x120] sm:$0xff]
    %v66 = vld [vmem:[#allocation2 + $0x128] sm:$0xff]
    %v67 = vld [vmem:[#allocation2 + $0x130] sm:$0xff]
    %v68 = vld [vmem:[#allocation2 + $0x138] sm:$0xff]
    %v69 = vld [vmem:[#allocation2 + $0x140] sm:$0xff]
    %v70 = vld [vmem:[#allocation2 + $0x148] sm:$0xff]
    %v71 = vld [vmem:[#allocation2 + $0x150] sm:$0xff]
    %v72 = vld [vmem:[#allocation2 + $0x158] sm:$0xff]
    %v73 = vld [vmem:[#allocation2 + $0x160] sm:$0xff]
    %v74 = vld [vmem:[#allocation2 + $0x168] sm:$0xff]
    %v75 = vld [vmem:[#allocation2 + $0x170] sm:$0xff]
    %v76 = vld [vmem:[#allocation2 + $0x178] sm:$0xff]
    %v77 = vld [vmem:[#allocation2 + $0x180] sm:$0xff]
    %v78 = vld [vmem:[#allocation2 + $0x188] sm:$0xff]
    %v79 = vld [vmem:[#allocation2 + $0x190] sm:$0xff]
    %v80 = vld [vmem:[#allocation2 + $0x198] sm:$0xff]
    %v81 = vld [vmem:[#allocation2 + $0x1a0] sm:$0xff]
    %v82 = vld [vmem:[#allocation2 + $0x1a8] sm:$0xff]
    %v83 = vld [vmem:[#allocation2 + $0x1b0] sm:$0xff]
    %v84 = vld [vmem:[#allocation2 + $0x1b8] sm:$0xff]
    %v85 = vld [vmem:[#allocation2 + $0x1c0] sm:$0xff]
    %v86 = vld [vmem:[#allocation2 + $0x1c8] sm:$0xff]
    %v87 = vld [vmem:[#allocation2 + $0x1d0] sm:$0xff]
    %v88 = vld [vmem:[#allocation2 + $0x1d8] sm:$0xff]
    %v89 = vld [vmem:[#allocation2 + $0x1e0] sm:$0xff]
    %v90 = vld [vmem:[#allocation2 + $0x1e8] sm:$0xff]
    %v91 = vld [vmem:[#allocation2 + $0x1f0] sm:$0xff]
    %v92 = vld [vmem:[#allocation2 + $0x1f8] sm:$0xff]
    %v93 = vpack.c.bf16 %v30, %v29
    %v94 = vpack.c.bf16 %v32, %v31
    %v95 = vpack.c.bf16 %v34, %v33
    %v96 = vpack.c.bf16 %v36, %v35
    %v97 = vpack.c.bf16 %v38, %v37
    %v98 = vpack.c.bf16 %v40, %v39
    %v99 = vpack.c.bf16 %v42, %v41
    %v100 = vpack.c.bf16 %v44, %v43
    %v101 = vpack.c.bf16 %v46, %v45
    %v102 = vpack.c.bf16 %v48, %v47
    %v103 = vpack.c.bf16 %v50, %v49
    %v104 = vpack.c.bf16 %v52, %v51
    %v105 = vpack.c.bf16 %v54, %v53
    %v106 = vpack.c.bf16 %v56, %v55
    %v107 = vpack.c.bf16 %v58, %v57
    %v108 = vpack.c.bf16 %v60, %v59
    %v109 = vpack.c.bf16 %v62, %v61
    %v110 = vpack.c.bf16 %v64, %v63
    %v111 = vpack.c.bf16 %v66, %v65
    %v112 = vpack.c.bf16 %v68, %v67
    %v113 = vpack.c.bf16 %v70, %v69
    %v114 = vpack.c.bf16 %v72, %v71
    %v115 = vpack.c.bf16 %v74, %v73
    %v116 = vpack.c.bf16 %v76, %v75
    %v117 = vpack.c.bf16 %v78, %v77
    %v118 = vpack.c.bf16 %v80, %v79
    %v119 = vpack.c.bf16 %v82, %v81
    %v120 = vpack.c.bf16 %v84, %v83
    %v121 = vpack.c.bf16 %v86, %v85
    %v122 = vpack.c.bf16 %v88, %v87
    %v123 = vpack.c.bf16 %v90, %v89
    %v124 = vpack.c.bf16 %v92, %v91
    %v125 = vld [vmem:[%s1] sm:$0xf]
    %v126 = vld [vmem:[%s1 + $0x4] sm:$0xf]
    %v127 = vld [vmem:[%s1 + $0x8] sm:$0xf]
    %v128 = vld [vmem:[%s1 + $0xc] sm:$0xf]
    %v133 = vunpack.c.l.b16 %v125
    %v134 = vunpack.c.l.b16 %v126
    %v135 = vunpack.c.l.b16 %v127
    %v136 = vunpack.c.l.b16 %v128
    %v137 = vpack.c.b16 %v134, %v133
    %v138 = vpack.c.b16 %v136, %v135
    %vm141 = vcmask 261120
    %v143 = vsel %vm141, %v93, 0
    %v146 = vsel %vm141, %v94, 0
    %v149 = vsel %vm141, %v95, 0
    %v152 = vsel %vm141, %v96, 0
    %v155 = vsel %vm141, %v97, 0
    %v158 = vsel %vm141, %v98, 0
    %v161 = vsel %vm141, %v99, 0
    %v164 = vsel %vm141, %v100, 0
    %v167 = vsel %vm141, %v101, 0
    %v170 = vsel %vm141, %v102, 0
    %v173 = vsel %vm141, %v103, 0
    %v176 = vsel %vm141, %v104, 0
    %v179 = vsel %vm141, %v105, 0
    %v182 = vsel %vm141, %v106, 0
    %v185 = vsel %vm141, %v107, 0
    %v188 = vsel %vm141, %v108, 0
    %v191 = vsel %vm141, %v109, 0
    %v194 = vsel %vm141, %v110, 0
    %v197 = vsel %vm141, %v111, 0
    %v200 = vsel %vm141, %v112, 0
    %v203 = vsel %vm141, %v113, 0
    %v206 = vsel %vm141, %v114, 0
    %v209 = vsel %vm141, %v115, 0
    %v212 = vsel %vm141, %v116, 0
    %v215 = vsel %vm141, %v117, 0
    %v218 = vsel %vm141, %v118, 0
    %v221 = vsel %vm141, %v119, 0
    %v224 = vsel %vm141, %v120, 0
    %v227 = vsel %vm141, %v121, 0
    %v230 = vsel %vm141, %v122, 0
    %v233 = vsel %vm141, %v123, 0
    %v236 = vsel %vm141, %v124, 0
    %238 = vmatprep.subr.bf16.mxu0 0
    %239 = vmatpush1.bf16.msra.mxu0 0
    %240 = vmatprep.subr.bf16.mxu0 0
    %241 = vmatpush1.bf16.msra.mxu0 0
    %242 = vmatprep.subr.bf16.mxu0 0
    %243 = vmatpush1.bf16.msra.mxu0 0
    %244 = vmatprep.subr.bf16.mxu0 0
    %245 = vmatpush1.bf16.msra.mxu0 0
    %246 = vmatprep.subr.bf16.mxu0 0
    %247 = vmatpush1.bf16.msra.mxu0 0
    %248 = vmatprep.subr.bf16.mxu0 0
    %249 = vmatpush1.bf16.msra.mxu0 0
    %250 = vmatprep.subr.bf16.mxu0 0
    %251 = vmatpush1.bf16.msra.mxu0 %v138
    %252 = vmatprep.subr.bf16.mxu0 0
    %253 = vmatpush1.bf16.msra.mxu0 %v137
    %254 = vmatprep.subr.bf16.mxu0 0
    %255 = vmatpush2.bf16.msra.mxu0 0
    %256 = vmatprep.subr.bf16.mxu0 0
    %257 = vmatpush2.bf16.msra.mxu0 0
    %258 = vmatprep.subr.bf16.mxu0 0
    %259 = vmatpush2.bf16.msra.mxu0 0
    %260 = vmatprep.subr.bf16.mxu0 0
    %261 = vmatpush2.bf16.msra.mxu0 0
    %262 = vmatprep.subr.bf16.mxu0 0
    %263 = vmatpush2.bf16.msra.mxu0 0
    %264 = vmatprep.subr.bf16.mxu0 0
    %265 = vmatpush2.bf16.msra.mxu0 0
    %266 = vmatprep.subr.bf16.mxu0 0
    %267 = vmatpush2.bf16.msra.mxu0 0
    %268 = vmatprep.subr.bf16.mxu0 0
    %269 = vmatpush2.bf16.msra.mxu0 0
    %270 = vmatprep.mubr.bf16.mxu0 0
    %271 = vmatmul.mubr.bf16.gmra.mxu0 %v143
    %v272 = vpop.f32.mrf.mxu0
    %v273 = vadd.f32 0.0, %v272
    %v274 = vpop.f32.mrf.mxu0
    %v275 = vpop.f32.mrf.mxu0
    %v276 = vadd.f32 0.0, %v275
    %v277 = vpop.f32.mrf.mxu0
    %278 = vmatprep.mubr.bf16.mxu0 0
    %279 = vmatmul.mubr.bf16.gmra.mxu0 %v146
    %v280 = vpop.f32.mrf.mxu0
    %v281 = vadd.f32 0.0, %v280
    %v282 = vpop.f32.mrf.mxu0
    %v283 = vpop.f32.mrf.mxu0
    %v284 = vadd.f32 0.0, %v283
    %v285 = vpop.f32.mrf.mxu0
    %286 = vmatprep.mubr.bf16.mxu0 0
    %287 = vmatmul.mubr.bf16.gmra.mxu0 %v149
    %v288 = vpop.f32.mrf.mxu0
    %v289 = vadd.f32 0.0, %v288
    %v290 = vpop.f32.mrf.mxu0
    %v291 = vpop.f32.mrf.mxu0
    %v292 = vadd.f32 0.0, %v291
    %v293 = vpop.f32.mrf.mxu0
    %294 = vmatprep.mubr.bf16.mxu0 0
    %295 = vmatmul.mubr.bf16.gmra.mxu0 %v152
    %v296 = vpop.f32.mrf.mxu0
    %v297 = vadd.f32 0.0, %v296
    %v298 = vpop.f32.mrf.mxu0
    %v299 = vpop.f32.mrf.mxu0
    %v300 = vadd.f32 0.0, %v299
    %v301 = vpop.f32.mrf.mxu0
    %302 = vmatprep.mubr.bf16.mxu0 0
    %303 = vmatmul.mubr.bf16.gmra.mxu0 %v155
    %v304 = vpop.f32.mrf.mxu0
    %v305 = vadd.f32 0.0, %v304
    %v306 = vpop.f32.mrf.mxu0
    %v307 = vpop.f32.mrf.mxu0
    %v308 = vadd.f32 0.0, %v307
    %v309 = vpop.f32.mrf.mxu0
    %310 = vmatprep.mubr.bf16.mxu0 0
    %311 = vmatmul.mubr.bf16.gmra.mxu0 %v158
    %v312 = vpop.f32.mrf.mxu0
    %v313 = vadd.f32 0.0, %v312
    %v314 = vpop.f32.mrf.mxu0
    %v315 = vpop.f32.mrf.mxu0
    %v316 = vadd.f32 0.0, %v315
    %v317 = vpop.f32.mrf.mxu0
    %318 = vmatprep.mubr.bf16.mxu0 0
    %319 = vmatmul.mubr.bf16.gmra.mxu0 %v161
    %v320 = vpop.f32.mrf.mxu0
    %v321 = vadd.f32 0.0, %v320
    %v322 = vpop.f32.mrf.mxu0
    %v323 = vpop.f32.mrf.mxu0
    %v324 = vadd.f32 0.0, %v323
    %v325 = vpop.f32.mrf.mxu0
    %326 = vmatprep.mubr.bf16.mxu0 0
    %327 = vmatmul.mubr.bf16.gmra.mxu0 %v164
    %v328 = vpop.f32.mrf.mxu0
    %v329 = vadd.f32 0.0, %v328
    %v330 = vpop.f32.mrf.mxu0
    %v331 = vpop.f32.mrf.mxu0
    %v332 = vadd.f32 0.0, %v331
    %v333 = vpop.f32.mrf.mxu0
    %334 = vmatprep.mubr.bf16.mxu0 0
    %335 = vmatmul.mubr.bf16.gmra.mxu0 %v167
    %v336 = vpop.f32.mrf.mxu0
    %v337 = vadd.f32 0.0, %v336
    %v338 = vpop.f32.mrf.mxu0
    %v339 = vpop.f32.mrf.mxu0
    %v340 = vadd.f32 0.0, %v339
    %v341 = vpop.f32.mrf.mxu0
    %342 = vmatprep.mubr.bf16.mxu0 0
    %343 = vmatmul.mubr.bf16.gmra.mxu0 %v170
    %v344 = vpop.f32.mrf.mxu0
    %v345 = vadd.f32 0.0, %v344
    %v346 = vpop.f32.mrf.mxu0
    %v347 = vpop.f32.mrf.mxu0
    %v348 = vadd.f32 0.0, %v347
    %v349 = vpop.f32.mrf.mxu0
    %350 = vmatprep.mubr.bf16.mxu0 0
    %351 = vmatmul.mubr.bf16.gmra.mxu0 %v173
    %v352 = vpop.f32.mrf.mxu0
    %v353 = vadd.f32 0.0, %v352
    %v354 = vpop.f32.mrf.mxu0
    %v355 = vpop.f32.mrf.mxu0
    %v356 = vadd.f32 0.0, %v355
    %v357 = vpop.f32.mrf.mxu0
    %358 = vmatprep.mubr.bf16.mxu0 0
    %359 = vmatmul.mubr.bf16.gmra.mxu0 %v176
    %v360 = vpop.f32.mrf.mxu0
    %v361 = vadd.f32 0.0, %v360
    %v362 = vpop.f32.mrf.mxu0
    %v363 = vpop.f32.mrf.mxu0
    %v364 = vadd.f32 0.0, %v363
    %v365 = vpop.f32.mrf.mxu0
    %366 = vmatprep.mubr.bf16.mxu0 0
    %367 = vmatmul.mubr.bf16.gmra.mxu0 %v179
    %v368 = vpop.f32.mrf.mxu0
    %v369 = vadd.f32 0.0, %v368
    %v370 = vpop.f32.mrf.mxu0
    %v371 = vpop.f32.mrf.mxu0
    %v372 = vadd.f32 0.0, %v371
    %v373 = vpop.f32.mrf.mxu0
    %374 = vmatprep.mubr.bf16.mxu0 0
    %375 = vmatmul.mubr.bf16.gmra.mxu0 %v182
    %v376 = vpop.f32.mrf.mxu0
    %v377 = vadd.f32 0.0, %v376
    %v378 = vpop.f32.mrf.mxu0
    %v379 = vpop.f32.mrf.mxu0
    %v380 = vadd.f32 0.0, %v379
    %v381 = vpop.f32.mrf.mxu0
    %382 = vmatprep.mubr.bf16.mxu0 0
    %383 = vmatmul.mubr.bf16.gmra.mxu0 %v185
    %v384 = vpop.f32.mrf.mxu0
    %v385 = vadd.f32 0.0, %v384
    %v386 = vpop.f32.mrf.mxu0
    %v387 = vpop.f32.mrf.mxu0
    %v388 = vadd.f32 0.0, %v387
    %v389 = vpop.f32.mrf.mxu0
    %390 = vmatprep.mubr.bf16.mxu0 0
    %391 = vmatmul.mubr.bf16.gmra.mxu0 %v188
    %v392 = vpop.f32.mrf.mxu0
    %v393 = vadd.f32 0.0, %v392
    %v394 = vpop.f32.mrf.mxu0
    %v395 = vpop.f32.mrf.mxu0
    %v396 = vadd.f32 0.0, %v395
    %v397 = vpop.f32.mrf.mxu0
    %398 = vmatprep.mubr.bf16.mxu0 0
    %399 = vmatmul.mubr.bf16.gmra.mxu0 %v191
    %v400 = vpop.f32.mrf.mxu0
    %v401 = vadd.f32 0.0, %v400
    %v402 = vpop.f32.mrf.mxu0
    %v403 = vpop.f32.mrf.mxu0
    %v404 = vadd.f32 0.0, %v403
    %v405 = vpop.f32.mrf.mxu0
    %406 = vmatprep.mubr.bf16.mxu0 0
    %407 = vmatmul.mubr.bf16.gmra.mxu0 %v194
    %v408 = vpop.f32.mrf.mxu0
    %v409 = vadd.f32 0.0, %v408
    %v410 = vpop.f32.mrf.mxu0
    %v411 = vpop.f32.mrf.mxu0
    %v412 = vadd.f32 0.0, %v411
    %v413 = vpop.f32.mrf.mxu0
    %414 = vmatprep.mubr.bf16.mxu0 0
    %415 = vmatmul.mubr.bf16.gmra.mxu0 %v197
    %v416 = vpop.f32.mrf.mxu0
    %v417 = vadd.f32 0.0, %v416
    %v418 = vpop.f32.mrf.mxu0
    %v419 = vpop.f32.mrf.mxu0
    %v420 = vadd.f32 0.0, %v419
    %v421 = vpop.f32.mrf.mxu0
    %422 = vmatprep.mubr.bf16.mxu0 0
    %423 = vmatmul.mubr.bf16.gmra.mxu0 %v200
    %v424 = vpop.f32.mrf.mxu0
    %v425 = vadd.f32 0.0, %v424
    %v426 = vpop.f32.mrf.mxu0
    %v427 = vpop.f32.mrf.mxu0
    %v428 = vadd.f32 0.0, %v427
    %v429 = vpop.f32.mrf.mxu0
    %430 = vmatprep.mubr.bf16.mxu0 0
    %431 = vmatmul.mubr.bf16.gmra.mxu0 %v203
    %v432 = vpop.f32.mrf.mxu0
    %v433 = vadd.f32 0.0, %v432
    %v434 = vpop.f32.mrf.mxu0
    %v435 = vpop.f32.mrf.mxu0
    %v436 = vadd.f32 0.0, %v435
    %v437 = vpop.f32.mrf.mxu0
    %438 = vmatprep.mubr.bf16.mxu0 0
    %439 = vmatmul.mubr.bf16.gmra.mxu0 %v206
    %v440 = vpop.f32.mrf.mxu0
    %v441 = vadd.f32 0.0, %v440
    %v442 = vpop.f32.mrf.mxu0
    %v443 = vpop.f32.mrf.mxu0
    %v444 = vadd.f32 0.0, %v443
    %v445 = vpop.f32.mrf.mxu0
    %446 = vmatprep.mubr.bf16.mxu0 0
    %447 = vmatmul.mubr.bf16.gmra.mxu0 %v209
    %v448 = vpop.f32.mrf.mxu0
    %v449 = vadd.f32 0.0, %v448
    %v450 = vpop.f32.mrf.mxu0
    %v451 = vpop.f32.mrf.mxu0
    %v452 = vadd.f32 0.0, %v451
    %v453 = vpop.f32.mrf.mxu0
    %454 = vmatprep.mubr.bf16.mxu0 0
    %455 = vmatmul.mubr.bf16.gmra.mxu0 %v212
    %v456 = vpop.f32.mrf.mxu0
    %v457 = vadd.f32 0.0, %v456
    %v458 = vpop.f32.mrf.mxu0
    %v459 = vpop.f32.mrf.mxu0
    %v460 = vadd.f32 0.0, %v459
    %v461 = vpop.f32.mrf.mxu0
    %462 = vmatprep.mubr.bf16.mxu0 0
    %463 = vmatmul.mubr.bf16.gmra.mxu0 %v215
    %v464 = vpop.f32.mrf.mxu0
    %v465 = vadd.f32 0.0, %v464
    %v466 = vpop.f32.mrf.mxu0
    %v467 = vpop.f32.mrf.mxu0
    %v468 = vadd.f32 0.0, %v467
    %v469 = vpop.f32.mrf.mxu0
    %470 = vmatprep.mubr.bf16.mxu0 0
    %471 = vmatmul.mubr.bf16.gmra.mxu0 %v218
    %v472 = vpop.f32.mrf.mxu0
    %v473 = vadd.f32 0.0, %v472
    %v474 = vpop.f32.mrf.mxu0
    %v475 = vpop.f32.mrf.mxu0
    %v476 = vadd.f32 0.0, %v475
    %v477 = vpop.f32.mrf.mxu0
    %478 = vmatprep.mubr.bf16.mxu0 0
    %479 = vmatmul.mubr.bf16.gmra.mxu0 %v221
    %v480 = vpop.f32.mrf.mxu0
    %v481 = vadd.f32 0.0, %v480
    %v482 = vpop.f32.mrf.mxu0
    %v483 = vpop.f32.mrf.mxu0
    %v484 = vadd.f32 0.0, %v483
    %v485 = vpop.f32.mrf.mxu0
    %486 = vmatprep.mubr.bf16.mxu0 0
    %487 = vmatmul.mubr.bf16.gmra.mxu0 %v224
    %v488 = vpop.f32.mrf.mxu0
    %v489 = vadd.f32 0.0, %v488
    %v490 = vpop.f32.mrf.mxu0
    %v491 = vpop.f32.mrf.mxu0
    %v492 = vadd.f32 0.0, %v491
    %v493 = vpop.f32.mrf.mxu0
    %494 = vmatprep.mubr.bf16.mxu0 0
    %495 = vmatmul.mubr.bf16.gmra.mxu0 %v227
    %v496 = vpop.f32.mrf.mxu0
    %v497 = vadd.f32 0.0, %v496
    %v498 = vpop.f32.mrf.mxu0
    %v499 = vpop.f32.mrf.mxu0
    %v500 = vadd.f32 0.0, %v499
    %v501 = vpop.f32.mrf.mxu0
    %502 = vmatprep.mubr.bf16.mxu0 0
    %503 = vmatmul.mubr.bf16.gmra.mxu0 %v230
    %v504 = vpop.f32.mrf.mxu0
    %v505 = vadd.f32 0.0, %v504
    %v506 = vpop.f32.mrf.mxu0
    %v507 = vpop.f32.mrf.mxu0
    %v508 = vadd.f32 0.0, %v507
    %v509 = vpop.f32.mrf.mxu0
    %510 = vmatprep.mubr.bf16.mxu0 0
    %511 = vmatmul.mubr.bf16.gmra.mxu0 %v233
    %v512 = vpop.f32.mrf.mxu0
    %v513 = vadd.f32 0.0, %v512
    %v514 = vpop.f32.mrf.mxu0
    %v515 = vpop.f32.mrf.mxu0
    %v516 = vadd.f32 0.0, %v515
    %v517 = vpop.f32.mrf.mxu0
    %518 = vmatprep.mubr.bf16.mxu0 0
    %519 = vmatmul.mubr.bf16.gmra.mxu0 %v236
    %v520 = vpop.f32.mrf.mxu0
    %v521 = vadd.f32 0.0, %v520
    %v522 = vpop.f32.mrf.mxu0
    %v523 = vpop.f32.mrf.mxu0
    %v524 = vadd.f32 0.0, %v523
    %v525 = vpop.f32.mrf.mxu0
    %526 = vdwg.mxu0
    %v527 = vpack.c.bf16 %v276, %v273
    %v528 = vpack.c.bf16 %v284, %v281
    %v529 = vpack.c.bf16 %v292, %v289
    %v530 = vpack.c.bf16 %v300, %v297
    %v531 = vpack.c.bf16 %v308, %v305
    %v532 = vpack.c.bf16 %v316, %v313
    %v533 = vpack.c.bf16 %v324, %v321
    %v534 = vpack.c.bf16 %v332, %v329
    %v535 = vpack.c.bf16 %v340, %v337
    %v536 = vpack.c.bf16 %v348, %v345
    %v537 = vpack.c.bf16 %v356, %v353
    %v538 = vpack.c.bf16 %v364, %v361
    %v539 = vpack.c.bf16 %v372, %v369
    %v540 = vpack.c.bf16 %v380, %v377
    %v541 = vpack.c.bf16 %v388, %v385
    %v542 = vpack.c.bf16 %v396, %v393
    %v543 = vpack.c.bf16 %v404, %v401
    %v544 = vpack.c.bf16 %v412, %v409
    %v545 = vpack.c.bf16 %v420, %v417
    %v546 = vpack.c.bf16 %v428, %v425
    %v547 = vpack.c.bf16 %v436, %v433
    %v548 = vpack.c.bf16 %v444, %v441
    %v549 = vpack.c.bf16 %v452, %v449
    %v550 = vpack.c.bf16 %v460, %v457
    %v551 = vpack.c.bf16 %v468, %v465
    %v552 = vpack.c.bf16 %v476, %v473
    %v553 = vpack.c.bf16 %v484, %v481
    %v554 = vpack.c.bf16 %v492, %v489
    %v555 = vpack.c.bf16 %v500, %v497
    %v556 = vpack.c.bf16 %v508, %v505
    %v557 = vpack.c.bf16 %v516, %v513
    %v558 = vpack.c.bf16 %v524, %v521
    %v591 = vunpack.c.l.b16 %v527
    %v592 = vunpack.c.h.b16 %v527
    %v593 = vunpack.c.l.b16 %v528
    %v594 = vunpack.c.h.b16 %v528
    %v595 = vunpack.c.l.b16 %v529
    %v596 = vunpack.c.h.b16 %v529
    %v597 = vunpack.c.l.b16 %v530
    %v598 = vunpack.c.h.b16 %v530
    %v599 = vunpack.c.l.b16 %v531
    %v600 = vunpack.c.h.b16 %v531
    %v601 = vunpack.c.l.b16 %v532
    %v602 = vunpack.c.h.b16 %v532
    %v603 = vunpack.c.l.b16 %v533
    %v604 = vunpack.c.h.b16 %v533
    %v605 = vunpack.c.l.b16 %v534
    %v606 = vunpack.c.h.b16 %v534
    %v607 = vunpack.c.l.b16 %v535
    %v608 = vunpack.c.h.b16 %v535
    %v609 = vunpack.c.l.b16 %v536
    %v610 = vunpack.c.h.b16 %v536
    %v611 = vunpack.c.l.b16 %v537
    %v612 = vunpack.c.h.b16 %v537
    %v613 = vunpack.c.l.b16 %v538
    %v614 = vunpack.c.h.b16 %v538
    %v615 = vunpack.c.l.b16 %v539
    %v616 = vunpack.c.h.b16 %v539
    %v617 = vunpack.c.l.b16 %v540
    %v618 = vunpack.c.h.b16 %v540
    %v619 = vunpack.c.l.b16 %v541
    %v620 = vunpack.c.h.b16 %v541
    %v621 = vunpack.c.l.b16 %v542
    %v622 = vunpack.c.h.b16 %v542
    %v623 = vunpack.c.l.b16 %v543
    %v624 = vunpack.c.h.b16 %v543
    %v625 = vunpack.c.l.b16 %v544
    %v626 = vunpack.c.h.b16 %v544
    %v627 = vunpack.c.l.b16 %v545
    %v628 = vunpack.c.h.b16 %v545
    %v629 = vunpack.c.l.b16 %v546
    %v630 = vunpack.c.h.b16 %v546
    %v631 = vunpack.c.l.b16 %v547
    %v632 = vunpack.c.h.b16 %v547
    %v633 = vunpack.c.l.b16 %v548
    %v634 = vunpack.c.h.b16 %v548
    %v635 = vunpack.c.l.b16 %v549
    %v636 = vunpack.c.h.b16 %v549
    %v637 = vunpack.c.l.b16 %v550
    %v638 = vunpack.c.h.b16 %v550
    %v639 = vunpack.c.l.b16 %v551
    %v640 = vunpack.c.h.b16 %v551
    %v641 = vunpack.c.l.b16 %v552
    %v642 = vunpack.c.h.b16 %v552
    %v643 = vunpack.c.l.b16 %v553
    %v644 = vunpack.c.h.b16 %v553
    %v645 = vunpack.c.l.b16 %v554
    %v646 = vunpack.c.h.b16 %v554
    %v647 = vunpack.c.l.b16 %v555
    %v648 = vunpack.c.h.b16 %v555
    %v649 = vunpack.c.l.b16 %v556
    %v650 = vunpack.c.h.b16 %v556
    %v651 = vunpack.c.l.b16 %v557
    %v652 = vunpack.c.h.b16 %v557
    %v653 = vunpack.c.l.b16 %v558
    %v654 = vunpack.c.h.b16 %v558
    %v655 = vpack.c.b16 %v591, %v591
    %v656 = vpack.c.b16 %v592, %v592
    %v657 = vpack.c.b16 %v593, %v593
    %v658 = vpack.c.b16 %v594, %v594
    %v659 = vpack.c.b16 %v595, %v595
    %v660 = vpack.c.b16 %v596, %v596
    %v661 = vpack.c.b16 %v597, %v597
    %v662 = vpack.c.b16 %v598, %v598
    %v663 = vpack.c.b16 %v599, %v599
    %v664 = vpack.c.b16 %v600, %v600
    %v665 = vpack.c.b16 %v601, %v601
    %v666 = vpack.c.b16 %v602, %v602
    %v667 = vpack.c.b16 %v603, %v603
    %v668 = vpack.c.b16 %v604, %v604
    %v669 = vpack.c.b16 %v605, %v605
    %v670 = vpack.c.b16 %v606, %v606
    %v671 = vpack.c.b16 %v607, %v607
    %v672 = vpack.c.b16 %v608, %v608
    %v673 = vpack.c.b16 %v609, %v609
    %v674 = vpack.c.b16 %v610, %v610
    %v675 = vpack.c.b16 %v611, %v611
    %v676 = vpack.c.b16 %v612, %v612
    %v677 = vpack.c.b16 %v613, %v613
    %v678 = vpack.c.b16 %v614, %v614
    %v679 = vpack.c.b16 %v615, %v615
    %v680 = vpack.c.b16 %v616, %v616
    %v681 = vpack.c.b16 %v617, %v617
    %v682 = vpack.c.b16 %v618, %v618
    %v683 = vpack.c.b16 %v619, %v619
    %v684 = vpack.c.b16 %v620, %v620
    %v685 = vpack.c.b16 %v621, %v621
    %v686 = vpack.c.b16 %v622, %v622
    %v687 = vpack.c.b16 %v623, %v623
    %v688 = vpack.c.b16 %v624, %v624
    %v689 = vpack.c.b16 %v625, %v625
    %v690 = vpack.c.b16 %v626, %v626
    %v691 = vpack.c.b16 %v627, %v627
    %v692 = vpack.c.b16 %v628, %v628
    %v693 = vpack.c.b16 %v629, %v629
    %v694 = vpack.c.b16 %v630, %v630
    %v695 = vpack.c.b16 %v631, %v631
    %v696 = vpack.c.b16 %v632, %v632
    %v697 = vpack.c.b16 %v633, %v633
    %v698 = vpack.c.b16 %v634, %v634
    %v699 = vpack.c.b16 %v635, %v635
    %v700 = vpack.c.b16 %v636, %v636
    %v701 = vpack.c.b16 %v637, %v637
    %v702 = vpack.c.b16 %v638, %v638
    %v703 = vpack.c.b16 %v639, %v639
    %v704 = vpack.c.b16 %v640, %v640
    %v705 = vpack.c.b16 %v641, %v641
    %v706 = vpack.c.b16 %v642, %v642
    %v707 = vpack.c.b16 %v643, %v643
    %v708 = vpack.c.b16 %v644, %v644
    %v709 = vpack.c.b16 %v645, %v645
    %v710 = vpack.c.b16 %v646, %v646
    %v711 = vpack.c.b16 %v647, %v647
    %v712 = vpack.c.b16 %v648, %v648
    %v713 = vpack.c.b16 %v649, %v649
    %v714 = vpack.c.b16 %v650, %v650
    %v715 = vpack.c.b16 %v651, %v651
    %v716 = vpack.c.b16 %v652, %v652
    %v717 = vpack.c.b16 %v653, %v653
    %v718 = vpack.c.b16 %v654, %v654
    %vm783 = vcmask 60416
    %784 = vst.msk [vmem:[%s2] sm:$0xf] %vm783, %v655
    %785 = vst.msk [vmem:[%s2 + $0x4] sm:$0xf] %vm783, %v656
    %786 = vst.msk [vmem:[%s2 + $0x8] sm:$0xf] %vm783, %v657
    %787 = vst.msk [vmem:[%s2 + $0xc] sm:$0xf] %vm783, %v658
    %788 = vst.msk [vmem:[%s2 + $0x10] sm:$0xf] %vm783, %v659
    %789 = vst.msk [vmem:[%s2 + $0x14] sm:$0xf] %vm783, %v660
    %790 = vst.msk [vmem:[%s2 + $0x18] sm:$0xf] %vm783, %v661
    %791 = vst.msk [vmem:[%s2 + $0x1c] sm:$0xf] %vm783, %v662
    %792 = vst.msk [vmem:[%s2 + $0x20] sm:$0xf] %vm783, %v663
    %793 = vst.msk [vmem:[%s2 + $0x24] sm:$0xf] %vm783, %v664
    %794 = vst.msk [vmem:[%s2 + $0x28] sm:$0xf] %vm783, %v665
    %795 = vst.msk [vmem:[%s2 + $0x2c] sm:$0xf] %vm783, %v666
    %796 = vst.msk [vmem:[%s2 + $0x30] sm:$0xf] %vm783, %v667
    %797 = vst.msk [vmem:[%s2 + $0x34] sm:$0xf] %vm783, %v668
    %798 = vst.msk [vmem:[%s2 + $0x38] sm:$0xf] %vm783, %v669
    %799 = vst.msk [vmem:[%s2 + $0x3c] sm:$0xf] %vm783, %v670
    %800 = vst.msk [vmem:[%s2 + $0x40] sm:$0xf] %vm783, %v671
    %801 = vst.msk [vmem:[%s2 + $0x44] sm:$0xf] %vm783, %v672
    %802 = vst.msk [vmem:[%s2 + $0x48] sm:$0xf] %vm783, %v673
    %803 = vst.msk [vmem:[%s2 + $0x4c] sm:$0xf] %vm783, %v674
    %804 = vst.msk [vmem:[%s2 + $0x50] sm:$0xf] %vm783, %v675
    %805 = vst.msk [vmem:[%s2 + $0x54] sm:$0xf] %vm783, %v676
    %806 = vst.msk [vmem:[%s2 + $0x58] sm:$0xf] %vm783, %v677
    %807 = vst.msk [vmem:[%s2 + $0x5c] sm:$0xf] %vm783, %v678
    %808 = vst.msk [vmem:[%s2 + $0x60] sm:$0xf] %vm783, %v679
    %809 = vst.msk [vmem:[%s2 + $0x64] sm:$0xf] %vm783, %v680
    %810 = vst.msk [vmem:[%s2 + $0x68] sm:$0xf] %vm783, %v681
    %811 = vst.msk [vmem:[%s2 + $0x6c] sm:$0xf] %vm783, %v682
    %812 = vst.msk [vmem:[%s2 + $0x70] sm:$0xf] %vm783, %v683
    %813 = vst.msk [vmem:[%s2 + $0x74] sm:$0xf] %vm783, %v684
    %814 = vst.msk [vmem:[%s2 + $0x78] sm:$0xf] %vm783, %v685
    %815 = vst.msk [vmem:[%s2 + $0x7c] sm:$0xf] %vm783, %v686
    %816 = vst.msk [vmem:[%s2 + $0x80] sm:$0xf] %vm783, %v687
    %817 = vst.msk [vmem:[%s2 + $0x84] sm:$0xf] %vm783, %v688
    %818 = vst.msk [vmem:[%s2 + $0x88] sm:$0xf] %vm783, %v689
    %819 = vst.msk [vmem:[%s2 + $0x8c] sm:$0xf] %vm783, %v690
    %820 = vst.msk [vmem:[%s2 + $0x90] sm:$0xf] %vm783, %v691
    %821 = vst.msk [vmem:[%s2 + $0x94] sm:$0xf] %vm783, %v692
    %822 = vst.msk [vmem:[%s2 + $0x98] sm:$0xf] %vm783, %v693
    %823 = vst.msk [vmem:[%s2 + $0x9c] sm:$0xf] %vm783, %v694
    %824 = vst.msk [vmem:[%s2 + $0xa0] sm:$0xf] %vm783, %v695
    %825 = vst.msk [vmem:[%s2 + $0xa4] sm:$0xf] %vm783, %v696
    %826 = vst.msk [vmem:[%s2 + $0xa8] sm:$0xf] %vm783, %v697
    %827 = vst.msk [vmem:[%s2 + $0xac] sm:$0xf] %vm783, %v698
    %828 = vst.msk [vmem:[%s2 + $0xb0] sm:$0xf] %vm783, %v699
    %829 = vst.msk [vmem:[%s2 + $0xb4] sm:$0xf] %vm783, %v700
    %830 = vst.msk [vmem:[%s2 + $0xb8] sm:$0xf] %vm783, %v701
    %831 = vst.msk [vmem:[%s2 + $0xbc] sm:$0xf] %vm783, %v702
    %832 = vst.msk [vmem:[%s2 + $0xc0] sm:$0xf] %vm783, %v703
    %833 = vst.msk [vmem:[%s2 + $0xc4] sm:$0xf] %vm783, %v704
    %834 = vst.msk [vmem:[%s2 + $0xc8] sm:$0xf] %vm783, %v705
    %835 = vst.msk [vmem:[%s2 + $0xcc] sm:$0xf] %vm783, %v706
    %836 = vst.msk [vmem:[%s2 + $0xd0] sm:$0xf] %vm783, %v707
    %837 = vst.msk [vmem:[%s2 + $0xd4] sm:$0xf] %vm783, %v708
    %838 = vst.msk [vmem:[%s2 + $0xd8] sm:$0xf] %vm783, %v709
    %839 = vst.msk [vmem:[%s2 + $0xdc] sm:$0xf] %vm783, %v710
    %840 = vst.msk [vmem:[%s2 + $0xe0] sm:$0xf] %vm783, %v711
    %841 = vst.msk [vmem:[%s2 + $0xe4] sm:$0xf] %vm783, %v712
    %842 = vst.msk [vmem:[%s2 + $0xe8] sm:$0xf] %vm783, %v713
    %843 = vst.msk [vmem:[%s2 + $0xec] sm:$0xf] %vm783, %v714
    %844 = vst.msk [vmem:[%s2 + $0xf0] sm:$0xf] %vm783, %v715
    %845 = vst.msk [vmem:[%s2 + $0xf4] sm:$0xf] %vm783, %v716
    %846 = vst.msk [vmem:[%s2 + $0xf8] sm:$0xf] %vm783, %v717
    %847 = vst.msk [vmem:[%s2 + $0xfc] sm:$0xf] %vm783, %v718
    %vm848 = vcmask 64512
    %v849 = vsel %vm848, %v273, 0.0
    %v850 = vsel %vm848, %v276, 0.0
    %v851 = vadd.f32 %v849, %v850
    %v852 = vsel %vm848, %v281, 0.0
    %v853 = vadd.f32 %v851, %v852
    %v854 = vsel %vm848, %v284, 0.0
    %v855 = vadd.f32 %v853, %v854
    %v856 = vsel %vm848, %v289, 0.0
    %v857 = vadd.f32 %v855, %v856
    %v858 = vsel %vm848, %v292, 0.0
    %v859 = vadd.f32 %v857, %v858
    %v860 = vsel %vm848, %v297, 0.0
    %v861 = vadd.f32 %v859, %v860
    %v862 = vsel %vm848, %v300, 0.0
    %v863 = vadd.f32 %v861, %v862
    %v864 = vsel %vm848, %v305, 0.0
    %v865 = vadd.f32 %v863, %v864
    %v866 = vsel %vm848, %v308, 0.0
    %v867 = vadd.f32 %v865, %v866
    %v868 = vsel %vm848, %v313, 0.0
    %v869 = vadd.f32 %v867, %v868
    %v870 = vsel %vm848, %v316, 0.0
    %v871 = vadd.f32 %v869, %v870
    %v872 = vsel %vm848, %v321, 0.0
    %v873 = vadd.f32 %v871, %v872
    %v874 = vsel %vm848, %v324, 0.0
    %v875 = vadd.f32 %v873, %v874
    %v876 = vsel %vm848, %v329, 0.0
    %v877 = vadd.f32 %v875, %v876
    %v878 = vsel %vm848, %v332, 0.0
    %v879 = vadd.f32 %v877, %v878
    %v880 = vsel %vm848, %v337, 0.0
    %v881 = vadd.f32 %v879, %v880
    %v882 = vsel %vm848, %v340, 0.0
    %v883 = vadd.f32 %v881, %v882
    %v884 = vsel %vm848, %v345, 0.0
    %v885 = vadd.f32 %v883, %v884
    %v886 = vsel %vm848, %v348, 0.0
    %v887 = vadd.f32 %v885, %v886
    %v888 = vsel %vm848, %v353, 0.0
    %v889 = vadd.f32 %v887, %v888
    %v890 = vsel %vm848, %v356, 0.0
    %v891 = vadd.f32 %v889, %v890
    %v892 = vsel %vm848, %v361, 0.0
    %v893 = vadd.f32 %v891, %v892
    %v894 = vsel %vm848, %v364, 0.0
    %v895 = vadd.f32 %v893, %v894
    %v896 = vsel %vm848, %v369, 0.0
    %v897 = vadd.f32 %v895, %v896
    %v898 = vsel %vm848, %v372, 0.0
    %v899 = vadd.f32 %v897, %v898
    %v900 = vsel %vm848, %v377, 0.0
    %v901 = vadd.f32 %v899, %v900
    %v902 = vsel %vm848, %v380, 0.0
    %v903 = vadd.f32 %v901, %v902
    %v904 = vsel %vm848, %v385, 0.0
    %v905 = vadd.f32 %v903, %v904
    %v906 = vsel %vm848, %v388, 0.0
    %v907 = vadd.f32 %v905, %v906
    %v908 = vsel %vm848, %v393, 0.0
    %v909 = vadd.f32 %v907, %v908
    %v910 = vsel %vm848, %v396, 0.0
    %v911 = vadd.f32 %v909, %v910
    %v912 = vsel %vm848, %v401, 0.0
    %v913 = vadd.f32 %v911, %v912
    %v914 = vsel %vm848, %v404, 0.0
    %v915 = vadd.f32 %v913, %v914
    %v916 = vsel %vm848, %v409, 0.0
    %v917 = vadd.f32 %v915, %v916
    %v918 = vsel %vm848, %v412, 0.0
    %v919 = vadd.f32 %v917, %v918
    %v920 = vsel %vm848, %v417, 0.0
    %v921 = vadd.f32 %v919, %v920
    %v922 = vsel %vm848, %v420, 0.0
    %v923 = vadd.f32 %v921, %v922
    %v924 = vsel %vm848, %v425, 0.0
    %v925 = vadd.f32 %v923, %v924
    %v926 = vsel %vm848, %v428, 0.0
    %v927 = vadd.f32 %v925, %v926
    %v928 = vsel %vm848, %v433, 0.0
    %v929 = vadd.f32 %v927, %v928
    %v930 = vsel %vm848, %v436, 0.0
    %v931 = vadd.f32 %v929, %v930
    %v932 = vsel %vm848, %v441, 0.0
    %v933 = vadd.f32 %v931, %v932
    %v934 = vsel %vm848, %v444, 0.0
    %v935 = vadd.f32 %v933, %v934
    %v936 = vsel %vm848, %v449, 0.0
    %v937 = vadd.f32 %v935, %v936
    %v938 = vsel %vm848, %v452, 0.0
    %v939 = vadd.f32 %v937, %v938
    %v940 = vsel %vm848, %v457, 0.0
    %v941 = vadd.f32 %v939, %v940
    %v942 = vsel %vm848, %v460, 0.0
    %v943 = vadd.f32 %v941, %v942
    %v944 = vsel %vm848, %v465, 0.0
    %v945 = vadd.f32 %v943, %v944
    %v946 = vsel %vm848, %v468, 0.0
    %v947 = vadd.f32 %v945, %v946
    %v948 = vsel %vm848, %v473, 0.0
    %v949 = vadd.f32 %v947, %v948
    %v950 = vsel %vm848, %v476, 0.0
    %v951 = vadd.f32 %v949, %v950
    %v952 = vsel %vm848, %v481, 0.0
    %v953 = vadd.f32 %v951, %v952
    %v954 = vsel %vm848, %v484, 0.0
    %v955 = vadd.f32 %v953, %v954
    %v956 = vsel %vm848, %v489, 0.0
    %v957 = vadd.f32 %v955, %v956
    %v958 = vsel %vm848, %v492, 0.0
    %v959 = vadd.f32 %v957, %v958
    %v960 = vsel %vm848, %v497, 0.0
    %v961 = vadd.f32 %v959, %v960
    %v962 = vsel %vm848, %v500, 0.0
    %v963 = vadd.f32 %v961, %v962
    %v964 = vsel %vm848, %v505, 0.0
    %v965 = vadd.f32 %v963, %v964
    %v966 = vsel %vm848, %v508, 0.0
    %v967 = vadd.f32 %v965, %v966
    %v968 = vsel %vm848, %v513, 0.0
    %v969 = vadd.f32 %v967, %v968
    %v970 = vsel %vm848, %v516, 0.0
    %v971 = vadd.f32 %v969, %v970
    %v972 = vsel %vm848, %v521, 0.0
    %v973 = vadd.f32 %v971, %v972
    %v974 = vsel %vm848, %v524, 0.0
    %v975 = vadd.f32 %v973, %v974
    %v976 = vrot.slane %v975, 4
    %v977 = vadd.f32 %v975, %v976
    %v978 = vrot.slane %v977, 2
    %v979 = vadd.f32 %v977, %v978
    %v980 = vrot.slane %v979, 1
    %v981 = vadd.f32 %v979, %v980
    %vm982 = vcmask 57344
    %983 = vst.msk [vmem:[%s3] sm:$0x1] %vm982, %v981
    %v984 = vmul.f32 %v273, %v273
    %v985 = vmul.f32 %v276, %v276
    %v986 = vmul.f32 %v281, %v281
    %v987 = vmul.f32 %v284, %v284
    %v988 = vmul.f32 %v289, %v289
    %v989 = vmul.f32 %v292, %v292
    %v990 = vmul.f32 %v297, %v297
    %v991 = vmul.f32 %v300, %v300
    %v992 = vmul.f32 %v305, %v305
    %v993 = vmul.f32 %v308, %v308
    %v994 = vmul.f32 %v313, %v313
    %v995 = vmul.f32 %v316, %v316
    %v996 = vmul.f32 %v321, %v321
    %v997 = vmul.f32 %v324, %v324
    %v998 = vmul.f32 %v329, %v329
    %v999 = vmul.f32 %v332, %v332
    %v1000 = vmul.f32 %v337, %v337
    %v1001 = vmul.f32 %v340, %v340
    %v1002 = vmul.f32 %v345, %v345
    %v1003 = vmul.f32 %v348, %v348
    %v1004 = vmul.f32 %v353, %v353
    %v1005 = vmul.f32 %v356, %v356
    %v1006 = vmul.f32 %v361, %v361
    %v1007 = vmul.f32 %v364, %v364
    %v1008 = vmul.f32 %v369, %v369
    %v1009 = vmul.f32 %v372, %v372
    %v1010 = vmul.f32 %v377, %v377
    %v1011 = vmul.f32 %v380, %v380
    %v1012 = vmul.f32 %v385, %v385
    %v1013 = vmul.f32 %v388, %v388
    %v1014 = vmul.f32 %v393, %v393
    %v1015 = vmul.f32 %v396, %v396
    %v1016 = vmul.f32 %v401, %v401
    %v1017 = vmul.f32 %v404, %v404
    %v1018 = vmul.f32 %v409, %v409
    %v1019 = vmul.f32 %v412, %v412
    %v1020 = vmul.f32 %v417, %v417
    %v1021 = vmul.f32 %v420, %v420
    %v1022 = vmul.f32 %v425, %v425
    %v1023 = vmul.f32 %v428, %v428
    %v1024 = vmul.f32 %v433, %v433
    %v1025 = vmul.f32 %v436, %v436
    %v1026 = vmul.f32 %v441, %v441
    %v1027 = vmul.f32 %v444, %v444
    %v1028 = vmul.f32 %v449, %v449
    %v1029 = vmul.f32 %v452, %v452
    %v1030 = vmul.f32 %v457, %v457
    %v1031 = vmul.f32 %v460, %v460
    %v1032 = vmul.f32 %v465, %v465
    %v1033 = vmul.f32 %v468, %v468
    %v1034 = vmul.f32 %v473, %v473
    %v1035 = vmul.f32 %v476, %v476
    %v1036 = vmul.f32 %v481, %v481
    %v1037 = vmul.f32 %v484, %v484
    %v1038 = vmul.f32 %v489, %v489
    %v1039 = vmul.f32 %v492, %v492
    %v1040 = vmul.f32 %v497, %v497
    %v1041 = vmul.f32 %v500, %v500
    %v1042 = vmul.f32 %v505, %v505
    %v1043 = vmul.f32 %v508, %v508
    %v1044 = vmul.f32 %v513, %v513
    %v1045 = vmul.f32 %v516, %v516
    %v1046 = vmul.f32 %v521, %v521
    %v1047 = vmul.f32 %v524, %v524
    %v1048 = vsel %vm848, %v984, 0.0
    %v1049 = vsel %vm848, %v985, 0.0
    %v1050 = vadd.f32 %v1048, %v1049
    %v1051 = vsel %vm848, %v986, 0.0
    %v1052 = vadd.f32 %v1050, %v1051
    %v1053 = vsel %vm848, %v987, 0.0
    %v1054 = vadd.f32 %v1052, %v1053
    %v1055 = vsel %vm848, %v988, 0.0
    %v1056 = vadd.f32 %v1054, %v1055
    %v1057 = vsel %vm848, %v989, 0.0
    %v1058 = vadd.f32 %v1056, %v1057
    %v1059 = vsel %vm848, %v990, 0.0
    %v1060 = vadd.f32 %v1058, %v1059
    %v1061 = vsel %vm848, %v991, 0.0
    %v1062 = vadd.f32 %v1060, %v1061
    %v1063 = vsel %vm848, %v992, 0.0
    %v1064 = vadd.f32 %v1062, %v1063
    %v1065 = vsel %vm848, %v993, 0.0
    %v1066 = vadd.f32 %v1064, %v1065
    %v1067 = vsel %vm848, %v994, 0.0
    %v1068 = vadd.f32 %v1066, %v1067
    %v1069 = vsel %vm848, %v995, 0.0
    %v1070 = vadd.f32 %v1068, %v1069
    %v1071 = vsel %vm848, %v996, 0.0
    %v1072 = vadd.f32 %v1070, %v1071
    %v1073 = vsel %vm848, %v997, 0.0
    %v1074 = vadd.f32 %v1072, %v1073
    %v1075 = vsel %vm848, %v998, 0.0
    %v1076 = vadd.f32 %v1074, %v1075
    %v1077 = vsel %vm848, %v999, 0.0
    %v1078 = vadd.f32 %v1076, %v1077
    %v1079 = vsel %vm848, %v1000, 0.0
    %v1080 = vadd.f32 %v1078, %v1079
    %v1081 = vsel %vm848, %v1001, 0.0
    %v1082 = vadd.f32 %v1080, %v1081
    %v1083 = vsel %vm848, %v1002, 0.0
    %v1084 = vadd.f32 %v1082, %v1083
    %v1085 = vsel %vm848, %v1003, 0.0
    %v1086 = vadd.f32 %v1084, %v1085
    %v1087 = vsel %vm848, %v1004, 0.0
    %v1088 = vadd.f32 %v1086, %v1087
    %v1089 = vsel %vm848, %v1005, 0.0
    %v1090 = vadd.f32 %v1088, %v1089
    %v1091 = vsel %vm848, %v1006, 0.0
    %v1092 = vadd.f32 %v1090, %v1091
    %v1093 = vsel %vm848, %v1007, 0.0
    %v1094 = vadd.f32 %v1092, %v1093
    %v1095 = vsel %vm848, %v1008, 0.0
    %v1096 = vadd.f32 %v1094, %v1095
    %v1097 = vsel %vm848, %v1009, 0.0
    %v1098 = vadd.f32 %v1096, %v1097
    %v1099 = vsel %vm848, %v1010, 0.0
    %v1100 = vadd.f32 %v1098, %v1099
    %v1101 = vsel %vm848, %v1011, 0.0
    %v1102 = vadd.f32 %v1100, %v1101
    %v1103 = vsel %vm848, %v1012, 0.0
    %v1104 = vadd.f32 %v1102, %v1103
    %v1105 = vsel %vm848, %v1013, 0.0
    %v1106 = vadd.f32 %v1104, %v1105
    %v1107 = vsel %vm848, %v1014, 0.0
    %v1108 = vadd.f32 %v1106, %v1107
    %v1109 = vsel %vm848, %v1015, 0.0
    %v1110 = vadd.f32 %v1108, %v1109
    %v1111 = vsel %vm848, %v1016, 0.0
    %v1112 = vadd.f32 %v1110, %v1111
    %v1113 = vsel %vm848, %v1017, 0.0
    %v1114 = vadd.f32 %v1112, %v1113
    %v1115 = vsel %vm848, %v1018, 0.0
    %v1116 = vadd.f32 %v1114, %v1115
    %v1117 = vsel %vm848, %v1019, 0.0
    %v1118 = vadd.f32 %v1116, %v1117
    %v1119 = vsel %vm848, %v1020, 0.0
    %v1120 = vadd.f32 %v1118, %v1119
    %v1121 = vsel %vm848, %v1021, 0.0
    %v1122 = vadd.f32 %v1120, %v1121
    %v1123 = vsel %vm848, %v1022, 0.0
    %v1124 = vadd.f32 %v1122, %v1123
    %v1125 = vsel %vm848, %v1023, 0.0
    %v1126 = vadd.f32 %v1124, %v1125
    %v1127 = vsel %vm848, %v1024, 0.0
    %v1128 = vadd.f32 %v1126, %v1127
    %v1129 = vsel %vm848, %v1025, 0.0
    %v1130 = vadd.f32 %v1128, %v1129
    %v1131 = vsel %vm848, %v1026, 0.0
    %v1132 = vadd.f32 %v1130, %v1131
    %v1133 = vsel %vm848, %v1027, 0.0
    %v1134 = vadd.f32 %v1132, %v1133
    %v1135 = vsel %vm848, %v1028, 0.0
    %v1136 = vadd.f32 %v1134, %v1135
    %v1137 = vsel %vm848, %v1029, 0.0
    %v1138 = vadd.f32 %v1136, %v1137
    %v1139 = vsel %vm848, %v1030, 0.0
    %v1140 = vadd.f32 %v1138, %v1139
    %v1141 = vsel %vm848, %v1031, 0.0
    %v1142 = vadd.f32 %v1140, %v1141
    %v1143 = vsel %vm848, %v1032, 0.0
    %v1144 = vadd.f32 %v1142, %v1143
    %v1145 = vsel %vm848, %v1033, 0.0
    %v1146 = vadd.f32 %v1144, %v1145
    %v1147 = vsel %vm848, %v1034, 0.0
    %v1148 = vadd.f32 %v1146, %v1147
    %v1149 = vsel %vm848, %v1035, 0.0
    %v1150 = vadd.f32 %v1148, %v1149
    %v1151 = vsel %vm848, %v1036, 0.0
    %v1152 = vadd.f32 %v1150, %v1151
    %v1153 = vsel %vm848, %v1037, 0.0
    %v1154 = vadd.f32 %v1152, %v1153
    %v1155 = vsel %vm848, %v1038, 0.0
    %v1156 = vadd.f32 %v1154, %v1155
    %v1157 = vsel %vm848, %v1039, 0.0
    %v1158 = vadd.f32 %v1156, %v1157
    %v1159 = vsel %vm848, %v1040, 0.0
    %v1160 = vadd.f32 %v1158, %v1159
    %v1161 = vsel %vm848, %v1041, 0.0
    %v1162 = vadd.f32 %v1160, %v1161
    %v1163 = vsel %vm848, %v1042, 0.0
    %v1164 = vadd.f32 %v1162, %v1163
    %v1165 = vsel %vm848, %v1043, 0.0
    %v1166 = vadd.f32 %v1164, %v1165
    %v1167 = vsel %vm848, %v1044, 0.0
    %v1168 = vadd.f32 %v1166, %v1167
    %v1169 = vsel %vm848, %v1045, 0.0
    %v1170 = vadd.f32 %v1168, %v1169
    %v1171 = vsel %vm848, %v1046, 0.0
    %v1172 = vadd.f32 %v1170, %v1171
    %v1173 = vsel %vm848, %v1047, 0.0
    %v1174 = vadd.f32 %v1172, %v1173
    %v1175 = vrot.slane %v1174, 4
    %v1176 = vadd.f32 %v1174, %v1175
    %v1177 = vrot.slane %v1176, 2
    %v1178 = vadd.f32 %v1176, %v1177
    %v1179 = vrot.slane %v1178, 1
    %v1180 = vadd.f32 %v1178, %v1179
    %1181 = vst.msk [vmem:[%s4] sm:$0x1] %vm982, %v1180
    // Predicated region
    $region14: #{bottleneck_forward.4} parent=1 // pred_check
      _
    $region15: #{bottleneck_forward.4} parent=1 // pred_check_branch
      %1183 = sbr.rel (0) target = $region17
    $region16: #{bottleneck_forward.4} parent=1 // pred_region
      _
    $region17: #{bottleneck_forward.4} parent=1 // pred_fallthru
      _
    // Predicated region
    $region18: #{bottleneck_forward.4} parent=1 // pred_check
      _
    $region19: #{bottleneck_forward.4} parent=1 // pred_check_branch
      %1185 = sbr.rel (0) target = $region21
    $region20: #{bottleneck_forward.4} parent=1 // pred_region
      _
    $region21: #{bottleneck_forward.4} parent=1 // pred_fallthru
      _
    // Predicated region
    $region22: #{bottleneck_forward.4} parent=1 // pred_check
      _
    $region23: #{bottleneck_forward.4} parent=1 // pred_check_branch
      %1187 = sbr.rel (0) target = $region25
    $region24: #{bottleneck_forward.4} parent=1 // pred_region
      _
    $region25: #{bottleneck_forward.4} parent=1 // pred_fallthru
      _
    // Predicated region
    $region26: #{bottleneck_forward.4} parent=1 // pred_check
      _
    $region27: #{bottleneck_forward.4} parent=1 // pred_check_branch
      %1189 = sbr.rel (0) target = $region29
    $region28: #{bottleneck_forward.4} parent=1 // pred_region
      _
    $region29: #{bottleneck_forward.4} parent=1 // pred_fallthru
      _
    // Predicated region
    $region30: #{bottleneck_forward.4} parent=1 // pred_check
      _
    $region31: #{bottleneck_forward.4} parent=1 // pred_check_branch
      %1191 = sbr.rel (0) target = $region33
    $region32: #{bottleneck_forward.4} parent=1 // pred_region
      _
    $region33: #{bottleneck_forward.4} parent=1 // pred_fallthru
      _
    // Predicated region
    $region34: #{bottleneck_forward.4} parent=1 // pred_check
      _
    $region35: #{bottleneck_forward.4} parent=1 // pred_check_branch
      %1193 = sbr.rel (0) target = $region37
    $region36: #{bottleneck_forward.4} parent=1 // pred_region
      _
    $region37: #{bottleneck_forward.4} parent=1 // pred_fallthru
      _
    %1194 = vsyncpa [#allocation3], 1

// kernel: bottleneck_forward.6
$region0: #{bottleneck_forward.6}
  #allocation0 [shape = 'u32[]', space=smem, size = 0x4, offset = 0x4, fixed_abs, tag = 'smem constant byte address 0x4 - core index']
  #allocation1 [shape = 'u32[144,128]{1,0:T(1,128)}', space=vmem, size = 0x12000, scoped, tag = 'internal scratch']
  %s0 = inlined_call_operand.vmem [shape: bf16[512,8], index: 0, kind: input, shape index: {}]
  %s1 = inlined_call_operand.vmem [shape: f32[1,8], index: 1, kind: input, shape index: {}]
  %s2 = inlined_call_operand.vmem [shape: f32[1,8], index: 2, kind: input, shape index: {}]
  %s3 = inlined_call_operand.vmem [shape: bf16[8,32], index: 3, kind: input, shape index: {}]
  %s4 = inlined_call_operand.vmem [shape: f32[1,1,32], index: 4, kind: output, shape index: {0}]
  %s5 = inlined_call_operand.vmem [shape: f32[1,1,32], index: 5, kind: output, shape index: {1}]
  %6 = xla_tuple %s4, %s5
  %s7 = sld [smem:[#allocation0]]
  $region34: #{bottleneck_forward.6} parent=0
    _
  %s9 = ssub.s32 1, %s7
  %s10 = scalar_select 0, %s9, %s7
  // Predicated region
  $region2: #{bottleneck_forward.6} parent=0 // pred_check
    _
  $region3: #{bottleneck_forward.6} parent=0 // pred_check_branch
    %12 = sbr.rel (0) target = $region5
  $region4: #{bottleneck_forward.6} parent=0 // pred_region
    _
  $region5: #{bottleneck_forward.6} parent=0 // pred_fallthru
    _
  // Predicated region
  $region6: #{bottleneck_forward.6} parent=0 // pred_check
    _
  $region7: #{bottleneck_forward.6} parent=0 // pred_check_branch
    %14 = sbr.rel (0) target = $region9
  $region8: #{bottleneck_forward.6} parent=0 // pred_region
    _
  $region9: #{bottleneck_forward.6} parent=0 // pred_fallthru
    _
  // Predicated region
  $region10: #{bottleneck_forward.6} parent=0 // pred_check
    _
  $region11: #{bottleneck_forward.6} parent=0 // pred_check_branch
    %16 = sbr.rel (0) target = $region13
  $region12: #{bottleneck_forward.6} parent=0 // pred_region
    _
  $region13: #{bottleneck_forward.6} parent=0 // pred_fallthru
    _
  // Predicated region
  $region14: #{bottleneck_forward.6} parent=0 // pred_check
    _
  $region15: #{bottleneck_forward.6} parent=0 // pred_check_branch
    %18 = sbr.rel (0) target = $region17
  $region16: #{bottleneck_forward.6} parent=0 // pred_region
    _
  $region17: #{bottleneck_forward.6} parent=0 // pred_fallthru
    _
  %v20 = vld [vmem:[%s0] sm:$0xf]
  %v21 = vld [vmem:[%s0 + $0x4] sm:$0xf]
  %v22 = vld [vmem:[%s0 + $0x8] sm:$0xf]
  %v23 = vld [vmem:[%s0 + $0xc] sm:$0xf]
  %v24 = vld [vmem:[%s0 + $0x10] sm:$0xf]
  %v25 = vld [vmem:[%s0 + $0x14] sm:$0xf]
  %v26 = vld [vmem:[%s0 + $0x18] sm:$0xf]
  %v27 = vld [vmem:[%s0 + $0x1c] sm:$0xf]
  %v28 = vld [vmem:[%s0 + $0x20] sm:$0xf]
  %v29 = vld [vmem:[%s0 + $0x24] sm:$0xf]
  %v30 = vld [vmem:[%s0 + $0x28] sm:$0xf]
  %v31 = vld [vmem:[%s0 + $0x2c] sm:$0xf]
  %v32 = vld [vmem:[%s0 + $0x30] sm:$0xf]
  %v33 = vld [vmem:[%s0 + $0x34] sm:$0xf]
  %v34 = vld [vmem:[%s0 + $0x38] sm:$0xf]
  %v35 = vld [vmem:[%s0 + $0x3c] sm:$0xf]
  %v36 = vld [vmem:[%s0 + $0x40] sm:$0xf]
  %v37 = vld [vmem:[%s0 + $0x44] sm:$0xf]
  %v38 = vld [vmem:[%s0 + $0x48] sm:$0xf]
  %v39 = vld [vmem:[%s0 + $0x4c] sm:$0xf]
  %v40 = vld [vmem:[%s0 + $0x50] sm:$0xf]
  %v41 = vld [vmem:[%s0 + $0x54] sm:$0xf]
  %v42 = vld [vmem:[%s0 + $0x58] sm:$0xf]
  %v43 = vld [vmem:[%s0 + $0x5c] sm:$0xf]
  %v44 = vld [vmem:[%s0 + $0x60] sm:$0xf]
  %v45 = vld [vmem:[%s0 + $0x64] sm:$0xf]
  %v46 = vld [vmem:[%s0 + $0x68] sm:$0xf]
  %v47 = vld [vmem:[%s0 + $0x6c] sm:$0xf]
  %v48 = vld [vmem:[%s0 + $0x70] sm:$0xf]
  %v49 = vld [vmem:[%s0 + $0x74] sm:$0xf]
  %v50 = vld [vmem:[%s0 + $0x78] sm:$0xf]
  %v51 = vld [vmem:[%s0 + $0x7c] sm:$0xf]
  %v52 = vld [vmem:[%s0 + $0x80] sm:$0xf]
  %v53 = vld [vmem:[%s0 + $0x84] sm:$0xf]
  %v54 = vld [vmem:[%s0 + $0x88] sm:$0xf]
  %v55 = vld [vmem:[%s0 + $0x8c] sm:$0xf]
  %v56 = vld [vmem:[%s0 + $0x90] sm:$0xf]
  %v57 = vld [vmem:[%s0 + $0x94] sm:$0xf]
  %v58 = vld [vmem:[%s0 + $0x98] sm:$0xf]
  %v59 = vld [vmem:[%s0 + $0x9c] sm:$0xf]
  %v60 = vld [vmem:[%s0 + $0xa0] sm:$0xf]
  %v61 = vld [vmem:[%s0 + $0xa4] sm:$0xf]
  %v62 = vld [vmem:[%s0 + $0xa8] sm:$0xf]
  %v63 = vld [vmem:[%s0 + $0xac] sm:$0xf]
  %v64 = vld [vmem:[%s0 + $0xb0] sm:$0xf]
  %v65 = vld [vmem:[%s0 + $0xb4] sm:$0xf]
  %v66 = vld [vmem:[%s0 + $0xb8] sm:$0xf]
  %v67 = vld [vmem:[%s0 + $0xbc] sm:$0xf]
  %v68 = vld [vmem:[%s0 + $0xc0] sm:$0xf]
  %v69 = vld [vmem:[%s0 + $0xc4] sm:$0xf]
  %v70 = vld [vmem:[%s0 + $0xc8] sm:$0xf]
  %v71 = vld [vmem:[%s0 + $0xcc] sm:$0xf]
  %v72 = vld [vmem:[%s0 + $0xd0] sm:$0xf]
  %v73 = vld [vmem:[%s0 + $0xd4] sm:$0xf]
  %v74 = vld [vmem:[%s0 + $0xd8] sm:$0xf]
  %v75 = vld [vmem:[%s0 + $0xdc] sm:$0xf]
  %v76 = vld [vmem:[%s0 + $0xe0] sm:$0xf]
  %v77 = vld [vmem:[%s0 + $0xe4] sm:$0xf]
  %v78 = vld [vmem:[%s0 + $0xe8] sm:$0xf]
  %v79 = vld [vmem:[%s0 + $0xec] sm:$0xf]
  %v80 = vld [vmem:[%s0 + $0xf0] sm:$0xf]
  %v81 = vld [vmem:[%s0 + $0xf4] sm:$0xf]
  %v82 = vld [vmem:[%s0 + $0xf8] sm:$0xf]
  %v83 = vld [vmem:[%s0 + $0xfc] sm:$0xf]
  %v84 = vunpack.c.l.bf16 %v20
  %v85 = vunpack.c.l.bf16 %v21
  %v86 = vunpack.c.l.bf16 %v22
  %v87 = vunpack.c.l.bf16 %v23
  %v88 = vunpack.c.l.bf16 %v24
  %v89 = vunpack.c.l.bf16 %v25
  %v90 = vunpack.c.l.bf16 %v26
  %v91 = vunpack.c.l.bf16 %v27
  %v92 = vunpack.c.l.bf16 %v28
  %v93 = vunpack.c.l.bf16 %v29
  %v94 = vunpack.c.l.bf16 %v30
  %v95 = vunpack.c.l.bf16 %v31
  %v96 = vunpack.c.l.bf16 %v32
  %v97 = vunpack.c.l.bf16 %v33
  %v98 = vunpack.c.l.bf16 %v34
  %v99 = vunpack.c.l.bf16 %v35
  %v100 = vunpack.c.l.bf16 %v36
  %v101 = vunpack.c.l.bf16 %v37
  %v102 = vunpack.c.l.bf16 %v38
  %v103 = vunpack.c.l.bf16 %v39
  %v104 = vunpack.c.l.bf16 %v40
  %v105 = vunpack.c.l.bf16 %v41
  %v106 = vunpack.c.l.bf16 %v42
  %v107 = vunpack.c.l.bf16 %v43
  %v108 = vunpack.c.l.bf16 %v44
  %v109 = vunpack.c.l.bf16 %v45
  %v110 = vunpack.c.l.bf16 %v46
  %v111 = vunpack.c.l.bf16 %v47
  %v112 = vunpack.c.l.bf16 %v48
  %v113 = vunpack.c.l.bf16 %v49
  %v114 = vunpack.c.l.bf16 %v50
  %v115 = vunpack.c.l.bf16 %v51
  %v116 = vunpack.c.l.bf16 %v52
  %v117 = vunpack.c.l.bf16 %v53
  %v118 = vunpack.c.l.bf16 %v54
  %v119 = vunpack.c.l.bf16 %v55
  %v120 = vunpack.c.l.bf16 %v56
  %v121 = vunpack.c.l.bf16 %v57
  %v122 = vunpack.c.l.bf16 %v58
  %v123 = vunpack.c.l.bf16 %v59
  %v124 = vunpack.c.l.bf16 %v60
  %v125 = vunpack.c.l.bf16 %v61
  %v126 = vunpack.c.l.bf16 %v62
  %v127 = vunpack.c.l.bf16 %v63
  %v128 = vunpack.c.l.bf16 %v64
  %v129 = vunpack.c.l.bf16 %v65
  %v130 = vunpack.c.l.bf16 %v66
  %v131 = vunpack.c.l.bf16 %v67
  %v132 = vunpack.c.l.bf16 %v68
  %v133 = vunpack.c.l.bf16 %v69
  %v134 = vunpack.c.l.bf16 %v70
  %v135 = vunpack.c.l.bf16 %v71
  %v136 = vunpack.c.l.bf16 %v72
  %v137 = vunpack.c.l.bf16 %v73
  %v138 = vunpack.c.l.bf16 %v74
  %v139 = vunpack.c.l.bf16 %v75
  %v140 = vunpack.c.l.bf16 %v76
  %v141 = vunpack.c.l.bf16 %v77
  %v142 = vunpack.c.l.bf16 %v78
  %v143 = vunpack.c.l.bf16 %v79
  %v144 = vunpack.c.l.bf16 %v80
  %v145 = vunpack.c.l.bf16 %v81
  %v146 = vunpack.c.l.bf16 %v82
  %v147 = vunpack.c.l.bf16 %v83
  %v148 = vld [vmem:[%s1] sm:$0x1]
  %v150 = vlaneseq
  %v151 = vshrl.u32 %v150, 7
  %v152 = vsub.s32 0, %v151
  %v153 = vrot.slane %v148, %v152
  %v155 = vmul.f32 %v84, %v153
  %v156 = vmul.f32 %v85, %v153
  %v157 = vmul.f32 %v86, %v153
  %v158 = vmul.f32 %v87, %v153
  %v159 = vmul.f32 %v88, %v153
  %v160 = vmul.f32 %v89, %v153
  %v161 = vmul.f32 %v90, %v153
  %v162 = vmul.f32 %v91, %v153
  %v163 = vmul.f32 %v92, %v153
  %v164 = vmul.f32 %v93, %v153
  %v165 = vmul.f32 %v94, %v153
  %v166 = vmul.f32 %v95, %v153
  %v167 = vmul.f32 %v96, %v153
  %v168 = vmul.f32 %v97, %v153
  %v169 = vmul.f32 %v98, %v153
  %v170 = vmul.f32 %v99, %v153
  %v171 = vmul.f32 %v100, %v153
  %v172 = vmul.f32 %v101, %v153
  %v173 = vmul.f32 %v102, %v153
  %v174 = vmul.f32 %v103, %v153
  %v175 = vmul.f32 %v104, %v153
  %v176 = vmul.f32 %v105, %v153
  %v177 = vmul.f32 %v106, %v153
  %v178 = vmul.f32 %v107, %v153
  %v179 = vmul.f32 %v108, %v153
  %v180 = vmul.f32 %v109, %v153
  %v181 = vmul.f32 %v110, %v153
  %v182 = vmul.f32 %v111, %v153
  %v183 = vmul.f32 %v112, %v153
  %v184 = vmul.f32 %v113, %v153
  %v185 = vmul.f32 %v114, %v153
  %v186 = vmul.f32 %v115, %v153
  %v187 = vmul.f32 %v116, %v153
  %v188 = vmul.f32 %v117, %v153
  %v189 = vmul.f32 %v118, %v153
  %v190 = vmul.f32 %v119, %v153
  %v191 = vmul.f32 %v120, %v153
  %v192 = vmul.f32 %v121, %v153
  %v193 = vmul.f32 %v122, %v153
  %v194 = vmul.f32 %v123, %v153
  %v195 = vmul.f32 %v124, %v153
  %v196 = vmul.f32 %v125, %v153
  %v197 = vmul.f32 %v126, %v153
  %v198 = vmul.f32 %v127, %v153
  %v199 = vmul.f32 %v128, %v153
  %v200 = vmul.f32 %v129, %v153
  %v201 = vmul.f32 %v130, %v153
  %v202 = vmul.f32 %v131, %v153
  %v203 = vmul.f32 %v132, %v153
  %v204 = vmul.f32 %v133, %v153
  %v205 = vmul.f32 %v134, %v153
  %v206 = vmul.f32 %v135, %v153
  %v207 = vmul.f32 %v136, %v153
  %v208 = vmul.f32 %v137, %v153
  %v209 = vmul.f32 %v138, %v153
  %v210 = vmul.f32 %v139, %v153
  %v211 = vmul.f32 %v140, %v153
  %v212 = vmul.f32 %v141, %v153
  %v213 = vmul.f32 %v142, %v153
  %v214 = vmul.f32 %v143, %v153
  %v215 = vmul.f32 %v144, %v153
  %v216 = vmul.f32 %v145, %v153
  %v217 = vmul.f32 %v146, %v153
  %v218 = vmul.f32 %v147, %v153
  %v219 = vld [vmem:[%s2] sm:$0x1]
  %v221 = vlaneseq
  %v222 = vshrl.u32 %v221, 7
  %v223 = vsub.s32 0, %v222
  %v224 = vrot.slane %v219, %v223
  %v226 = vadd.f32 %v155, %v224
  %v227 = vadd.f32 %v156, %v224
  %v228 = vadd.f32 %v157, %v224
  %v229 = vadd.f32 %v158, %v224
  %v230 = vadd.f32 %v159, %v224
  %v231 = vadd.f32 %v160, %v224
  %v232 = vadd.f32 %v161, %v224
  %v233 = vadd.f32 %v162, %v224
  %v234 = vadd.f32 %v163, %v224
  %v235 = vadd.f32 %v164, %v224
  %v236 = vadd.f32 %v165, %v224
  %v237 = vadd.f32 %v166, %v224
  %v238 = vadd.f32 %v167, %v224
  %v239 = vadd.f32 %v168, %v224
  %v240 = vadd.f32 %v169, %v224
  %v241 = vadd.f32 %v170, %v224
  %v242 = vadd.f32 %v171, %v224
  %v243 = vadd.f32 %v172, %v224
  %v244 = vadd.f32 %v173, %v224
  %v245 = vadd.f32 %v174, %v224
  %v246 = vadd.f32 %v175, %v224
  %v247 = vadd.f32 %v176, %v224
  %v248 = vadd.f32 %v177, %v224
  %v249 = vadd.f32 %v178, %v224
  %v250 = vadd.f32 %v179, %v224
  %v251 = vadd.f32 %v180, %v224
  %v252 = vadd.f32 %v181, %v224
  %v253 = vadd.f32 %v182, %v224
  %v254 = vadd.f32 %v183, %v224
  %v255 = vadd.f32 %v184, %v224
  %v256 = vadd.f32 %v185, %v224
  %v257 = vadd.f32 %v186, %v224
  %v258 = vadd.f32 %v187, %v224
  %v259 = vadd.f32 %v188, %v224
  %v260 = vadd.f32 %v189, %v224
  %v261 = vadd.f32 %v190, %v224
  %v262 = vadd.f32 %v191, %v224
  %v263 = vadd.f32 %v192, %v224
  %v264 = vadd.f32 %v193, %v224
  %v265 = vadd.f32 %v194, %v224
  %v266 = vadd.f32 %v195, %v224
  %v267 = vadd.f32 %v196, %v224
  %v268 = vadd.f32 %v197, %v224
  %v269 = vadd.f32 %v198, %v224
  %v270 = vadd.f32 %v199, %v224
  %v271 = vadd.f32 %v200, %v224
  %v272 = vadd.f32 %v201, %v224
  %v273 = vadd.f32 %v202, %v224
  %v274 = vadd.f32 %v203, %v224
  %v275 = vadd.f32 %v204, %v224
  %v276 = vadd.f32 %v205, %v224
  %v277 = vadd.f32 %v206, %v224
  %v278 = vadd.f32 %v207, %v224
  %v279 = vadd.f32 %v208, %v224
  %v280 = vadd.f32 %v209, %v224
  %v281 = vadd.f32 %v210, %v224
  %v282 = vadd.f32 %v211, %v224
  %v283 = vadd.f32 %v212, %v224
  %v284 = vadd.f32 %v213, %v224
  %v285 = vadd.f32 %v214, %v224
  %v286 = vadd.f32 %v215, %v224
  %v287 = vadd.f32 %v216, %v224
  %v288 = vadd.f32 %v217, %v224
  %v289 = vadd.f32 %v218, %v224
  %v290 = vmax.f32 %v226, 0.0
  %v291 = vmax.f32 %v227, 0.0
  %v292 = vmax.f32 %v228, 0.0
  %v293 = vmax.f32 %v229, 0.0
  %v294 = vmax.f32 %v230, 0.0
  %v295 = vmax.f32 %v231, 0.0
  %v296 = vmax.f32 %v232, 0.0
  %v297 = vmax.f32 %v233, 0.0
  %v298 = vmax.f32 %v234, 0.0
  %v299 = vmax.f32 %v235, 0.0
  %v300 = vmax.f32 %v236, 0.0
  %v301 = vmax.f32 %v237, 0.0
  %v302 = vmax.f32 %v238, 0.0
  %v303 = vmax.f32 %v239, 0.0
  %v304 = vmax.f32 %v240, 0.0
  %v305 = vmax.f32 %v241, 0.0
  %v306 = vmax.f32 %v242, 0.0
  %v307 = vmax.f32 %v243, 0.0
  %v308 = vmax.f32 %v244, 0.0
  %v309 = vmax.f32 %v245, 0.0
  %v310 = vmax.f32 %v246, 0.0
  %v311 = vmax.f32 %v247, 0.0
  %v312 = vmax.f32 %v248, 0.0
  %v313 = vmax.f32 %v249, 0.0
  %v314 = vmax.f32 %v250, 0.0
  %v315 = vmax.f32 %v251, 0.0
  %v316 = vmax.f32 %v252, 0.0
  %v317 = vmax.f32 %v253, 0.0
  %v318 = vmax.f32 %v254, 0.0
  %v319 = vmax.f32 %v255, 0.0
  %v320 = vmax.f32 %v256, 0.0
  %v321 = vmax.f32 %v257, 0.0
  %v322 = vmax.f32 %v258, 0.0
  %v323 = vmax.f32 %v259, 0.0
  %v324 = vmax.f32 %v260, 0.0
  %v325 = vmax.f32 %v261, 0.0
  %v326 = vmax.f32 %v262, 0.0
  %v327 = vmax.f32 %v263, 0.0
  %v328 = vmax.f32 %v264, 0.0
  %v329 = vmax.f32 %v265, 0.0
  %v330 = vmax.f32 %v266, 0.0
  %v331 = vmax.f32 %v267, 0.0
  %v332 = vmax.f32 %v268, 0.0
  %v333 = vmax.f32 %v269, 0.0
  %v334 = vmax.f32 %v270, 0.0
  %v335 = vmax.f32 %v271, 0.0
  %v336 = vmax.f32 %v272, 0.0
  %v337 = vmax.f32 %v273, 0.0
  %v338 = vmax.f32 %v274, 0.0
  %v339 = vmax.f32 %v275, 0.0
  %v340 = vmax.f32 %v276, 0.0
  %v341 = vmax.f32 %v277, 0.0
  %v342 = vmax.f32 %v278, 0.0
  %v343 = vmax.f32 %v279, 0.0
  %v344 = vmax.f32 %v280, 0.0
  %v345 = vmax.f32 %v281, 0.0
  %v346 = vmax.f32 %v282, 0.0
  %v347 = vmax.f32 %v283, 0.0
  %v348 = vmax.f32 %v284, 0.0
  %v349 = vmax.f32 %v285, 0.0
  %v350 = vmax.f32 %v286, 0.0
  %v351 = vmax.f32 %v287, 0.0
  %v352 = vmax.f32 %v288, 0.0
  %v353 = vmax.f32 %v289, 0.0
  %v354 = vpack.c.bf16 %v291, %v290
  %v355 = vpack.c.bf16 %v293, %v292
  %v356 = vpack.c.bf16 %v295, %v294
  %v357 = vpack.c.bf16 %v297, %v296
  %v358 = vpack.c.bf16 %v299, %v298
  %v359 = vpack.c.bf16 %v301, %v300
  %v360 = vpack.c.bf16 %v303, %v302
  %v361 = vpack.c.bf16 %v305, %v304
  %v362 = vpack.c.bf16 %v307, %v306
  %v363 = vpack.c.bf16 %v309, %v308
  %v364 = vpack.c.bf16 %v311, %v310
  %v365 = vpack.c.bf16 %v313, %v312
  %v366 = vpack.c.bf16 %v315, %v314
  %v367 = vpack.c.bf16 %v317, %v316
  %v368 = vpack.c.bf16 %v319, %v318
  %v369 = vpack.c.bf16 %v321, %v320
  %v370 = vpack.c.bf16 %v323, %v322
  %v371 = vpack.c.bf16 %v325, %v324
  %v372 = vpack.c.bf16 %v327, %v326
  %v373 = vpack.c.bf16 %v329, %v328
  %v374 = vpack.c.bf16 %v331, %v330
  %v375 = vpack.c.bf16 %v333, %v332
  %v376 = vpack.c.bf16 %v335, %v334
  %v377 = vpack.c.bf16 %v337, %v336
  %v378 = vpack.c.bf16 %v339, %v338
  %v379 = vpack.c.bf16 %v341, %v340
  %v380 = vpack.c.bf16 %v343, %v342
  %v381 = vpack.c.bf16 %v345, %v344
  %v382 = vpack.c.bf16 %v347, %v346
  %v383 = vpack.c.bf16 %v349, %v348
  %v384 = vpack.c.bf16 %v351, %v350
  %v385 = vpack.c.bf16 %v353, %v352
  %v386 = vld [vmem:[%s3] sm:$0xf]
  %vm387 = vcmask 64512
  %v389 = vsel %vm387, %v354, 0
  %v392 = vsel %vm387, %v355, 0
  %v395 = vsel %vm387, %v356, 0
  %v398 = vsel %vm387, %v357, 0
  %v401 = vsel %vm387, %v358, 0
  %v404 = vsel %vm387, %v359, 0
  %v407 = vsel %vm387, %v360, 0
  %v410 = vsel %vm387, %v361, 0
  %v413 = vsel %vm387, %v362, 0
  %v416 = vsel %vm387, %v363, 0
  %v419 = vsel %vm387, %v364, 0
  %v422 = vsel %vm387, %v365, 0
  %v425 = vsel %vm387, %v366, 0
  %v428 = vsel %vm387, %v367, 0
  %v431 = vsel %vm387, %v368, 0
  %v434 = vsel %vm387, %v369, 0
  %v437 = vsel %vm387, %v370, 0
  %v440 = vsel %vm387, %v371, 0
  %v443 = vsel %vm387, %v372, 0
  %v446 = vsel %vm387, %v373, 0
  %v449 = vsel %vm387, %v374, 0
  %v452 = vsel %vm387, %v375, 0
  %v455 = vsel %vm387, %v376, 0
  %v458 = vsel %vm387, %v377, 0
  %v461 = vsel %vm387, %v378, 0
  %v464 = vsel %vm387, %v379, 0
  %v467 = vsel %vm387, %v380, 0
  %v470 = vsel %vm387, %v381, 0
  %v473 = vsel %vm387, %v382, 0
  %v476 = vsel %vm387, %v383, 0
  %v479 = vsel %vm387, %v384, 0
  %v482 = vsel %vm387, %v385, 0
  %vm484 = vcmask 1043456
  %v486 = vsel %vm484, %v386, 0
  %488 = vmatprep.subr.bf16.mxu0 0
  %489 = vmatpush1.bf16.msra.mxu0 0
  %490 = vmatprep.subr.bf16.mxu0 0
  %491 = vmatpush1.bf16.msra.mxu0 0
  %492 = vmatprep.subr.bf16.mxu0 0
  %493 = vmatpush1.bf16.msra.mxu0 0
  %494 = vmatprep.subr.bf16.mxu0 0
  %495 = vmatpush1.bf16.msra.mxu0 0
  %496 = vmatprep.subr.bf16.mxu0 0
  %497 = vmatpush1.bf16.msra.mxu0 0
  %498 = vmatprep.subr.bf16.mxu0 0
  %499 = vmatpush1.bf16.msra.mxu0 0
  %500 = vmatprep.subr.bf16.mxu0 0
  %501 = vmatpush1.bf16.msra.mxu0 0
  %502 = vmatprep.subr.bf16.mxu0 0
  %503 = vmatpush1.bf16.msra.mxu0 %v486
  %504 = vmatprep.subr.bf16.mxu0 0
  %505 = vmatpush2.bf16.msra.mxu0 0
  %506 = vmatprep.subr.bf16.mxu0 0
  %507 = vmatpush2.bf16.msra.mxu0 0
  %508 = vmatprep.subr.bf16.mxu0 0
  %509 = vmatpush2.bf16.msra.mxu0 0
  %510 = vmatprep.subr.bf16.mxu0 0
  %511 = vmatpush2.bf16.msra.mxu0 0
  %512 = vmatprep.subr.bf16.mxu0 0
  %513 = vmatpush2.bf16.msra.mxu0 0
  %514 = vmatprep.subr.bf16.mxu0 0
  %515 = vmatpush2.bf16.msra.mxu0 0
  %516 = vmatprep.subr.bf16.mxu0 0
  %517 = vmatpush2.bf16.msra.mxu0 0
  %518 = vmatprep.subr.bf16.mxu0 0
  %519 = vmatpush2.bf16.msra.mxu0 0
  %520 = vmatprep.mubr.bf16.mxu0 0
  %521 = vmatmul.mubr.bf16.gmra.mxu0 %v389
  %v522 = vpop.f32.mrf.mxu0
  %v523 = vadd.f32 0.0, %v522
  %v524 = vpop.f32.mrf.mxu0
  %v525 = vpop.f32.mrf.mxu0
  %v526 = vadd.f32 0.0, %v525
  %v527 = vpop.f32.mrf.mxu0
  %528 = vmatprep.mubr.bf16.mxu0 0
  %529 = vmatmul.mubr.bf16.gmra.mxu0 %v392
  %v530 = vpop.f32.mrf.mxu0
  %v531 = vadd.f32 0.0, %v530
  %v532 = vpop.f32.mrf.mxu0
  %v533 = vpop.f32.mrf.mxu0
  %v534 = vadd.f32 0.0, %v533
  %v535 = vpop.f32.mrf.mxu0
  %536 = vmatprep.mubr.bf16.mxu0 0
  %537 = vmatmul.mubr.bf16.gmra.mxu0 %v395
  %v538 = vpop.f32.mrf.mxu0
  %v539 = vadd.f32 0.0, %v538
  %v540 = vpop.f32.mrf.mxu0
  %v541 = vpop.f32.mrf.mxu0
  %v542 = vadd.f32 0.0, %v541
  %v543 = vpop.f32.mrf.mxu0
  %544 = vmatprep.mubr.bf16.mxu0 0
  %545 = vmatmul.mubr.bf16.gmra.mxu0 %v398
  %v546 = vpop.f32.mrf.mxu0
  %v547 = vadd.f32 0.0, %v546
  %v548 = vpop.f32.mrf.mxu0
  %v549 = vpop.f32.mrf.mxu0
  %v550 = vadd.f32 0.0, %v549
  %v551 = vpop.f32.mrf.mxu0
  %552 = vmatprep.mubr.bf16.mxu0 0
  %553 = vmatmul.mubr.bf16.gmra.mxu0 %v401
  %v554 = vpop.f32.mrf.mxu0
  %v555 = vadd.f32 0.0, %v554
  %v556 = vpop.f32.mrf.mxu0
  %v557 = vpop.f32.mrf.mxu0
  %v558 = vadd.f32 0.0, %v557
  %v559 = vpop.f32.mrf.mxu0
  %560 = vmatprep.mubr.bf16.mxu0 0
  %561 = vmatmul.mubr.bf16.gmra.mxu0 %v404
  %v562 = vpop.f32.mrf.mxu0
  %v563 = vadd.f32 0.0, %v562
  %v564 = vpop.f32.mrf.mxu0
  %v565 = vpop.f32.mrf.mxu0
  %v566 = vadd.f32 0.0, %v565
  %v567 = vpop.f32.mrf.mxu0
  %568 = vmatprep.mubr.bf16.mxu0 0
  %569 = vmatmul.mubr.bf16.gmra.mxu0 %v407
  %v570 = vpop.f32.mrf.mxu0
  %v571 = vadd.f32 0.0, %v570
  %v572 = vpop.f32.mrf.mxu0
  %v573 = vpop.f32.mrf.mxu0
  %v574 = vadd.f32 0.0, %v573
  %v575 = vpop.f32.mrf.mxu0
  %576 = vmatprep.mubr.bf16.mxu0 0
  %577 = vmatmul.mubr.bf16.gmra.mxu0 %v410
  %v578 = vpop.f32.mrf.mxu0
  %v579 = vadd.f32 0.0, %v578
  %v580 = vpop.f32.mrf.mxu0
  %v581 = vpop.f32.mrf.mxu0
  %v582 = vadd.f32 0.0, %v581
  %v583 = vpop.f32.mrf.mxu0
  %584 = vmatprep.mubr.bf16.mxu0 0
  %585 = vmatmul.mubr.bf16.gmra.mxu0 %v413
  %v586 = vpop.f32.mrf.mxu0
  %v587 = vadd.f32 0.0, %v586
  %v588 = vpop.f32.mrf.mxu0
  %v589 = vpop.f32.mrf.mxu0
  %v590 = vadd.f32 0.0, %v589
  %v591 = vpop.f32.mrf.mxu0
  %592 = vmatprep.mubr.bf16.mxu0 0
  %593 = vmatmul.mubr.bf16.gmra.mxu0 %v416
  %v594 = vpop.f32.mrf.mxu0
  %v595 = vadd.f32 0.0, %v594
  %v596 = vpop.f32.mrf.mxu0
  %v597 = vpop.f32.mrf.mxu0
  %v598 = vadd.f32 0.0, %v597
  %v599 = vpop.f32.mrf.mxu0
  %600 = vmatprep.mubr.bf16.mxu0 0
  %601 = vmatmul.mubr.bf16.gmra.mxu0 %v419
  %v602 = vpop.f32.mrf.mxu0
  %v603 = vadd.f32 0.0, %v602
  %v604 = vpop.f32.mrf.mxu0
  %v605 = vpop.f32.mrf.mxu0
  %v606 = vadd.f32 0.0, %v605
  %v607 = vpop.f32.mrf.mxu0
  %608 = vmatprep.mubr.bf16.mxu0 0
  %609 = vmatmul.mubr.bf16.gmra.mxu0 %v422
  %v610 = vpop.f32.mrf.mxu0
  %v611 = vadd.f32 0.0, %v610
  %v612 = vpop.f32.mrf.mxu0
  %v613 = vpop.f32.mrf.mxu0
  %v614 = vadd.f32 0.0, %v613
  %v615 = vpop.f32.mrf.mxu0
  %616 = vmatprep.mubr.bf16.mxu0 0
  %617 = vmatmul.mubr.bf16.gmra.mxu0 %v425
  %v618 = vpop.f32.mrf.mxu0
  %v619 = vadd.f32 0.0, %v618
  %v620 = vpop.f32.mrf.mxu0
  %v621 = vpop.f32.mrf.mxu0
  %v622 = vadd.f32 0.0, %v621
  %v623 = vpop.f32.mrf.mxu0
  %624 = vmatprep.mubr.bf16.mxu0 0
  %625 = vmatmul.mubr.bf16.gmra.mxu0 %v428
  %v626 = vpop.f32.mrf.mxu0
  %v627 = vadd.f32 0.0, %v626
  %v628 = vpop.f32.mrf.mxu0
  %v629 = vpop.f32.mrf.mxu0
  %v630 = vadd.f32 0.0, %v629
  %v631 = vpop.f32.mrf.mxu0
  %632 = vmatprep.mubr.bf16.mxu0 0
  %633 = vmatmul.mubr.bf16.gmra.mxu0 %v431
  %v634 = vpop.f32.mrf.mxu0
  %v635 = vadd.f32 0.0, %v634
  %v636 = vpop.f32.mrf.mxu0
  %v637 = vpop.f32.mrf.mxu0
  %v638 = vadd.f32 0.0, %v637
  %v639 = vpop.f32.mrf.mxu0
  %640 = vmatprep.mubr.bf16.mxu0 0
  %641 = vmatmul.mubr.bf16.gmra.mxu0 %v434
  %v642 = vpop.f32.mrf.mxu0
  %v643 = vadd.f32 0.0, %v642
  %v644 = vpop.f32.mrf.mxu0
  %v645 = vpop.f32.mrf.mxu0
  %v646 = vadd.f32 0.0, %v645
  %v647 = vpop.f32.mrf.mxu0
  %648 = vmatprep.mubr.bf16.mxu0 0
  %649 = vmatmul.mubr.bf16.gmra.mxu0 %v437
  %v650 = vpop.f32.mrf.mxu0
  %v651 = vadd.f32 0.0, %v650
  %v652 = vpop.f32.mrf.mxu0
  %v653 = vpop.f32.mrf.mxu0
  %v654 = vadd.f32 0.0, %v653
  %v655 = vpop.f32.mrf.mxu0
  %656 = vmatprep.mubr.bf16.mxu0 0
  %657 = vmatmul.mubr.bf16.gmra.mxu0 %v440
  %v658 = vpop.f32.mrf.mxu0
  %v659 = vadd.f32 0.0, %v658
  %v660 = vpop.f32.mrf.mxu0
  %v661 = vpop.f32.mrf.mxu0
  %v662 = vadd.f32 0.0, %v661
  %v663 = vpop.f32.mrf.mxu0
  %664 = vmatprep.mubr.bf16.mxu0 0
  %665 = vmatmul.mubr.bf16.gmra.mxu0 %v443
  %v666 = vpop.f32.mrf.mxu0
  %v667 = vadd.f32 0.0, %v666
  %v668 = vpop.f32.mrf.mxu0
  %v669 = vpop.f32.mrf.mxu0
  %v670 = vadd.f32 0.0, %v669
  %v671 = vpop.f32.mrf.mxu0
  %672 = vmatprep.mubr.bf16.mxu0 0
  %673 = vmatmul.mubr.bf16.gmra.mxu0 %v446
  %v674 = vpop.f32.mrf.mxu0
  %v675 = vadd.f32 0.0, %v674
  %v676 = vpop.f32.mrf.mxu0
  %v677 = vpop.f32.mrf.mxu0
  %v678 = vadd.f32 0.0, %v677
  %v679 = vpop.f32.mrf.mxu0
  %680 = vmatprep.mubr.bf16.mxu0 0
  %681 = vmatmul.mubr.bf16.gmra.mxu0 %v449
  %v682 = vpop.f32.mrf.mxu0
  %v683 = vadd.f32 0.0, %v682
  %v684 = vpop.f32.mrf.mxu0
  %v685 = vpop.f32.mrf.mxu0
  %v686 = vadd.f32 0.0, %v685
  %v687 = vpop.f32.mrf.mxu0
  %688 = vmatprep.mubr.bf16.mxu0 0
  %689 = vmatmul.mubr.bf16.gmra.mxu0 %v452
  %v690 = vpop.f32.mrf.mxu0
  %v691 = vadd.f32 0.0, %v690
  %v692 = vpop.f32.mrf.mxu0
  %v693 = vpop.f32.mrf.mxu0
  %v694 = vadd.f32 0.0, %v693
  %v695 = vpop.f32.mrf.mxu0
  %696 = vmatprep.mubr.bf16.mxu0 0
  %697 = vmatmul.mubr.bf16.gmra.mxu0 %v455
  %v698 = vpop.f32.mrf.mxu0
  %v699 = vadd.f32 0.0, %v698
  %v700 = vpop.f32.mrf.mxu0
  %v701 = vpop.f32.mrf.mxu0
  %v702 = vadd.f32 0.0, %v701
  %v703 = vpop.f32.mrf.mxu0
  %704 = vmatprep.mubr.bf16.mxu0 0
  %705 = vmatmul.mubr.bf16.gmra.mxu0 %v458
  %v706 = vpop.f32.mrf.mxu0
  %v707 = vadd.f32 0.0, %v706
  %v708 = vpop.f32.mrf.mxu0
  %v709 = vpop.f32.mrf.mxu0
  %v710 = vadd.f32 0.0, %v709
  %v711 = vpop.f32.mrf.mxu0
  %712 = vmatprep.mubr.bf16.mxu0 0
  %713 = vmatmul.mubr.bf16.gmra.mxu0 %v461
  %v714 = vpop.f32.mrf.mxu0
  %v715 = vadd.f32 0.0, %v714
  %v716 = vpop.f32.mrf.mxu0
  %v717 = vpop.f32.mrf.mxu0
  %v718 = vadd.f32 0.0, %v717
  %v719 = vpop.f32.mrf.mxu0
  %720 = vmatprep.mubr.bf16.mxu0 0
  %721 = vmatmul.mubr.bf16.gmra.mxu0 %v464
  %v722 = vpop.f32.mrf.mxu0
  %v723 = vadd.f32 0.0, %v722
  %v724 = vpop.f32.mrf.mxu0
  %v725 = vpop.f32.mrf.mxu0
  %v726 = vadd.f32 0.0, %v725
  %v727 = vpop.f32.mrf.mxu0
  %728 = vmatprep.mubr.bf16.mxu0 0
  %729 = vmatmul.mubr.bf16.gmra.mxu0 %v467
  %v730 = vpop.f32.mrf.mxu0
  %v731 = vadd.f32 0.0, %v730
  %v732 = vpop.f32.mrf.mxu0
  %v733 = vpop.f32.mrf.mxu0
  %v734 = vadd.f32 0.0, %v733
  %v735 = vpop.f32.mrf.mxu0
  %736 = vmatprep.mubr.bf16.mxu0 0
  %737 = vmatmul.mubr.bf16.gmra.mxu0 %v470
  %v738 = vpop.f32.mrf.mxu0
  %v739 = vadd.f32 0.0, %v738
  %v740 = vpop.f32.mrf.mxu0
  %v741 = vpop.f32.mrf.mxu0
  %v742 = vadd.f32 0.0, %v741
  %v743 = vpop.f32.mrf.mxu0
  %744 = vmatprep.mubr.bf16.mxu0 0
  %745 = vmatmul.mubr.bf16.gmra.mxu0 %v473
  %v746 = vpop.f32.mrf.mxu0
  %v747 = vadd.f32 0.0, %v746
  %v748 = vpop.f32.mrf.mxu0
  %v749 = vpop.f32.mrf.mxu0
  %v750 = vadd.f32 0.0, %v749
  %v751 = vpop.f32.mrf.mxu0
  %752 = vmatprep.mubr.bf16.mxu0 0
  %753 = vmatmul.mubr.bf16.gmra.mxu0 %v476
  %v754 = vpop.f32.mrf.mxu0
  %v755 = vadd.f32 0.0, %v754
  %v756 = vpop.f32.mrf.mxu0
  %v757 = vpop.f32.mrf.mxu0
  %v758 = vadd.f32 0.0, %v757
  %v759 = vpop.f32.mrf.mxu0
  %760 = vmatprep.mubr.bf16.mxu0 0
  %761 = vmatmul.mubr.bf16.gmra.mxu0 %v479
  %v762 = vpop.f32.mrf.mxu0
  %v763 = vadd.f32 0.0, %v762
  %v764 = vpop.f32.mrf.mxu0
  %v765 = vpop.f32.mrf.mxu0
  %v766 = vadd.f32 0.0, %v765
  %v767 = vpop.f32.mrf.mxu0
  %768 = vmatprep.mubr.bf16.mxu0 0
  %769 = vmatmul.mubr.bf16.gmra.mxu0 %v482
  %v770 = vpop.f32.mrf.mxu0
  %v771 = vadd.f32 0.0, %v770
  %v772 = vpop.f32.mrf.mxu0
  %v773 = vpop.f32.mrf.mxu0
  %v774 = vadd.f32 0.0, %v773
  %v775 = vpop.f32.mrf.mxu0
  %776 = vdwg.mxu0
  %vm777 = vcmask 261120
  %v778 = vsel %vm777, %v523, 0.0
  %v779 = vsel %vm777, %v526, 0.0
  %v780 = vadd.f32 %v778, %v779
  %v781 = vsel %vm777, %v531, 0.0
  %v782 = vadd.f32 %v780, %v781
  %v783 = vsel %vm777, %v534, 0.0
  %v784 = vadd.f32 %v782, %v783
  %v785 = vsel %vm777, %v539, 0.0
  %v786 = vadd.f32 %v784, %v785
  %v787 = vsel %vm777, %v542, 0.0
  %v788 = vadd.f32 %v786, %v787
  %v789 = vsel %vm777, %v547, 0.0
  %v790 = vadd.f32 %v788, %v789
  %v791 = vsel %vm777, %v550, 0.0
  %v792 = vadd.f32 %v790, %v791
  %v793 = vsel %vm777, %v555, 0.0
  %v794 = vadd.f32 %v792, %v793
  %v795 = vsel %vm777, %v558, 0.0
  %v796 = vadd.f32 %v794, %v795
  %v797 = vsel %vm777, %v563, 0.0
  %v798 = vadd.f32 %v796, %v797
  %v799 = vsel %vm777, %v566, 0.0
  %v800 = vadd.f32 %v798, %v799
  %v801 = vsel %vm777, %v571, 0.0
  %v802 = vadd.f32 %v800, %v801
  %v803 = vsel %vm777, %v574, 0.0
  %v804 = vadd.f32 %v802, %v803
  %v805 = vsel %vm777, %v579, 0.0
  %v806 = vadd.f32 %v804, %v805
  %v807 = vsel %vm777, %v582, 0.0
  %v808 = vadd.f32 %v806, %v807
  %v809 = vsel %vm777, %v587, 0.0
  %v810 = vadd.f32 %v808, %v809
  %v811 = vsel %vm777, %v590, 0.0
  %v812 = vadd.f32 %v810, %v811
  %v813 = vsel %vm777, %v595, 0.0
  %v814 = vadd.f32 %v812, %v813
  %v815 = vsel %vm777, %v598, 0.0
  %v816 = vadd.f32 %v814, %v815
  %v817 = vsel %vm777, %v603, 0.0
  %v818 = vadd.f32 %v816, %v817
  %v819 = vsel %vm777, %v606, 0.0
  %v820 = vadd.f32 %v818, %v819
  %v821 = vsel %vm777, %v611, 0.0
  %v822 = vadd.f32 %v820, %v821
  %v823 = vsel %vm777, %v614, 0.0
  %v824 = vadd.f32 %v822, %v823
  %v825 = vsel %vm777, %v619, 0.0
  %v826 = vadd.f32 %v824, %v825
  %v827 = vsel %vm777, %v622, 0.0
  %v828 = vadd.f32 %v826, %v827
  %v829 = vsel %vm777, %v627, 0.0
  %v830 = vadd.f32 %v828, %v829
  %v831 = vsel %vm777, %v630, 0.0
  %v832 = vadd.f32 %v830, %v831
  %v833 = vsel %vm777, %v635, 0.0
  %v834 = vadd.f32 %v832, %v833
  %v835 = vsel %vm777, %v638, 0.0
  %v836 = vadd.f32 %v834, %v835
  %v837 = vsel %vm777, %v643, 0.0
  %v838 = vadd.f32 %v836, %v837
  %v839 = vsel %vm777, %v646, 0.0
  %v840 = vadd.f32 %v838, %v839
  %v841 = vsel %vm777, %v651, 0.0
  %v842 = vadd.f32 %v840, %v841
  %v843 = vsel %vm777, %v654, 0.0
  %v844 = vadd.f32 %v842, %v843
  %v845 = vsel %vm777, %v659, 0.0
  %v846 = vadd.f32 %v844, %v845
  %v847 = vsel %vm777, %v662, 0.0
  %v848 = vadd.f32 %v846, %v847
  %v849 = vsel %vm777, %v667, 0.0
  %v850 = vadd.f32 %v848, %v849
  %v851 = vsel %vm777, %v670, 0.0
  %v852 = vadd.f32 %v850, %v851
  %v853 = vsel %vm777, %v675, 0.0
  %v854 = vadd.f32 %v852, %v853
  %v855 = vsel %vm777, %v678, 0.0
  %v856 = vadd.f32 %v854, %v855
  %v857 = vsel %vm777, %v683, 0.0
  %v858 = vadd.f32 %v856, %v857
  %v859 = vsel %vm777, %v686, 0.0
  %v860 = vadd.f32 %v858, %v859
  %v861 = vsel %vm777, %v691, 0.0
  %v862 = vadd.f32 %v860, %v861
  %v863 = vsel %vm777, %v694, 0.0
  %v864 = vadd.f32 %v862, %v863
  %v865 = vsel %vm777, %v699, 0.0
  %v866 = vadd.f32 %v864, %v865
  %v867 = vsel %vm777, %v702, 0.0
  %v868 = vadd.f32 %v866, %v867
  %v869 = vsel %vm777, %v707, 0.0
  %v870 = vadd.f32 %v868, %v869
  %v871 = vsel %vm777, %v710, 0.0
  %v872 = vadd.f32 %v870, %v871
  %v873 = vsel %vm777, %v715, 0.0
  %v874 = vadd.f32 %v872, %v873
  %v875 = vsel %vm777, %v718, 0.0
  %v876 = vadd.f32 %v874, %v875
  %v877 = vsel %vm777, %v723, 0.0
  %v878 = vadd.f32 %v876, %v877
  %v879 = vsel %vm777, %v726, 0.0
  %v880 = vadd.f32 %v878, %v879
  %v881 = vsel %vm777, %v731, 0.0
  %v882 = vadd.f32 %v880, %v881
  %v883 = vsel %vm777, %v734, 0.0
  %v884 = vadd.f32 %v882, %v883
  %v885 = vsel %vm777, %v739, 0.0
  %v886 = vadd.f32 %v884, %v885
  %v887 = vsel %vm777, %v742, 0.0
  %v888 = vadd.f32 %v886, %v887
  %v889 = vsel %vm777, %v747, 0.0
  %v890 = vadd.f32 %v888, %v889
  %v891 = vsel %vm777, %v750, 0.0
  %v892 = vadd.f32 %v890, %v891
  %v893 = vsel %vm777, %v755, 0.0
  %v894 = vadd.f32 %v892, %v893
  %v895 = vsel %vm777, %v758, 0.0
  %v896 = vadd.f32 %v894, %v895
  %v897 = vsel %vm777, %v763, 0.0
  %v898 = vadd.f32 %v896, %v897
  %v899 = vsel %vm777, %v766, 0.0
  %v900 = vadd.f32 %v898, %v899
  %v901 = vsel %vm777, %v771, 0.0
  %v902 = vadd.f32 %v900, %v901
  %v903 = vsel %vm777, %v774, 0.0
  %v904 = vadd.f32 %v902, %v903
  %v905 = vrot.slane %v904, 4
  %v906 = vadd.f32 %v904, %v905
  %v907 = vrot.slane %v906, 2
  %v908 = vadd.f32 %v906, %v907
  %v909 = vrot.slane %v908, 1
  %v910 = vadd.f32 %v908, %v909
  %vm911 = vcmask 253952
  %912 = vst.msk [vmem:[%s4] sm:$0x1] %vm911, %v910
  %v913 = vmul.f32 %v523, %v523
  %v914 = vmul.f32 %v526, %v526
  %v915 = vmul.f32 %v531, %v531
  %v916 = vmul.f32 %v534, %v534
  %v917 = vmul.f32 %v539, %v539
  %v918 = vmul.f32 %v542, %v542
  %v919 = vmul.f32 %v547, %v547
  %v920 = vmul.f32 %v550, %v550
  %v921 = vmul.f32 %v555, %v555
  %v922 = vmul.f32 %v558, %v558
  %v923 = vmul.f32 %v563, %v563
  %v924 = vmul.f32 %v566, %v566
  %v925 = vmul.f32 %v571, %v571
  %v926 = vmul.f32 %v574, %v574
  %v927 = vmul.f32 %v579, %v579
  %v928 = vmul.f32 %v582, %v582
  %v929 = vmul.f32 %v587, %v587
  %v930 = vmul.f32 %v590, %v590
  %v931 = vmul.f32 %v595, %v595
  %v932 = vmul.f32 %v598, %v598
  %v933 = vmul.f32 %v603, %v603
  %v934 = vmul.f32 %v606, %v606
  %v935 = vmul.f32 %v611, %v611
  %v936 = vmul.f32 %v614, %v614
  %v937 = vmul.f32 %v619, %v619
  %v938 = vmul.f32 %v622, %v622
  %v939 = vmul.f32 %v627, %v627
  %v940 = vmul.f32 %v630, %v630
  %v941 = vmul.f32 %v635, %v635
  %v942 = vmul.f32 %v638, %v638
  %v943 = vmul.f32 %v643, %v643
  %v944 = vmul.f32 %v646, %v646
  %v945 = vmul.f32 %v651, %v651
  %v946 = vmul.f32 %v654, %v654
  %v947 = vmul.f32 %v659, %v659
  %v948 = vmul.f32 %v662, %v662
  %v949 = vmul.f32 %v667, %v667
  %v950 = vmul.f32 %v670, %v670
  %v951 = vmul.f32 %v675, %v675
  %v952 = vmul.f32 %v678, %v678
  %v953 = vmul.f32 %v683, %v683
  %v954 = vmul.f32 %v686, %v686
  %v955 = vmul.f32 %v691, %v691
  %v956 = vmul.f32 %v694, %v694
  %v957 = vmul.f32 %v699, %v699
  %v958 = vmul.f32 %v702, %v702
  %v959 = vmul.f32 %v707, %v707
  %v960 = vmul.f32 %v710, %v710
  %v961 = vmul.f32 %v715, %v715
  %v962 = vmul.f32 %v718, %v718
  %v963 = vmul.f32 %v723, %v723
  %v964 = vmul.f32 %v726, %v726
  %v965 = vmul.f32 %v731, %v731
  %v966 = vmul.f32 %v734, %v734
  %v967 = vmul.f32 %v739, %v739
  %v968 = vmul.f32 %v742, %v742
  %v969 = vmul.f32 %v747, %v747
  %v970 = vmul.f32 %v750, %v750
  %v971 = vmul.f32 %v755, %v755
  %v972 = vmul.f32 %v758, %v758
  %v973 = vmul.f32 %v763, %v763
  %v974 = vmul.f32 %v766, %v766
  %v975 = vmul.f32 %v771, %v771
  %v976 = vmul.f32 %v774, %v774
  %v977 = vsel %vm777, %v913, 0.0
  %v978 = vsel %vm777, %v914, 0.0
  %v979 = vadd.f32 %v977, %v978
  %v980 = vsel %vm777, %v915, 0.0
  %v981 = vadd.f32 %v979, %v980
  %v982 = vsel %vm777, %v916, 0.0
  %v983 = vadd.f32 %v981, %v982
  %v984 = vsel %vm777, %v917, 0.0
  %v985 = vadd.f32 %v983, %v984
  %v986 = vsel %vm777, %v918, 0.0
  %v987 = vadd.f32 %v985, %v986
  %v988 = vsel %vm777, %v919, 0.0
  %v989 = vadd.f32 %v987, %v988
  %v990 = vsel %vm777, %v920, 0.0
  %v991 = vadd.f32 %v989, %v990
  %v992 = vsel %vm777, %v921, 0.0
  %v993 = vadd.f32 %v991, %v992
  %v994 = vsel %vm777, %v922, 0.0
  %v995 = vadd.f32 %v993, %v994
  %v996 = vsel %vm777, %v923, 0.0
  %v997 = vadd.f32 %v995, %v996
  %v998 = vsel %vm777, %v924, 0.0
  %v999 = vadd.f32 %v997, %v998
  %v1000 = vsel %vm777, %v925, 0.0
  %v1001 = vadd.f32 %v999, %v1000
  %v1002 = vsel %vm777, %v926, 0.0
  %v1003 = vadd.f32 %v1001, %v1002
  %v1004 = vsel %vm777, %v927, 0.0
  %v1005 = vadd.f32 %v1003, %v1004
  %v1006 = vsel %vm777, %v928, 0.0
  %v1007 = vadd.f32 %v1005, %v1006
  %v1008 = vsel %vm777, %v929, 0.0
  %v1009 = vadd.f32 %v1007, %v1008
  %v1010 = vsel %vm777, %v930, 0.0
  %v1011 = vadd.f32 %v1009, %v1010
  %v1012 = vsel %vm777, %v931, 0.0
  %v1013 = vadd.f32 %v1011, %v1012
  %v1014 = vsel %vm777, %v932, 0.0
  %v1015 = vadd.f32 %v1013, %v1014
  %v1016 = vsel %vm777, %v933, 0.0
  %v1017 = vadd.f32 %v1015, %v1016
  %v1018 = vsel %vm777, %v934, 0.0
  %v1019 = vadd.f32 %v1017, %v1018
  %v1020 = vsel %vm777, %v935, 0.0
  %v1021 = vadd.f32 %v1019, %v1020
  %v1022 = vsel %vm777, %v936, 0.0
  %v1023 = vadd.f32 %v1021, %v1022
  %v1024 = vsel %vm777, %v937, 0.0
  %v1025 = vadd.f32 %v1023, %v1024
  %v1026 = vsel %vm777, %v938, 0.0
  %v1027 = vadd.f32 %v1025, %v1026
  %v1028 = vsel %vm777, %v939, 0.0
  %v1029 = vadd.f32 %v1027, %v1028
  %v1030 = vsel %vm777, %v940, 0.0
  %v1031 = vadd.f32 %v1029, %v1030
  %v1032 = vsel %vm777, %v941, 0.0
  %v1033 = vadd.f32 %v1031, %v1032
  %v1034 = vsel %vm777, %v942, 0.0
  %v1035 = vadd.f32 %v1033, %v1034
  %v1036 = vsel %vm777, %v943, 0.0
  %v1037 = vadd.f32 %v1035, %v1036
  %v1038 = vsel %vm777, %v944, 0.0
  %v1039 = vadd.f32 %v1037, %v1038
  %v1040 = vsel %vm777, %v945, 0.0
  %v1041 = vadd.f32 %v1039, %v1040
  %v1042 = vsel %vm777, %v946, 0.0
  %v1043 = vadd.f32 %v1041, %v1042
  %v1044 = vsel %vm777, %v947, 0.0
  %v1045 = vadd.f32 %v1043, %v1044
  %v1046 = vsel %vm777, %v948, 0.0
  %v1047 = vadd.f32 %v1045, %v1046
  %v1048 = vsel %vm777, %v949, 0.0
  %v1049 = vadd.f32 %v1047, %v1048
  %v1050 = vsel %vm777, %v950, 0.0
  %v1051 = vadd.f32 %v1049, %v1050
  %v1052 = vsel %vm777, %v951, 0.0
  %v1053 = vadd.f32 %v1051, %v1052
  %v1054 = vsel %vm777, %v952, 0.0
  %v1055 = vadd.f32 %v1053, %v1054
  %v1056 = vsel %vm777, %v953, 0.0
  %v1057 = vadd.f32 %v1055, %v1056
  %v1058 = vsel %vm777, %v954, 0.0
  %v1059 = vadd.f32 %v1057, %v1058
  %v1060 = vsel %vm777, %v955, 0.0
  %v1061 = vadd.f32 %v1059, %v1060
  %v1062 = vsel %vm777, %v956, 0.0
  %v1063 = vadd.f32 %v1061, %v1062
  %v1064 = vsel %vm777, %v957, 0.0
  %v1065 = vadd.f32 %v1063, %v1064
  %v1066 = vsel %vm777, %v958, 0.0
  %v1067 = vadd.f32 %v1065, %v1066
  %v1068 = vsel %vm777, %v959, 0.0
  %v1069 = vadd.f32 %v1067, %v1068
  %v1070 = vsel %vm777, %v960, 0.0
  %v1071 = vadd.f32 %v1069, %v1070
  %v1072 = vsel %vm777, %v961, 0.0
  %v1073 = vadd.f32 %v1071, %v1072
  %v1074 = vsel %vm777, %v962, 0.0
  %v1075 = vadd.f32 %v1073, %v1074
  %v1076 = vsel %vm777, %v963, 0.0
  %v1077 = vadd.f32 %v1075, %v1076
  %v1078 = vsel %vm777, %v964, 0.0
  %v1079 = vadd.f32 %v1077, %v1078
  %v1080 = vsel %vm777, %v965, 0.0
  %v1081 = vadd.f32 %v1079, %v1080
  %v1082 = vsel %vm777, %v966, 0.0
  %v1083 = vadd.f32 %v1081, %v1082
  %v1084 = vsel %vm777, %v967, 0.0
  %v1085 = vadd.f32 %v1083, %v1084
  %v1086 = vsel %vm777, %v968, 0.0
  %v1087 = vadd.f32 %v1085, %v1086
  %v1088 = vsel %vm777, %v969, 0.0
  %v1089 = vadd.f32 %v1087, %v1088
  %v1090 = vsel %vm777, %v970, 0.0
  %v1091 = vadd.f32 %v1089, %v1090
  %v1092 = vsel %vm777, %v971, 0.0
  %v1093 = vadd.f32 %v1091, %v1092
  %v1094 = vsel %vm777, %v972, 0.0
  %v1095 = vadd.f32 %v1093, %v1094
  %v1096 = vsel %vm777, %v973, 0.0
  %v1097 = vadd.f32 %v1095, %v1096
  %v1098 = vsel %vm777, %v974, 0.0
  %v1099 = vadd.f32 %v1097, %v1098
  %v1100 = vsel %vm777, %v975, 0.0
  %v1101 = vadd.f32 %v1099, %v1100
  %v1102 = vsel %vm777, %v976, 0.0
  %v1103 = vadd.f32 %v1101, %v1102
  %v1104 = vrot.slane %v1103, 4
  %v1105 = vadd.f32 %v1103, %v1104
  %v1106 = vrot.slane %v1105, 2
  %v1107 = vadd.f32 %v1105, %v1106
  %v1108 = vrot.slane %v1107, 1
  %v1109 = vadd.f32 %v1107, %v1108
  %1110 = vst.msk [vmem:[%s5] sm:$0x1] %vm911, %v1109
  // Predicated region
  $region18: #{bottleneck_forward.6} parent=0 // pred_check
    _
  $region19: #{bottleneck_forward.6} parent=0 // pred_check_branch
    %1112 = sbr.rel (0) target = $region21
  $region20: #{bottleneck_forward.6} parent=0 // pred_region
    _
  $region21: #{bottleneck_forward.6} parent=0 // pred_fallthru
    _
  // Predicated region
  $region22: #{bottleneck_forward.6} parent=0 // pred_check
    _
  $region23: #{bottleneck_forward.6} parent=0 // pred_check_branch
    %1114 = sbr.rel (0) target = $region25
  $region24: #{bottleneck_forward.6} parent=0 // pred_region
    _
  $region25: #{bottleneck_forward.6} parent=0 // pred_fallthru
    _
  // Predicated region
  $region26: #{bottleneck_forward.6} parent=0 // pred_check
    _
  $region27: #{bottleneck_forward.6} parent=0 // pred_check_branch
    %1116 = sbr.rel (0) target = $region29
  $region28: #{bottleneck_forward.6} parent=0 // pred_region
    _
  $region29: #{bottleneck_forward.6} parent=0 // pred_fallthru
    _
  // Predicated region
  $region30: #{bottleneck_forward.6} parent=0 // pred_check
    _
  $region31: #{bottleneck_forward.6} parent=0 // pred_check_branch
    %1118 = sbr.rel (0) target = $region33
  $region32: #{bottleneck_forward.6} parent=0 // pred_region
    _
  $region33: #{bottleneck_forward.6} parent=0 // pred_fallthru
    _

// kernel: bottleneck_forward.7
$region0: #{bottleneck_forward.7}
  #allocation0 [shape = 'u32[]', space=smem, size = 0x4, offset = 0x4, fixed_abs, tag = 'smem constant byte address 0x4 - core index']
  #allocation1 [shape = 'u32[144,128]{1,0:T(1,128)}', space=vmem, size = 0x12000, scoped, tag = 'internal scratch']
  %s0 = inlined_call_operand.vmem [shape: bf16[512,8], index: 0, kind: input, shape index: {}]
  %s1 = inlined_call_operand.vmem [shape: f32[512,32], index: 1, kind: input, shape index: {}]
  %s2 = inlined_call_operand.vmem [shape: f32[1,8], index: 2, kind: input, shape index: {}]
  %s3 = inlined_call_operand.vmem [shape: f32[1,8], index: 3, kind: input, shape index: {}]
  %s4 = inlined_call_operand.vmem [shape: f32[1,32], index: 4, kind: input, shape index: {}]
  %s5 = inlined_call_operand.vmem [shape: bf16[8,32], index: 5, kind: input, shape index: {}]
  %s6 = inlined_call_operand.hbm [shape: f32[512,32], index: 6, kind: output, shape index: {}]
  %s7 = sld [smem:[#allocation0]]
  $region34: #{bottleneck_forward.7} parent=0
    _
  %s9 = ssub.s32 1, %s7
  %s10 = scalar_select 0, %s9, %s7
  $region1: #{bottleneck_forward.7} parent=0
    #allocation2 [shape = 'u8[262144]{0}', space=vmem, size = 0x40000, scoped, tag = 'output window, operand 0, single buffered']
    #allocation3 [shape = 's32[1]{0}', space=sflag, size = 0x4, scoped, tag = 'scoped memory for bottleneck_forward.7']
    %11 = vsyncpa [#allocation3], 0
    // Predicated region
    $region2: #{bottleneck_forward.7} parent=1 // pred_check
      _
    $region3: #{bottleneck_forward.7} parent=1 // pred_check_branch
      %13 = sbr.rel (0) target = $region5
    $region4: #{bottleneck_forward.7} parent=1 // pred_region
      _
    $region5: #{bottleneck_forward.7} parent=1 // pred_fallthru
      _
    // Predicated region
    $region6: #{bottleneck_forward.7} parent=1 // pred_check
      _
    $region7: #{bottleneck_forward.7} parent=1 // pred_check_branch
      %15 = sbr.rel (0) target = $region9
    $region8: #{bottleneck_forward.7} parent=1 // pred_region
      _
    $region9: #{bottleneck_forward.7} parent=1 // pred_fallthru
      _
    // Predicated region
    $region10: #{bottleneck_forward.7} parent=1 // pred_check
      _
    $region11: #{bottleneck_forward.7} parent=1 // pred_check_branch
      %17 = sbr.rel (0) target = $region13
    $region12: #{bottleneck_forward.7} parent=1 // pred_region
      _
    $region13: #{bottleneck_forward.7} parent=1 // pred_fallthru
      _
    // Predicated region
    $region14: #{bottleneck_forward.7} parent=1 // pred_check
      _
    $region15: #{bottleneck_forward.7} parent=1 // pred_check_branch
      %19 = sbr.rel (0) target = $region17
    $region16: #{bottleneck_forward.7} parent=1 // pred_region
      _
    $region17: #{bottleneck_forward.7} parent=1 // pred_fallthru
      _
    // Predicated region
    $region18: #{bottleneck_forward.7} parent=1 // pred_check
      _
    $region19: #{bottleneck_forward.7} parent=1 // pred_check_branch
      %21 = sbr.rel (0) target = $region21
    $region20: #{bottleneck_forward.7} parent=1 // pred_region
      _
    $region21: #{bottleneck_forward.7} parent=1 // pred_fallthru
      _
    // Predicated region
    $region22: #{bottleneck_forward.7} parent=1 // pred_check
      _
    $region23: #{bottleneck_forward.7} parent=1 // pred_check_branch
      %23 = sbr.rel (0) target = $region25
    $region24: #{bottleneck_forward.7} parent=1 // pred_region
      _
    $region25: #{bottleneck_forward.7} parent=1 // pred_fallthru
      _
    %v25 = vld [vmem:[%s0] sm:$0xf]
    %v26 = vld [vmem:[%s0 + $0x4] sm:$0xf]
    %v27 = vld [vmem:[%s0 + $0x8] sm:$0xf]
    %v28 = vld [vmem:[%s0 + $0xc] sm:$0xf]
    %v29 = vld [vmem:[%s0 + $0x10] sm:$0xf]
    %v30 = vld [vmem:[%s0 + $0x14] sm:$0xf]
    %v31 = vld [vmem:[%s0 + $0x18] sm:$0xf]
    %v32 = vld [vmem:[%s0 + $0x1c] sm:$0xf]
    %v33 = vld [vmem:[%s0 + $0x20] sm:$0xf]
    %v34 = vld [vmem:[%s0 + $0x24] sm:$0xf]
    %v35 = vld [vmem:[%s0 + $0x28] sm:$0xf]
    %v36 = vld [vmem:[%s0 + $0x2c] sm:$0xf]
    %v37 = vld [vmem:[%s0 + $0x30] sm:$0xf]
    %v38 = vld [vmem:[%s0 + $0x34] sm:$0xf]
    %v39 = vld [vmem:[%s0 + $0x38] sm:$0xf]
    %v40 = vld [vmem:[%s0 + $0x3c] sm:$0xf]
    %v41 = vld [vmem:[%s0 + $0x40] sm:$0xf]
    %v42 = vld [vmem:[%s0 + $0x44] sm:$0xf]
    %v43 = vld [vmem:[%s0 + $0x48] sm:$0xf]
    %v44 = vld [vmem:[%s0 + $0x4c] sm:$0xf]
    %v45 = vld [vmem:[%s0 + $0x50] sm:$0xf]
    %v46 = vld [vmem:[%s0 + $0x54] sm:$0xf]
    %v47 = vld [vmem:[%s0 + $0x58] sm:$0xf]
    %v48 = vld [vmem:[%s0 + $0x5c] sm:$0xf]
    %v49 = vld [vmem:[%s0 + $0x60] sm:$0xf]
    %v50 = vld [vmem:[%s0 + $0x64] sm:$0xf]
    %v51 = vld [vmem:[%s0 + $0x68] sm:$0xf]
    %v52 = vld [vmem:[%s0 + $0x6c] sm:$0xf]
    %v53 = vld [vmem:[%s0 + $0x70] sm:$0xf]
    %v54 = vld [vmem:[%s0 + $0x74] sm:$0xf]
    %v55 = vld [vmem:[%s0 + $0x78] sm:$0xf]
    %v56 = vld [vmem:[%s0 + $0x7c] sm:$0xf]
    %v57 = vld [vmem:[%s0 + $0x80] sm:$0xf]
    %v58 = vld [vmem:[%s0 + $0x84] sm:$0xf]
    %v59 = vld [vmem:[%s0 + $0x88] sm:$0xf]
    %v60 = vld [vmem:[%s0 + $0x8c] sm:$0xf]
    %v61 = vld [vmem:[%s0 + $0x90] sm:$0xf]
    %v62 = vld [vmem:[%s0 + $0x94] sm:$0xf]
    %v63 = vld [vmem:[%s0 + $0x98] sm:$0xf]
    %v64 = vld [vmem:[%s0 + $0x9c] sm:$0xf]
    %v65 = vld [vmem:[%s0 + $0xa0] sm:$0xf]
    %v66 = vld [vmem:[%s0 + $0xa4] sm:$0xf]
    %v67 = vld [vmem:[%s0 + $0xa8] sm:$0xf]
    %v68 = vld [vmem:[%s0 + $0xac] sm:$0xf]
    %v69 = vld [vmem:[%s0 + $0xb0] sm:$0xf]
    %v70 = vld [vmem:[%s0 + $0xb4] sm:$0xf]
    %v71 = vld [vmem:[%s0 + $0xb8] sm:$0xf]
    %v72 = vld [vmem:[%s0 + $0xbc] sm:$0xf]
    %v73 = vld [vmem:[%s0 + $0xc0] sm:$0xf]
    %v74 = vld [vmem:[%s0 + $0xc4] sm:$0xf]
    %v75 = vld [vmem:[%s0 + $0xc8] sm:$0xf]
    %v76 = vld [vmem:[%s0 + $0xcc] sm:$0xf]
    %v77 = vld [vmem:[%s0 + $0xd0] sm:$0xf]
    %v78 = vld [vmem:[%s0 + $0xd4] sm:$0xf]
    %v79 = vld [vmem:[%s0 + $0xd8] sm:$0xf]
    %v80 = vld [vmem:[%s0 + $0xdc] sm:$0xf]
    %v81 = vld [vmem:[%s0 + $0xe0] sm:$0xf]
    %v82 = vld [vmem:[%s0 + $0xe4] sm:$0xf]
    %v83 = vld [vmem:[%s0 + $0xe8] sm:$0xf]
    %v84 = vld [vmem:[%s0 + $0xec] sm:$0xf]
    %v85 = vld [vmem:[%s0 + $0xf0] sm:$0xf]
    %v86 = vld [vmem:[%s0 + $0xf4] sm:$0xf]
    %v87 = vld [vmem:[%s0 + $0xf8] sm:$0xf]
    %v88 = vld [vmem:[%s0 + $0xfc] sm:$0xf]
    %v89 = vunpack.c.l.bf16 %v25
    %v90 = vunpack.c.l.bf16 %v26
    %v91 = vunpack.c.l.bf16 %v27
    %v92 = vunpack.c.l.bf16 %v28
    %v93 = vunpack.c.l.bf16 %v29
    %v94 = vunpack.c.l.bf16 %v30
    %v95 = vunpack.c.l.bf16 %v31
    %v96 = vunpack.c.l.bf16 %v32
    %v97 = vunpack.c.l.bf16 %v33
    %v98 = vunpack.c.l.bf16 %v34
    %v99 = vunpack.c.l.bf16 %v35
    %v100 = vunpack.c.l.bf16 %v36
    %v101 = vunpack.c.l.bf16 %v37
    %v102 = vunpack.c.l.bf16 %v38
    %v103 = vunpack.c.l.bf16 %v39
    %v104 = vunpack.c.l.bf16 %v40
    %v105 = vunpack.c.l.bf16 %v41
    %v106 = vunpack.c.l.bf16 %v42
    %v107 = vunpack.c.l.bf16 %v43
    %v108 = vunpack.c.l.bf16 %v44
    %v109 = vunpack.c.l.bf16 %v45
    %v110 = vunpack.c.l.bf16 %v46
    %v111 = vunpack.c.l.bf16 %v47
    %v112 = vunpack.c.l.bf16 %v48
    %v113 = vunpack.c.l.bf16 %v49
    %v114 = vunpack.c.l.bf16 %v50
    %v115 = vunpack.c.l.bf16 %v51
    %v116 = vunpack.c.l.bf16 %v52
    %v117 = vunpack.c.l.bf16 %v53
    %v118 = vunpack.c.l.bf16 %v54
    %v119 = vunpack.c.l.bf16 %v55
    %v120 = vunpack.c.l.bf16 %v56
    %v121 = vunpack.c.l.bf16 %v57
    %v122 = vunpack.c.l.bf16 %v58
    %v123 = vunpack.c.l.bf16 %v59
    %v124 = vunpack.c.l.bf16 %v60
    %v125 = vunpack.c.l.bf16 %v61
    %v126 = vunpack.c.l.bf16 %v62
    %v127 = vunpack.c.l.bf16 %v63
    %v128 = vunpack.c.l.bf16 %v64
    %v129 = vunpack.c.l.bf16 %v65
    %v130 = vunpack.c.l.bf16 %v66
    %v131 = vunpack.c.l.bf16 %v67
    %v132 = vunpack.c.l.bf16 %v68
    %v133 = vunpack.c.l.bf16 %v69
    %v134 = vunpack.c.l.bf16 %v70
    %v135 = vunpack.c.l.bf16 %v71
    %v136 = vunpack.c.l.bf16 %v72
    %v137 = vunpack.c.l.bf16 %v73
    %v138 = vunpack.c.l.bf16 %v74
    %v139 = vunpack.c.l.bf16 %v75
    %v140 = vunpack.c.l.bf16 %v76
    %v141 = vunpack.c.l.bf16 %v77
    %v142 = vunpack.c.l.bf16 %v78
    %v143 = vunpack.c.l.bf16 %v79
    %v144 = vunpack.c.l.bf16 %v80
    %v145 = vunpack.c.l.bf16 %v81
    %v146 = vunpack.c.l.bf16 %v82
    %v147 = vunpack.c.l.bf16 %v83
    %v148 = vunpack.c.l.bf16 %v84
    %v149 = vunpack.c.l.bf16 %v85
    %v150 = vunpack.c.l.bf16 %v86
    %v151 = vunpack.c.l.bf16 %v87
    %v152 = vunpack.c.l.bf16 %v88
    %v153 = vld [vmem:[%s2] sm:$0x1]
    %v155 = vlaneseq
    %v156 = vshrl.u32 %v155, 7
    %v157 = vsub.s32 0, %v156
    %v158 = vrot.slane %v153, %v157
    %v160 = vmul.f32 %v89, %v158
    %v161 = vmul.f32 %v90, %v158
    %v162 = vmul.f32 %v91, %v158
    %v163 = vmul.f32 %v92, %v158
    %v164 = vmul.f32 %v93, %v158
    %v165 = vmul.f32 %v94, %v158
    %v166 = vmul.f32 %v95, %v158
    %v167 = vmul.f32 %v96, %v158
    %v168 = vmul.f32 %v97, %v158
    %v169 = vmul.f32 %v98, %v158
    %v170 = vmul.f32 %v99, %v158
    %v171 = vmul.f32 %v100, %v158
    %v172 = vmul.f32 %v101, %v158
    %v173 = vmul.f32 %v102, %v158
    %v174 = vmul.f32 %v103, %v158
    %v175 = vmul.f32 %v104, %v158
    %v176 = vmul.f32 %v105, %v158
    %v177 = vmul.f32 %v106, %v158
    %v178 = vmul.f32 %v107, %v158
    %v179 = vmul.f32 %v108, %v158
    %v180 = vmul.f32 %v109, %v158
    %v181 = vmul.f32 %v110, %v158
    %v182 = vmul.f32 %v111, %v158
    %v183 = vmul.f32 %v112, %v158
    %v184 = vmul.f32 %v113, %v158
    %v185 = vmul.f32 %v114, %v158
    %v186 = vmul.f32 %v115, %v158
    %v187 = vmul.f32 %v116, %v158
    %v188 = vmul.f32 %v117, %v158
    %v189 = vmul.f32 %v118, %v158
    %v190 = vmul.f32 %v119, %v158
    %v191 = vmul.f32 %v120, %v158
    %v192 = vmul.f32 %v121, %v158
    %v193 = vmul.f32 %v122, %v158
    %v194 = vmul.f32 %v123, %v158
    %v195 = vmul.f32 %v124, %v158
    %v196 = vmul.f32 %v125, %v158
    %v197 = vmul.f32 %v126, %v158
    %v198 = vmul.f32 %v127, %v158
    %v199 = vmul.f32 %v128, %v158
    %v200 = vmul.f32 %v129, %v158
    %v201 = vmul.f32 %v130, %v158
    %v202 = vmul.f32 %v131, %v158
    %v203 = vmul.f32 %v132, %v158
    %v204 = vmul.f32 %v133, %v158
    %v205 = vmul.f32 %v134, %v158
    %v206 = vmul.f32 %v135, %v158
    %v207 = vmul.f32 %v136, %v158
    %v208 = vmul.f32 %v137, %v158
    %v209 = vmul.f32 %v138, %v158
    %v210 = vmul.f32 %v139, %v158
    %v211 = vmul.f32 %v140, %v158
    %v212 = vmul.f32 %v141, %v158
    %v213 = vmul.f32 %v142, %v158
    %v214 = vmul.f32 %v143, %v158
    %v215 = vmul.f32 %v144, %v158
    %v216 = vmul.f32 %v145, %v158
    %v217 = vmul.f32 %v146, %v158
    %v218 = vmul.f32 %v147, %v158
    %v219 = vmul.f32 %v148, %v158
    %v220 = vmul.f32 %v149, %v158
    %v221 = vmul.f32 %v150, %v158
    %v222 = vmul.f32 %v151, %v158
    %v223 = vmul.f32 %v152, %v158
    %v224 = vld [vmem:[%s3] sm:$0x1]
    %v226 = vlaneseq
    %v227 = vshrl.u32 %v226, 7
    %v228 = vsub.s32 0, %v227
    %v229 = vrot.slane %v224, %v228
    %v231 = vadd.f32 %v160, %v229
    %v232 = vadd.f32 %v161, %v229
    %v233 = vadd.f32 %v162, %v229
    %v234 = vadd.f32 %v163, %v229
    %v235 = vadd.f32 %v164, %v229
    %v236 = vadd.f32 %v165, %v229
    %v237 = vadd.f32 %v166, %v229
    %v238 = vadd.f32 %v167, %v229
    %v239 = vadd.f32 %v168, %v229
    %v240 = vadd.f32 %v169, %v229
    %v241 = vadd.f32 %v170, %v229
    %v242 = vadd.f32 %v171, %v229
    %v243 = vadd.f32 %v172, %v229
    %v244 = vadd.f32 %v173, %v229
    %v245 = vadd.f32 %v174, %v229
    %v246 = vadd.f32 %v175, %v229
    %v247 = vadd.f32 %v176, %v229
    %v248 = vadd.f32 %v177, %v229
    %v249 = vadd.f32 %v178, %v229
    %v250 = vadd.f32 %v179, %v229
    %v251 = vadd.f32 %v180, %v229
    %v252 = vadd.f32 %v181, %v229
    %v253 = vadd.f32 %v182, %v229
    %v254 = vadd.f32 %v183, %v229
    %v255 = vadd.f32 %v184, %v229
    %v256 = vadd.f32 %v185, %v229
    %v257 = vadd.f32 %v186, %v229
    %v258 = vadd.f32 %v187, %v229
    %v259 = vadd.f32 %v188, %v229
    %v260 = vadd.f32 %v189, %v229
    %v261 = vadd.f32 %v190, %v229
    %v262 = vadd.f32 %v191, %v229
    %v263 = vadd.f32 %v192, %v229
    %v264 = vadd.f32 %v193, %v229
    %v265 = vadd.f32 %v194, %v229
    %v266 = vadd.f32 %v195, %v229
    %v267 = vadd.f32 %v196, %v229
    %v268 = vadd.f32 %v197, %v229
    %v269 = vadd.f32 %v198, %v229
    %v270 = vadd.f32 %v199, %v229
    %v271 = vadd.f32 %v200, %v229
    %v272 = vadd.f32 %v201, %v229
    %v273 = vadd.f32 %v202, %v229
    %v274 = vadd.f32 %v203, %v229
    %v275 = vadd.f32 %v204, %v229
    %v276 = vadd.f32 %v205, %v229
    %v277 = vadd.f32 %v206, %v229
    %v278 = vadd.f32 %v207, %v229
    %v279 = vadd.f32 %v208, %v229
    %v280 = vadd.f32 %v209, %v229
    %v281 = vadd.f32 %v210, %v229
    %v282 = vadd.f32 %v211, %v229
    %v283 = vadd.f32 %v212, %v229
    %v284 = vadd.f32 %v213, %v229
    %v285 = vadd.f32 %v214, %v229
    %v286 = vadd.f32 %v215, %v229
    %v287 = vadd.f32 %v216, %v229
    %v288 = vadd.f32 %v217, %v229
    %v289 = vadd.f32 %v218, %v229
    %v290 = vadd.f32 %v219, %v229
    %v291 = vadd.f32 %v220, %v229
    %v292 = vadd.f32 %v221, %v229
    %v293 = vadd.f32 %v222, %v229
    %v294 = vadd.f32 %v223, %v229
    %v295 = vmax.f32 %v231, 0.0
    %v296 = vmax.f32 %v232, 0.0
    %v297 = vmax.f32 %v233, 0.0
    %v298 = vmax.f32 %v234, 0.0
    %v299 = vmax.f32 %v235, 0.0
    %v300 = vmax.f32 %v236, 0.0
    %v301 = vmax.f32 %v237, 0.0
    %v302 = vmax.f32 %v238, 0.0
    %v303 = vmax.f32 %v239, 0.0
    %v304 = vmax.f32 %v240, 0.0
    %v305 = vmax.f32 %v241, 0.0
    %v306 = vmax.f32 %v242, 0.0
    %v307 = vmax.f32 %v243, 0.0
    %v308 = vmax.f32 %v244, 0.0
    %v309 = vmax.f32 %v245, 0.0
    %v310 = vmax.f32 %v246, 0.0
    %v311 = vmax.f32 %v247, 0.0
    %v312 = vmax.f32 %v248, 0.0
    %v313 = vmax.f32 %v249, 0.0
    %v314 = vmax.f32 %v250, 0.0
    %v315 = vmax.f32 %v251, 0.0
    %v316 = vmax.f32 %v252, 0.0
    %v317 = vmax.f32 %v253, 0.0
    %v318 = vmax.f32 %v254, 0.0
    %v319 = vmax.f32 %v255, 0.0
    %v320 = vmax.f32 %v256, 0.0
    %v321 = vmax.f32 %v257, 0.0
    %v322 = vmax.f32 %v258, 0.0
    %v323 = vmax.f32 %v259, 0.0
    %v324 = vmax.f32 %v260, 0.0
    %v325 = vmax.f32 %v261, 0.0
    %v326 = vmax.f32 %v262, 0.0
    %v327 = vmax.f32 %v263, 0.0
    %v328 = vmax.f32 %v264, 0.0
    %v329 = vmax.f32 %v265, 0.0
    %v330 = vmax.f32 %v266, 0.0
    %v331 = vmax.f32 %v267, 0.0
    %v332 = vmax.f32 %v268, 0.0
    %v333 = vmax.f32 %v269, 0.0
    %v334 = vmax.f32 %v270, 0.0
    %v335 = vmax.f32 %v271, 0.0
    %v336 = vmax.f32 %v272, 0.0
    %v337 = vmax.f32 %v273, 0.0
    %v338 = vmax.f32 %v274, 0.0
    %v339 = vmax.f32 %v275, 0.0
    %v340 = vmax.f32 %v276, 0.0
    %v341 = vmax.f32 %v277, 0.0
    %v342 = vmax.f32 %v278, 0.0
    %v343 = vmax.f32 %v279, 0.0
    %v344 = vmax.f32 %v280, 0.0
    %v345 = vmax.f32 %v281, 0.0
    %v346 = vmax.f32 %v282, 0.0
    %v347 = vmax.f32 %v283, 0.0
    %v348 = vmax.f32 %v284, 0.0
    %v349 = vmax.f32 %v285, 0.0
    %v350 = vmax.f32 %v286, 0.0
    %v351 = vmax.f32 %v287, 0.0
    %v352 = vmax.f32 %v288, 0.0
    %v353 = vmax.f32 %v289, 0.0
    %v354 = vmax.f32 %v290, 0.0
    %v355 = vmax.f32 %v291, 0.0
    %v356 = vmax.f32 %v292, 0.0
    %v357 = vmax.f32 %v293, 0.0
    %v358 = vmax.f32 %v294, 0.0
    %v359 = vpack.c.bf16 %v296, %v295
    %v360 = vpack.c.bf16 %v298, %v297
    %v361 = vpack.c.bf16 %v300, %v299
    %v362 = vpack.c.bf16 %v302, %v301
    %v363 = vpack.c.bf16 %v304, %v303
    %v364 = vpack.c.bf16 %v306, %v305
    %v365 = vpack.c.bf16 %v308, %v307
    %v366 = vpack.c.bf16 %v310, %v309
    %v367 = vpack.c.bf16 %v312, %v311
    %v368 = vpack.c.bf16 %v314, %v313
    %v369 = vpack.c.bf16 %v316, %v315
    %v370 = vpack.c.bf16 %v318, %v317
    %v371 = vpack.c.bf16 %v320, %v319
    %v372 = vpack.c.bf16 %v322, %v321
    %v373 = vpack.c.bf16 %v324, %v323
    %v374 = vpack.c.bf16 %v326, %v325
    %v375 = vpack.c.bf16 %v328, %v327
    %v376 = vpack.c.bf16 %v330, %v329
    %v377 = vpack.c.bf16 %v332, %v331
    %v378 = vpack.c.bf16 %v334, %v333
    %v379 = vpack.c.bf16 %v336, %v335
    %v380 = vpack.c.bf16 %v338, %v337
    %v381 = vpack.c.bf16 %v340, %v339
    %v382 = vpack.c.bf16 %v342, %v341
    %v383 = vpack.c.bf16 %v344, %v343
    %v384 = vpack.c.bf16 %v346, %v345
    %v385 = vpack.c.bf16 %v348, %v347
    %v386 = vpack.c.bf16 %v350, %v349
    %v387 = vpack.c.bf16 %v352, %v351
    %v388 = vpack.c.bf16 %v354, %v353
    %v389 = vpack.c.bf16 %v356, %v355
    %v390 = vpack.c.bf16 %v358, %v357
    %v391 = vld [vmem:[%s5] sm:$0xf]
    %v392 = vld [vmem:[%s4] sm:$0x1]
    %v394 = vlaneseq
    %v395 = vshrl.u32 %v394, 7
    %v396 = vsub.s32 0, %v395
    %v397 = vrot.slane %v392, %v396
    %vm399 = vcmask 64512
    %v401 = vsel %vm399, %v359, 0
    %v404 = vsel %vm399, %v360, 0
    %v407 = vsel %vm399, %v361, 0
    %v410 = vsel %vm399, %v362, 0
    %v413 = vsel %vm399, %v363, 0
    %v416 = vsel %vm399, %v364, 0
    %v419 = vsel %vm399, %v365, 0
    %v422 = vsel %vm399, %v366, 0
    %v425 = vsel %vm399, %v367, 0
    %v428 = vsel %vm399, %v368, 0
    %v431 = vsel %vm399, %v369, 0
    %v434 = vsel %vm399, %v370, 0
    %v437 = vsel %vm399, %v371, 0
    %v440 = vsel %vm399, %v372, 0
    %v443 = vsel %vm399, %v373, 0
    %v446 = vsel %vm399, %v374, 0
    %v449 = vsel %vm399, %v375, 0
    %v452 = vsel %vm399, %v376, 0
    %v455 = vsel %vm399, %v377, 0
    %v458 = vsel %vm399, %v378, 0
    %v461 = vsel %vm399, %v379, 0
    %v464 = vsel %vm399, %v380, 0
    %v467 = vsel %vm399, %v381, 0
    %v470 = vsel %vm399, %v382, 0
    %v473 = vsel %vm399, %v383, 0
    %v476 = vsel %vm399, %v384, 0
    %v479 = vsel %vm399, %v385, 0
    %v482 = vsel %vm399, %v386, 0
    %v485 = vsel %vm399, %v387, 0
    %v488 = vsel %vm399, %v388, 0
    %v491 = vsel %vm399, %v389, 0
    %v494 = vsel %vm399, %v390, 0
    %vm496 = vcmask 1043456
    %v498 = vsel %vm496, %v391, 0
    %500 = vmatprep.subr.bf16.mxu0 0
    %501 = vmatpush1.bf16.msra.mxu0 0
    %502 = vmatprep.subr.bf16.mxu0 0
    %503 = vmatpush1.bf16.msra.mxu0 0
    %504 = vmatprep.subr.bf16.mxu0 0
    %505 = vmatpush1.bf16.msra.mxu0 0
    %506 = vmatprep.subr.bf16.mxu0 0
    %507 = vmatpush1.bf16.msra.mxu0 0
    %508 = vmatprep.subr.bf16.mxu0 0
    %509 = vmatpush1.bf16.msra.mxu0 0
    %510 = vmatprep.subr.bf16.mxu0 0
    %511 = vmatpush1.bf16.msra.mxu0 0
    %512 = vmatprep.subr.bf16.mxu0 0
    %513 = vmatpush1.bf16.msra.mxu0 0
    %514 = vmatprep.subr.bf16.mxu0 0
    %515 = vmatpush1.bf16.msra.mxu0 %v498
    %516 = vmatprep.subr.bf16.mxu0 0
    %517 = vmatpush2.bf16.msra.mxu0 0
    %518 = vmatprep.subr.bf16.mxu0 0
    %519 = vmatpush2.bf16.msra.mxu0 0
    %520 = vmatprep.subr.bf16.mxu0 0
    %521 = vmatpush2.bf16.msra.mxu0 0
    %522 = vmatprep.subr.bf16.mxu0 0
    %523 = vmatpush2.bf16.msra.mxu0 0
    %524 = vmatprep.subr.bf16.mxu0 0
    %525 = vmatpush2.bf16.msra.mxu0 0
    %526 = vmatprep.subr.bf16.mxu0 0
    %527 = vmatpush2.bf16.msra.mxu0 0
    %528 = vmatprep.subr.bf16.mxu0 0
    %529 = vmatpush2.bf16.msra.mxu0 0
    %530 = vmatprep.subr.bf16.mxu0 0
    %531 = vmatpush2.bf16.msra.mxu0 0
    %532 = vmatprep.mubr.bf16.mxu0 0
    %533 = vmatmul.mubr.bf16.gmra.mxu0 %v401
    %v534 = vpop.f32.mrf.mxu0
    %v535 = vadd.f32 %v397, %v534
    %v536 = vpop.f32.mrf.mxu0
    %v537 = vpop.f32.mrf.mxu0
    %v538 = vadd.f32 %v397, %v537
    %v539 = vpop.f32.mrf.mxu0
    %540 = vmatprep.mubr.bf16.mxu0 0
    %541 = vmatmul.mubr.bf16.gmra.mxu0 %v404
    %v542 = vpop.f32.mrf.mxu0
    %v543 = vadd.f32 %v397, %v542
    %v544 = vpop.f32.mrf.mxu0
    %v545 = vpop.f32.mrf.mxu0
    %v546 = vadd.f32 %v397, %v545
    %v547 = vpop.f32.mrf.mxu0
    %548 = vmatprep.mubr.bf16.mxu0 0
    %549 = vmatmul.mubr.bf16.gmra.mxu0 %v407
    %v550 = vpop.f32.mrf.mxu0
    %v551 = vadd.f32 %v397, %v550
    %v552 = vpop.f32.mrf.mxu0
    %v553 = vpop.f32.mrf.mxu0
    %v554 = vadd.f32 %v397, %v553
    %v555 = vpop.f32.mrf.mxu0
    %556 = vmatprep.mubr.bf16.mxu0 0
    %557 = vmatmul.mubr.bf16.gmra.mxu0 %v410
    %v558 = vpop.f32.mrf.mxu0
    %v559 = vadd.f32 %v397, %v558
    %v560 = vpop.f32.mrf.mxu0
    %v561 = vpop.f32.mrf.mxu0
    %v562 = vadd.f32 %v397, %v561
    %v563 = vpop.f32.mrf.mxu0
    %564 = vmatprep.mubr.bf16.mxu0 0
    %565 = vmatmul.mubr.bf16.gmra.mxu0 %v413
    %v566 = vpop.f32.mrf.mxu0
    %v567 = vadd.f32 %v397, %v566
    %v568 = vpop.f32.mrf.mxu0
    %v569 = vpop.f32.mrf.mxu0
    %v570 = vadd.f32 %v397, %v569
    %v571 = vpop.f32.mrf.mxu0
    %572 = vmatprep.mubr.bf16.mxu0 0
    %573 = vmatmul.mubr.bf16.gmra.mxu0 %v416
    %v574 = vpop.f32.mrf.mxu0
    %v575 = vadd.f32 %v397, %v574
    %v576 = vpop.f32.mrf.mxu0
    %v577 = vpop.f32.mrf.mxu0
    %v578 = vadd.f32 %v397, %v577
    %v579 = vpop.f32.mrf.mxu0
    %580 = vmatprep.mubr.bf16.mxu0 0
    %581 = vmatmul.mubr.bf16.gmra.mxu0 %v419
    %v582 = vpop.f32.mrf.mxu0
    %v583 = vadd.f32 %v397, %v582
    %v584 = vpop.f32.mrf.mxu0
    %v585 = vpop.f32.mrf.mxu0
    %v586 = vadd.f32 %v397, %v585
    %v587 = vpop.f32.mrf.mxu0
    %588 = vmatprep.mubr.bf16.mxu0 0
    %589 = vmatmul.mubr.bf16.gmra.mxu0 %v422
    %v590 = vpop.f32.mrf.mxu0
    %v591 = vadd.f32 %v397, %v590
    %v592 = vpop.f32.mrf.mxu0
    %v593 = vpop.f32.mrf.mxu0
    %v594 = vadd.f32 %v397, %v593
    %v595 = vpop.f32.mrf.mxu0
    %596 = vmatprep.mubr.bf16.mxu0 0
    %597 = vmatmul.mubr.bf16.gmra.mxu0 %v425
    %v598 = vpop.f32.mrf.mxu0
    %v599 = vadd.f32 %v397, %v598
    %v600 = vpop.f32.mrf.mxu0
    %v601 = vpop.f32.mrf.mxu0
    %v602 = vadd.f32 %v397, %v601
    %v603 = vpop.f32.mrf.mxu0
    %604 = vmatprep.mubr.bf16.mxu0 0
    %605 = vmatmul.mubr.bf16.gmra.mxu0 %v428
    %v606 = vpop.f32.mrf.mxu0
    %v607 = vadd.f32 %v397, %v606
    %v608 = vpop.f32.mrf.mxu0
    %v609 = vpop.f32.mrf.mxu0
    %v610 = vadd.f32 %v397, %v609
    %v611 = vpop.f32.mrf.mxu0
    %612 = vmatprep.mubr.bf16.mxu0 0
    %613 = vmatmul.mubr.bf16.gmra.mxu0 %v431
    %v614 = vpop.f32.mrf.mxu0
    %v615 = vadd.f32 %v397, %v614
    %v616 = vpop.f32.mrf.mxu0
    %v617 = vpop.f32.mrf.mxu0
    %v618 = vadd.f32 %v397, %v617
    %v619 = vpop.f32.mrf.mxu0
    %620 = vmatprep.mubr.bf16.mxu0 0
    %621 = vmatmul.mubr.bf16.gmra.mxu0 %v434
    %v622 = vpop.f32.mrf.mxu0
    %v623 = vadd.f32 %v397, %v622
    %v624 = vpop.f32.mrf.mxu0
    %v625 = vpop.f32.mrf.mxu0
    %v626 = vadd.f32 %v397, %v625
    %v627 = vpop.f32.mrf.mxu0
    %628 = vmatprep.mubr.bf16.mxu0 0
    %629 = vmatmul.mubr.bf16.gmra.mxu0 %v437
    %v630 = vpop.f32.mrf.mxu0
    %v631 = vadd.f32 %v397, %v630
    %v632 = vpop.f32.mrf.mxu0
    %v633 = vpop.f32.mrf.mxu0
    %v634 = vadd.f32 %v397, %v633
    %v635 = vpop.f32.mrf.mxu0
    %636 = vmatprep.mubr.bf16.mxu0 0
    %637 = vmatmul.mubr.bf16.gmra.mxu0 %v440
    %v638 = vpop.f32.mrf.mxu0
    %v639 = vadd.f32 %v397, %v638
    %v640 = vpop.f32.mrf.mxu0
    %v641 = vpop.f32.mrf.mxu0
    %v642 = vadd.f32 %v397, %v641
    %v643 = vpop.f32.mrf.mxu0
    %644 = vmatprep.mubr.bf16.mxu0 0
    %645 = vmatmul.mubr.bf16.gmra.mxu0 %v443
    %v646 = vpop.f32.mrf.mxu0
    %v647 = vadd.f32 %v397, %v646
    %v648 = vpop.f32.mrf.mxu0
    %v649 = vpop.f32.mrf.mxu0
    %v650 = vadd.f32 %v397, %v649
    %v651 = vpop.f32.mrf.mxu0
    %652 = vmatprep.mubr.bf16.mxu0 0
    %653 = vmatmul.mubr.bf16.gmra.mxu0 %v446
    %v654 = vpop.f32.mrf.mxu0
    %v655 = vadd.f32 %v397, %v654
    %v656 = vpop.f32.mrf.mxu0
    %v657 = vpop.f32.mrf.mxu0
    %v658 = vadd.f32 %v397, %v657
    %v659 = vpop.f32.mrf.mxu0
    %660 = vmatprep.mubr.bf16.mxu0 0
    %661 = vmatmul.mubr.bf16.gmra.mxu0 %v449
    %v662 = vpop.f32.mrf.mxu0
    %v663 = vadd.f32 %v397, %v662
    %v664 = vpop.f32.mrf.mxu0
    %v665 = vpop.f32.mrf.mxu0
    %v666 = vadd.f32 %v397, %v665
    %v667 = vpop.f32.mrf.mxu0
    %668 = vmatprep.mubr.bf16.mxu0 0
    %669 = vmatmul.mubr.bf16.gmra.mxu0 %v452
    %v670 = vpop.f32.mrf.mxu0
    %v671 = vadd.f32 %v397, %v670
    %v672 = vpop.f32.mrf.mxu0
    %v673 = vpop.f32.mrf.mxu0
    %v674 = vadd.f32 %v397, %v673
    %v675 = vpop.f32.mrf.mxu0
    %676 = vmatprep.mubr.bf16.mxu0 0
    %677 = vmatmul.mubr.bf16.gmra.mxu0 %v455
    %v678 = vpop.f32.mrf.mxu0
    %v679 = vadd.f32 %v397, %v678
    %v680 = vpop.f32.mrf.mxu0
    %v681 = vpop.f32.mrf.mxu0
    %v682 = vadd.f32 %v397, %v681
    %v683 = vpop.f32.mrf.mxu0
    %684 = vmatprep.mubr.bf16.mxu0 0
    %685 = vmatmul.mubr.bf16.gmra.mxu0 %v458
    %v686 = vpop.f32.mrf.mxu0
    %v687 = vadd.f32 %v397, %v686
    %v688 = vpop.f32.mrf.mxu0
    %v689 = vpop.f32.mrf.mxu0
    %v690 = vadd.f32 %v397, %v689
    %v691 = vpop.f32.mrf.mxu0
    %692 = vmatprep.mubr.bf16.mxu0 0
    %693 = vmatmul.mubr.bf16.gmra.mxu0 %v461
    %v694 = vpop.f32.mrf.mxu0
    %v695 = vadd.f32 %v397, %v694
    %v696 = vpop.f32.mrf.mxu0
    %v697 = vpop.f32.mrf.mxu0
    %v698 = vadd.f32 %v397, %v697
    %v699 = vpop.f32.mrf.mxu0
    %700 = vmatprep.mubr.bf16.mxu0 0
    %701 = vmatmul.mubr.bf16.gmra.mxu0 %v464
    %v702 = vpop.f32.mrf.mxu0
    %v703 = vadd.f32 %v397, %v702
    %v704 = vpop.f32.mrf.mxu0
    %v705 = vpop.f32.mrf.mxu0
    %v706 = vadd.f32 %v397, %v705
    %v707 = vpop.f32.mrf.mxu0
    %708 = vmatprep.mubr.bf16.mxu0 0
    %709 = vmatmul.mubr.bf16.gmra.mxu0 %v467
    %v710 = vpop.f32.mrf.mxu0
    %v711 = vadd.f32 %v397, %v710
    %v712 = vpop.f32.mrf.mxu0
    %v713 = vpop.f32.mrf.mxu0
    %v714 = vadd.f32 %v397, %v713
    %v715 = vpop.f32.mrf.mxu0
    %716 = vmatprep.mubr.bf16.mxu0 0
    %717 = vmatmul.mubr.bf16.gmra.mxu0 %v470
    %v718 = vpop.f32.mrf.mxu0
    %v719 = vadd.f32 %v397, %v718
    %v720 = vpop.f32.mrf.mxu0
    %v721 = vpop.f32.mrf.mxu0
    %v722 = vadd.f32 %v397, %v721
    %v723 = vpop.f32.mrf.mxu0
    %724 = vmatprep.mubr.bf16.mxu0 0
    %725 = vmatmul.mubr.bf16.gmra.mxu0 %v473
    %v726 = vpop.f32.mrf.mxu0
    %v727 = vadd.f32 %v397, %v726
    %v728 = vpop.f32.mrf.mxu0
    %v729 = vpop.f32.mrf.mxu0
    %v730 = vadd.f32 %v397, %v729
    %v731 = vpop.f32.mrf.mxu0
    %732 = vmatprep.mubr.bf16.mxu0 0
    %733 = vmatmul.mubr.bf16.gmra.mxu0 %v476
    %v734 = vpop.f32.mrf.mxu0
    %v735 = vadd.f32 %v397, %v734
    %v736 = vpop.f32.mrf.mxu0
    %v737 = vpop.f32.mrf.mxu0
    %v738 = vadd.f32 %v397, %v737
    %v739 = vpop.f32.mrf.mxu0
    %740 = vmatprep.mubr.bf16.mxu0 0
    %741 = vmatmul.mubr.bf16.gmra.mxu0 %v479
    %v742 = vpop.f32.mrf.mxu0
    %v743 = vadd.f32 %v397, %v742
    %v744 = vpop.f32.mrf.mxu0
    %v745 = vpop.f32.mrf.mxu0
    %v746 = vadd.f32 %v397, %v745
    %v747 = vpop.f32.mrf.mxu0
    %748 = vmatprep.mubr.bf16.mxu0 0
    %749 = vmatmul.mubr.bf16.gmra.mxu0 %v482
    %v750 = vpop.f32.mrf.mxu0
    %v751 = vadd.f32 %v397, %v750
    %v752 = vpop.f32.mrf.mxu0
    %v753 = vpop.f32.mrf.mxu0
    %v754 = vadd.f32 %v397, %v753
    %v755 = vpop.f32.mrf.mxu0
    %756 = vmatprep.mubr.bf16.mxu0 0
    %757 = vmatmul.mubr.bf16.gmra.mxu0 %v485
    %v758 = vpop.f32.mrf.mxu0
    %v759 = vadd.f32 %v397, %v758
    %v760 = vpop.f32.mrf.mxu0
    %v761 = vpop.f32.mrf.mxu0
    %v762 = vadd.f32 %v397, %v761
    %v763 = vpop.f32.mrf.mxu0
    %764 = vmatprep.mubr.bf16.mxu0 0
    %765 = vmatmul.mubr.bf16.gmra.mxu0 %v488
    %v766 = vpop.f32.mrf.mxu0
    %v767 = vadd.f32 %v397, %v766
    %v768 = vpop.f32.mrf.mxu0
    %v769 = vpop.f32.mrf.mxu0
    %v770 = vadd.f32 %v397, %v769
    %v771 = vpop.f32.mrf.mxu0
    %772 = vmatprep.mubr.bf16.mxu0 0
    %773 = vmatmul.mubr.bf16.gmra.mxu0 %v491
    %v774 = vpop.f32.mrf.mxu0
    %v775 = vadd.f32 %v397, %v774
    %v776 = vpop.f32.mrf.mxu0
    %v777 = vpop.f32.mrf.mxu0
    %v778 = vadd.f32 %v397, %v777
    %v779 = vpop.f32.mrf.mxu0
    %780 = vmatprep.mubr.bf16.mxu0 0
    %781 = vmatmul.mubr.bf16.gmra.mxu0 %v494
    %v782 = vpop.f32.mrf.mxu0
    %v783 = vadd.f32 %v397, %v782
    %v784 = vpop.f32.mrf.mxu0
    %v785 = vpop.f32.mrf.mxu0
    %v786 = vadd.f32 %v397, %v785
    %v787 = vpop.f32.mrf.mxu0
    %788 = vdwg.mxu0
    %v789 = vld [vmem:[%s1] sm:$0xff]
    %v790 = vld [vmem:[%s1 + $0x8] sm:$0xff]
    %v791 = vld [vmem:[%s1 + $0x10] sm:$0xff]
    %v792 = vld [vmem:[%s1 + $0x18] sm:$0xff]
    %v793 = vld [vmem:[%s1 + $0x20] sm:$0xff]
    %v794 = vld [vmem:[%s1 + $0x28] sm:$0xff]
    %v795 = vld [vmem:[%s1 + $0x30] sm:$0xff]
    %v796 = vld [vmem:[%s1 + $0x38] sm:$0xff]
    %v797 = vld [vmem:[%s1 + $0x40] sm:$0xff]
    %v798 = vld [vmem:[%s1 + $0x48] sm:$0xff]
    %v799 = vld [vmem:[%s1 + $0x50] sm:$0xff]
    %v800 = vld [vmem:[%s1 + $0x58] sm:$0xff]
    %v801 = vld [vmem:[%s1 + $0x60] sm:$0xff]
    %v802 = vld [vmem:[%s1 + $0x68] sm:$0xff]
    %v803 = vld [vmem:[%s1 + $0x70] sm:$0xff]
    %v804 = vld [vmem:[%s1 + $0x78] sm:$0xff]
    %v805 = vld [vmem:[%s1 + $0x80] sm:$0xff]
    %v806 = vld [vmem:[%s1 + $0x88] sm:$0xff]
    %v807 = vld [vmem:[%s1 + $0x90] sm:$0xff]
    %v808 = vld [vmem:[%s1 + $0x98] sm:$0xff]
    %v809 = vld [vmem:[%s1 + $0xa0] sm:$0xff]
    %v810 = vld [vmem:[%s1 + $0xa8] sm:$0xff]
    %v811 = vld [vmem:[%s1 + $0xb0] sm:$0xff]
    %v812 = vld [vmem:[%s1 + $0xb8] sm:$0xff]
    %v813 = vld [vmem:[%s1 + $0xc0] sm:$0xff]
    %v814 = vld [vmem:[%s1 + $0xc8] sm:$0xff]
    %v815 = vld [vmem:[%s1 + $0xd0] sm:$0xff]
    %v816 = vld [vmem:[%s1 + $0xd8] sm:$0xff]
    %v817 = vld [vmem:[%s1 + $0xe0] sm:$0xff]
    %v818 = vld [vmem:[%s1 + $0xe8] sm:$0xff]
    %v819 = vld [vmem:[%s1 + $0xf0] sm:$0xff]
    %v820 = vld [vmem:[%s1 + $0xf8] sm:$0xff]
    %v821 = vld [vmem:[%s1 + $0x100] sm:$0xff]
    %v822 = vld [vmem:[%s1 + $0x108] sm:$0xff]
    %v823 = vld [vmem:[%s1 + $0x110] sm:$0xff]
    %v824 = vld [vmem:[%s1 + $0x118] sm:$0xff]
    %v825 = vld [vmem:[%s1 + $0x120] sm:$0xff]
    %v826 = vld [vmem:[%s1 + $0x128] sm:$0xff]
    %v827 = vld [vmem:[%s1 + $0x130] sm:$0xff]
    %v828 = vld [vmem:[%s1 + $0x138] sm:$0xff]
    %v829 = vld [vmem:[%s1 + $0x140] sm:$0xff]
    %v830 = vld [vmem:[%s1 + $0x148] sm:$0xff]
    %v831 = vld [vmem:[%s1 + $0x150] sm:$0xff]
    %v832 = vld [vmem:[%s1 + $0x158] sm:$0xff]
    %v833 = vld [vmem:[%s1 + $0x160] sm:$0xff]
    %v834 = vld [vmem:[%s1 + $0x168] sm:$0xff]
    %v835 = vld [vmem:[%s1 + $0x170] sm:$0xff]
    %v836 = vld [vmem:[%s1 + $0x178] sm:$0xff]
    %v837 = vld [vmem:[%s1 + $0x180] sm:$0xff]
    %v838 = vld [vmem:[%s1 + $0x188] sm:$0xff]
    %v839 = vld [vmem:[%s1 + $0x190] sm:$0xff]
    %v840 = vld [vmem:[%s1 + $0x198] sm:$0xff]
    %v841 = vld [vmem:[%s1 + $0x1a0] sm:$0xff]
    %v842 = vld [vmem:[%s1 + $0x1a8] sm:$0xff]
    %v843 = vld [vmem:[%s1 + $0x1b0] sm:$0xff]
    %v844 = vld [vmem:[%s1 + $0x1b8] sm:$0xff]
    %v845 = vld [vmem:[%s1 + $0x1c0] sm:$0xff]
    %v846 = vld [vmem:[%s1 + $0x1c8] sm:$0xff]
    %v847 = vld [vmem:[%s1 + $0x1d0] sm:$0xff]
    %v848 = vld [vmem:[%s1 + $0x1d8] sm:$0xff]
    %v849 = vld [vmem:[%s1 + $0x1e0] sm:$0xff]
    %v850 = vld [vmem:[%s1 + $0x1e8] sm:$0xff]
    %v851 = vld [vmem:[%s1 + $0x1f0] sm:$0xff]
    %v852 = vld [vmem:[%s1 + $0x1f8] sm:$0xff]
    %v853 = vadd.f32 %v535, %v789
    %v854 = vadd.f32 %v538, %v790
    %v855 = vadd.f32 %v543, %v791
    %v856 = vadd.f32 %v546, %v792
    %v857 = vadd.f32 %v551, %v793
    %v858 = vadd.f32 %v554, %v794
    %v859 = vadd.f32 %v559, %v795
    %v860 = vadd.f32 %v562, %v796
    %v861 = vadd.f32 %v567, %v797
    %v862 = vadd.f32 %v570, %v798
    %v863 = vadd.f32 %v575, %v799
    %v864 = vadd.f32 %v578, %v800
    %v865 = vadd.f32 %v583, %v801
    %v866 = vadd.f32 %v586, %v802
    %v867 = vadd.f32 %v591, %v803
    %v868 = vadd.f32 %v594, %v804
    %v869 = vadd.f32 %v599, %v805
    %v870 = vadd.f32 %v602, %v806
    %v871 = vadd.f32 %v607, %v807
    %v872 = vadd.f32 %v610, %v808
    %v873 = vadd.f32 %v615, %v809
    %v874 = vadd.f32 %v618, %v810
    %v875 = vadd.f32 %v623, %v811
    %v876 = vadd.f32 %v626, %v812
    %v877 = vadd.f32 %v631, %v813
    %v878 = vadd.f32 %v634, %v814
    %v879 = vadd.f32 %v639, %v815
    %v880 = vadd.f32 %v642, %v816
    %v881 = vadd.f32 %v647, %v817
    %v882 = vadd.f32 %v650, %v818
    %v883 = vadd.f32 %v655, %v819
    %v884 = vadd.f32 %v658, %v820
    %v885 = vadd.f32 %v663, %v821
    %v886 = vadd.f32 %v666, %v822
    %v887 = vadd.f32 %v671, %v823
    %v888 = vadd.f32 %v674, %v824
    %v889 = vadd.f32 %v679, %v825
    %v890 = vadd.f32 %v682, %v826
    %v891 = vadd.f32 %v687, %v827
    %v892 = vadd.f32 %v690, %v828
    %v893 = vadd.f32 %v695, %v829
    %v894 = vadd.f32 %v698, %v830
    %v895 = vadd.f32 %v703, %v831
    %v896 = vadd.f32 %v706, %v832
    %v897 = vadd.f32 %v711, %v833
    %v898 = vadd.f32 %v714, %v834
    %v899 = vadd.f32 %v719, %v835
    %v900 = vadd.f32 %v722, %v836
    %v901 = vadd.f32 %v727, %v837
    %v902 = vadd.f32 %v730, %v838
    %v903 = vadd.f32 %v735, %v839
    %v904 = vadd.f32 %v738, %v840
    %v905 = vadd.f32 %v743, %v841
    %v906 = vadd.f32 %v746, %v842
    %v907 = vadd.f32 %v751, %v843
    %v908 = vadd.f32 %v754, %v844
    %v909 = vadd.f32 %v759, %v845
    %v910 = vadd.f32 %v762, %v846
    %v911 = vadd.f32 %v767, %v847
    %v912 = vadd.f32 %v770, %v848
    %v913 = vadd.f32 %v775, %v849
    %v914 = vadd.f32 %v778, %v850
    %v915 = vadd.f32 %v783, %v851
    %v916 = vadd.f32 %v786, %v852
    %v917 = vmax.f32 %v853, 0.0
    %v918 = vmax.f32 %v854, 0.0
    %v919 = vmax.f32 %v855, 0.0
    %v920 = vmax.f32 %v856, 0.0
    %v921 = vmax.f32 %v857, 0.0
    %v922 = vmax.f32 %v858, 0.0
    %v923 = vmax.f32 %v859, 0.0
    %v924 = vmax.f32 %v860, 0.0
    %v925 = vmax.f32 %v861, 0.0
    %v926 = vmax.f32 %v862, 0.0
    %v927 = vmax.f32 %v863, 0.0
    %v928 = vmax.f32 %v864, 0.0
    %v929 = vmax.f32 %v865, 0.0
    %v930 = vmax.f32 %v866, 0.0
    %v931 = vmax.f32 %v867, 0.0
    %v932 = vmax.f32 %v868, 0.0
    %v933 = vmax.f32 %v869, 0.0
    %v934 = vmax.f32 %v870, 0.0
    %v935 = vmax.f32 %v871, 0.0
    %v936 = vmax.f32 %v872, 0.0
    %v937 = vmax.f32 %v873, 0.0
    %v938 = vmax.f32 %v874, 0.0
    %v939 = vmax.f32 %v875, 0.0
    %v940 = vmax.f32 %v876, 0.0
    %v941 = vmax.f32 %v877, 0.0
    %v942 = vmax.f32 %v878, 0.0
    %v943 = vmax.f32 %v879, 0.0
    %v944 = vmax.f32 %v880, 0.0
    %v945 = vmax.f32 %v881, 0.0
    %v946 = vmax.f32 %v882, 0.0
    %v947 = vmax.f32 %v883, 0.0
    %v948 = vmax.f32 %v884, 0.0
    %v949 = vmax.f32 %v885, 0.0
    %v950 = vmax.f32 %v886, 0.0
    %v951 = vmax.f32 %v887, 0.0
    %v952 = vmax.f32 %v888, 0.0
    %v953 = vmax.f32 %v889, 0.0
    %v954 = vmax.f32 %v890, 0.0
    %v955 = vmax.f32 %v891, 0.0
    %v956 = vmax.f32 %v892, 0.0
    %v957 = vmax.f32 %v893, 0.0
    %v958 = vmax.f32 %v894, 0.0
    %v959 = vmax.f32 %v895, 0.0
    %v960 = vmax.f32 %v896, 0.0
    %v961 = vmax.f32 %v897, 0.0
    %v962 = vmax.f32 %v898, 0.0
    %v963 = vmax.f32 %v899, 0.0
    %v964 = vmax.f32 %v900, 0.0
    %v965 = vmax.f32 %v901, 0.0
    %v966 = vmax.f32 %v902, 0.0
    %v967 = vmax.f32 %v903, 0.0
    %v968 = vmax.f32 %v904, 0.0
    %v969 = vmax.f32 %v905, 0.0
    %v970 = vmax.f32 %v906, 0.0
    %v971 = vmax.f32 %v907, 0.0
    %v972 = vmax.f32 %v908, 0.0
    %v973 = vmax.f32 %v909, 0.0
    %v974 = vmax.f32 %v910, 0.0
    %v975 = vmax.f32 %v911, 0.0
    %v976 = vmax.f32 %v912, 0.0
    %v977 = vmax.f32 %v913, 0.0
    %v978 = vmax.f32 %v914, 0.0
    %v979 = vmax.f32 %v915, 0.0
    %v980 = vmax.f32 %v916, 0.0
    %vm981 = vcmask 261120
    %982 = vst.msk [vmem:[#allocation2] sm:$0xff] %vm981, %v917
    %983 = vst.msk [vmem:[#allocation2 + $0x8] sm:$0xff] %vm981, %v918
    %984 = vst.msk [vmem:[#allocation2 + $0x10] sm:$0xff] %vm981, %v919
    %985 = vst.msk [vmem:[#allocation2 + $0x18] sm:$0xff] %vm981, %v920
    %986 = vst.msk [vmem:[#allocation2 + $0x20] sm:$0xff] %vm981, %v921
    %987 = vst.msk [vmem:[#allocation2 + $0x28] sm:$0xff] %vm981, %v922
    %988 = vst.msk [vmem:[#allocation2 + $0x30] sm:$0xff] %vm981, %v923
    %989 = vst.msk [vmem:[#allocation2 + $0x38] sm:$0xff] %vm981, %v924
    %990 = vst.msk [vmem:[#allocation2 + $0x40] sm:$0xff] %vm981, %v925
    %991 = vst.msk [vmem:[#allocation2 + $0x48] sm:$0xff] %vm981, %v926
    %992 = vst.msk [vmem:[#allocation2 + $0x50] sm:$0xff] %vm981, %v927
    %993 = vst.msk [vmem:[#allocation2 + $0x58] sm:$0xff] %vm981, %v928
    %994 = vst.msk [vmem:[#allocation2 + $0x60] sm:$0xff] %vm981, %v929
    %995 = vst.msk [vmem:[#allocation2 + $0x68] sm:$0xff] %vm981, %v930
    %996 = vst.msk [vmem:[#allocation2 + $0x70] sm:$0xff] %vm981, %v931
    %997 = vst.msk [vmem:[#allocation2 + $0x78] sm:$0xff] %vm981, %v932
    %998 = vst.msk [vmem:[#allocation2 + $0x80] sm:$0xff] %vm981, %v933
    %999 = vst.msk [vmem:[#allocation2 + $0x88] sm:$0xff] %vm981, %v934
    %1000 = vst.msk [vmem:[#allocation2 + $0x90] sm:$0xff] %vm981, %v935
    %1001 = vst.msk [vmem:[#allocation2 + $0x98] sm:$0xff] %vm981, %v936
    %1002 = vst.msk [vmem:[#allocation2 + $0xa0] sm:$0xff] %vm981, %v937
    %1003 = vst.msk [vmem:[#allocation2 + $0xa8] sm:$0xff] %vm981, %v938
    %1004 = vst.msk [vmem:[#allocation2 + $0xb0] sm:$0xff] %vm981, %v939
    %1005 = vst.msk [vmem:[#allocation2 + $0xb8] sm:$0xff] %vm981, %v940
    %1006 = vst.msk [vmem:[#allocation2 + $0xc0] sm:$0xff] %vm981, %v941
    %1007 = vst.msk [vmem:[#allocation2 + $0xc8] sm:$0xff] %vm981, %v942
    %1008 = vst.msk [vmem:[#allocation2 + $0xd0] sm:$0xff] %vm981, %v943
    %1009 = vst.msk [vmem:[#allocation2 + $0xd8] sm:$0xff] %vm981, %v944
    %1010 = vst.msk [vmem:[#allocation2 + $0xe0] sm:$0xff] %vm981, %v945
    %1011 = vst.msk [vmem:[#allocation2 + $0xe8] sm:$0xff] %vm981, %v946
    %1012 = vst.msk [vmem:[#allocation2 + $0xf0] sm:$0xff] %vm981, %v947
    %1013 = vst.msk [vmem:[#allocation2 + $0xf8] sm:$0xff] %vm981, %v948
    %1014 = vst.msk [vmem:[#allocation2 + $0x100] sm:$0xff] %vm981, %v949
    %1015 = vst.msk [vmem:[#allocation2 + $0x108] sm:$0xff] %vm981, %v950
    %1016 = vst.msk [vmem:[#allocation2 + $0x110] sm:$0xff] %vm981, %v951
    %1017 = vst.msk [vmem:[#allocation2 + $0x118] sm:$0xff] %vm981, %v952
    %1018 = vst.msk [vmem:[#allocation2 + $0x120] sm:$0xff] %vm981, %v953
    %1019 = vst.msk [vmem:[#allocation2 + $0x128] sm:$0xff] %vm981, %v954
    %1020 = vst.msk [vmem:[#allocation2 + $0x130] sm:$0xff] %vm981, %v955
    %1021 = vst.msk [vmem:[#allocation2 + $0x138] sm:$0xff] %vm981, %v956
    %1022 = vst.msk [vmem:[#allocation2 + $0x140] sm:$0xff] %vm981, %v957
    %1023 = vst.msk [vmem:[#allocation2 + $0x148] sm:$0xff] %vm981, %v958
    %1024 = vst.msk [vmem:[#allocation2 + $0x150] sm:$0xff] %vm981, %v959
    %1025 = vst.msk [vmem:[#allocation2 + $0x158] sm:$0xff] %vm981, %v960
    %1026 = vst.msk [vmem:[#allocation2 + $0x160] sm:$0xff] %vm981, %v961
    %1027 = vst.msk [vmem:[#allocation2 + $0x168] sm:$0xff] %vm981, %v962
    %1028 = vst.msk [vmem:[#allocation2 + $0x170] sm:$0xff] %vm981, %v963
    %1029 = vst.msk [vmem:[#allocation2 + $0x178] sm:$0xff] %vm981, %v964
    %1030 = vst.msk [vmem:[#allocation2 + $0x180] sm:$0xff] %vm981, %v965
    %1031 = vst.msk [vmem:[#allocation2 + $0x188] sm:$0xff] %vm981, %v966
    %1032 = vst.msk [vmem:[#allocation2 + $0x190] sm:$0xff] %vm981, %v967
    %1033 = vst.msk [vmem:[#allocation2 + $0x198] sm:$0xff] %vm981, %v968
    %1034 = vst.msk [vmem:[#allocation2 + $0x1a0] sm:$0xff] %vm981, %v969
    %1035 = vst.msk [vmem:[#allocation2 + $0x1a8] sm:$0xff] %vm981, %v970
    %1036 = vst.msk [vmem:[#allocation2 + $0x1b0] sm:$0xff] %vm981, %v971
    %1037 = vst.msk [vmem:[#allocation2 + $0x1b8] sm:$0xff] %vm981, %v972
    %1038 = vst.msk [vmem:[#allocation2 + $0x1c0] sm:$0xff] %vm981, %v973
    %1039 = vst.msk [vmem:[#allocation2 + $0x1c8] sm:$0xff] %vm981, %v974
    %1040 = vst.msk [vmem:[#allocation2 + $0x1d0] sm:$0xff] %vm981, %v975
    %1041 = vst.msk [vmem:[#allocation2 + $0x1d8] sm:$0xff] %vm981, %v976
    %1042 = vst.msk [vmem:[#allocation2 + $0x1e0] sm:$0xff] %vm981, %v977
    %1043 = vst.msk [vmem:[#allocation2 + $0x1e8] sm:$0xff] %vm981, %v978
    %1044 = vst.msk [vmem:[#allocation2 + $0x1f0] sm:$0xff] %vm981, %v979
    %1045 = vst.msk [vmem:[#allocation2 + $0x1f8] sm:$0xff] %vm981, %v980
    // Predicated region
    $region26: #{bottleneck_forward.7} parent=1 // pred_check
      _
    $region27: #{bottleneck_forward.7} parent=1 // pred_check_branch
      %1047 = sbr.rel (0) target = $region29
    $region28: #{bottleneck_forward.7} parent=1 // pred_region
      %s1049 = ssub.s32 8192, 8192
      %1050 = vsyncadd [#allocation3], %s1049
      %s1051 = sshll.u32 [#allocation2], 4
      %s1052 = int_to_ptr.vmem [resolvable:$true] %s1051
      %1057 = dma.vmem_to_hbm [thread:$0]  %s1052, 8192, %s6, [#allocation3], 128, 128, 8
    $region29: #{bottleneck_forward.7} parent=1 // pred_fallthru
      _
    // Predicated region
    $region30: #{bottleneck_forward.7} parent=1 // pred_check
      _
    $region31: #{bottleneck_forward.7} parent=1 // pred_check_branch
      %1059 = sbr.rel (0) target = $region33
    $region32: #{bottleneck_forward.7} parent=1 // pred_region
      %1060 = dma.done [#allocation3], 8192
    $region33: #{bottleneck_forward.7} parent=1 // pred_fallthru
      _
    %1061 = vsyncpa [#allocation3], 1

// kernel: bottleneck_forward.5
$region0: #{bottleneck_forward.5}
  #allocation0 [shape = 'u32[]', space=smem, size = 0x4, offset = 0x4, fixed_abs, tag = 'smem constant byte address 0x4 - core index']
  #allocation1 [shape = 'u32[144,128]{1,0:T(1,128)}', space=vmem, size = 0x12000, scoped, tag = 'internal scratch']
  #allocation2 [shape = 'f32[256,8]{1,0:T(8,128)}', space=vmem, size = 0x20000, scoped, tag = 'scratch operand']
  %s0 = inlined_call_operand.vmem [shape: bf16[2,256,8], index: 0, kind: input, shape index: {}]
  %s1 = inlined_call_operand.vmem [shape: f32[1,8], index: 1, kind: input, shape index: {}]
  %s2 = inlined_call_operand.vmem [shape: f32[1,8], index: 2, kind: input, shape index: {}]
  %s3 = inlined_call_operand.vmem [shape: bf16[9,8,8], index: 3, kind: input, shape index: {}]
  %s4 = inlined_call_operand.vmem [shape: bf16[2,256,8], index: 4, kind: output, shape index: {0}]
  %s5 = inlined_call_operand.vmem [shape: f32[2,1,8], index: 5, kind: output, shape index: {1}]
  %s6 = inlined_call_operand.vmem [shape: f32[2,1,8], index: 6, kind: output, shape index: {2}]
  %7 = xla_tuple %s4, %s5, %s6
  %s8 = sld [smem:[#allocation0]]
  $region65: #{bottleneck_forward.5} parent=0
    _
  %s10 = ssub.s32 1, %s8
  %s11 = scalar_select 0, %s10, %s8
  loop: start=0, step=1, limit=4
  $region2: #{bottleneck_forward.5} parent=0 // loop_pre_header
    _
  $region3: #{bottleneck_forward.5} parent=0 // loop_header
    %s13 = sphi 0, %s17
    %p14 = scmp.ge.s32.totalorder %s13, 4
    %s23 = sphi 0, %s25
    %s26 = sphi 0, %s23
    %s27 = sphi 0, %s26
    %s43 = sphi 0, %s27
    %s47 = sphi 0, %s47
    %s49 = sphi 0, %s47
    %s50 = sphi 0, %s49
    %s64 = sphi 0, %s50
    %s68 = sphi 0, %s68
    %s70 = sphi 0, %s68
    %s71 = sphi 0, %s70
    %s85 = sphi 0, %s71
    %s89 = sphi 0, %s89
    %s91 = sphi 0, %s89
    %s92 = sphi 0, %s91
    %s106 = sphi 0, %s92
    %s112 = sphi 0, %s114
    %s115 = sphi 0, %s112
    %s116 = sphi 0, %s115
    %s132 = sphi 0, %s116
    %s138 = sphi 0, %s140
    %s141 = sphi 0, %s138
    %s142 = sphi 0, %s141
    %s158 = sphi 0, %s142
    %s164 = sphi 0, %s166
    %s167 = sphi 0, %s164
    %s168 = sphi 0, %s167
    %s184 = sphi 0, %s168
  $region4: #{bottleneck_forward.5} parent=0 // loop_header_branch
    %16 = sbr.rel (%p14) target = $region8
  $region5: #{bottleneck_forward.5} parent=0 // loop_body
    %s18 = ssub.s32 %s13, 1
    %s19 = ssub.s32 %s13, 2
    %s20 = sadd.s32 %s13, 1
    %s21 = ssub.s32 %s13, %s20
    %p22 = scmp.eq.s32.totalorder %s21, 0
    %s24 = sadd.s32 %s23, 1
    %s25 = scalar_select %p22, %s23, %s24
    %p28 = pneg %p22
    %p29 = scmp.eq.s32.totalorder %s13, 1
    %p30 = por %p28, %p29
    %p31 = scmp.ne.s32.totalorder %s23, %s26
    %p32 = scmp.eq.s32.totalorder %s13, 0
    %p33 = por %p31, %p32
    %p34 = scmp.ne.s32.totalorder %s23, %s26
    %p35 = scmp.eq.s32.totalorder %s18, 1
    %p36 = por %p34, %p35
    %p37 = scmp.ne.s32.totalorder %s26, %s27
    %p38 = scmp.eq.s32.totalorder %s18, 0
    %p39 = por %p37, %p38
    %p40 = scmp.ne.s32.totalorder %s26, %s27
    %p41 = scmp.eq.s32.totalorder %s19, 1
    %p42 = por %p40, %p41
    %p44 = scmp.ne.s32.totalorder %s27, %s43
    %p45 = scmp.eq.s32.totalorder %s19, 0
    %p46 = por %p44, %p45
    %s48 = sadd.s32 %s47, 1
    %p51 = scmp.eq.s32.totalorder %s13, 1
    %p52 = scmp.ne.s32.totalorder %s47, %s49
    %p53 = scmp.eq.s32.totalorder %s13, 0
    %p54 = por %p52, %p53
    %p55 = scmp.ne.s32.totalorder %s47, %s49
    %p56 = scmp.eq.s32.totalorder %s18, 1
    %p57 = por %p55, %p56
    %p58 = scmp.ne.s32.totalorder %s49, %s50
    %p59 = scmp.eq.s32.totalorder %s18, 0
    %p60 = por %p58, %p59
    %p61 = scmp.ne.s32.totalorder %s49, %s50
    %p62 = scmp.eq.s32.totalorder %s19, 1
    %p63 = por %p61, %p62
    %p65 = scmp.ne.s32.totalorder %s50, %s64
    %p66 = scmp.eq.s32.totalorder %s19, 0
    %p67 = por %p65, %p66
    %s69 = sadd.s32 %s68, 1
    %p72 = scmp.eq.s32.totalorder %s13, 1
    %p73 = scmp.ne.s32.totalorder %s68, %s70
    %p74 = scmp.eq.s32.totalorder %s13, 0
    %p75 = por %p73, %p74
    %p76 = scmp.ne.s32.totalorder %s68, %s70
    %p77 = scmp.eq.s32.totalorder %s18, 1
    %p78 = por %p76, %p77
    %p79 = scmp.ne.s32.totalorder %s70, %s71
    %p80 = scmp.eq.s32.totalorder %s18, 0
    %p81 = por %p79, %p80
    %p82 = scmp.ne.s32.totalorder %s70, %s71
    %p83 = scmp.eq.s32.totalorder %s19, 1
    %p84 = por %p82, %p83
    %p86 = scmp.ne.s32.totalorder %s71, %s85
    %p87 = scmp.eq.s32.totalorder %s19, 0
    %p88 = por %p86, %p87
    %s90 = sadd.s32 %s89, 1
    %p93 = scmp.eq.s32.totalorder %s13, 1
    %p94 = scmp.ne.s32.totalorder %s89, %s91
    %p95 = scmp.eq.s32.totalorder %s13, 0
    %p96 = por %p94, %p95
    %p97 = scmp.ne.s32.totalorder %s89, %s91
    %p98 = scmp.eq.s32.totalorder %s18, 1
    %p99 = por %p97, %p98
    %p100 = scmp.ne.s32.totalorder %s91, %s92
    %p101 = scmp.eq.s32.totalorder %s18, 0
    %p102 = por %p100, %p101
    %p103 = scmp.ne.s32.totalorder %s91, %s92
    %p104 = scmp.eq.s32.totalorder %s19, 1
    %p105 = por %p103, %p104
    %p107 = scmp.ne.s32.totalorder %s92, %s106
    %p108 = scmp.eq.s32.totalorder %s19, 0
    %p109 = por %p107, %p108
    %s110 = ssub.s32 %s13, %s20
    %p111 = scmp.eq.s32.totalorder %s110, 0
    %s113 = sadd.s32 %s112, 1
    %s114 = scalar_select %p111, %s112, %s113
    %p117 = pneg %p111
    %p118 = scmp.eq.s32.totalorder %s13, 1
    %p119 = por %p117, %p118
    %p120 = scmp.ne.s32.totalorder %s112, %s115
    %p121 = scmp.eq.s32.totalorder %s13, 0
    %p122 = por %p120, %p121
    %p123 = scmp.ne.s32.totalorder %s112, %s115
    %p124 = scmp.eq.s32.totalorder %s18, 1
    %p125 = por %p123, %p124
    %p126 = scmp.ne.s32.totalorder %s115, %s116
    %p127 = scmp.eq.s32.totalorder %s18, 0
    %p128 = por %p126, %p127
    %p129 = scmp.ne.s32.totalorder %s115, %s116
    %p130 = scmp.eq.s32.totalorder %s19, 1
    %p131 = por %p129, %p130
    %p133 = scmp.ne.s32.totalorder %s116, %s132
    %p134 = scmp.eq.s32.totalorder %s19, 0
    %p135 = por %p133, %p134
    %s136 = ssub.s32 %s13, %s20
    %p137 = scmp.eq.s32.totalorder %s136, 0
    %s139 = sadd.s32 %s138, 1
    %s140 = scalar_select %p137, %s138, %s139
    %p143 = pneg %p137
    %p144 = scmp.eq.s32.totalorder %s13, 1
    %p145 = por %p143, %p144
    %p146 = scmp.ne.s32.totalorder %s138, %s141
    %p147 = scmp.eq.s32.totalorder %s13, 0
    %p148 = por %p146, %p147
    %p149 = scmp.ne.s32.totalorder %s138, %s141
    %p150 = scmp.eq.s32.totalorder %s18, 1
    %p151 = por %p149, %p150
    %p152 = scmp.ne.s32.totalorder %s141, %s142
    %p153 = scmp.eq.s32.totalorder %s18, 0
    %p154 = por %p152, %p153
    %p155 = scmp.ne.s32.totalorder %s141, %s142
    %p156 = scmp.eq.s32.totalorder %s19, 1
    %p157 = por %p155, %p156
    %p159 = scmp.ne.s32.totalorder %s142, %s158
    %p160 = scmp.eq.s32.totalorder %s19, 0
    %p161 = por %p159, %p160
    %s162 = ssub.s32 %s13, %s20
    %p163 = scmp.eq.s32.totalorder %s162, 0
    %s165 = sadd.s32 %s164, 1
    %s166 = scalar_select %p163, %s164, %s165
    %p169 = pneg %p163
    %p170 = scmp.eq.s32.totalorder %s13, 1
    %p171 = por %p169, %p170
    %p172 = scmp.ne.s32.totalorder %s164, %s167
    %p173 = scmp.eq.s32.totalorder %s13, 0
    %p174 = por %p172, %p173
    %p175 = scmp.ne.s32.totalorder %s164, %s167
    %p176 = scmp.eq.s32.totalorder %s18, 1
    %p177 = por %p175, %p176
    %p178 = scmp.ne.s32.totalorder %s167, %s168
    %p179 = scmp.eq.s32.totalorder %s18, 0
    %p180 = por %p178, %p179
    %p181 = scmp.ne.s32.totalorder %s167, %s168
    %p182 = scmp.eq.s32.totalorder %s19, 1
    %p183 = por %p181, %p182
    %p185 = scmp.ne.s32.totalorder %s168, %s184
    %p186 = scmp.eq.s32.totalorder %s19, 0
    %p187 = por %p185, %p186
    %p188 = scmp.le.s32.totalorder 1, %s13
    %p189 = scmp.lt.s32.totalorder %s13, 3
    %p190 = pnand %p188, %p189
    %p191 = pneg %p190
    // Predicated region
    $region9: #{bottleneck_forward.5} parent=5 // pred_check
      _
    $region10: #{bottleneck_forward.5} parent=5 // pred_check_branch
      %193 = sbr.rel (%p190) target = $region12
    $region11: #{bottleneck_forward.5} parent=5 // pred_region
      %s194 = ssub.s32 %s13, 1
      // Predicated region
      $region13: #{bottleneck_forward.5} parent=11 // pred_check
        %p195 = pneg %p60
      $region14: #{bottleneck_forward.5} parent=11 // pred_check_branch
        %197 = sbr.rel (%p195) target = $region16
      $region15: #{bottleneck_forward.5} parent=11 // pred_region
        _
      $region16: #{bottleneck_forward.5} parent=11 // pred_fallthru
        _
      // Predicated region
      $region17: #{bottleneck_forward.5} parent=11 // pred_check
        %p198 = pneg %p81
      $region18: #{bottleneck_forward.5} parent=11 // pred_check_branch
        %200 = sbr.rel (%p198) target = $region20
      $region19: #{bottleneck_forward.5} parent=11 // pred_region
        _
      $region20: #{bottleneck_forward.5} parent=11 // pred_fallthru
        _
      // Predicated region
      $region21: #{bottleneck_forward.5} parent=11 // pred_check
        %p201 = pneg %p102
      $region22: #{bottleneck_forward.5} parent=11 // pred_check_branch
        %203 = sbr.rel (%p201) target = $region24
      $region23: #{bottleneck_forward.5} parent=11 // pred_region
        _
      $region24: #{bottleneck_forward.5} parent=11 // pred_fallthru
        _
    $region12: #{bottleneck_forward.5} parent=5 // pred_fallthru
      _
    %p204 = scmp.lt.s32.totalorder %s13, 2
    // Predicated region
    $region25: #{bottleneck_forward.5} parent=5 // pred_check
      %p205 = pneg %p204
    $region26: #{bottleneck_forward.5} parent=5 // pred_check_branch
      %207 = sbr.rel (%p205) target = $region28
    $region27: #{bottleneck_forward.5} parent=5 // pred_region
      // Predicated region
      $region29: #{bottleneck_forward.5} parent=27 // pred_check
        %p208 = pneg %p33
      $region30: #{bottleneck_forward.5} parent=27 // pred_check_branch
        %210 = sbr.rel (%p208) target = $region32
      $region31: #{bottleneck_forward.5} parent=27 // pred_region
        %p211 = scmp.lt.s32.totalorder %s13, 1
        %s212 = scalar_select %p211, %s13, 1
        %s213 = smul.addr %s212, 32
        %s214 = smul.addr %s213, 4
        %s215 = scalar_lea.vmem %s0, %s214
      $region32: #{bottleneck_forward.5} parent=27 // pred_fallthru
        _
    $region28: #{bottleneck_forward.5} parent=5 // pred_fallthru
      _
    %p216 = scmp.le.s32.totalorder 1, %s13
    %p217 = scmp.lt.s32.totalorder %s13, 3
    %p218 = pnand %p216, %p217
    %p219 = pneg %p218
    // Predicated region
    $region33: #{bottleneck_forward.5} parent=5 // pred_check
      _
    $region34: #{bottleneck_forward.5} parent=5 // pred_check_branch
      %221 = sbr.rel (%p218) target = $region36
    $region35: #{bottleneck_forward.5} parent=5 // pred_region
      %s222 = ssub.s32 %s13, 1
      %p223 = scmp.lt.s32.totalorder %s18, 1
      %s224 = scalar_select %p223, %s18, 1
      %s225 = smul.addr %s224, 32
      %s226 = smul.addr %s225, 4
      %s227 = scalar_lea.vmem %s0, %s226
      %p228 = pneg %p39
      %p229 = pneg %p36
      %p230 = pneg %p60
      %p231 = pneg %p57
      %p232 = pneg %p81
      %p233 = pneg %p78
      %p234 = pneg %p102
      %p235 = pneg %p99
      %p236 = pneg %p128
      %p237 = pneg %p125
      %p238 = scmp.lt.s32.totalorder %s18, 1
      %s239 = scalar_select %p238, %s18, 1
      %s240 = smul.addr %s239, 32
      %s241 = smul.addr %s240, 4
      %s242 = scalar_lea.vmem %s4, %s241
      %p243 = pneg %p154
      %p244 = pneg %p151
      %p245 = scmp.lt.s32.totalorder %s18, 1
      %s246 = scalar_select %p245, %s18, 1
      %s247 = scalar_lea.vmem %s5, %s246
      %p248 = pneg %p180
      %p249 = pneg %p177
      %p250 = scmp.lt.s32.totalorder %s18, 1
      %s251 = scalar_select %p250, %s18, 1
      %s252 = scalar_lea.vmem %s6, %s251
      %p253 = scmp.lt.s32.totalorder %s18, 1
      %s254 = scalar_select %p253, %s18, 1
      %s255 = smul.addr %s254, 32
      %s256 = smul.addr %s255, 4
      %s257 = scalar_lea.vmem %s0, %s256
      %p258 = scmp.lt.s32.totalorder %s18, 1
      %s259 = scalar_select %p258, %s18, 1
      %s260 = smul.addr %s259, 32
      %s261 = smul.addr %s260, 4
      %s262 = scalar_lea.vmem %s4, %s261
      %p263 = scmp.lt.s32.totalorder %s18, 1
      %s264 = scalar_select %p263, %s18, 1
      %s265 = scalar_lea.vmem %s5, %s264
      %p266 = scmp.lt.s32.totalorder %s18, 1
      %s267 = scalar_select %p266, %s18, 1
      %s268 = scalar_lea.vmem %s6, %s267
      %v270 = vld [vmem:[%s257] sm:$0xf]
      %v271 = vld [vmem:[%s257 + $0x4] sm:$0xf]
      %v272 = vld [vmem:[%s257 + $0x8] sm:$0xf]
      %v273 = vld [vmem:[%s257 + $0xc] sm:$0xf]
      %v274 = vld [vmem:[%s257 + $0x10] sm:$0xf]
      %v275 = vld [vmem:[%s257 + $0x14] sm:$0xf]
      %v276 = vld [vmem:[%s257 + $0x18] sm:$0xf]
      %v277 = vld [vmem:[%s257 + $0x1c] sm:$0xf]
      %v278 = vld [vmem:[%s257 + $0x20] sm:$0xf]
      %v279 = vld [vmem:[%s257 + $0x24] sm:$0xf]
      %v280 = vld [vmem:[%s257 + $0x28] sm:$0xf]
      %v281 = vld [vmem:[%s257 + $0x2c] sm:$0xf]
      %v282 = vld [vmem:[%s257 + $0x30] sm:$0xf]
      %v283 = vld [vmem:[%s257 + $0x34] sm:$0xf]
      %v284 = vld [vmem:[%s257 + $0x38] sm:$0xf]
      %v285 = vld [vmem:[%s257 + $0x3c] sm:$0xf]
      %v286 = vld [vmem:[%s257 + $0x40] sm:$0xf]
      %v287 = vld [vmem:[%s257 + $0x44] sm:$0xf]
      %v288 = vld [vmem:[%s257 + $0x48] sm:$0xf]
      %v289 = vld [vmem:[%s257 + $0x4c] sm:$0xf]
      %v290 = vld [vmem:[%s257 + $0x50] sm:$0xf]
      %v291 = vld [vmem:[%s257 + $0x54] sm:$0xf]
      %v292 = vld [vmem:[%s257 + $0x58] sm:$0xf]
      %v293 = vld [vmem:[%s257 + $0x5c] sm:$0xf]
      %v294 = vld [vmem:[%s257 + $0x60] sm:$0xf]
      %v295 = vld [vmem:[%s257 + $0x64] sm:$0xf]
      %v296 = vld [vmem:[%s257 + $0x68] sm:$0xf]
      %v297 = vld [vmem:[%s257 + $0x6c] sm:$0xf]
      %v298 = vld [vmem:[%s257 + $0x70] sm:$0xf]
      %v299 = vld [vmem:[%s257 + $0x74] sm:$0xf]
      %v300 = vld [vmem:[%s257 + $0x78] sm:$0xf]
      %v301 = vld [vmem:[%s257 + $0x7c] sm:$0xf]
      %v302 = vunpack.c.l.bf16 %v270
      %v303 = vunpack.c.l.bf16 %v271
      %v304 = vunpack.c.l.bf16 %v272
      %v305 = vunpack.c.l.bf16 %v273
      %v306 = vunpack.c.l.bf16 %v274
      %v307 = vunpack.c.l.bf16 %v275
      %v308 = vunpack.c.l.bf16 %v276
      %v309 = vunpack.c.l.bf16 %v277
      %v310 = vunpack.c.l.bf16 %v278
      %v311 = vunpack.c.l.bf16 %v279
      %v312 = vunpack.c.l.bf16 %v280
      %v313 = vunpack.c.l.bf16 %v281
      %v314 = vunpack.c.l.bf16 %v282
      %v315 = vunpack.c.l.bf16 %v283
      %v316 = vunpack.c.l.bf16 %v284
      %v317 = vunpack.c.l.bf16 %v285
      %v318 = vunpack.c.l.bf16 %v286
      %v319 = vunpack.c.l.bf16 %v287
      %v320 = vunpack.c.l.bf16 %v288
      %v321 = vunpack.c.l.bf16 %v289
      %v322 = vunpack.c.l.bf16 %v290
      %v323 = vunpack.c.l.bf16 %v291
      %v324 = vunpack.c.l.bf16 %v292
      %v325 = vunpack.c.l.bf16 %v293
      %v326 = vunpack.c.l.bf16 %v294
      %v327 = vunpack.c.l.bf16 %v295
      %v328 = vunpack.c.l.bf16 %v296
      %v329 = vunpack.c.l.bf16 %v297
      %v330 = vunpack.c.l.bf16 %v298
      %v331 = vunpack.c.l.bf16 %v299
      %v332 = vunpack.c.l.bf16 %v300
      %v333 = vunpack.c.l.bf16 %v301
      %v334 = vld [vmem:[%s1] sm:$0x1]
      %v336 = vlaneseq
      %v337 = vshrl.u32 %v336, 7
      %v338 = vsub.s32 0, %v337
      %v339 = vrot.slane %v334, %v338
      %v341 = vmul.f32 %v302, %v339
      %v342 = vmul.f32 %v303, %v339
      %v343 = vmul.f32 %v304, %v339
      %v344 = vmul.f32 %v305, %v339
      %v345 = vmul.f32 %v306, %v339
      %v346 = vmul.f32 %v307, %v339
      %v347 = vmul.f32 %v308, %v339
      %v348 = vmul.f32 %v309, %v339
      %v349 = vmul.f32 %v310, %v339
      %v350 = vmul.f32 %v311, %v339
      %v351 = vmul.f32 %v312, %v339
      %v352 = vmul.f32 %v313, %v339
      %v353 = vmul.f32 %v314, %v339
      %v354 = vmul.f32 %v315, %v339
      %v355 = vmul.f32 %v316, %v339
      %v356 = vmul.f32 %v317, %v339
      %v357 = vmul.f32 %v318, %v339
      %v358 = vmul.f32 %v319, %v339
      %v359 = vmul.f32 %v320, %v339
      %v360 = vmul.f32 %v321, %v339
      %v361 = vmul.f32 %v322, %v339
      %v362 = vmul.f32 %v323, %v339
      %v363 = vmul.f32 %v324, %v339
      %v364 = vmul.f32 %v325, %v339
      %v365 = vmul.f32 %v326, %v339
      %v366 = vmul.f32 %v327, %v339
      %v367 = vmul.f32 %v328, %v339
      %v368 = vmul.f32 %v329, %v339
      %v369 = vmul.f32 %v330, %v339
      %v370 = vmul.f32 %v331, %v339
      %v371 = vmul.f32 %v332, %v339
      %v372 = vmul.f32 %v333, %v339
      %v373 = vld [vmem:[%s2] sm:$0x1]
      %v375 = vlaneseq
      %v376 = vshrl.u32 %v375, 7
      %v377 = vsub.s32 0, %v376
      %v378 = vrot.slane %v373, %v377
      %v380 = vadd.f32 %v341, %v378
      %v381 = vadd.f32 %v342, %v378
      %v382 = vadd.f32 %v343, %v378
      %v383 = vadd.f32 %v344, %v378
      %v384 = vadd.f32 %v345, %v378
      %v385 = vadd.f32 %v346, %v378
      %v386 = vadd.f32 %v347, %v378
      %v387 = vadd.f32 %v348, %v378
      %v388 = vadd.f32 %v349, %v378
      %v389 = vadd.f32 %v350, %v378
      %v390 = vadd.f32 %v351, %v378
      %v391 = vadd.f32 %v352, %v378
      %v392 = vadd.f32 %v353, %v378
      %v393 = vadd.f32 %v354, %v378
      %v394 = vadd.f32 %v355, %v378
      %v395 = vadd.f32 %v356, %v378
      %v396 = vadd.f32 %v357, %v378
      %v397 = vadd.f32 %v358, %v378
      %v398 = vadd.f32 %v359, %v378
      %v399 = vadd.f32 %v360, %v378
      %v400 = vadd.f32 %v361, %v378
      %v401 = vadd.f32 %v362, %v378
      %v402 = vadd.f32 %v363, %v378
      %v403 = vadd.f32 %v364, %v378
      %v404 = vadd.f32 %v365, %v378
      %v405 = vadd.f32 %v366, %v378
      %v406 = vadd.f32 %v367, %v378
      %v407 = vadd.f32 %v368, %v378
      %v408 = vadd.f32 %v369, %v378
      %v409 = vadd.f32 %v370, %v378
      %v410 = vadd.f32 %v371, %v378
      %v411 = vadd.f32 %v372, %v378
      %v412 = vmax.f32 %v380, 0.0
      %v413 = vmax.f32 %v381, 0.0
      %v414 = vmax.f32 %v382, 0.0
      %v415 = vmax.f32 %v383, 0.0
      %v416 = vmax.f32 %v384, 0.0
      %v417 = vmax.f32 %v385, 0.0
      %v418 = vmax.f32 %v386, 0.0
      %v419 = vmax.f32 %v387, 0.0
      %v420 = vmax.f32 %v388, 0.0
      %v421 = vmax.f32 %v389, 0.0
      %v422 = vmax.f32 %v390, 0.0
      %v423 = vmax.f32 %v391, 0.0
      %v424 = vmax.f32 %v392, 0.0
      %v425 = vmax.f32 %v393, 0.0
      %v426 = vmax.f32 %v394, 0.0
      %v427 = vmax.f32 %v395, 0.0
      %v428 = vmax.f32 %v396, 0.0
      %v429 = vmax.f32 %v397, 0.0
      %v430 = vmax.f32 %v398, 0.0
      %v431 = vmax.f32 %v399, 0.0
      %v432 = vmax.f32 %v400, 0.0
      %v433 = vmax.f32 %v401, 0.0
      %v434 = vmax.f32 %v402, 0.0
      %v435 = vmax.f32 %v403, 0.0
      %v436 = vmax.f32 %v404, 0.0
      %v437 = vmax.f32 %v405, 0.0
      %v438 = vmax.f32 %v406, 0.0
      %v439 = vmax.f32 %v407, 0.0
      %v440 = vmax.f32 %v408, 0.0
      %v441 = vmax.f32 %v409, 0.0
      %v442 = vmax.f32 %v410, 0.0
      %v443 = vmax.f32 %v411, 0.0
      %v444 = vlaneseq
      %v445 = vshrl.u32 %v444, 7
      %v446 = vadd.s32 %v445, 8
      %v447 = vadd.s32 %v445, 16
      %v448 = vadd.s32 %v445, 24
      %v449 = vadd.s32 %v445, 32
      %v450 = vadd.s32 %v445, 40
      %v451 = vadd.s32 %v445, 48
      %v452 = vadd.s32 %v445, 56
      %v453 = vadd.s32 %v445, 64
      %v454 = vadd.s32 %v445, 72
      %v455 = vadd.s32 %v445, 80
      %v456 = vadd.s32 %v445, 88
      %v457 = vadd.s32 %v445, 96
      %v458 = vadd.s32 %v445, 104
      %v459 = vadd.s32 %v445, 112
      %v460 = vadd.s32 %v445, 120
      %v461 = vadd.s32 %v445, 128
      %v462 = vadd.s32 %v445, 136
      %v463 = vadd.s32 %v445, 144
      %v464 = vadd.s32 %v445, 152
      %v465 = vadd.s32 %v445, 160
      %v466 = vadd.s32 %v445, 168
      %v467 = vadd.s32 %v445, 176
      %v468 = vadd.s32 %v445, 184
      %v469 = vadd.s32 %v445, 192
      %v470 = vadd.s32 %v445, 200
      %v471 = vadd.s32 %v445, 208
      %v472 = vadd.s32 %v445, 216
      %v473 = vadd.s32 %v445, 224
      %v474 = vadd.s32 %v445, 232
      %v475 = vadd.s32 %v445, 240
      %v476 = vadd.s32 %v445, 248
      %vm477 = vcmp.lt.s32.totalorder %v445, 0
      %v478 = vsub.s32 0, %v445
      %v479 = vsel %vm477, %v478, %v445
      %v480 = vshrl.u32 %v479, 4
      %v481 = vand.u32 %v479, 15
      %v482 = vsub.s32 0, %v481
      %v483 = vsel %vm477, %v482, %v481
      %vm484 = vcmp.lt.s32.totalorder %v446, 0
      %v485 = vsub.s32 0, %v446
      %v486 = vsel %vm484, %v485, %v446
      %v487 = vshrl.u32 %v486, 4
      %v488 = vand.u32 %v486, 15
      %v489 = vsub.s32 0, %v488
      %v490 = vsel %vm484, %v489, %v488
      %vm491 = vcmp.lt.s32.totalorder %v447, 0
      %v492 = vsub.s32 0, %v447
      %v493 = vsel %vm491, %v492, %v447
      %v494 = vshrl.u32 %v493, 4
      %v495 = vand.u32 %v493, 15
      %v496 = vsub.s32 0, %v495
      %v497 = vsel %vm491, %v496, %v495
      %vm498 = vcmp.lt.s32.totalorder %v448, 0
      %v499 = vsub.s32 0, %v448
      %v500 = vsel %vm498, %v499, %v448
      %v501 = vshrl.u32 %v500, 4
      %v502 = vand.u32 %v500, 15
      %v503 = vsub.s32 0, %v502
      %v504 = vsel %vm498, %v503, %v502
      %vm505 = vcmp.lt.s32.totalorder %v449, 0
      %v506 = vsub.s32 0, %v449
      %v507 = vsel %vm505, %v506, %v449
      %v508 = vshrl.u32 %v507, 4
      %v509 = vand.u32 %v507, 15
      %v510 = vsub.s32 0, %v509
      %v511 = vsel %vm505, %v510, %v509
      %vm512 = vcmp.lt.s32.totalorder %v450, 0
      %v513 = vsub.s32 0, %v450
      %v514 = vsel %vm512, %v513, %v450
      %v515 = vshrl.u32 %v514, 4
      %v516 = vand.u32 %v514, 15
      %v517 = vsub.s32 0, %v516
      %v518 = vsel %vm512, %v517, %v516
      %vm519 = vcmp.lt.s32.totalorder %v451, 0
      %v520 = vsub.s32 0, %v451
      %v521 = vsel %vm519, %v520, %v451
      %v522 = vshrl.u32 %v521, 4
      %v523 = vand.u32 %v521, 15
      %v524 = vsub.s32 0, %v523
      %v525 = vsel %vm519, %v524, %v523
      %vm526 = vcmp.lt.s32.totalorder %v452, 0
      %v527 = vsub.s32 0, %v452
      %v528 = vsel %vm526, %v527, %v452
      %v529 = vshrl.u32 %v528, 4
      %v530 = vand.u32 %v528, 15
      %v531 = vsub.s32 0, %v530
      %v532 = vsel %vm526, %v531, %v530
      %vm533 = vcmp.lt.s32.totalorder %v453, 0
      %v534 = vsub.s32 0, %v453
      %v535 = vsel %vm533, %v534, %v453
      %v536 = vshrl.u32 %v535, 4
      %v537 = vand.u32 %v535, 15
      %v538 = vsub.s32 0, %v537
      %v539 = vsel %vm533, %v538, %v537
      %vm540 = vcmp.lt.s32.totalorder %v454, 0
      %v541 = vsub.s32 0, %v454
      %v542 = vsel %vm540, %v541, %v454
      %v543 = vshrl.u32 %v542, 4
      %v544 = vand.u32 %v542, 15
      %v545 = vsub.s32 0, %v544
      %v546 = vsel %vm540, %v545, %v544
      %vm547 = vcmp.lt.s32.totalorder %v455, 0
      %v548 = vsub.s32 0, %v455
      %v549 = vsel %vm547, %v548, %v455
      %v550 = vshrl.u32 %v549, 4
      %v551 = vand.u32 %v549, 15
      %v552 = vsub.s32 0, %v551
      %v553 = vsel %vm547, %v552, %v551
      %vm554 = vcmp.lt.s32.totalorder %v456, 0
      %v555 = vsub.s32 0, %v456
      %v556 = vsel %vm554, %v555, %v456
      %v557 = vshrl.u32 %v556, 4
      %v558 = vand.u32 %v556, 15
      %v559 = vsub.s32 0, %v558
      %v560 = vsel %vm554, %v559, %v558
      %vm561 = vcmp.lt.s32.totalorder %v457, 0
      %v562 = vsub.s32 0, %v457
      %v563 = vsel %vm561, %v562, %v457
      %v564 = vshrl.u32 %v563, 4
      %v565 = vand.u32 %v563, 15
      %v566 = vsub.s32 0, %v565
      %v567 = vsel %vm561, %v566, %v565
      %vm568 = vcmp.lt.s32.totalorder %v458, 0
      %v569 = vsub.s32 0, %v458
      %v570 = vsel %vm568, %v569, %v458
      %v571 = vshrl.u32 %v570, 4
      %v572 = vand.u32 %v570, 15
      %v573 = vsub.s32 0, %v572
      %v574 = vsel %vm568, %v573, %v572
      %vm575 = vcmp.lt.s32.totalorder %v459, 0
      %v576 = vsub.s32 0, %v459
      %v577 = vsel %vm575, %v576, %v459
      %v578 = vshrl.u32 %v577, 4
      %v579 = vand.u32 %v577, 15
      %v580 = vsub.s32 0, %v579
      %v581 = vsel %vm575, %v580, %v579
      %vm582 = vcmp.lt.s32.totalorder %v460, 0
      %v583 = vsub.s32 0, %v460
      %v584 = vsel %vm582, %v583, %v460
      %v585 = vshrl.u32 %v584, 4
      %v586 = vand.u32 %v584, 15
      %v587 = vsub.s32 0, %v586
      %v588 = vsel %vm582, %v587, %v586
      %vm589 = vcmp.lt.s32.totalorder %v461, 0
      %v590 = vsub.s32 0, %v461
      %v591 = vsel %vm589, %v590, %v461
      %v592 = vshrl.u32 %v591, 4
      %v593 = vand.u32 %v591, 15
      %v594 = vsub.s32 0, %v593
      %v595 = vsel %vm589, %v594, %v593
      %vm596 = vcmp.lt.s32.totalorder %v462, 0
      %v597 = vsub.s32 0, %v462
      %v598 = vsel %vm596, %v597, %v462
      %v599 = vshrl.u32 %v598, 4
      %v600 = vand.u32 %v598, 15
      %v601 = vsub.s32 0, %v600
      %v602 = vsel %vm596, %v601, %v600
      %vm603 = vcmp.lt.s32.totalorder %v463, 0
      %v604 = vsub.s32 0, %v463
      %v605 = vsel %vm603, %v604, %v463
      %v606 = vshrl.u32 %v605, 4
      %v607 = vand.u32 %v605, 15
      %v608 = vsub.s32 0, %v607
      %v609 = vsel %vm603, %v608, %v607
      %vm610 = vcmp.lt.s32.totalorder %v464, 0
      %v611 = vsub.s32 0, %v464
      %v612 = vsel %vm610, %v611, %v464
      %v613 = vshrl.u32 %v612, 4
      %v614 = vand.u32 %v612, 15
      %v615 = vsub.s32 0, %v614
      %v616 = vsel %vm610, %v615, %v614
      %vm617 = vcmp.lt.s32.totalorder %v465, 0
      %v618 = vsub.s32 0, %v465
      %v619 = vsel %vm617, %v618, %v465
      %v620 = vshrl.u32 %v619, 4
      %v621 = vand.u32 %v619, 15
      %v622 = vsub.s32 0, %v621
      %v623 = vsel %vm617, %v622, %v621
      %vm624 = vcmp.lt.s32.totalorder %v466, 0
      %v625 = vsub.s32 0, %v466
      %v626 = vsel %vm624, %v625, %v466
      %v627 = vshrl.u32 %v626, 4
      %v628 = vand.u32 %v626, 15
      %v629 = vsub.s32 0, %v628
      %v630 = vsel %vm624, %v629, %v628
      %vm631 = vcmp.lt.s32.totalorder %v467, 0
      %v632 = vsub.s32 0, %v467
      %v633 = vsel %vm631, %v632, %v467
      %v634 = vshrl.u32 %v633, 4
      %v635 = vand.u32 %v633, 15
      %v636 = vsub.s32 0, %v635
      %v637 = vsel %vm631, %v636, %v635
      %vm638 = vcmp.lt.s32.totalorder %v468, 0
      %v639 = vsub.s32 0, %v468
      %v640 = vsel %vm638, %v639, %v468
      %v641 = vshrl.u32 %v640, 4
      %v642 = vand.u32 %v640, 15
      %v643 = vsub.s32 0, %v642
      %v644 = vsel %vm638, %v643, %v642
      %vm645 = vcmp.lt.s32.totalorder %v469, 0
      %v646 = vsub.s32 0, %v469
      %v647 = vsel %vm645, %v646, %v469
      %v648 = vshrl.u32 %v647, 4
      %v649 = vand.u32 %v647, 15
      %v650 = vsub.s32 0, %v649
      %v651 = vsel %vm645, %v650, %v649
      %vm652 = vcmp.lt.s32.totalorder %v470, 0
      %v653 = vsub.s32 0, %v470
      %v654 = vsel %vm652, %v653, %v470
      %v655 = vshrl.u32 %v654, 4
      %v656 = vand.u32 %v654, 15
      %v657 = vsub.s32 0, %v656
      %v658 = vsel %vm652, %v657, %v656
      %vm659 = vcmp.lt.s32.totalorder %v471, 0
      %v660 = vsub.s32 0, %v471
      %v661 = vsel %vm659, %v660, %v471
      %v662 = vshrl.u32 %v661, 4
      %v663 = vand.u32 %v661, 15
      %v664 = vsub.s32 0, %v663
      %v665 = vsel %vm659, %v664, %v663
      %vm666 = vcmp.lt.s32.totalorder %v472, 0
      %v667 = vsub.s32 0, %v472
      %v668 = vsel %vm666, %v667, %v472
      %v669 = vshrl.u32 %v668, 4
      %v670 = vand.u32 %v668, 15
      %v671 = vsub.s32 0, %v670
      %v672 = vsel %vm666, %v671, %v670
      %vm673 = vcmp.lt.s32.totalorder %v473, 0
      %v674 = vsub.s32 0, %v473
      %v675 = vsel %vm673, %v674, %v473
      %v676 = vshrl.u32 %v675, 4
      %v677 = vand.u32 %v675, 15
      %v678 = vsub.s32 0, %v677
      %v679 = vsel %vm673, %v678, %v677
      %vm680 = vcmp.lt.s32.totalorder %v474, 0
      %v681 = vsub.s32 0, %v474
      %v682 = vsel %vm680, %v681, %v474
      %v683 = vshrl.u32 %v682, 4
      %v684 = vand.u32 %v682, 15
      %v685 = vsub.s32 0, %v684
      %v686 = vsel %vm680, %v685, %v684
      %vm687 = vcmp.lt.s32.totalorder %v475, 0
      %v688 = vsub.s32 0, %v475
      %v689 = vsel %vm687, %v688, %v475
      %v690 = vshrl.u32 %v689, 4
      %v691 = vand.u32 %v689, 15
      %v692 = vsub.s32 0, %v691
      %v693 = vsel %vm687, %v692, %v691
      %vm694 = vcmp.lt.s32.totalorder %v476, 0
      %v695 = vsub.s32 0, %v476
      %v696 = vsel %vm694, %v695, %v476
      %v697 = vshrl.u32 %v696, 4
      %v698 = vand.u32 %v696, 15
      %v699 = vsub.s32 0, %v698
      %v700 = vsel %vm694, %v699, %v698
      %vm701 = vcmp.ne.s32.totalorder %v483, 0
      %vm702 = vcmp.ne.s32.totalorder %v490, 0
      %vm703 = vcmp.ne.s32.totalorder %v497, 0
      %vm704 = vcmp.ne.s32.totalorder %v504, 0
      %vm705 = vcmp.ne.s32.totalorder %v511, 0
      %vm706 = vcmp.ne.s32.totalorder %v518, 0
      %vm707 = vcmp.ne.s32.totalorder %v525, 0
      %vm708 = vcmp.ne.s32.totalorder %v532, 0
      %vm709 = vcmp.ne.s32.totalorder %v539, 0
      %vm710 = vcmp.ne.s32.totalorder %v546, 0
      %vm711 = vcmp.ne.s32.totalorder %v553, 0
      %vm712 = vcmp.ne.s32.totalorder %v560, 0
      %vm713 = vcmp.ne.s32.totalorder %v567, 0
      %vm714 = vcmp.ne.s32.totalorder %v574, 0
      %vm715 = vcmp.ne.s32.totalorder %v581, 0
      %vm716 = vcmp.ne.s32.totalorder %v588, 0
      %vm717 = vcmp.ne.s32.totalorder %v595, 0
      %vm718 = vcmp.ne.s32.totalorder %v602, 0
      %vm719 = vcmp.ne.s32.totalorder %v609, 0
      %vm720 = vcmp.ne.s32.totalorder %v616, 0
      %vm721 = vcmp.ne.s32.totalorder %v623, 0
      %vm722 = vcmp.ne.s32.totalorder %v630, 0
      %vm723 = vcmp.ne.s32.totalorder %v637, 0
      %vm724 = vcmp.ne.s32.totalorder %v644, 0
      %vm725 = vcmp.ne.s32.totalorder %v651, 0
      %vm726 = vcmp.ne.s32.totalorder %v658, 0
      %vm727 = vcmp.ne.s32.totalorder %v665, 0
      %vm728 = vcmp.ne.s32.totalorder %v672, 0
      %vm729 = vcmp.ne.s32.totalorder %v679, 0
      %vm730 = vcmp.ne.s32.totalorder %v686, 0
      %vm731 = vcmp.ne.s32.totalorder %v693, 0
      %vm732 = vcmp.ne.s32.totalorder %v700, 0
      %vm733 = vcmp.lt.s32.totalorder %v483, 0
      %vm734 = vcmp.lt.s32.totalorder %v490, 0
      %vm735 = vcmp.lt.s32.totalorder %v497, 0
      %vm736 = vcmp.lt.s32.totalorder %v504, 0
      %vm737 = vcmp.lt.s32.totalorder %v511, 0
      %vm738 = vcmp.lt.s32.totalorder %v518, 0
      %vm739 = vcmp.lt.s32.totalorder %v525, 0
      %vm740 = vcmp.lt.s32.totalorder %v532, 0
      %vm741 = vcmp.lt.s32.totalorder %v539, 0
      %vm742 = vcmp.lt.s32.totalorder %v546, 0
      %vm743 = vcmp.lt.s32.totalorder %v553, 0
      %vm744 = vcmp.lt.s32.totalorder %v560, 0
      %vm745 = vcmp.lt.s32.totalorder %v567, 0
      %vm746 = vcmp.lt.s32.totalorder %v574, 0
      %vm747 = vcmp.lt.s32.totalorder %v581, 0
      %vm748 = vcmp.lt.s32.totalorder %v588, 0
      %vm749 = vcmp.lt.s32.totalorder %v595, 0
      %vm750 = vcmp.lt.s32.totalorder %v602, 0
      %vm751 = vcmp.lt.s32.totalorder %v609, 0
      %vm752 = vcmp.lt.s32.totalorder %v616, 0
      %vm753 = vcmp.lt.s32.totalorder %v623, 0
      %vm754 = vcmp.lt.s32.totalorder %v630, 0
      %vm755 = vcmp.lt.s32.totalorder %v637, 0
      %vm756 = vcmp.lt.s32.totalorder %v644, 0
      %vm757 = vcmp.lt.s32.totalorder %v651, 0
      %vm758 = vcmp.lt.s32.totalorder %v658, 0
      %vm759 = vcmp.lt.s32.totalorder %v665, 0
      %vm760 = vcmp.lt.s32.totalorder %v672, 0
      %vm761 = vcmp.lt.s32.totalorder %v679, 0
      %vm762 = vcmp.lt.s32.totalorder %v686, 0
      %vm763 = vcmp.lt.s32.totalorder %v693, 0
      %vm764 = vcmp.lt.s32.totalorder %v700, 0
      %vm765 = vmand %vm733, %vm701
      %vm766 = vmand %vm734, %vm702
      %vm767 = vmand %vm735, %vm703
      %vm768 = vmand %vm736, %vm704
      %vm769 = vmand %vm737, %vm705
      %vm770 = vmand %vm738, %vm706
      %vm771 = vmand %vm739, %vm707
      %vm772 = vmand %vm740, %vm708
      %vm773 = vmand %vm741, %vm709
      %vm774 = vmand %vm742, %vm710
      %vm775 = vmand %vm743, %vm711
      %vm776 = vmand %vm744, %vm712
      %vm777 = vmand %vm745, %vm713
      %vm778 = vmand %vm746, %vm714
      %vm779 = vmand %vm747, %vm715
      %vm780 = vmand %vm748, %vm716
      %vm781 = vmand %vm749, %vm717
      %vm782 = vmand %vm750, %vm718
      %vm783 = vmand %vm751, %vm719
      %vm784 = vmand %vm752, %vm720
      %vm785 = vmand %vm753, %vm721
      %vm786 = vmand %vm754, %vm722
      %vm787 = vmand %vm755, %vm723
      %vm788 = vmand %vm756, %vm724
      %vm789 = vmand %vm757, %vm725
      %vm790 = vmand %vm758, %vm726
      %vm791 = vmand %vm759, %vm727
      %vm792 = vmand %vm760, %vm728
      %vm793 = vmand %vm761, %vm729
      %vm794 = vmand %vm762, %vm730
      %vm795 = vmand %vm763, %vm731
      %vm796 = vmand %vm764, %vm732
      %v797 = vadd.s32 %v483, 16
      %v798 = vadd.s32 %v490, 16
      %v799 = vadd.s32 %v497, 16
      %v800 = vadd.s32 %v504, 16
      %v801 = vadd.s32 %v511, 16
      %v802 = vadd.s32 %v518, 16
      %v803 = vadd.s32 %v525, 16
      %v804 = vadd.s32 %v532, 16
      %v805 = vadd.s32 %v539, 16
      %v806 = vadd.s32 %v546, 16
      %v807 = vadd.s32 %v553, 16
      %v808 = vadd.s32 %v560, 16
      %v809 = vadd.s32 %v567, 16
      %v810 = vadd.s32 %v574, 16
      %v811 = vadd.s32 %v581, 16
      %v812 = vadd.s32 %v588, 16
      %v813 = vadd.s32 %v595, 16
      %v814 = vadd.s32 %v602, 16
      %v815 = vadd.s32 %v609, 16
      %v816 = vadd.s32 %v616, 16
      %v817 = vadd.s32 %v623, 16
      %v818 = vadd.s32 %v630, 16
      %v819 = vadd.s32 %v637, 16
      %v820 = vadd.s32 %v644, 16
      %v821 = vadd.s32 %v651, 16
      %v822 = vadd.s32 %v658, 16
      %v823 = vadd.s32 %v665, 16
      %v824 = vadd.s32 %v672, 16
      %v825 = vadd.s32 %v679, 16
      %v826 = vadd.s32 %v686, 16
      %v827 = vadd.s32 %v693, 16
      %v828 = vadd.s32 %v700, 16
      %v829 = vsel %vm765, %v797, %v483
      %v830 = vsel %vm766, %v798, %v490
      %v831 = vsel %vm767, %v799, %v497
      %v832 = vsel %vm768, %v800, %v504
      %v833 = vsel %vm769, %v801, %v511
      %v834 = vsel %vm770, %v802, %v518
      %v835 = vsel %vm771, %v803, %v525
      %v836 = vsel %vm772, %v804, %v532
      %v837 = vsel %vm773, %v805, %v539
      %v838 = vsel %vm774, %v806, %v546
      %v839 = vsel %vm775, %v807, %v553
      %v840 = vsel %vm776, %v808, %v560
      %v841 = vsel %vm777, %v809, %v567
      %v842 = vsel %vm778, %v810, %v574
      %v843 = vsel %vm779, %v811, %v581
      %v844 = vsel %vm780, %v812, %v588
      %v845 = vsel %vm781, %v813, %v595
      %v846 = vsel %vm782, %v814, %v602
      %v847 = vsel %vm783, %v815, %v609
      %v848 = vsel %vm784, %v816, %v616
      %v849 = vsel %vm785, %v817, %v623
      %v850 = vsel %vm786, %v818, %v630
      %v851 = vsel %vm787, %v819, %v637
      %v852 = vsel %vm788, %v820, %v644
      %v853 = vsel %vm789, %v821, %v651
      %v854 = vsel %vm790, %v822, %v658
      %v855 = vsel %vm791, %v823, %v665
      %v856 = vsel %vm792, %v824, %v672
      %v857 = vsel %vm793, %v825, %v679
      %v858 = vsel %vm794, %v826, %v686
      %v859 = vsel %vm795, %v827, %v693
      %v860 = vsel %vm796, %v828, %v700
      %vm861 = vcmp.gt.s32.totalorder %v829, 0
      %vm862 = vcmp.gt.s32.totalorder %v830, 0
      %vm863 = vcmp.gt.s32.totalorder %v831, 0
      %vm864 = vcmp.gt.s32.totalorder %v832, 0
      %vm865 = vcmp.gt.s32.totalorder %v833, 0
      %vm866 = vcmp.gt.s32.totalorder %v834, 0
      %vm867 = vcmp.gt.s32.totalorder %v835, 0
      %vm868 = vcmp.gt.s32.totalorder %v836, 0
      %vm869 = vcmp.gt.s32.totalorder %v837, 0
      %vm870 = vcmp.gt.s32.totalorder %v838, 0
      %vm871 = vcmp.gt.s32.totalorder %v839, 0
      %vm872 = vcmp.gt.s32.totalorder %v840, 0
      %vm873 = vcmp.gt.s32.totalorder %v841, 0
      %vm874 = vcmp.gt.s32.totalorder %v842, 0
      %vm875 = vcmp.gt.s32.totalorder %v843, 0
      %vm876 = vcmp.gt.s32.totalorder %v844, 0
      %vm877 = vcmp.gt.s32.totalorder %v845, 0
      %vm878 = vcmp.gt.s32.totalorder %v846, 0
      %vm879 = vcmp.gt.s32.totalorder %v847, 0
      %vm880 = vcmp.gt.s32.totalorder %v848, 0
      %vm881 = vcmp.gt.s32.totalorder %v849, 0
      %vm882 = vcmp.gt.s32.totalorder %v850, 0
      %vm883 = vcmp.gt.s32.totalorder %v851, 0
      %vm884 = vcmp.gt.s32.totalorder %v852, 0
      %vm885 = vcmp.gt.s32.totalorder %v853, 0
      %vm886 = vcmp.gt.s32.totalorder %v854, 0
      %vm887 = vcmp.gt.s32.totalorder %v855, 0
      %vm888 = vcmp.gt.s32.totalorder %v856, 0
      %vm889 = vcmp.gt.s32.totalorder %v857, 0
      %vm890 = vcmp.gt.s32.totalorder %v858, 0
      %vm891 = vcmp.gt.s32.totalorder %v859, 0
      %vm892 = vcmp.gt.s32.totalorder %v860, 0
      %v893 = vsel %vm861, 1, 0
      %v894 = vsel %vm862, 1, 0
      %v895 = vsel %vm863, 1, 0
      %v896 = vsel %vm864, 1, 0
      %v897 = vsel %vm865, 1, 0
      %v898 = vsel %vm866, 1, 0
      %v899 = vsel %vm867, 1, 0
      %v900 = vsel %vm868, 1, 0
      %v901 = vsel %vm869, 1, 0
      %v902 = vsel %vm870, 1, 0
      %v903 = vsel %vm871, 1, 0
      %v904 = vsel %vm872, 1, 0
      %v905 = vsel %vm873, 1, 0
      %v906 = vsel %vm874, 1, 0
      %v907 = vsel %vm875, 1, 0
      %v908 = vsel %vm876, 1, 0
      %v909 = vsel %vm877, 1, 0
      %v910 = vsel %vm878, 1, 0
      %v911 = vsel %vm879, 1, 0
      %v912 = vsel %vm880, 1, 0
      %v913 = vsel %vm881, 1, 0
      %v914 = vsel %vm882, 1, 0
      %v915 = vsel %vm883, 1, 0
      %v916 = vsel %vm884, 1, 0
      %v917 = vsel %vm885, 1, 0
      %v918 = vsel %vm886, 1, 0
      %v919 = vsel %vm887, 1, 0
      %v920 = vsel %vm888, 1, 0
      %v921 = vsel %vm889, 1, 0
      %v922 = vsel %vm890, 1, 0
      %v923 = vsel %vm891, 1, 0
      %v924 = vsel %vm892, 1, 0
      %v925 = vcvt.s32.f32 %v893
      %v926 = vcvt.s32.f32 %v894
      %v927 = vcvt.s32.f32 %v895
      %v928 = vcvt.s32.f32 %v896
      %v929 = vcvt.s32.f32 %v897
      %v930 = vcvt.s32.f32 %v898
      %v931 = vcvt.s32.f32 %v899
      %v932 = vcvt.s32.f32 %v900
      %v933 = vcvt.s32.f32 %v901
      %v934 = vcvt.s32.f32 %v902
      %v935 = vcvt.s32.f32 %v903
      %v936 = vcvt.s32.f32 %v904
      %v937 = vcvt.s32.f32 %v905
      %v938 = vcvt.s32.f32 %v906
      %v939 = vcvt.s32.f32 %v907
      %v940 = vcvt.s32.f32 %v908
      %v941 = vcvt.s32.f32 %v909
      %v942 = vcvt.s32.f32 %v910
      %v943 = vcvt.s32.f32 %v911
      %v944 = vcvt.s32.f32 %v912
      %v945 = vcvt.s32.f32 %v913
      %v946 = vcvt.s32.f32 %v914
      %v947 = vcvt.s32.f32 %v915
      %v948 = vcvt.s32.f32 %v916
      %v949 = vcvt.s32.f32 %v917
      %v950 = vcvt.s32.f32 %v918
      %v951 = vcvt.s32.f32 %v919
      %v952 = vcvt.s32.f32 %v920
      %v953 = vcvt.s32.f32 %v921
      %v954 = vcvt.s32.f32 %v922
      %v955 = vcvt.s32.f32 %v923
      %v956 = vcvt.s32.f32 %v924
      %vm957 = vcmp.lt.s32.totalorder %v829, 15
      %vm958 = vcmp.lt.s32.totalorder %v830, 15
      %vm959 = vcmp.lt.s32.totalorder %v831, 15
      %vm960 = vcmp.lt.s32.totalorder %v832, 15
      %vm961 = vcmp.lt.s32.totalorder %v833, 15
      %vm962 = vcmp.lt.s32.totalorder %v834, 15
      %vm963 = vcmp.lt.s32.totalorder %v835, 15
      %vm964 = vcmp.lt.s32.totalorder %v836, 15
      %vm965 = vcmp.lt.s32.totalorder %v837, 15
      %vm966 = vcmp.lt.s32.totalorder %v838, 15
      %vm967 = vcmp.lt.s32.totalorder %v839, 15
      %vm968 = vcmp.lt.s32.totalorder %v840, 15
      %vm969 = vcmp.lt.s32.totalorder %v841, 15
      %vm970 = vcmp.lt.s32.totalorder %v842, 15
      %vm971 = vcmp.lt.s32.totalorder %v843, 15
      %vm972 = vcmp.lt.s32.totalorder %v844, 15
      %vm973 = vcmp.lt.s32.totalorder %v845, 15
      %vm974 = vcmp.lt.s32.totalorder %v846, 15
      %vm975 = vcmp.lt.s32.totalorder %v847, 15
      %vm976 = vcmp.lt.s32.totalorder %v848, 15
      %vm977 = vcmp.lt.s32.totalorder %v849, 15
      %vm978 = vcmp.lt.s32.totalorder %v850, 15
      %vm979 = vcmp.lt.s32.totalorder %v851, 15
      %vm980 = vcmp.lt.s32.totalorder %v852, 15
      %vm981 = vcmp.lt.s32.totalorder %v853, 15
      %vm982 = vcmp.lt.s32.totalorder %v854, 15
      %vm983 = vcmp.lt.s32.totalorder %v855, 15
      %vm984 = vcmp.lt.s32.totalorder %v856, 15
      %vm985 = vcmp.lt.s32.totalorder %v857, 15
      %vm986 = vcmp.lt.s32.totalorder %v858, 15
      %vm987 = vcmp.lt.s32.totalorder %v859, 15
      %vm988 = vcmp.lt.s32.totalorder %v860, 15
      %v989 = vsel %vm957, 1, 0
      %v990 = vsel %vm958, 1, 0
      %v991 = vsel %vm959, 1, 0
      %v992 = vsel %vm960, 1, 0
      %v993 = vsel %vm961, 1, 0
      %v994 = vsel %vm962, 1, 0
      %v995 = vsel %vm963, 1, 0
      %v996 = vsel %vm964, 1, 0
      %v997 = vsel %vm965, 1, 0
      %v998 = vsel %vm966, 1, 0
      %v999 = vsel %vm967, 1, 0
      %v1000 = vsel %vm968, 1, 0
      %v1001 = vsel %vm969, 1, 0
      %v1002 = vsel %vm970, 1, 0
      %v1003 = vsel %vm971, 1, 0
      %v1004 = vsel %vm972, 1, 0
      %v1005 = vsel %vm973, 1, 0
      %v1006 = vsel %vm974, 1, 0
      %v1007 = vsel %vm975, 1, 0
      %v1008 = vsel %vm976, 1, 0
      %v1009 = vsel %vm977, 1, 0
      %v1010 = vsel %vm978, 1, 0
      %v1011 = vsel %vm979, 1, 0
      %v1012 = vsel %vm980, 1, 0
      %v1013 = vsel %vm981, 1, 0
      %v1014 = vsel %vm982, 1, 0
      %v1015 = vsel %vm983, 1, 0
      %v1016 = vsel %vm984, 1, 0
      %v1017 = vsel %vm985, 1, 0
      %v1018 = vsel %vm986, 1, 0
      %v1019 = vsel %vm987, 1, 0
      %v1020 = vsel %vm988, 1, 0
      %v1021 = vcvt.s32.f32 %v989
      %v1022 = vcvt.s32.f32 %v990
      %v1023 = vcvt.s32.f32 %v991
      %v1024 = vcvt.s32.f32 %v992
      %v1025 = vcvt.s32.f32 %v993
      %v1026 = vcvt.s32.f32 %v994
      %v1027 = vcvt.s32.f32 %v995
      %v1028 = vcvt.s32.f32 %v996
      %v1029 = vcvt.s32.f32 %v997
      %v1030 = vcvt.s32.f32 %v998
      %v1031 = vcvt.s32.f32 %v999
      %v1032 = vcvt.s32.f32 %v1000
      %v1033 = vcvt.s32.f32 %v1001
      %v1034 = vcvt.s32.f32 %v1002
      %v1035 = vcvt.s32.f32 %v1003
      %v1036 = vcvt.s32.f32 %v1004
      %v1037 = vcvt.s32.f32 %v1005
      %v1038 = vcvt.s32.f32 %v1006
      %v1039 = vcvt.s32.f32 %v1007
      %v1040 = vcvt.s32.f32 %v1008
      %v1041 = vcvt.s32.f32 %v1009
      %v1042 = vcvt.s32.f32 %v1010
      %v1043 = vcvt.s32.f32 %v1011
      %v1044 = vcvt.s32.f32 %v1012
      %v1045 = vcvt.s32.f32 %v1013
      %v1046 = vcvt.s32.f32 %v1014
      %v1047 = vcvt.s32.f32 %v1015
      %v1048 = vcvt.s32.f32 %v1016
      %v1049 = vcvt.s32.f32 %v1017
      %v1050 = vcvt.s32.f32 %v1018
      %v1051 = vcvt.s32.f32 %v1019
      %v1052 = vcvt.s32.f32 %v1020
      %vm1053 = vcmp.ge.s32.totalorder %v445, 16
      %vm1054 = vcmp.ge.s32.totalorder %v446, 16
      %vm1055 = vcmp.ge.s32.totalorder %v447, 16
      %vm1056 = vcmp.ge.s32.totalorder %v448, 16
      %vm1057 = vcmp.ge.s32.totalorder %v449, 16
      %vm1058 = vcmp.ge.s32.totalorder %v450, 16
      %vm1059 = vcmp.ge.s32.totalorder %v451, 16
      %vm1060 = vcmp.ge.s32.totalorder %v452, 16
      %vm1061 = vcmp.ge.s32.totalorder %v453, 16
      %vm1062 = vcmp.ge.s32.totalorder %v454, 16
      %vm1063 = vcmp.ge.s32.totalorder %v455, 16
      %vm1064 = vcmp.ge.s32.totalorder %v456, 16
      %vm1065 = vcmp.ge.s32.totalorder %v457, 16
      %vm1066 = vcmp.ge.s32.totalorder %v458, 16
      %vm1067 = vcmp.ge.s32.totalorder %v459, 16
      %vm1068 = vcmp.ge.s32.totalorder %v460, 16
      %vm1069 = vcmp.ge.s32.totalorder %v461, 16
      %vm1070 = vcmp.ge.s32.totalorder %v462, 16
      %vm1071 = vcmp.ge.s32.totalorder %v463, 16
      %vm1072 = vcmp.ge.s32.totalorder %v464, 16
      %vm1073 = vcmp.ge.s32.totalorder %v465, 16
      %vm1074 = vcmp.ge.s32.totalorder %v466, 16
      %vm1075 = vcmp.ge.s32.totalorder %v467, 16
      %vm1076 = vcmp.ge.s32.totalorder %v468, 16
      %vm1077 = vcmp.ge.s32.totalorder %v469, 16
      %vm1078 = vcmp.ge.s32.totalorder %v470, 16
      %vm1079 = vcmp.ge.s32.totalorder %v471, 16
      %vm1080 = vcmp.ge.s32.totalorder %v472, 16
      %vm1081 = vcmp.ge.s32.totalorder %v473, 16
      %vm1082 = vcmp.ge.s32.totalorder %v474, 16
      %vm1083 = vcmp.ge.s32.totalorder %v475, 16
      %vm1084 = vcmp.ge.s32.totalorder %v476, 16
      %v1085 = vsel %vm1053, 1, 0
      %v1086 = vsel %vm1054, 1, 0
      %v1087 = vsel %vm1055, 1, 0
      %v1088 = vsel %vm1056, 1, 0
      %v1089 = vsel %vm1057, 1, 0
      %v1090 = vsel %vm1058, 1, 0
      %v1091 = vsel %vm1059, 1, 0
      %v1092 = vsel %vm1060, 1, 0
      %v1093 = vsel %vm1061, 1, 0
      %v1094 = vsel %vm1062, 1, 0
      %v1095 = vsel %vm1063, 1, 0
      %v1096 = vsel %vm1064, 1, 0
      %v1097 = vsel %vm1065, 1, 0
      %v1098 = vsel %vm1066, 1, 0
      %v1099 = vsel %vm1067, 1, 0
      %v1100 = vsel %vm1068, 1, 0
      %v1101 = vsel %vm1069, 1, 0
      %v1102 = vsel %vm1070, 1, 0
      %v1103 = vsel %vm1071, 1, 0
      %v1104 = vsel %vm1072, 1, 0
      %v1105 = vsel %vm1073, 1, 0
      %v1106 = vsel %vm1074, 1, 0
      %v1107 = vsel %vm1075, 1, 0
      %v1108 = vsel %vm1076, 1, 0
      %v1109 = vsel %vm1077, 1, 0
      %v1110 = vsel %vm1078, 1, 0
      %v1111 = vsel %vm1079, 1, 0
      %v1112 = vsel %vm1080, 1, 0
      %v1113 = vsel %vm1081, 1, 0
      %v1114 = vsel %vm1082, 1, 0
      %v1115 = vsel %vm1083, 1, 0
      %v1116 = vsel %vm1084, 1, 0
      %v1117 = vcvt.s32.f32 %v1085
      %v1118 = vcvt.s32.f32 %v1086
      %v1119 = vcvt.s32.f32 %v1087
      %v1120 = vcvt.s32.f32 %v1088
      %v1121 = vcvt.s32.f32 %v1089
      %v1122 = vcvt.s32.f32 %v1090
      %v1123 = vcvt.s32.f32 %v1091
      %v1124 = vcvt.s32.f32 %v1092
      %v1125 = vcvt.s32.f32 %v1093
      %v1126 = vcvt.s32.f32 %v1094
      %v1127 = vcvt.s32.f32 %v1095
      %v1128 = vcvt.s32.f32 %v1096
      %v1129 = vcvt.s32.f32 %v1097
      %v1130 = vcvt.s32.f32 %v1098
      %v1131 = vcvt.s32.f32 %v1099
      %v1132 = vcvt.s32.f32 %v1100
      %v1133 = vcvt.s32.f32 %v1101
      %v1134 = vcvt.s32.f32 %v1102
      %v1135 = vcvt.s32.f32 %v1103
      %v1136 = vcvt.s32.f32 %v1104
      %v1137 = vcvt.s32.f32 %v1105
      %v1138 = vcvt.s32.f32 %v1106
      %v1139 = vcvt.s32.f32 %v1107
      %v1140 = vcvt.s32.f32 %v1108
      %v1141 = vcvt.s32.f32 %v1109
      %v1142 = vcvt.s32.f32 %v1110
      %v1143 = vcvt.s32.f32 %v1111
      %v1144 = vcvt.s32.f32 %v1112
      %v1145 = vcvt.s32.f32 %v1113
      %v1146 = vcvt.s32.f32 %v1114
      %v1147 = vcvt.s32.f32 %v1115
      %v1148 = vcvt.s32.f32 %v1116
      %vm1149 = vcmp.lt.s32.totalorder %v445, 240
      %vm1150 = vcmp.lt.s32.totalorder %v446, 240
      %vm1151 = vcmp.lt.s32.totalorder %v447, 240
      %vm1152 = vcmp.lt.s32.totalorder %v448, 240
      %vm1153 = vcmp.lt.s32.totalorder %v449, 240
      %vm1154 = vcmp.lt.s32.totalorder %v450, 240
      %vm1155 = vcmp.lt.s32.totalorder %v451, 240
      %vm1156 = vcmp.lt.s32.totalorder %v452, 240
      %vm1157 = vcmp.lt.s32.totalorder %v453, 240
      %vm1158 = vcmp.lt.s32.totalorder %v454, 240
      %vm1159 = vcmp.lt.s32.totalorder %v455, 240
      %vm1160 = vcmp.lt.s32.totalorder %v456, 240
      %vm1161 = vcmp.lt.s32.totalorder %v457, 240
      %vm1162 = vcmp.lt.s32.totalorder %v458, 240
      %vm1163 = vcmp.lt.s32.totalorder %v459, 240
      %vm1164 = vcmp.lt.s32.totalorder %v460, 240
      %vm1165 = vcmp.lt.s32.totalorder %v461, 240
      %vm1166 = vcmp.lt.s32.totalorder %v462, 240
      %vm1167 = vcmp.lt.s32.totalorder %v463, 240
      %vm1168 = vcmp.lt.s32.totalorder %v464, 240
      %vm1169 = vcmp.lt.s32.totalorder %v465, 240
      %vm1170 = vcmp.lt.s32.totalorder %v466, 240
      %vm1171 = vcmp.lt.s32.totalorder %v467, 240
      %vm1172 = vcmp.lt.s32.totalorder %v468, 240
      %vm1173 = vcmp.lt.s32.totalorder %v469, 240
      %vm1174 = vcmp.lt.s32.totalorder %v470, 240
      %vm1175 = vcmp.lt.s32.totalorder %v471, 240
      %vm1176 = vcmp.lt.s32.totalorder %v472, 240
      %vm1177 = vcmp.lt.s32.totalorder %v473, 240
      %vm1178 = vcmp.lt.s32.totalorder %v474, 240
      %vm1179 = vcmp.lt.s32.totalorder %v475, 240
      %vm1180 = vcmp.lt.s32.totalorder %v476, 240
      %v1181 = vsel %vm1149, 1, 0
      %v1182 = vsel %vm1150, 1, 0
      %v1183 = vsel %vm1151, 1, 0
      %v1184 = vsel %vm1152, 1, 0
      %v1185 = vsel %vm1153, 1, 0
      %v1186 = vsel %vm1154, 1, 0
      %v1187 = vsel %vm1155, 1, 0
      %v1188 = vsel %vm1156, 1, 0
      %v1189 = vsel %vm1157, 1, 0
      %v1190 = vsel %vm1158, 1, 0
      %v1191 = vsel %vm1159, 1, 0
      %v1192 = vsel %vm1160, 1, 0
      %v1193 = vsel %vm1161, 1, 0
      %v1194 = vsel %vm1162, 1, 0
      %v1195 = vsel %vm1163, 1, 0
      %v1196 = vsel %vm1164, 1, 0
      %v1197 = vsel %vm1165, 1, 0
      %v1198 = vsel %vm1166, 1, 0
      %v1199 = vsel %vm1167, 1, 0
      %v1200 = vsel %vm1168, 1, 0
      %v1201 = vsel %vm1169, 1, 0
      %v1202 = vsel %vm1170, 1, 0
      %v1203 = vsel %vm1171, 1, 0
      %v1204 = vsel %vm1172, 1, 0
      %v1205 = vsel %vm1173, 1, 0
      %v1206 = vsel %vm1174, 1, 0
      %v1207 = vsel %vm1175, 1, 0
      %v1208 = vsel %vm1176, 1, 0
      %v1209 = vsel %vm1177, 1, 0
      %v1210 = vsel %vm1178, 1, 0
      %v1211 = vsel %vm1179, 1, 0
      %v1212 = vsel %vm1180, 1, 0
      %v1213 = vcvt.s32.f32 %v1181
      %v1214 = vcvt.s32.f32 %v1182
      %v1215 = vcvt.s32.f32 %v1183
      %v1216 = vcvt.s32.f32 %v1184
      %v1217 = vcvt.s32.f32 %v1185
      %v1218 = vcvt.s32.f32 %v1186
      %v1219 = vcvt.s32.f32 %v1187
      %v1220 = vcvt.s32.f32 %v1188
      %v1221 = vcvt.s32.f32 %v1189
      %v1222 = vcvt.s32.f32 %v1190
      %v1223 = vcvt.s32.f32 %v1191
      %v1224 = vcvt.s32.f32 %v1192
      %v1225 = vcvt.s32.f32 %v1193
      %v1226 = vcvt.s32.f32 %v1194
      %v1227 = vcvt.s32.f32 %v1195
      %v1228 = vcvt.s32.f32 %v1196
      %v1229 = vcvt.s32.f32 %v1197
      %v1230 = vcvt.s32.f32 %v1198
      %v1231 = vcvt.s32.f32 %v1199
      %v1232 = vcvt.s32.f32 %v1200
      %v1233 = vcvt.s32.f32 %v1201
      %v1234 = vcvt.s32.f32 %v1202
      %v1235 = vcvt.s32.f32 %v1203
      %v1236 = vcvt.s32.f32 %v1204
      %v1237 = vcvt.s32.f32 %v1205
      %v1238 = vcvt.s32.f32 %v1206
      %v1239 = vcvt.s32.f32 %v1207
      %v1240 = vcvt.s32.f32 %v1208
      %v1241 = vcvt.s32.f32 %v1209
      %v1242 = vcvt.s32.f32 %v1210
      %v1243 = vcvt.s32.f32 %v1211
      %v1244 = vcvt.s32.f32 %v1212
      %vm1245 = vcmask 64512
      %1246 = vst.msk [vmem:[#allocation2] sm:$0xff] %vm1245, 0.0
      %1247 = vst.msk [vmem:[#allocation2 + $0x8] sm:$0xff] %vm1245, 0.0
      %1248 = vst.msk [vmem:[#allocation2 + $0x10] sm:$0xff] %vm1245, 0.0
      %1249 = vst.msk [vmem:[#allocation2 + $0x18] sm:$0xff] %vm1245, 0.0
      %1250 = vst.msk [vmem:[#allocation2 + $0x20] sm:$0xff] %vm1245, 0.0
      %1251 = vst.msk [vmem:[#allocation2 + $0x28] sm:$0xff] %vm1245, 0.0
      %1252 = vst.msk [vmem:[#allocation2 + $0x30] sm:$0xff] %vm1245, 0.0
      %1253 = vst.msk [vmem:[#allocation2 + $0x38] sm:$0xff] %vm1245, 0.0
      %1254 = vst.msk [vmem:[#allocation2 + $0x40] sm:$0xff] %vm1245, 0.0
      %1255 = vst.msk [vmem:[#allocation2 + $0x48] sm:$0xff] %vm1245, 0.0
      %1256 = vst.msk [vmem:[#allocation2 + $0x50] sm:$0xff] %vm1245, 0.0
      %1257 = vst.msk [vmem:[#allocation2 + $0x58] sm:$0xff] %vm1245, 0.0
      %1258 = vst.msk [vmem:[#allocation2 + $0x60] sm:$0xff] %vm1245, 0.0
      %1259 = vst.msk [vmem:[#allocation2 + $0x68] sm:$0xff] %vm1245, 0.0
      %1260 = vst.msk [vmem:[#allocation2 + $0x70] sm:$0xff] %vm1245, 0.0
      %1261 = vst.msk [vmem:[#allocation2 + $0x78] sm:$0xff] %vm1245, 0.0
      %1262 = vst.msk [vmem:[#allocation2 + $0x80] sm:$0xff] %vm1245, 0.0
      %1263 = vst.msk [vmem:[#allocation2 + $0x88] sm:$0xff] %vm1245, 0.0
      %1264 = vst.msk [vmem:[#allocation2 + $0x90] sm:$0xff] %vm1245, 0.0
      %1265 = vst.msk [vmem:[#allocation2 + $0x98] sm:$0xff] %vm1245, 0.0
      %1266 = vst.msk [vmem:[#allocation2 + $0xa0] sm:$0xff] %vm1245, 0.0
      %1267 = vst.msk [vmem:[#allocation2 + $0xa8] sm:$0xff] %vm1245, 0.0
      %1268 = vst.msk [vmem:[#allocation2 + $0xb0] sm:$0xff] %vm1245, 0.0
      %1269 = vst.msk [vmem:[#allocation2 + $0xb8] sm:$0xff] %vm1245, 0.0
      %1270 = vst.msk [vmem:[#allocation2 + $0xc0] sm:$0xff] %vm1245, 0.0
      %1271 = vst.msk [vmem:[#allocation2 + $0xc8] sm:$0xff] %vm1245, 0.0
      %1272 = vst.msk [vmem:[#allocation2 + $0xd0] sm:$0xff] %vm1245, 0.0
      %1273 = vst.msk [vmem:[#allocation2 + $0xd8] sm:$0xff] %vm1245, 0.0
      %1274 = vst.msk [vmem:[#allocation2 + $0xe0] sm:$0xff] %vm1245, 0.0
      %1275 = vst.msk [vmem:[#allocation2 + $0xe8] sm:$0xff] %vm1245, 0.0
      %1276 = vst.msk [vmem:[#allocation2 + $0xf0] sm:$0xff] %vm1245, 0.0
      %1277 = vst.msk [vmem:[#allocation2 + $0xf8] sm:$0xff] %vm1245, 0.0
      %v1278 = vrot.slane %v412, 7
      %v1279 = vrot.slane %v413, 7
      %v1280 = vrot.slane %v414, 7
      %v1281 = vrot.slane %v415, 7
      %v1282 = vrot.slane %v416, 7
      %v1283 = vrot.slane %v417, 7
      %v1284 = vrot.slane %v418, 7
      %v1285 = vrot.slane %v419, 7
      %v1286 = vrot.slane %v420, 7
      %v1287 = vrot.slane %v421, 7
      %v1288 = vrot.slane %v422, 7
      %v1289 = vrot.slane %v423, 7
      %v1290 = vrot.slane %v424, 7
      %v1291 = vrot.slane %v425, 7
      %v1292 = vrot.slane %v426, 7
      %v1293 = vrot.slane %v427, 7
      %v1294 = vrot.slane %v428, 7
      %v1295 = vrot.slane %v429, 7
      %v1296 = vrot.slane %v430, 7
      %v1297 = vrot.slane %v431, 7
      %v1298 = vrot.slane %v432, 7
      %v1299 = vrot.slane %v433, 7
      %v1300 = vrot.slane %v434, 7
      %v1301 = vrot.slane %v435, 7
      %v1302 = vrot.slane %v436, 7
      %v1303 = vrot.slane %v437, 7
      %v1304 = vrot.slane %v438, 7
      %v1305 = vrot.slane %v439, 7
      %v1306 = vrot.slane %v440, 7
      %v1307 = vrot.slane %v441, 7
      %v1308 = vrot.slane %v442, 7
      %v1309 = vrot.slane %v443, 7
      %vm1310 = vcmp.lt.s32.totalorder %v445, 1
      %v1311 = vsel %vm1310, %v1308, %v1309
      %v1312 = vsel %vm1310, %v1307, %v1308
      %v1313 = vsel %vm1310, %v1306, %v1307
      %v1314 = vsel %vm1310, %v1305, %v1306
      %v1315 = vsel %vm1310, %v1304, %v1305
      %v1316 = vsel %vm1310, %v1303, %v1304
      %v1317 = vsel %vm1310, %v1302, %v1303
      %v1318 = vsel %vm1310, %v1301, %v1302
      %v1319 = vsel %vm1310, %v1300, %v1301
      %v1320 = vsel %vm1310, %v1299, %v1300
      %v1321 = vsel %vm1310, %v1298, %v1299
      %v1322 = vsel %vm1310, %v1297, %v1298
      %v1323 = vsel %vm1310, %v1296, %v1297
      %v1324 = vsel %vm1310, %v1295, %v1296
      %v1325 = vsel %vm1310, %v1294, %v1295
      %v1326 = vsel %vm1310, %v1293, %v1294
      %v1327 = vsel %vm1310, %v1292, %v1293
      %v1328 = vsel %vm1310, %v1291, %v1292
      %v1329 = vsel %vm1310, %v1290, %v1291
      %v1330 = vsel %vm1310, %v1289, %v1290
      %v1331 = vsel %vm1310, %v1288, %v1289
      %v1332 = vsel %vm1310, %v1287, %v1288
      %v1333 = vsel %vm1310, %v1286, %v1287
      %v1334 = vsel %vm1310, %v1285, %v1286
      %v1335 = vsel %vm1310, %v1284, %v1285
      %v1336 = vsel %vm1310, %v1283, %v1284
      %v1337 = vsel %vm1310, %v1282, %v1283
      %v1338 = vsel %vm1310, %v1281, %v1282
      %v1339 = vsel %vm1310, %v1280, %v1281
      %v1340 = vsel %vm1310, %v1279, %v1280
      %v1341 = vsel %vm1310, %v1278, %v1279
      %v1342 = vsel %vm1310, %v1309, %v1278
      %v1343 = vmul.f32 %v1117, %v925
      %v1344 = vmul.f32 %v1118, %v926
      %v1345 = vmul.f32 %v1119, %v927
      %v1346 = vmul.f32 %v1120, %v928
      %v1347 = vmul.f32 %v1121, %v929
      %v1348 = vmul.f32 %v1122, %v930
      %v1349 = vmul.f32 %v1123, %v931
      %v1350 = vmul.f32 %v1124, %v932
      %v1351 = vmul.f32 %v1125, %v933
      %v1352 = vmul.f32 %v1126, %v934
      %v1353 = vmul.f32 %v1127, %v935
      %v1354 = vmul.f32 %v1128, %v936
      %v1355 = vmul.f32 %v1129, %v937
      %v1356 = vmul.f32 %v1130, %v938
      %v1357 = vmul.f32 %v1131, %v939
      %v1358 = vmul.f32 %v1132, %v940
      %v1359 = vmul.f32 %v1133, %v941
      %v1360 = vmul.f32 %v1134, %v942
      %v1361 = vmul.f32 %v1135, %v943
      %v1362 = vmul.f32 %v1136, %v944
      %v1363 = vmul.f32 %v1137, %v945
      %v1364 = vmul.f32 %v1138, %v946
      %v1365 = vmul.f32 %v1139, %v947
      %v1366 = vmul.f32 %v1140, %v948
      %v1367 = vmul.f32 %v1141, %v949
      %v1368 = vmul.f32 %v1142, %v950
      %v1369 = vmul.f32 %v1143, %v951
      %v1370 = vmul.f32 %v1144, %v952
      %v1371 = vmul.f32 %v1145, %v953
      %v1372 = vmul.f32 %v1146, %v954
      %v1373 = vmul.f32 %v1147, %v955
      %v1374 = vmul.f32 %v1148, %v956
      %v1375 = vmul.f32 %v1312, %v1343
      %v1376 = vmul.f32 %v1311, %v1344
      %v1377 = vmul.f32 %v1342, %v1345
      %v1378 = vmul.f32 %v1341, %v1346
      %v1379 = vmul.f32 %v1340, %v1347
      %v1380 = vmul.f32 %v1339, %v1348
      %v1381 = vmul.f32 %v1338, %v1349
      %v1382 = vmul.f32 %v1337, %v1350
      %v1383 = vmul.f32 %v1336, %v1351
      %v1384 = vmul.f32 %v1335, %v1352
      %v1385 = vmul.f32 %v1334, %v1353
      %v1386 = vmul.f32 %v1333, %v1354
      %v1387 = vmul.f32 %v1332, %v1355
      %v1388 = vmul.f32 %v1331, %v1356
      %v1389 = vmul.f32 %v1330, %v1357
      %v1390 = vmul.f32 %v1329, %v1358
      %v1391 = vmul.f32 %v1328, %v1359
      %v1392 = vmul.f32 %v1327, %v1360
      %v1393 = vmul.f32 %v1326, %v1361
      %v1394 = vmul.f32 %v1325, %v1362
      %v1395 = vmul.f32 %v1324, %v1363
      %v1396 = vmul.f32 %v1323, %v1364
      %v1397 = vmul.f32 %v1322, %v1365
      %v1398 = vmul.f32 %v1321, %v1366
      %v1399 = vmul.f32 %v1320, %v1367
      %v1400 = vmul.f32 %v1319, %v1368
      %v1401 = vmul.f32 %v1318, %v1369
      %v1402 = vmul.f32 %v1317, %v1370
      %v1403 = vmul.f32 %v1316, %v1371
      %v1404 = vmul.f32 %v1315, %v1372
      %v1405 = vmul.f32 %v1314, %v1373
      %v1406 = vmul.f32 %v1313, %v1374
      %v1407 = vld [vmem:[#allocation2] sm:$0xff]
      %v1408 = vld [vmem:[#allocation2 + $0x8] sm:$0xff]
      %v1409 = vld [vmem:[#allocation2 + $0x10] sm:$0xff]
      %v1410 = vld [vmem:[#allocation2 + $0x18] sm:$0xff]
      %v1411 = vld [vmem:[#allocation2 + $0x20] sm:$0xff]
      %v1412 = vld [vmem:[#allocation2 + $0x28] sm:$0xff]
      %v1413 = vld [vmem:[#allocation2 + $0x30] sm:$0xff]
      %v1414 = vld [vmem:[#allocation2 + $0x38] sm:$0xff]
      %v1415 = vld [vmem:[#allocation2 + $0x40] sm:$0xff]
      %v1416 = vld [vmem:[#allocation2 + $0x48] sm:$0xff]
      %v1417 = vld [vmem:[#allocation2 + $0x50] sm:$0xff]
      %v1418 = vld [vmem:[#allocation2 + $0x58] sm:$0xff]
      %v1419 = vld [vmem:[#allocation2 + $0x60] sm:$0xff]
      %v1420 = vld [vmem:[#allocation2 + $0x68] sm:$0xff]
      %v1421 = vld [vmem:[#allocation2 + $0x70] sm:$0xff]
      %v1422 = vld [vmem:[#allocation2 + $0x78] sm:$0xff]
      %v1423 = vld [vmem:[#allocation2 + $0x80] sm:$0xff]
      %v1424 = vld [vmem:[#allocation2 + $0x88] sm:$0xff]
      %v1425 = vld [vmem:[#allocation2 + $0x90] sm:$0xff]
      %v1426 = vld [vmem:[#allocation2 + $0x98] sm:$0xff]
      %v1427 = vld [vmem:[#allocation2 + $0xa0] sm:$0xff]
      %v1428 = vld [vmem:[#allocation2 + $0xa8] sm:$0xff]
      %v1429 = vld [vmem:[#allocation2 + $0xb0] sm:$0xff]
      %v1430 = vld [vmem:[#allocation2 + $0xb8] sm:$0xff]
      %v1431 = vld [vmem:[#allocation2 + $0xc0] sm:$0xff]
      %v1432 = vld [vmem:[#allocation2 + $0xc8] sm:$0xff]
      %v1433 = vld [vmem:[#allocation2 + $0xd0] sm:$0xff]
      %v1434 = vld [vmem:[#allocation2 + $0xd8] sm:$0xff]
      %v1435 = vld [vmem:[#allocation2 + $0xe0] sm:$0xff]
      %v1436 = vld [vmem:[#allocation2 + $0xe8] sm:$0xff]
      %v1437 = vld [vmem:[#allocation2 + $0xf0] sm:$0xff]
      %v1438 = vld [vmem:[#allocation2 + $0xf8] sm:$0xff]
      %v1439 = vpack.c.bf16 %v1376, %v1375
      %v1440 = vpack.c.bf16 %v1378, %v1377
      %v1441 = vpack.c.bf16 %v1380, %v1379
      %v1442 = vpack.c.bf16 %v1382, %v1381
      %v1443 = vpack.c.bf16 %v1384, %v1383
      %v1444 = vpack.c.bf16 %v1386, %v1385
      %v1445 = vpack.c.bf16 %v1388, %v1387
      %v1446 = vpack.c.bf16 %v1390, %v1389
      %v1447 = vpack.c.bf16 %v1392, %v1391
      %v1448 = vpack.c.bf16 %v1394, %v1393
      %v1449 = vpack.c.bf16 %v1396, %v1395
      %v1450 = vpack.c.bf16 %v1398, %v1397
      %v1451 = vpack.c.bf16 %v1400, %v1399
      %v1452 = vpack.c.bf16 %v1402, %v1401
      %v1453 = vpack.c.bf16 %v1404, %v1403
      %v1454 = vpack.c.bf16 %v1406, %v1405
      %v1455 = vld [vmem:[%s3] sm:$0xf]
      %v1457 = vsel %vm1245, %v1439, 0
      %v1460 = vsel %vm1245, %v1440, 0
      %v1463 = vsel %vm1245, %v1441, 0
      %v1466 = vsel %vm1245, %v1442, 0
      %v1469 = vsel %vm1245, %v1443, 0
      %v1472 = vsel %vm1245, %v1444, 0
      %v1475 = vsel %vm1245, %v1445, 0
      %v1478 = vsel %vm1245, %v1446, 0
      %v1481 = vsel %vm1245, %v1447, 0
      %v1484 = vsel %vm1245, %v1448, 0
      %v1487 = vsel %vm1245, %v1449, 0
      %v1490 = vsel %vm1245, %v1450, 0
      %v1493 = vsel %vm1245, %v1451, 0
      %v1496 = vsel %vm1245, %v1452, 0
      %v1499 = vsel %vm1245, %v1453, 0
      %v1502 = vsel %vm1245, %v1454, 0
      %vm1504 = vcmask 1043456
      %v1506 = vsel %vm1504, %v1455, 0
      %1508 = vmatprep.subr.bf16.mxu0 0
      %1509 = vmatpush1.bf16.msra.mxu0 0
      %1510 = vmatprep.subr.bf16.mxu0 0
      %1511 = vmatpush1.bf16.msra.mxu0 0
      %1512 = vmatprep.subr.bf16.mxu0 0
      %1513 = vmatpush1.bf16.msra.mxu0 0
      %1514 = vmatprep.subr.bf16.mxu0 0
      %1515 = vmatpush1.bf16.msra.mxu0 0
      %1516 = vmatprep.subr.bf16.mxu0 0
      %1517 = vmatpush1.bf16.msra.mxu0 0
      %1518 = vmatprep.subr.bf16.mxu0 0
      %1519 = vmatpush1.bf16.msra.mxu0 0
      %1520 = vmatprep.subr.bf16.mxu0 0
      %1521 = vmatpush1.bf16.msra.mxu0 0
      %1522 = vmatprep.subr.bf16.mxu0 0
      %1523 = vmatpush1.bf16.msra.mxu0 %v1506
      %1524 = vmatprep.subr.bf16.mxu0 0
      %1525 = vmatpush2.bf16.msra.mxu0 0
      %1526 = vmatprep.subr.bf16.mxu0 0
      %1527 = vmatpush2.bf16.msra.mxu0 0
      %1528 = vmatprep.subr.bf16.mxu0 0
      %1529 = vmatpush2.bf16.msra.mxu0 0
      %1530 = vmatprep.subr.bf16.mxu0 0
      %1531 = vmatpush2.bf16.msra.mxu0 0
      %1532 = vmatprep.subr.bf16.mxu0 0
      %1533 = vmatpush2.bf16.msra.mxu0 0
      %1534 = vmatprep.subr.bf16.mxu0 0
      %1535 = vmatpush2.bf16.msra.mxu0 0
      %1536 = vmatprep.subr.bf16.mxu0 0
      %1537 = vmatpush2.bf16.msra.mxu0 0
      %1538 = vmatprep.subr.bf16.mxu0 0
      %1539 = vmatpush2.bf16.msra.mxu0 0
      %1540 = vmatprep.mubr.bf16.mxu0 0
      %1541 = vmatmul.mubr.bf16.gmra.mxu0 %v1457
      %v1542 = vpop.f32.mrf.mxu0
      %v1543 = vadd.f32 0.0, %v1542
      %v1544 = vpop.f32.mrf.mxu0
      %v1545 = vpop.f32.mrf.mxu0
      %v1546 = vadd.f32 0.0, %v1545
      %v1547 = vpop.f32.mrf.mxu0
      %1548 = vmatprep.mubr.bf16.mxu0 0
      %1549 = vmatmul.mubr.bf16.gmra.mxu0 %v1460
      %v1550 = vpop.f32.mrf.mxu0
      %v1551 = vadd.f32 0.0, %v1550
      %v1552 = vpop.f32.mrf.mxu0
      %v1553 = vpop.f32.mrf.mxu0
      %v1554 = vadd.f32 0.0, %v1553
      %v1555 = vpop.f32.mrf.mxu0
      %1556 = vmatprep.mubr.bf16.mxu0 0
      %1557 = vmatmul.mubr.bf16.gmra.mxu0 %v1463
      %v1558 = vpop.f32.mrf.mxu0
      %v1559 = vadd.f32 0.0, %v1558
      %v1560 = vpop.f32.mrf.mxu0
      %v1561 = vpop.f32.mrf.mxu0
      %v1562 = vadd.f32 0.0, %v1561
      %v1563 = vpop.f32.mrf.mxu0
      %1564 = vmatprep.mubr.bf16.mxu0 0
      %1565 = vmatmul.mubr.bf16.gmra.mxu0 %v1466
      %v1566 = vpop.f32.mrf.mxu0
      %v1567 = vadd.f32 0.0, %v1566
      %v1568 = vpop.f32.mrf.mxu0
      %v1569 = vpop.f32.mrf.mxu0
      %v1570 = vadd.f32 0.0, %v1569
      %v1571 = vpop.f32.mrf.mxu0
      %1572 = vmatprep.mubr.bf16.mxu0 0
      %1573 = vmatmul.mubr.bf16.gmra.mxu0 %v1469
      %v1574 = vpop.f32.mrf.mxu0
      %v1575 = vadd.f32 0.0, %v1574
      %v1576 = vpop.f32.mrf.mxu0
      %v1577 = vpop.f32.mrf.mxu0
      %v1578 = vadd.f32 0.0, %v1577
      %v1579 = vpop.f32.mrf.mxu0
      %1580 = vmatprep.mubr.bf16.mxu0 0
      %1581 = vmatmul.mubr.bf16.gmra.mxu0 %v1472
      %v1582 = vpop.f32.mrf.mxu0
      %v1583 = vadd.f32 0.0, %v1582
      %v1584 = vpop.f32.mrf.mxu0
      %v1585 = vpop.f32.mrf.mxu0
      %v1586 = vadd.f32 0.0, %v1585
      %v1587 = vpop.f32.mrf.mxu0
      %1588 = vmatprep.mubr.bf16.mxu0 0
      %1589 = vmatmul.mubr.bf16.gmra.mxu0 %v1475
      %v1590 = vpop.f32.mrf.mxu0
      %v1591 = vadd.f32 0.0, %v1590
      %v1592 = vpop.f32.mrf.mxu0
      %v1593 = vpop.f32.mrf.mxu0
      %v1594 = vadd.f32 0.0, %v1593
      %v1595 = vpop.f32.mrf.mxu0
      %1596 = vmatprep.mubr.bf16.mxu0 0
      %1597 = vmatmul.mubr.bf16.gmra.mxu0 %v1478
      %v1598 = vpop.f32.mrf.mxu0
      %v1599 = vadd.f32 0.0, %v1598
      %v1600 = vpop.f32.mrf.mxu0
      %v1601 = vpop.f32.mrf.mxu0
      %v1602 = vadd.f32 0.0, %v1601
      %v1603 = vpop.f32.mrf.mxu0
      %1604 = vmatprep.mubr.bf16.mxu0 0
      %1605 = vmatmul.mubr.bf16.gmra.mxu0 %v1481
      %v1606 = vpop.f32.mrf.mxu0
      %v1607 = vadd.f32 0.0, %v1606
      %v1608 = vpop.f32.mrf.mxu0
      %v1609 = vpop.f32.mrf.mxu0
      %v1610 = vadd.f32 0.0, %v1609
      %v1611 = vpop.f32.mrf.mxu0
      %1612 = vmatprep.mubr.bf16.mxu0 0
      %1613 = vmatmul.mubr.bf16.gmra.mxu0 %v1484
      %v1614 = vpop.f32.mrf.mxu0
      %v1615 = vadd.f32 0.0, %v1614
      %v1616 = vpop.f32.mrf.mxu0
      %v1617 = vpop.f32.mrf.mxu0
      %v1618 = vadd.f32 0.0, %v1617
      %v1619 = vpop.f32.mrf.mxu0
      %1620 = vmatprep.mubr.bf16.mxu0 0
      %1621 = vmatmul.mubr.bf16.gmra.mxu0 %v1487
      %v1622 = vpop.f32.mrf.mxu0
      %v1623 = vadd.f32 0.0, %v1622
      %v1624 = vpop.f32.mrf.mxu0
      %v1625 = vpop.f32.mrf.mxu0
      %v1626 = vadd.f32 0.0, %v1625
      %v1627 = vpop.f32.mrf.mxu0
      %1628 = vmatprep.mubr.bf16.mxu0 0
      %1629 = vmatmul.mubr.bf16.gmra.mxu0 %v1490
      %v1630 = vpop.f32.mrf.mxu0
      %v1631 = vadd.f32 0.0, %v1630
      %v1632 = vpop.f32.mrf.mxu0
      %v1633 = vpop.f32.mrf.mxu0
      %v1634 = vadd.f32 0.0, %v1633
      %v1635 = vpop.f32.mrf.mxu0
      %1636 = vmatprep.mubr.bf16.mxu0 0
      %1637 = vmatmul.mubr.bf16.gmra.mxu0 %v1493
      %v1638 = vpop.f32.mrf.mxu0
      %v1639 = vadd.f32 0.0, %v1638
      %v1640 = vpop.f32.mrf.mxu0
      %v1641 = vpop.f32.mrf.mxu0
      %v1642 = vadd.f32 0.0, %v1641
      %v1643 = vpop.f32.mrf.mxu0
      %1644 = vmatprep.mubr.bf16.mxu0 0
      %1645 = vmatmul.mubr.bf16.gmra.mxu0 %v1496
      %v1646 = vpop.f32.mrf.mxu0
      %v1647 = vadd.f32 0.0, %v1646
      %v1648 = vpop.f32.mrf.mxu0
      %v1649 = vpop.f32.mrf.mxu0
      %v1650 = vadd.f32 0.0, %v1649
      %v1651 = vpop.f32.mrf.mxu0
      %1652 = vmatprep.mubr.bf16.mxu0 0
      %1653 = vmatmul.mubr.bf16.gmra.mxu0 %v1499
      %v1654 = vpop.f32.mrf.mxu0
      %v1655 = vadd.f32 0.0, %v1654
      %v1656 = vpop.f32.mrf.mxu0
      %v1657 = vpop.f32.mrf.mxu0
      %v1658 = vadd.f32 0.0, %v1657
      %v1659 = vpop.f32.mrf.mxu0
      %1660 = vmatprep.mubr.bf16.mxu0 0
      %1661 = vmatmul.mubr.bf16.gmra.mxu0 %v1502
      %v1662 = vpop.f32.mrf.mxu0
      %v1663 = vadd.f32 0.0, %v1662
      %v1664 = vpop.f32.mrf.mxu0
      %v1665 = vpop.f32.mrf.mxu0
      %v1666 = vadd.f32 0.0, %v1665
      %v1667 = vpop.f32.mrf.mxu0
      %1668 = vdwg.mxu0
      %v1669 = vadd.f32 %v1407, %v1543
      %v1670 = vadd.f32 %v1408, %v1546
      %v1671 = vadd.f32 %v1409, %v1551
      %v1672 = vadd.f32 %v1410, %v1554
      %v1673 = vadd.f32 %v1411, %v1559
      %v1674 = vadd.f32 %v1412, %v1562
      %v1675 = vadd.f32 %v1413, %v1567
      %v1676 = vadd.f32 %v1414, %v1570
      %v1677 = vadd.f32 %v1415, %v1575
      %v1678 = vadd.f32 %v1416, %v1578
      %v1679 = vadd.f32 %v1417, %v1583
      %v1680 = vadd.f32 %v1418, %v1586
      %v1681 = vadd.f32 %v1419, %v1591
      %v1682 = vadd.f32 %v1420, %v1594
      %v1683 = vadd.f32 %v1421, %v1599
      %v1684 = vadd.f32 %v1422, %v1602
      %v1685 = vadd.f32 %v1423, %v1607
      %v1686 = vadd.f32 %v1424, %v1610
      %v1687 = vadd.f32 %v1425, %v1615
      %v1688 = vadd.f32 %v1426, %v1618
      %v1689 = vadd.f32 %v1427, %v1623
      %v1690 = vadd.f32 %v1428, %v1626
      %v1691 = vadd.f32 %v1429, %v1631
      %v1692 = vadd.f32 %v1430, %v1634
      %v1693 = vadd.f32 %v1431, %v1639
      %v1694 = vadd.f32 %v1432, %v1642
      %v1695 = vadd.f32 %v1433, %v1647
      %v1696 = vadd.f32 %v1434, %v1650
      %v1697 = vadd.f32 %v1435, %v1655
      %v1698 = vadd.f32 %v1436, %v1658
      %v1699 = vadd.f32 %v1437, %v1663
      %v1700 = vadd.f32 %v1438, %v1666
      %1701 = vst.msk [vmem:[#allocation2] sm:$0xff] %vm1245, %v1669
      %1702 = vst.msk [vmem:[#allocation2 + $0x8] sm:$0xff] %vm1245, %v1670
      %1703 = vst.msk [vmem:[#allocation2 + $0x10] sm:$0xff] %vm1245, %v1671
      %1704 = vst.msk [vmem:[#allocation2 + $0x18] sm:$0xff] %vm1245, %v1672
      %1705 = vst.msk [vmem:[#allocation2 + $0x20] sm:$0xff] %vm1245, %v1673
      %1706 = vst.msk [vmem:[#allocation2 + $0x28] sm:$0xff] %vm1245, %v1674
      %1707 = vst.msk [vmem:[#allocation2 + $0x30] sm:$0xff] %vm1245, %v1675
      %1708 = vst.msk [vmem:[#allocation2 + $0x38] sm:$0xff] %vm1245, %v1676
      %1709 = vst.msk [vmem:[#allocation2 + $0x40] sm:$0xff] %vm1245, %v1677
      %1710 = vst.msk [vmem:[#allocation2 + $0x48] sm:$0xff] %vm1245, %v1678
      %1711 = vst.msk [vmem:[#allocation2 + $0x50] sm:$0xff] %vm1245, %v1679
      %1712 = vst.msk [vmem:[#allocation2 + $0x58] sm:$0xff] %vm1245, %v1680
      %1713 = vst.msk [vmem:[#allocation2 + $0x60] sm:$0xff] %vm1245, %v1681
      %1714 = vst.msk [vmem:[#allocation2 + $0x68] sm:$0xff] %vm1245, %v1682
      %1715 = vst.msk [vmem:[#allocation2 + $0x70] sm:$0xff] %vm1245, %v1683
      %1716 = vst.msk [vmem:[#allocation2 + $0x78] sm:$0xff] %vm1245, %v1684
      %1717 = vst.msk [vmem:[#allocation2 + $0x80] sm:$0xff] %vm1245, %v1685
      %1718 = vst.msk [vmem:[#allocation2 + $0x88] sm:$0xff] %vm1245, %v1686
      %1719 = vst.msk [vmem:[#allocation2 + $0x90] sm:$0xff] %vm1245, %v1687
      %1720 = vst.msk [vmem:[#allocation2 + $0x98] sm:$0xff] %vm1245, %v1688
      %1721 = vst.msk [vmem:[#allocation2 + $0xa0] sm:$0xff] %vm1245, %v1689
      %1722 = vst.msk [vmem:[#allocation2 + $0xa8] sm:$0xff] %vm1245, %v1690
      %1723 = vst.msk [vmem:[#allocation2 + $0xb0] sm:$0xff] %vm1245, %v1691
      %1724 = vst.msk [vmem:[#allocation2 + $0xb8] sm:$0xff] %vm1245, %v1692
      %1725 = vst.msk [vmem:[#allocation2 + $0xc0] sm:$0xff] %vm1245, %v1693
      %1726 = vst.msk [vmem:[#allocation2 + $0xc8] sm:$0xff] %vm1245, %v1694
      %1727 = vst.msk [vmem:[#allocation2 + $0xd0] sm:$0xff] %vm1245, %v1695
      %1728 = vst.msk [vmem:[#allocation2 + $0xd8] sm:$0xff] %vm1245, %v1696
      %1729 = vst.msk [vmem:[#allocation2 + $0xe0] sm:$0xff] %vm1245, %v1697
      %1730 = vst.msk [vmem:[#allocation2 + $0xe8] sm:$0xff] %vm1245, %v1698
      %1731 = vst.msk [vmem:[#allocation2 + $0xf0] sm:$0xff] %vm1245, %v1699
      %1732 = vst.msk [vmem:[#allocation2 + $0xf8] sm:$0xff] %vm1245, %v1700
      %v1733 = vmul.f32 %v442, %v1117
      %v1734 = vmul.f32 %v443, %v1118
      %v1735 = vmul.f32 %v412, %v1119
      %v1736 = vmul.f32 %v413, %v1120
      %v1737 = vmul.f32 %v414, %v1121
      %v1738 = vmul.f32 %v415, %v1122
      %v1739 = vmul.f32 %v416, %v1123
      %v1740 = vmul.f32 %v417, %v1124
      %v1741 = vmul.f32 %v418, %v1125
      %v1742 = vmul.f32 %v419, %v1126
      %v1743 = vmul.f32 %v420, %v1127
      %v1744 = vmul.f32 %v421, %v1128
      %v1745 = vmul.f32 %v422, %v1129
      %v1746 = vmul.f32 %v423, %v1130
      %v1747 = vmul.f32 %v424, %v1131
      %v1748 = vmul.f32 %v425, %v1132
      %v1749 = vmul.f32 %v426, %v1133
      %v1750 = vmul.f32 %v427, %v1134
      %v1751 = vmul.f32 %v428, %v1135
      %v1752 = vmul.f32 %v429, %v1136
      %v1753 = vmul.f32 %v430, %v1137
      %v1754 = vmul.f32 %v431, %v1138
      %v1755 = vmul.f32 %v432, %v1139
      %v1756 = vmul.f32 %v433, %v1140
      %v1757 = vmul.f32 %v434, %v1141
      %v1758 = vmul.f32 %v435, %v1142
      %v1759 = vmul.f32 %v436, %v1143
      %v1760 = vmul.f32 %v437, %v1144
      %v1761 = vmul.f32 %v438, %v1145
      %v1762 = vmul.f32 %v439, %v1146
      %v1763 = vmul.f32 %v440, %v1147
      %v1764 = vmul.f32 %v441, %v1148
      %v1765 = vld [vmem:[#allocation2] sm:$0xff]
      %v1766 = vld [vmem:[#allocation2 + $0x8] sm:$0xff]
      %v1767 = vld [vmem:[#allocation2 + $0x10] sm:$0xff]
      %v1768 = vld [vmem:[#allocation2 + $0x18] sm:$0xff]
      %v1769 = vld [vmem:[#allocation2 + $0x20] sm:$0xff]
      %v1770 = vld [vmem:[#allocation2 + $0x28] sm:$0xff]
      %v1771 = vld [vmem:[#allocation2 + $0x30] sm:$0xff]
      %v1772 = vld [vmem:[#allocation2 + $0x38] sm:$0xff]
      %v1773 = vld [vmem:[#allocation2 + $0x40] sm:$0xff]
      %v1774 = vld [vmem:[#allocation2 + $0x48] sm:$0xff]
      %v1775 = vld [vmem:[#allocation2 + $0x50] sm:$0xff]
      %v1776 = vld [vmem:[#allocation2 + $0x58] sm:$0xff]
      %v1777 = vld [vmem:[#allocation2 + $0x60] sm:$0xff]
      %v1778 = vld [vmem:[#allocation2 + $0x68] sm:$0xff]
      %v1779 = vld [vmem:[#allocation2 + $0x70] sm:$0xff]
      %v1780 = vld [vmem:[#allocation2 + $0x78] sm:$0xff]
      %v1781 = vld [vmem:[#allocation2 + $0x80] sm:$0xff]
      %v1782 = vld [vmem:[#allocation2 + $0x88] sm:$0xff]
      %v1783 = vld [vmem:[#allocation2 + $0x90] sm:$0xff]
      %v1784 = vld [vmem:[#allocation2 + $0x98] sm:$0xff]
      %v1785 = vld [vmem:[#allocation2 + $0xa0] sm:$0xff]
      %v1786 = vld [vmem:[#allocation2 + $0xa8] sm:$0xff]
      %v1787 = vld [vmem:[#allocation2 + $0xb0] sm:$0xff]
      %v1788 = vld [vmem:[#allocation2 + $0xb8] sm:$0xff]
      %v1789 = vld [vmem:[#allocation2 + $0xc0] sm:$0xff]
      %v1790 = vld [vmem:[#allocation2 + $0xc8] sm:$0xff]
      %v1791 = vld [vmem:[#allocation2 + $0xd0] sm:$0xff]
      %v1792 = vld [vmem:[#allocation2 + $0xd8] sm:$0xff]
      %v1793 = vld [vmem:[#allocation2 + $0xe0] sm:$0xff]
      %v1794 = vld [vmem:[#allocation2 + $0xe8] sm:$0xff]
      %v1795 = vld [vmem:[#allocation2 + $0xf0] sm:$0xff]
      %v1796 = vld [vmem:[#allocation2 + $0xf8] sm:$0xff]
      %v1797 = vpack.c.bf16 %v1734, %v1733
      %v1798 = vpack.c.bf16 %v1736, %v1735
      %v1799 = vpack.c.bf16 %v1738, %v1737
      %v1800 = vpack.c.bf16 %v1740, %v1739
      %v1801 = vpack.c.bf16 %v1742, %v1741
      %v1802 = vpack.c.bf16 %v1744, %v1743
      %v1803 = vpack.c.bf16 %v1746, %v1745
      %v1804 = vpack.c.bf16 %v1748, %v1747
      %v1805 = vpack.c.bf16 %v1750, %v1749
      %v1806 = vpack.c.bf16 %v1752, %v1751
      %v1807 = vpack.c.bf16 %v1754, %v1753
      %v1808 = vpack.c.bf16 %v1756, %v1755
      %v1809 = vpack.c.bf16 %v1758, %v1757
      %v1810 = vpack.c.bf16 %v1760, %v1759
      %v1811 = vpack.c.bf16 %v1762, %v1761
      %v1812 = vpack.c.bf16 %v1764, %v1763
      %s1813 = scalar_lea.vmem %s3, 4
      %v1814 = vld [vmem:[%s1813] sm:$0xf]
      %v1816 = vsel %vm1245, %v1797, 0
      %v1819 = vsel %vm1245, %v1798, 0
      %v1822 = vsel %vm1245, %v1799, 0
      %v1825 = vsel %vm1245, %v1800, 0
      %v1828 = vsel %vm1245, %v1801, 0
      %v1831 = vsel %vm1245, %v1802, 0
      %v1834 = vsel %vm1245, %v1803, 0
      %v1837 = vsel %vm1245, %v1804, 0
      %v1840 = vsel %vm1245, %v1805, 0
      %v1843 = vsel %vm1245, %v1806, 0
      %v1846 = vsel %vm1245, %v1807, 0
      %v1849 = vsel %vm1245, %v1808, 0
      %v1852 = vsel %vm1245, %v1809, 0
      %v1855 = vsel %vm1245, %v1810, 0
      %v1858 = vsel %vm1245, %v1811, 0
      %v1861 = vsel %vm1245, %v1812, 0
      %v1864 = vsel %vm1504, %v1814, 0
      %1866 = vmatprep.subr.bf16.mxu0 0
      %1867 = vmatpush1.bf16.msra.mxu0 0
      %1868 = vmatprep.subr.bf16.mxu0 0
      %1869 = vmatpush1.bf16.msra.mxu0 0
      %1870 = vmatprep.subr.bf16.mxu0 0
      %1871 = vmatpush1.bf16.msra.mxu0 0
      %1872 = vmatprep.subr.bf16.mxu0 0
      %1873 = vmatpush1.bf16.msra.mxu0 0
      %1874 = vmatprep.subr.bf16.mxu0 0
      %1875 = vmatpush1.bf16.msra.mxu0 0
      %1876 = vmatprep.subr.bf16.mxu0 0
      %1877 = vmatpush1.bf16.msra.mxu0 0
      %1878 = vmatprep.subr.bf16.mxu0 0
      %1879 = vmatpush1.bf16.msra.mxu0 0
      %1880 = vmatprep.subr.bf16.mxu0 0
      %1881 = vmatpush1.bf16.msra.mxu0 %v1864
      %1882 = vmatprep.subr.bf16.mxu0 0
      %1883 = vmatpush2.bf16.msra.mxu0 0
      %1884 = vmatprep.subr.bf16.mxu0 0
      %1885 = vmatpush2.bf16.msra.mxu0 0
      %1886 = vmatprep.subr.bf16.mxu0 0
      %1887 = vmatpush2.bf16.msra.mxu0 0
      %1888 = vmatprep.subr.bf16.mxu0 0
      %1889 = vmatpush2.bf16.msra.mxu0 0
      %1890 = vmatprep.subr.bf16.mxu0 0
      %1891 = vmatpush2.bf16.msra.mxu0 0
      %1892 = vmatprep.subr.bf16.mxu0 0
      %1893 = vmatpush2.bf16.msra.mxu0 0
      %1894 = vmatprep.subr.bf16.mxu0 0
      %1895 = vmatpush2.bf16.msra.mxu0 0
      %1896 = vmatprep.subr.bf16.mxu0 0
      %1897 = vmatpush2.bf16.msra.mxu0 0
      %1898 = vmatprep.mubr.bf16.mxu0 0
      %1899 = vmatmul.mubr.bf16.gmra.mxu0 %v1816
      %v1900 = vpop.f32.mrf.mxu0
      %v1901 = vadd.f32 0.0, %v1900
      %v1902 = vpop.f32.mrf.mxu0
      %v1903 = vpop.f32.mrf.mxu0
      %v1904 = vadd.f32 0.0, %v1903
      %v1905 = vpop.f32.mrf.mxu0
      %1906 = vmatprep.mubr.bf16.mxu0 0
      %1907 = vmatmul.mubr.bf16.gmra.mxu0 %v1819
      %v1908 = vpop.f32.mrf.mxu0
      %v1909 = vadd.f32 0.0, %v1908
      %v1910 = vpop.f32.mrf.mxu0
      %v1911 = vpop.f32.mrf.mxu0
      %v1912 = vadd.f32 0.0, %v1911
      %v1913 = vpop.f32.mrf.mxu0
      %1914 = vmatprep.mubr.bf16.mxu0 0
      %1915 = vmatmul.mubr.bf16.gmra.mxu0 %v1822
      %v1916 = vpop.f32.mrf.mxu0
      %v1917 = vadd.f32 0.0, %v1916
      %v1918 = vpop.f32.mrf.mxu0
      %v1919 = vpop.f32.mrf.mxu0
      %v1920 = vadd.f32 0.0, %v1919
      %v1921 = vpop.f32.mrf.mxu0
      %1922 = vmatprep.mubr.bf16.mxu0 0
      %1923 = vmatmul.mubr.bf16.gmra.mxu0 %v1825
      %v1924 = vpop.f32.mrf.mxu0
      %v1925 = vadd.f32 0.0, %v1924
      %v1926 = vpop.f32.mrf.mxu0
      %v1927 = vpop.f32.mrf.mxu0
      %v1928 = vadd.f32 0.0, %v1927
      %v1929 = vpop.f32.mrf.mxu0
      %1930 = vmatprep.mubr.bf16.mxu0 0
      %1931 = vmatmul.mubr.bf16.gmra.mxu0 %v1828
      %v1932 = vpop.f32.mrf.mxu0
      %v1933 = vadd.f32 0.0, %v1932
      %v1934 = vpop.f32.mrf.mxu0
      %v1935 = vpop.f32.mrf.mxu0
      %v1936 = vadd.f32 0.0, %v1935
      %v1937 = vpop.f32.mrf.mxu0
      %1938 = vmatprep.mubr.bf16.mxu0 0
      %1939 = vmatmul.mubr.bf16.gmra.mxu0 %v1831
      %v1940 = vpop.f32.mrf.mxu0
      %v1941 = vadd.f32 0.0, %v1940
      %v1942 = vpop.f32.mrf.mxu0
      %v1943 = vpop.f32.mrf.mxu0
      %v1944 = vadd.f32 0.0, %v1943
      %v1945 = vpop.f32.mrf.mxu0
      %1946 = vmatprep.mubr.bf16.mxu0 0
      %1947 = vmatmul.mubr.bf16.gmra.mxu0 %v1834
      %v1948 = vpop.f32.mrf.mxu0
      %v1949 = vadd.f32 0.0, %v1948
      %v1950 = vpop.f32.mrf.mxu0
      %v1951 = vpop.f32.mrf.mxu0
      %v1952 = vadd.f32 0.0, %v1951
      %v1953 = vpop.f32.mrf.mxu0
      %1954 = vmatprep.mubr.bf16.mxu0 0
      %1955 = vmatmul.mubr.bf16.gmra.mxu0 %v1837
      %v1956 = vpop.f32.mrf.mxu0
      %v1957 = vadd.f32 0.0, %v1956
      %v1958 = vpop.f32.mrf.mxu0
      %v1959 = vpop.f32.mrf.mxu0
      %v1960 = vadd.f32 0.0, %v1959
      %v1961 = vpop.f32.mrf.mxu0
      %1962 = vmatprep.mubr.bf16.mxu0 0
      %1963 = vmatmul.mubr.bf16.gmra.mxu0 %v1840
      %v1964 = vpop.f32.mrf.mxu0
      %v1965 = vadd.f32 0.0, %v1964
      %v1966 = vpop.f32.mrf.mxu0
      %v1967 = vpop.f32.mrf.mxu0
      %v1968 = vadd.f32 0.0, %v1967
      %v1969 = vpop.f32.mrf.mxu0
      %1970 = vmatprep.mubr.bf16.mxu0 0
      %1971 = vmatmul.mubr.bf16.gmra.mxu0 %v1843
      %v1972 = vpop.f32.mrf.mxu0
      %v1973 = vadd.f32 0.0, %v1972
      %v1974 = vpop.f32.mrf.mxu0
      %v1975 = vpop.f32.mrf.mxu0
      %v1976 = vadd.f32 0.0, %v1975
      %v1977 = vpop.f32.mrf.mxu0
      %1978 = vmatprep.mubr.bf16.mxu0 0
      %1979 = vmatmul.mubr.bf16.gmra.mxu0 %v1846
      %v1980 = vpop.f32.mrf.mxu0
      %v1981 = vadd.f32 0.0, %v1980
      %v1982 = vpop.f32.mrf.mxu0
      %v1983 = vpop.f32.mrf.mxu0
      %v1984 = vadd.f32 0.0, %v1983
      %v1985 = vpop.f32.mrf.mxu0
      %1986 = vmatprep.mubr.bf16.mxu0 0
      %1987 = vmatmul.mubr.bf16.gmra.mxu0 %v1849
      %v1988 = vpop.f32.mrf.mxu0
      %v1989 = vadd.f32 0.0, %v1988
      %v1990 = vpop.f32.mrf.mxu0
      %v1991 = vpop.f32.mrf.mxu0
      %v1992 = vadd.f32 0.0, %v1991
      %v1993 = vpop.f32.mrf.mxu0
      %1994 = vmatprep.mubr.bf16.mxu0 0
      %1995 = vmatmul.mubr.bf16.gmra.mxu0 %v1852
      %v1996 = vpop.f32.mrf.mxu0
      %v1997 = vadd.f32 0.0, %v1996
      %v1998 = vpop.f32.mrf.mxu0
      %v1999 = vpop.f32.mrf.mxu0
      %v2000 = vadd.f32 0.0, %v1999
      %v2001 = vpop.f32.mrf.mxu0
      %2002 = vmatprep.mubr.bf16.mxu0 0
      %2003 = vmatmul.mubr.bf16.gmra.mxu0 %v1855
      %v2004 = vpop.f32.mrf.mxu0
      %v2005 = vadd.f32 0.0, %v2004
      %v2006 = vpop.f32.mrf.mxu0
      %v2007 = vpop.f32.mrf.mxu0
      %v2008 = vadd.f32 0.0, %v2007
      %v2009 = vpop.f32.mrf.mxu0
      %2010 = vmatprep.mubr.bf16.mxu0 0
      %2011 = vmatmul.mubr.bf16.gmra.mxu0 %v1858
      %v2012 = vpop.f32.mrf.mxu0
      %v2013 = vadd.f32 0.0, %v2012
      %v2014 = vpop.f32.mrf.mxu0
      %v2015 = vpop.f32.mrf.mxu0
      %v2016 = vadd.f32 0.0, %v2015
      %v2017 = vpop.f32.mrf.mxu0
      %2018 = vmatprep.mubr.bf16.mxu0 0
      %2019 = vmatmul.mubr.bf16.gmra.mxu0 %v1861
      %v2020 = vpop.f32.mrf.mxu0
      %v2021 = vadd.f32 0.0, %v2020
      %v2022 = vpop.f32.mrf.mxu0
      %v2023 = vpop.f32.mrf.mxu0
      %v2024 = vadd.f32 0.0, %v2023
      %v2025 = vpop.f32.mrf.mxu0
      %2026 = vdwg.mxu0
      %v2027 = vadd.f32 %v1765, %v1901
      %v2028 = vadd.f32 %v1766, %v1904
      %v2029 = vadd.f32 %v1767, %v1909
      %v2030 = vadd.f32 %v1768, %v1912
      %v2031 = vadd.f32 %v1769, %v1917
      %v2032 = vadd.f32 %v1770, %v1920
      %v2033 = vadd.f32 %v1771, %v1925
      %v2034 = vadd.f32 %v1772, %v1928
      %v2035 = vadd.f32 %v1773, %v1933
      %v2036 = vadd.f32 %v1774, %v1936
      %v2037 = vadd.f32 %v1775, %v1941
      %v2038 = vadd.f32 %v1776, %v1944
      %v2039 = vadd.f32 %v1777, %v1949
      %v2040 = vadd.f32 %v1778, %v1952
      %v2041 = vadd.f32 %v1779, %v1957
      %v2042 = vadd.f32 %v1780, %v1960
      %v2043 = vadd.f32 %v1781, %v1965
      %v2044 = vadd.f32 %v1782, %v1968
      %v2045 = vadd.f32 %v1783, %v1973
      %v2046 = vadd.f32 %v1784, %v1976
      %v2047 = vadd.f32 %v1785, %v1981
      %v2048 = vadd.f32 %v1786, %v1984
      %v2049 = vadd.f32 %v1787, %v1989
      %v2050 = vadd.f32 %v1788, %v1992
      %v2051 = vadd.f32 %v1789, %v1997
      %v2052 = vadd.f32 %v1790, %v2000
      %v2053 = vadd.f32 %v1791, %v2005
      %v2054 = vadd.f32 %v1792, %v2008
      %v2055 = vadd.f32 %v1793, %v2013
      %v2056 = vadd.f32 %v1794, %v2016
      %v2057 = vadd.f32 %v1795, %v2021
      %v2058 = vadd.f32 %v1796, %v2024
      %2059 = vst.msk [vmem:[#allocation2] sm:$0xff] %vm1245, %v2027
      %2060 = vst.msk [vmem:[#allocation2 + $0x8] sm:$0xff] %vm1245, %v2028
      %2061 = vst.msk [vmem:[#allocation2 + $0x10] sm:$0xff] %vm1245, %v2029
      %2062 = vst.msk [vmem:[#allocation2 + $0x18] sm:$0xff] %vm1245, %v2030
      %2063 = vst.msk [vmem:[#allocation2 + $0x20] sm:$0xff] %vm1245, %v2031
      %2064 = vst.msk [vmem:[#allocation2 + $0x28] sm:$0xff] %vm1245, %v2032
      %2065 = vst.msk [vmem:[#allocation2 + $0x30] sm:$0xff] %vm1245, %v2033
      %2066 = vst.msk [vmem:[#allocation2 + $0x38] sm:$0xff] %vm1245, %v2034
      %2067 = vst.msk [vmem:[#allocation2 + $0x40] sm:$0xff] %vm1245, %v2035
      %2068 = vst.msk [vmem:[#allocation2 + $0x48] sm:$0xff] %vm1245, %v2036
      %2069 = vst.msk [vmem:[#allocation2 + $0x50] sm:$0xff] %vm1245, %v2037
      %2070 = vst.msk [vmem:[#allocation2 + $0x58] sm:$0xff] %vm1245, %v2038
      %2071 = vst.msk [vmem:[#allocation2 + $0x60] sm:$0xff] %vm1245, %v2039
      %2072 = vst.msk [vmem:[#allocation2 + $0x68] sm:$0xff] %vm1245, %v2040
      %2073 = vst.msk [vmem:[#allocation2 + $0x70] sm:$0xff] %vm1245, %v2041
      %2074 = vst.msk [vmem:[#allocation2 + $0x78] sm:$0xff] %vm1245, %v2042
      %2075 = vst.msk [vmem:[#allocation2 + $0x80] sm:$0xff] %vm1245, %v2043
      %2076 = vst.msk [vmem:[#allocation2 + $0x88] sm:$0xff] %vm1245, %v2044
      %2077 = vst.msk [vmem:[#allocation2 + $0x90] sm:$0xff] %vm1245, %v2045
      %2078 = vst.msk [vmem:[#allocation2 + $0x98] sm:$0xff] %vm1245, %v2046
      %2079 = vst.msk [vmem:[#allocation2 + $0xa0] sm:$0xff] %vm1245, %v2047
      %2080 = vst.msk [vmem:[#allocation2 + $0xa8] sm:$0xff] %vm1245, %v2048
      %2081 = vst.msk [vmem:[#allocation2 + $0xb0] sm:$0xff] %vm1245, %v2049
      %2082 = vst.msk [vmem:[#allocation2 + $0xb8] sm:$0xff] %vm1245, %v2050
      %2083 = vst.msk [vmem:[#allocation2 + $0xc0] sm:$0xff] %vm1245, %v2051
      %2084 = vst.msk [vmem:[#allocation2 + $0xc8] sm:$0xff] %vm1245, %v2052
      %2085 = vst.msk [vmem:[#allocation2 + $0xd0] sm:$0xff] %vm1245, %v2053
      %2086 = vst.msk [vmem:[#allocation2 + $0xd8] sm:$0xff] %vm1245, %v2054
      %2087 = vst.msk [vmem:[#allocation2 + $0xe0] sm:$0xff] %vm1245, %v2055
      %2088 = vst.msk [vmem:[#allocation2 + $0xe8] sm:$0xff] %vm1245, %v2056
      %2089 = vst.msk [vmem:[#allocation2 + $0xf0] sm:$0xff] %vm1245, %v2057
      %2090 = vst.msk [vmem:[#allocation2 + $0xf8] sm:$0xff] %vm1245, %v2058
      %v2091 = vrot.slane %v412, 1
      %v2092 = vrot.slane %v413, 1
      %v2093 = vrot.slane %v414, 1
      %v2094 = vrot.slane %v415, 1
      %v2095 = vrot.slane %v416, 1
      %v2096 = vrot.slane %v417, 1
      %v2097 = vrot.slane %v418, 1
      %v2098 = vrot.slane %v419, 1
      %v2099 = vrot.slane %v420, 1
      %v2100 = vrot.slane %v421, 1
      %v2101 = vrot.slane %v422, 1
      %v2102 = vrot.slane %v423, 1
      %v2103 = vrot.slane %v424, 1
      %v2104 = vrot.slane %v425, 1
      %v2105 = vrot.slane %v426, 1
      %v2106 = vrot.slane %v427, 1
      %v2107 = vrot.slane %v428, 1
      %v2108 = vrot.slane %v429, 1
      %v2109 = vrot.slane %v430, 1
      %v2110 = vrot.slane %v431, 1
      %v2111 = vrot.slane %v432, 1
      %v2112 = vrot.slane %v433, 1
      %v2113 = vrot.slane %v434, 1
      %v2114 = vrot.slane %v435, 1
      %v2115 = vrot.slane %v436, 1
      %v2116 = vrot.slane %v437, 1
      %v2117 = vrot.slane %v438, 1
      %v2118 = vrot.slane %v439, 1
      %v2119 = vrot.slane %v440, 1
      %v2120 = vrot.slane %v441, 1
      %v2121 = vrot.slane %v442, 1
      %v2122 = vrot.slane %v443, 1
      %vm2123 = vcmp.lt.s32.totalorder %v445, 7
      %v2124 = vsel %vm2123, %v2121, %v2122
      %v2125 = vsel %vm2123, %v2120, %v2121
      %v2126 = vsel %vm2123, %v2119, %v2120
      %v2127 = vsel %vm2123, %v2118, %v2119
      %v2128 = vsel %vm2123, %v2117, %v2118
      %v2129 = vsel %vm2123, %v2116, %v2117
      %v2130 = vsel %vm2123, %v2115, %v2116
      %v2131 = vsel %vm2123, %v2114, %v2115
      %v2132 = vsel %vm2123, %v2113, %v2114
      %v2133 = vsel %vm2123, %v2112, %v2113
      %v2134 = vsel %vm2123, %v2111, %v2112
      %v2135 = vsel %vm2123, %v2110, %v2111
      %v2136 = vsel %vm2123, %v2109, %v2110
      %v2137 = vsel %vm2123, %v2108, %v2109
      %v2138 = vsel %vm2123, %v2107, %v2108
      %v2139 = vsel %vm2123, %v2106, %v2107
      %v2140 = vsel %vm2123, %v2105, %v2106
      %v2141 = vsel %vm2123, %v2104, %v2105
      %v2142 = vsel %vm2123, %v2103, %v2104
      %v2143 = vsel %vm2123, %v2102, %v2103
      %v2144 = vsel %vm2123, %v2101, %v2102
      %v2145 = vsel %vm2123, %v2100, %v2101
      %v2146 = vsel %vm2123, %v2099, %v2100
      %v2147 = vsel %vm2123, %v2098, %v2099
      %v2148 = vsel %vm2123, %v2097, %v2098
      %v2149 = vsel %vm2123, %v2096, %v2097
      %v2150 = vsel %vm2123, %v2095, %v2096
      %v2151 = vsel %vm2123, %v2094, %v2095
      %v2152 = vsel %vm2123, %v2093, %v2094
      %v2153 = vsel %vm2123, %v2092, %v2093
      %v2154 = vsel %vm2123, %v2091, %v2092
      %v2155 = vsel %vm2123, %v2122, %v2091
      %v2156 = vmul.f32 %v1117, %v1021
      %v2157 = vmul.f32 %v1118, %v1022
      %v2158 = vmul.f32 %v1119, %v1023
      %v2159 = vmul.f32 %v1120, %v1024
      %v2160 = vmul.f32 %v1121, %v1025
      %v2161 = vmul.f32 %v1122, %v1026
      %v2162 = vmul.f32 %v1123, %v1027
      %v2163 = vmul.f32 %v1124, %v1028
      %v2164 = vmul.f32 %v1125, %v1029
      %v2165 = vmul.f32 %v1126, %v1030
      %v2166 = vmul.f32 %v1127, %v1031
      %v2167 = vmul.f32 %v1128, %v1032
      %v2168 = vmul.f32 %v1129, %v1033
      %v2169 = vmul.f32 %v1130, %v1034
      %v2170 = vmul.f32 %v1131, %v1035
      %v2171 = vmul.f32 %v1132, %v1036
      %v2172 = vmul.f32 %v1133, %v1037
      %v2173 = vmul.f32 %v1134, %v1038
      %v2174 = vmul.f32 %v1135, %v1039
      %v2175 = vmul.f32 %v1136, %v1040
      %v2176 = vmul.f32 %v1137, %v1041
      %v2177 = vmul.f32 %v1138, %v1042
      %v2178 = vmul.f32 %v1139, %v1043
      %v2179 = vmul.f32 %v1140, %v1044
      %v2180 = vmul.f32 %v1141, %v1045
      %v2181 = vmul.f32 %v1142, %v1046
      %v2182 = vmul.f32 %v1143, %v1047
      %v2183 = vmul.f32 %v1144, %v1048
      %v2184 = vmul.f32 %v1145, %v1049
      %v2185 = vmul.f32 %v1146, %v1050
      %v2186 = vmul.f32 %v1147, %v1051
      %v2187 = vmul.f32 %v1148, %v1052
      %v2188 = vmul.f32 %v2124, %v2156
      %v2189 = vmul.f32 %v2155, %v2157
      %v2190 = vmul.f32 %v2154, %v2158
      %v2191 = vmul.f32 %v2153, %v2159
      %v2192 = vmul.f32 %v2152, %v2160
      %v2193 = vmul.f32 %v2151, %v2161
      %v2194 = vmul.f32 %v2150, %v2162
      %v2195 = vmul.f32 %v2149, %v2163
      %v2196 = vmul.f32 %v2148, %v2164
      %v2197 = vmul.f32 %v2147, %v2165
      %v2198 = vmul.f32 %v2146, %v2166
      %v2199 = vmul.f32 %v2145, %v2167
      %v2200 = vmul.f32 %v2144, %v2168
      %v2201 = vmul.f32 %v2143, %v2169
      %v2202 = vmul.f32 %v2142, %v2170
      %v2203 = vmul.f32 %v2141, %v2171
      %v2204 = vmul.f32 %v2140, %v2172
      %v2205 = vmul.f32 %v2139, %v2173
      %v2206 = vmul.f32 %v2138, %v2174
      %v2207 = vmul.f32 %v2137, %v2175
      %v2208 = vmul.f32 %v2136, %v2176
      %v2209 = vmul.f32 %v2135, %v2177
      %v2210 = vmul.f32 %v2134, %v2178
      %v2211 = vmul.f32 %v2133, %v2179
      %v2212 = vmul.f32 %v2132, %v2180
      %v2213 = vmul.f32 %v2131, %v2181
      %v2214 = vmul.f32 %v2130, %v2182
      %v2215 = vmul.f32 %v2129, %v2183
      %v2216 = vmul.f32 %v2128, %v2184
      %v2217 = vmul.f32 %v2127, %v2185
      %v2218 = vmul.f32 %v2126, %v2186
      %v2219 = vmul.f32 %v2125, %v2187
      %v2220 = vld [vmem:[#allocation2] sm:$0xff]
      %v2221 = vld [vmem:[#allocation2 + $0x8] sm:$0xff]
      %v2222 = vld [vmem:[#allocation2 + $0x10] sm:$0xff]
      %v2223 = vld [vmem:[#allocation2 + $0x18] sm:$0xff]
      %v2224 = vld [vmem:[#allocation2 + $0x20] sm:$0xff]
      %v2225 = vld [vmem:[#allocation2 + $0x28] sm:$0xff]
      %v2226 = vld [vmem:[#allocation2 + $0x30] sm:$0xff]
      %v2227 = vld [vmem:[#allocation2 + $0x38] sm:$0xff]
      %v2228 = vld [vmem:[#allocation2 + $0x40] sm:$0xff]
      %v2229 = vld [vmem:[#allocation2 + $0x48] sm:$0xff]
      %v2230 = vld [vmem:[#allocation2 + $0x50] sm:$0xff]
      %v2231 = vld [vmem:[#allocation2 + $0x58] sm:$0xff]
      %v2232 = vld [vmem:[#allocation2 + $0x60] sm:$0xff]
      %v2233 = vld [vmem:[#allocation2 + $0x68] sm:$0xff]
      %v2234 = vld [vmem:[#allocation2 + $0x70] sm:$0xff]
      %v2235 = vld [vmem:[#allocation2 + $0x78] sm:$0xff]
      %v2236 = vld [vmem:[#allocation2 + $0x80] sm:$0xff]
      %v2237 = vld [vmem:[#allocation2 + $0x88] sm:$0xff]
      %v2238 = vld [vmem:[#allocation2 + $0x90] sm:$0xff]
      %v2239 = vld [vmem:[#allocation2 + $0x98] sm:$0xff]
      %v2240 = vld [vmem:[#allocation2 + $0xa0] sm:$0xff]
      %v2241 = vld [vmem:[#allocation2 + $0xa8] sm:$0xff]
      %v2242 = vld [vmem:[#allocation2 + $0xb0] sm:$0xff]
      %v2243 = vld [vmem:[#allocation2 + $0xb8] sm:$0xff]
      %v2244 = vld [vmem:[#allocation2 + $0xc0] sm:$0xff]
      %v2245 = vld [vmem:[#allocation2 + $0xc8] sm:$0xff]
      %v2246 = vld [vmem:[#allocation2 + $0xd0] sm:$0xff]
      %v2247 = vld [vmem:[#allocation2 + $0xd8] sm:$0xff]
      %v2248 = vld [vmem:[#allocation2 + $0xe0] sm:$0xff]
      %v2249 = vld [vmem:[#allocation2 + $0xe8] sm:$0xff]
      %v2250 = vld [vmem:[#allocation2 + $0xf0] sm:$0xff]
      %v2251 = vld [vmem:[#allocation2 + $0xf8] sm:$0xff]
      %v2252 = vpack.c.bf16 %v2189, %v2188
      %v2253 = vpack.c.bf16 %v2191, %v2190
      %v2254 = vpack.c.bf16 %v2193, %v2192
      %v2255 = vpack.c.bf16 %v2195, %v2194
      %v2256 = vpack.c.bf16 %v2197, %v2196
      %v2257 = vpack.c.bf16 %v2199, %v2198
      %v2258 = vpack.c.bf16 %v2201, %v2200
      %v2259 = vpack.c.bf16 %v2203, %v2202
      %v2260 = vpack.c.bf16 %v2205, %v2204
      %v2261 = vpack.c.bf16 %v2207, %v2206
      %v2262 = vpack.c.bf16 %v2209, %v2208
      %v2263 = vpack.c.bf16 %v2211, %v2210
      %v2264 = vpack.c.bf16 %v2213, %v2212
      %v2265 = vpack.c.bf16 %v2215, %v2214
      %v2266 = vpack.c.bf16 %v2217, %v2216
      %v2267 = vpack.c.bf16 %v2219, %v2218
      %s2268 = scalar_lea.vmem %s3, 8
      %v2269 = vld [vmem:[%s2268] sm:$0xf]
      %v2271 = vsel %vm1245, %v2252, 0
      %v2274 = vsel %vm1245, %v2253, 0
      %v2277 = vsel %vm1245, %v2254, 0
      %v2280 = vsel %vm1245, %v2255, 0
      %v2283 = vsel %vm1245, %v2256, 0
      %v2286 = vsel %vm1245, %v2257, 0
      %v2289 = vsel %vm1245, %v2258, 0
      %v2292 = vsel %vm1245, %v2259, 0
      %v2295 = vsel %vm1245, %v2260, 0
      %v2298 = vsel %vm1245, %v2261, 0
      %v2301 = vsel %vm1245, %v2262, 0
      %v2304 = vsel %vm1245, %v2263, 0
      %v2307 = vsel %vm1245, %v2264, 0
      %v2310 = vsel %vm1245, %v2265, 0
      %v2313 = vsel %vm1245, %v2266, 0
      %v2316 = vsel %vm1245, %v2267, 0
      %v2319 = vsel %vm1504, %v2269, 0
      %2321 = vmatprep.subr.bf16.mxu0 0
      %2322 = vmatpush1.bf16.msra.mxu0 0
      %2323 = vmatprep.subr.bf16.mxu0 0
      %2324 = vmatpush1.bf16.msra.mxu0 0
      %2325 = vmatprep.subr.bf16.mxu0 0
      %2326 = vmatpush1.bf16.msra.mxu0 0
      %2327 = vmatprep.subr.bf16.mxu0 0
      %2328 = vmatpush1.bf16.msra.mxu0 0
      %2329 = vmatprep.subr.bf16.mxu0 0
      %2330 = vmatpush1.bf16.msra.mxu0 0
      %2331 = vmatprep.subr.bf16.mxu0 0
      %2332 = vmatpush1.bf16.msra.mxu0 0
      %2333 = vmatprep.subr.bf16.mxu0 0
      %2334 = vmatpush1.bf16.msra.mxu0 0
      %2335 = vmatprep.subr.bf16.mxu0 0
      %2336 = vmatpush1.bf16.msra.mxu0 %v2319
      %2337 = vmatprep.subr.bf16.mxu0 0
      %2338 = vmatpush2.bf16.msra.mxu0 0
      %2339 = vmatprep.subr.bf16.mxu0 0
      %2340 = vmatpush2.bf16.msra.mxu0 0
      %2341 = vmatprep.subr.bf16.mxu0 0
      %2342 = vmatpush2.bf16.msra.mxu0 0
      %2343 = vmatprep.subr.bf16.mxu0 0
      %2344 = vmatpush2.bf16.msra.mxu0 0
      %2345 = vmatprep.subr.bf16.mxu0 0
      %2346 = vmatpush2.bf16.msra.mxu0 0
      %2347 = vmatprep.subr.bf16.mxu0 0
      %2348 = vmatpush2.bf16.msra.mxu0 0
      %2349 = vmatprep.subr.bf16.mxu0 0
      %2350 = vmatpush2.bf16.msra.mxu0 0
      %2351 = vmatprep.subr.bf16.mxu0 0
      %2352 = vmatpush2.bf16.msra.mxu0 0
      %2353 = vmatprep.mubr.bf16.mxu0 0
      %2354 = vmatmul.mubr.bf16.gmra.mxu0 %v2271
      %v2355 = vpop.f32.mrf.mxu0
      %v2356 = vadd.f32 0.0, %v2355
      %v2357 = vpop.f32.mrf.mxu0
      %v2358 = vpop.f32.mrf.mxu0
      %v2359 = vadd.f32 0.0, %v2358
      %v2360 = vpop.f32.mrf.mxu0
      %2361 = vmatprep.mubr.bf16.mxu0 0
      %2362 = vmatmul.mubr.bf16.gmra.mxu0 %v2274
      %v2363 = vpop.f32.mrf.mxu0
      %v2364 = vadd.f32 0.0, %v2363
      %v2365 = vpop.f32.mrf.mxu0
      %v2366 = vpop.f32.mrf.mxu0
      %v2367 = vadd.f32 0.0, %v2366
      %v2368 = vpop.f32.mrf.mxu0
      %2369 = vmatprep.mubr.bf16.mxu0 0
      %2370 = vmatmul.mubr.bf16.gmra.mxu0 %v2277
      %v2371 = vpop.f32.mrf.mxu0
      %v2372 = vadd.f32 0.0, %v2371
      %v2373 = vpop.f32.mrf.mxu0
      %v2374 = vpop.f32.mrf.mxu0
      %v2375 = vadd.f32 0.0, %v2374
      %v2376 = vpop.f32.mrf.mxu0
      %2377 = vmatprep.mubr.bf16.mxu0 0
      %2378 = vmatmul.mubr.bf16.gmra.mxu0 %v2280
      %v2379 = vpop.f32.mrf.mxu0
      %v2380 = vadd.f32 0.0, %v2379
      %v2381 = vpop.f32.mrf.mxu0
      %v2382 = vpop.f32.mrf.mxu0
      %v2383 = vadd.f32 0.0, %v2382
      %v2384 = vpop.f32.mrf.mxu0
      %2385 = vmatprep.mubr.bf16.mxu0 0
      %2386 = vmatmul.mubr.bf16.gmra.mxu0 %v2283
      %v2387 = vpop.f32.mrf.mxu0
      %v2388 = vadd.f32 0.0, %v2387
      %v2389 = vpop.f32.mrf.mxu0
      %v2390 = vpop.f32.mrf.mxu0
      %v2391 = vadd.f32 0.0, %v2390
      %v2392 = vpop.f32.mrf.mxu0
      %2393 = vmatprep.mubr.bf16.mxu0 0
      %2394 = vmatmul.mubr.bf16.gmra.mxu0 %v2286
      %v2395 = vpop.f32.mrf.mxu0
      %v2396 = vadd.f32 0.0, %v2395
      %v2397 = vpop.f32.mrf.mxu0
      %v2398 = vpop.f32.mrf.mxu0
      %v2399 = vadd.f32 0.0, %v2398
      %v2400 = vpop.f32.mrf.mxu0
      %2401 = vmatprep.mubr.bf16.mxu0 0
      %2402 = vmatmul.mubr.bf16.gmra.mxu0 %v2289
      %v2403 = vpop.f32.mrf.mxu0
      %v2404 = vadd.f32 0.0, %v2403
      %v2405 = vpop.f32.mrf.mxu0
      %v2406 = vpop.f32.mrf.mxu0
      %v2407 = vadd.f32 0.0, %v2406
      %v2408 = vpop.f32.mrf.mxu0
      %2409 = vmatprep.mubr.bf16.mxu0 0
      %2410 = vmatmul.mubr.bf16.gmra.mxu0 %v2292
      %v2411 = vpop.f32.mrf.mxu0
      %v2412 = vadd.f32 0.0, %v2411
      %v2413 = vpop.f32.mrf.mxu0
      %v2414 = vpop.f32.mrf.mxu0
      %v2415 = vadd.f32 0.0, %v2414
      %v2416 = vpop.f32.mrf.mxu0
      %2417 = vmatprep.mubr.bf16.mxu0 0
      %2418 = vmatmul.mubr.bf16.gmra.mxu0 %v2295
      %v2419 = vpop.f32.mrf.mxu0
      %v2420 = vadd.f32 0.0, %v2419
      %v2421 = vpop.f32.mrf.mxu0
      %v2422 = vpop.f32.mrf.mxu0
      %v2423 = vadd.f32 0.0, %v2422
      %v2424 = vpop.f32.mrf.mxu0
      %2425 = vmatprep.mubr.bf16.mxu0 0
      %2426 = vmatmul.mubr.bf16.gmra.mxu0 %v2298
      %v2427 = vpop.f32.mrf.mxu0
      %v2428 = vadd.f32 0.0, %v2427
      %v2429 = vpop.f32.mrf.mxu0
      %v2430 = vpop.f32.mrf.mxu0
      %v2431 = vadd.f32 0.0, %v2430
      %v2432 = vpop.f32.mrf.mxu0
      %2433 = vmatprep.mubr.bf16.mxu0 0
      %2434 = vmatmul.mubr.bf16.gmra.mxu0 %v2301
      %v2435 = vpop.f32.mrf.mxu0
      %v2436 = vadd.f32 0.0, %v2435
      %v2437 = vpop.f32.mrf.mxu0
      %v2438 = vpop.f32.mrf.mxu0
      %v2439 = vadd.f32 0.0, %v2438
      %v2440 = vpop.f32.mrf.mxu0
      %2441 = vmatprep.mubr.bf16.mxu0 0
      %2442 = vmatmul.mubr.bf16.gmra.mxu0 %v2304
      %v2443 = vpop.f32.mrf.mxu0
      %v2444 = vadd.f32 0.0, %v2443
      %v2445 = vpop.f32.mrf.mxu0
      %v2446 = vpop.f32.mrf.mxu0
      %v2447 = vadd.f32 0.0, %v2446
      %v2448 = vpop.f32.mrf.mxu0
      %2449 = vmatprep.mubr.bf16.mxu0 0
      %2450 = vmatmul.mubr.bf16.gmra.mxu0 %v2307
      %v2451 = vpop.f32.mrf.mxu0
      %v2452 = vadd.f32 0.0, %v2451
      %v2453 = vpop.f32.mrf.mxu0
      %v2454 = vpop.f32.mrf.mxu0
      %v2455 = vadd.f32 0.0, %v2454
      %v2456 = vpop.f32.mrf.mxu0
      %2457 = vmatprep.mubr.bf16.mxu0 0
      %2458 = vmatmul.mubr.bf16.gmra.mxu0 %v2310
      %v2459 = vpop.f32.mrf.mxu0
      %v2460 = vadd.f32 0.0, %v2459
      %v2461 = vpop.f32.mrf.mxu0
      %v2462 = vpop.f32.mrf.mxu0
      %v2463 = vadd.f32 0.0, %v2462
      %v2464 = vpop.f32.mrf.mxu0
      %2465 = vmatprep.mubr.bf16.mxu0 0
      %2466 = vmatmul.mubr.bf16.gmra.mxu0 %v2313
      %v2467 = vpop.f32.mrf.mxu0
      %v2468 = vadd.f32 0.0, %v2467
      %v2469 = vpop.f32.mrf.mxu0
      %v2470 = vpop.f32.mrf.mxu0
      %v2471 = vadd.f32 0.0, %v2470
      %v2472 = vpop.f32.mrf.mxu0
      %2473 = vmatprep.mubr.bf16.mxu0 0
      %2474 = vmatmul.mubr.bf16.gmra.mxu0 %v2316
      %v2475 = vpop.f32.mrf.mxu0
      %v2476 = vadd.f32 0.0, %v2475
      %v2477 = vpop.f32.mrf.mxu0
      %v2478 = vpop.f32.mrf.mxu0
      %v2479 = vadd.f32 0.0, %v2478
      %v2480 = vpop.f32.mrf.mxu0
      %2481 = vdwg.mxu0
      %v2482 = vadd.f32 %v2220, %v2356
      %v2483 = vadd.f32 %v2221, %v2359
      %v2484 = vadd.f32 %v2222, %v2364
      %v2485 = vadd.f32 %v2223, %v2367
      %v2486 = vadd.f32 %v2224, %v2372
      %v2487 = vadd.f32 %v2225, %v2375
      %v2488 = vadd.f32 %v2226, %v2380
      %v2489 = vadd.f32 %v2227, %v2383
      %v2490 = vadd.f32 %v2228, %v2388
      %v2491 = vadd.f32 %v2229, %v2391
      %v2492 = vadd.f32 %v2230, %v2396
      %v2493 = vadd.f32 %v2231, %v2399
      %v2494 = vadd.f32 %v2232, %v2404
      %v2495 = vadd.f32 %v2233, %v2407
      %v2496 = vadd.f32 %v2234, %v2412
      %v2497 = vadd.f32 %v2235, %v2415
      %v2498 = vadd.f32 %v2236, %v2420
      %v2499 = vadd.f32 %v2237, %v2423
      %v2500 = vadd.f32 %v2238, %v2428
      %v2501 = vadd.f32 %v2239, %v2431
      %v2502 = vadd.f32 %v2240, %v2436
      %v2503 = vadd.f32 %v2241, %v2439
      %v2504 = vadd.f32 %v2242, %v2444
      %v2505 = vadd.f32 %v2243, %v2447
      %v2506 = vadd.f32 %v2244, %v2452
      %v2507 = vadd.f32 %v2245, %v2455
      %v2508 = vadd.f32 %v2246, %v2460
      %v2509 = vadd.f32 %v2247, %v2463
      %v2510 = vadd.f32 %v2248, %v2468
      %v2511 = vadd.f32 %v2249, %v2471
      %v2512 = vadd.f32 %v2250, %v2476
      %v2513 = vadd.f32 %v2251, %v2479
      %2514 = vst.msk [vmem:[#allocation2] sm:$0xff] %vm1245, %v2482
      %2515 = vst.msk [vmem:[#allocation2 + $0x8] sm:$0xff] %vm1245, %v2483
      %2516 = vst.msk [vmem:[#allocation2 + $0x10] sm:$0xff] %vm1245, %v2484
      %2517 = vst.msk [vmem:[#allocation2 + $0x18] sm:$0xff] %vm1245, %v2485
      %2518 = vst.msk [vmem:[#allocation2 + $0x20] sm:$0xff] %vm1245, %v2486
      %2519 = vst.msk [vmem:[#allocation2 + $0x28] sm:$0xff] %vm1245, %v2487
      %2520 = vst.msk [vmem:[#allocation2 + $0x30] sm:$0xff] %vm1245, %v2488
      %2521 = vst.msk [vmem:[#allocation2 + $0x38] sm:$0xff] %vm1245, %v2489
      %2522 = vst.msk [vmem:[#allocation2 + $0x40] sm:$0xff] %vm1245, %v2490
      %2523 = vst.msk [vmem:[#allocation2 + $0x48] sm:$0xff] %vm1245, %v2491
      %2524 = vst.msk [vmem:[#allocation2 + $0x50] sm:$0xff] %vm1245, %v2492
      %2525 = vst.msk [vmem:[#allocation2 + $0x58] sm:$0xff] %vm1245, %v2493
      %2526 = vst.msk [vmem:[#allocation2 + $0x60] sm:$0xff] %vm1245, %v2494
      %2527 = vst.msk [vmem:[#allocation2 + $0x68] sm:$0xff] %vm1245, %v2495
      %2528 = vst.msk [vmem:[#allocation2 + $0x70] sm:$0xff] %vm1245, %v2496
      %2529 = vst.msk [vmem:[#allocation2 + $0x78] sm:$0xff] %vm1245, %v2497
      %2530 = vst.msk [vmem:[#allocation2 + $0x80] sm:$0xff] %vm1245, %v2498
      %2531 = vst.msk [vmem:[#allocation2 + $0x88] sm:$0xff] %vm1245, %v2499
      %2532 = vst.msk [vmem:[#allocation2 + $0x90] sm:$0xff] %vm1245, %v2500
      %2533 = vst.msk [vmem:[#allocation2 + $0x98] sm:$0xff] %vm1245, %v2501
      %2534 = vst.msk [vmem:[#allocation2 + $0xa0] sm:$0xff] %vm1245, %v2502
      %2535 = vst.msk [vmem:[#allocation2 + $0xa8] sm:$0xff] %vm1245, %v2503
      %2536 = vst.msk [vmem:[#allocation2 + $0xb0] sm:$0xff] %vm1245, %v2504
      %2537 = vst.msk [vmem:[#allocation2 + $0xb8] sm:$0xff] %vm1245, %v2505
      %2538 = vst.msk [vmem:[#allocation2 + $0xc0] sm:$0xff] %vm1245, %v2506
      %2539 = vst.msk [vmem:[#allocation2 + $0xc8] sm:$0xff] %vm1245, %v2507
      %2540 = vst.msk [vmem:[#allocation2 + $0xd0] sm:$0xff] %vm1245, %v2508
      %2541 = vst.msk [vmem:[#allocation2 + $0xd8] sm:$0xff] %vm1245, %v2509
      %2542 = vst.msk [vmem:[#allocation2 + $0xe0] sm:$0xff] %vm1245, %v2510
      %2543 = vst.msk [vmem:[#allocation2 + $0xe8] sm:$0xff] %vm1245, %v2511
      %2544 = vst.msk [vmem:[#allocation2 + $0xf0] sm:$0xff] %vm1245, %v2512
      %2545 = vst.msk [vmem:[#allocation2 + $0xf8] sm:$0xff] %vm1245, %v2513
      %v2546 = vmul.f32 %v1342, %v925
      %v2547 = vmul.f32 %v1341, %v926
      %v2548 = vmul.f32 %v1340, %v927
      %v2549 = vmul.f32 %v1339, %v928
      %v2550 = vmul.f32 %v1338, %v929
      %v2551 = vmul.f32 %v1337, %v930
      %v2552 = vmul.f32 %v1336, %v931
      %v2553 = vmul.f32 %v1335, %v932
      %v2554 = vmul.f32 %v1334, %v933
      %v2555 = vmul.f32 %v1333, %v934
      %v2556 = vmul.f32 %v1332, %v935
      %v2557 = vmul.f32 %v1331, %v936
      %v2558 = vmul.f32 %v1330, %v937
      %v2559 = vmul.f32 %v1329, %v938
      %v2560 = vmul.f32 %v1328, %v939
      %v2561 = vmul.f32 %v1327, %v940
      %v2562 = vmul.f32 %v1326, %v941
      %v2563 = vmul.f32 %v1325, %v942
      %v2564 = vmul.f32 %v1324, %v943
      %v2565 = vmul.f32 %v1323, %v944
      %v2566 = vmul.f32 %v1322, %v945
      %v2567 = vmul.f32 %v1321, %v946
      %v2568 = vmul.f32 %v1320, %v947
      %v2569 = vmul.f32 %v1319, %v948
      %v2570 = vmul.f32 %v1318, %v949
      %v2571 = vmul.f32 %v1317, %v950
      %v2572 = vmul.f32 %v1316, %v951
      %v2573 = vmul.f32 %v1315, %v952
      %v2574 = vmul.f32 %v1314, %v953
      %v2575 = vmul.f32 %v1313, %v954
      %v2576 = vmul.f32 %v1312, %v955
      %v2577 = vmul.f32 %v1311, %v956
      %v2578 = vld [vmem:[#allocation2] sm:$0xff]
      %v2579 = vld [vmem:[#allocation2 + $0x8] sm:$0xff]
      %v2580 = vld [vmem:[#allocation2 + $0x10] sm:$0xff]
      %v2581 = vld [vmem:[#allocation2 + $0x18] sm:$0xff]
      %v2582 = vld [vmem:[#allocation2 + $0x20] sm:$0xff]
      %v2583 = vld [vmem:[#allocation2 + $0x28] sm:$0xff]
      %v2584 = vld [vmem:[#allocation2 + $0x30] sm:$0xff]
      %v2585 = vld [vmem:[#allocation2 + $0x38] sm:$0xff]
      %v2586 = vld [vmem:[#allocation2 + $0x40] sm:$0xff]
      %v2587 = vld [vmem:[#allocation2 + $0x48] sm:$0xff]
      %v2588 = vld [vmem:[#allocation2 + $0x50] sm:$0xff]
      %v2589 = vld [vmem:[#allocation2 + $0x58] sm:$0xff]
      %v2590 = vld [vmem:[#allocation2 + $0x60] sm:$0xff]
      %v2591 = vld [vmem:[#allocation2 + $0x68] sm:$0xff]
      %v2592 = vld [vmem:[#allocation2 + $0x70] sm:$0xff]
      %v2593 = vld [vmem:[#allocation2 + $0x78] sm:$0xff]
      %v2594 = vld [vmem:[#allocation2 + $0x80] sm:$0xff]
      %v2595 = vld [vmem:[#allocation2 + $0x88] sm:$0xff]
      %v2596 = vld [vmem:[#allocation2 + $0x90] sm:$0xff]
      %v2597 = vld [vmem:[#allocation2 + $0x98] sm:$0xff]
      %v2598 = vld [vmem:[#allocation2 + $0xa0] sm:$0xff]
      %v2599 = vld [vmem:[#allocation2 + $0xa8] sm:$0xff]
      %v2600 = vld [vmem:[#allocation2 + $0xb0] sm:$0xff]
      %v2601 = vld [vmem:[#allocation2 + $0xb8] sm:$0xff]
      %v2602 = vld [vmem:[#allocation2 + $0xc0] sm:$0xff]
      %v2603 = vld [vmem:[#allocation2 + $0xc8] sm:$0xff]
      %v2604 = vld [vmem:[#allocation2 + $0xd0] sm:$0xff]
      %v2605 = vld [vmem:[#allocation2 + $0xd8] sm:$0xff]
      %v2606 = vld [vmem:[#allocation2 + $0xe0] sm:$0xff]
      %v2607 = vld [vmem:[#allocation2 + $0xe8] sm:$0xff]
      %v2608 = vld [vmem:[#allocation2 + $0xf0] sm:$0xff]
      %v2609 = vld [vmem:[#allocation2 + $0xf8] sm:$0xff]
      %v2610 = vpack.c.bf16 %v2547, %v2546
      %v2611 = vpack.c.bf16 %v2549, %v2548
      %v2612 = vpack.c.bf16 %v2551, %v2550
      %v2613 = vpack.c.bf16 %v2553, %v2552
      %v2614 = vpack.c.bf16 %v2555, %v2554
      %v2615 = vpack.c.bf16 %v2557, %v2556
      %v2616 = vpack.c.bf16 %v2559, %v2558
      %v2617 = vpack.c.bf16 %v2561, %v2560
      %v2618 = vpack.c.bf16 %v2563, %v2562
      %v2619 = vpack.c.bf16 %v2565, %v2564
      %v2620 = vpack.c.bf16 %v2567, %v2566
      %v2621 = vpack.c.bf16 %v2569, %v2568
      %v2622 = vpack.c.bf16 %v2571, %v2570
      %v2623 = vpack.c.bf16 %v2573, %v2572
      %v2624 = vpack.c.bf16 %v2575, %v2574
      %v2625 = vpack.c.bf16 %v2577, %v2576
      %s2626 = scalar_lea.vmem %s3, 12
      %v2627 = vld [vmem:[%s2626] sm:$0xf]
      %v2629 = vsel %vm1245, %v2610, 0
      %v2632 = vsel %vm1245, %v2611, 0
      %v2635 = vsel %vm1245, %v2612, 0
      %v2638 = vsel %vm1245, %v2613, 0
      %v2641 = vsel %vm1245, %v2614, 0
      %v2644 = vsel %vm1245, %v2615, 0
      %v2647 = vsel %vm1245, %v2616, 0
      %v2650 = vsel %vm1245, %v2617, 0
      %v2653 = vsel %vm1245, %v2618, 0
      %v2656 = vsel %vm1245, %v2619, 0
      %v2659 = vsel %vm1245, %v2620, 0
      %v2662 = vsel %vm1245, %v2621, 0
      %v2665 = vsel %vm1245, %v2622, 0
      %v2668 = vsel %vm1245, %v2623, 0
      %v2671 = vsel %vm1245, %v2624, 0
      %v2674 = vsel %vm1245, %v2625, 0
      %v2677 = vsel %vm1504, %v2627, 0
      %2679 = vmatprep.subr.bf16.mxu0 0
      %2680 = vmatpush1.bf16.msra.mxu0 0
      %2681 = vmatprep.subr.bf16.mxu0 0
      %2682 = vmatpush1.bf16.msra.mxu0 0
      %2683 = vmatprep.subr.bf16.mxu0 0
      %2684 = vmatpush1.bf16.msra.mxu0 0
      %2685 = vmatprep.subr.bf16.mxu0 0
      %2686 = vmatpush1.bf16.msra.mxu0 0
      %2687 = vmatprep.subr.bf16.mxu0 0
      %2688 = vmatpush1.bf16.msra.mxu0 0
      %2689 = vmatprep.subr.bf16.mxu0 0
      %2690 = vmatpush1.bf16.msra.mxu0 0
      %2691 = vmatprep.subr.bf16.mxu0 0
      %2692 = vmatpush1.bf16.msra.mxu0 0
      %2693 = vmatprep.subr.bf16.mxu0 0
      %2694 = vmatpush1.bf16.msra.mxu0 %v2677
      %2695 = vmatprep.subr.bf16.mxu0 0
      %2696 = vmatpush2.bf16.msra.mxu0 0
      %2697 = vmatprep.subr.bf16.mxu0 0
      %2698 = vmatpush2.bf16.msra.mxu0 0
      %2699 = vmatprep.subr.bf16.mxu0 0
      %2700 = vmatpush2.bf16.msra.mxu0 0
      %2701 = vmatprep.subr.bf16.mxu0 0
      %2702 = vmatpush2.bf16.msra.mxu0 0
      %2703 = vmatprep.subr.bf16.mxu0 0
      %2704 = vmatpush2.bf16.msra.mxu0 0
      %2705 = vmatprep.subr.bf16.mxu0 0
      %2706 = vmatpush2.bf16.msra.mxu0 0
      %2707 = vmatprep.subr.bf16.mxu0 0
      %2708 = vmatpush2.bf16.msra.mxu0 0
      %2709 = vmatprep.subr.bf16.mxu0 0
      %2710 = vmatpush2.bf16.msra.mxu0 0
      %2711 = vmatprep.mubr.bf16.mxu0 0
      %2712 = vmatmul.mubr.bf16.gmra.mxu0 %v2629
      %v2713 = vpop.f32.mrf.mxu0
      %v2714 = vadd.f32 0.0, %v2713
      %v2715 = vpop.f32.mrf.mxu0
      %v2716 = vpop.f32.mrf.mxu0
      %v2717 = vadd.f32 0.0, %v2716
      %v2718 = vpop.f32.mrf.mxu0
      %2719 = vmatprep.mubr.bf16.mxu0 0
      %2720 = vmatmul.mubr.bf16.gmra.mxu0 %v2632
      %v2721 = vpop.f32.mrf.mxu0
      %v2722 = vadd.f32 0.0, %v2721
      %v2723 = vpop.f32.mrf.mxu0
      %v2724 = vpop.f32.mrf.mxu0
      %v2725 = vadd.f32 0.0, %v2724
      %v2726 = vpop.f32.mrf.mxu0
      %2727 = vmatprep.mubr.bf16.mxu0 0
      %2728 = vmatmul.mubr.bf16.gmra.mxu0 %v2635
      %v2729 = vpop.f32.mrf.mxu0
      %v2730 = vadd.f32 0.0, %v2729
      %v2731 = vpop.f32.mrf.mxu0
      %v2732 = vpop.f32.mrf.mxu0
      %v2733 = vadd.f32 0.0, %v2732
      %v2734 = vpop.f32.mrf.mxu0
      %2735 = vmatprep.mubr.bf16.mxu0 0
      %2736 = vmatmul.mubr.bf16.gmra.mxu0 %v2638
      %v2737 = vpop.f32.mrf.mxu0
      %v2738 = vadd.f32 0.0, %v2737
      %v2739 = vpop.f32.mrf.mxu0
      %v2740 = vpop.f32.mrf.mxu0
      %v2741 = vadd.f32 0.0, %v2740
      %v2742 = vpop.f32.mrf.mxu0
      %2743 = vmatprep.mubr.bf16.mxu0 0
      %2744 = vmatmul.mubr.bf16.gmra.mxu0 %v2641
      %v2745 = vpop.f32.mrf.mxu0
      %v2746 = vadd.f32 0.0, %v2745
      %v2747 = vpop.f32.mrf.mxu0
      %v2748 = vpop.f32.mrf.mxu0
      %v2749 = vadd.f32 0.0, %v2748
      %v2750 = vpop.f32.mrf.mxu0
      %2751 = vmatprep.mubr.bf16.mxu0 0
      %2752 = vmatmul.mubr.bf16.gmra.mxu0 %v2644
      %v2753 = vpop.f32.mrf.mxu0
      %v2754 = vadd.f32 0.0, %v2753
      %v2755 = vpop.f32.mrf.mxu0
      %v2756 = vpop.f32.mrf.mxu0
      %v2757 = vadd.f32 0.0, %v2756
      %v2758 = vpop.f32.mrf.mxu0
      %2759 = vmatprep.mubr.bf16.mxu0 0
      %2760 = vmatmul.mubr.bf16.gmra.mxu0 %v2647
      %v2761 = vpop.f32.mrf.mxu0
      %v2762 = vadd.f32 0.0, %v2761
      %v2763 = vpop.f32.mrf.mxu0
      %v2764 = vpop.f32.mrf.mxu0
      %v2765 = vadd.f32 0.0, %v2764
      %v2766 = vpop.f32.mrf.mxu0
      %2767 = vmatprep.mubr.bf16.mxu0 0
      %2768 = vmatmul.mubr.bf16.gmra.mxu0 %v2650
      %v2769 = vpop.f32.mrf.mxu0
      %v2770 = vadd.f32 0.0, %v2769
      %v2771 = vpop.f32.mrf.mxu0
      %v2772 = vpop.f32.mrf.mxu0
      %v2773 = vadd.f32 0.0, %v2772
      %v2774 = vpop.f32.mrf.mxu0
      %2775 = vmatprep.mubr.bf16.mxu0 0
      %2776 = vmatmul.mubr.bf16.gmra.mxu0 %v2653
      %v2777 = vpop.f32.mrf.mxu0
      %v2778 = vadd.f32 0.0, %v2777
      %v2779 = vpop.f32.mrf.mxu0
      %v2780 = vpop.f32.mrf.mxu0
      %v2781 = vadd.f32 0.0, %v2780
      %v2782 = vpop.f32.mrf.mxu0
      %2783 = vmatprep.mubr.bf16.mxu0 0
      %2784 = vmatmul.mubr.bf16.gmra.mxu0 %v2656
      %v2785 = vpop.f32.mrf.mxu0
      %v2786 = vadd.f32 0.0, %v2785
      %v2787 = vpop.f32.mrf.mxu0
      %v2788 = vpop.f32.mrf.mxu0
      %v2789 = vadd.f32 0.0, %v2788
      %v2790 = vpop.f32.mrf.mxu0
      %2791 = vmatprep.mubr.bf16.mxu0 0
      %2792 = vmatmul.mubr.bf16.gmra.mxu0 %v2659
      %v2793 = vpop.f32.mrf.mxu0
      %v2794 = vadd.f32 0.0, %v2793
      %v2795 = vpop.f32.mrf.mxu0
      %v2796 = vpop.f32.mrf.mxu0
      %v2797 = vadd.f32 0.0, %v2796
      %v2798 = vpop.f32.mrf.mxu0
      %2799 = vmatprep.mubr.bf16.mxu0 0
      %2800 = vmatmul.mubr.bf16.gmra.mxu0 %v2662
      %v2801 = vpop.f32.mrf.mxu0
      %v2802 = vadd.f32 0.0, %v2801
      %v2803 = vpop.f32.mrf.mxu0
      %v2804 = vpop.f32.mrf.mxu0
      %v2805 = vadd.f32 0.0, %v2804
      %v2806 = vpop.f32.mrf.mxu0
      %2807 = vmatprep.mubr.bf16.mxu0 0
      %2808 = vmatmul.mubr.bf16.gmra.mxu0 %v2665
      %v2809 = vpop.f32.mrf.mxu0
      %v2810 = vadd.f32 0.0, %v2809
      %v2811 = vpop.f32.mrf.mxu0
      %v2812 = vpop.f32.mrf.mxu0
      %v2813 = vadd.f32 0.0, %v2812
      %v2814 = vpop.f32.mrf.mxu0
      %2815 = vmatprep.mubr.bf16.mxu0 0
      %2816 = vmatmul.mubr.bf16.gmra.mxu0 %v2668
      %v2817 = vpop.f32.mrf.mxu0
      %v2818 = vadd.f32 0.0, %v2817
      %v2819 = vpop.f32.mrf.mxu0
      %v2820 = vpop.f32.mrf.mxu0
      %v2821 = vadd.f32 0.0, %v2820
      %v2822 = vpop.f32.mrf.mxu0
      %2823 = vmatprep.mubr.bf16.mxu0 0
      %2824 = vmatmul.mubr.bf16.gmra.mxu0 %v2671
      %v2825 = vpop.f32.mrf.mxu0
      %v2826 = vadd.f32 0.0, %v2825
      %v2827 = vpop.f32.mrf.mxu0
      %v2828 = vpop.f32.mrf.mxu0
      %v2829 = vadd.f32 0.0, %v2828
      %v2830 = vpop.f32.mrf.mxu0
      %2831 = vmatprep.mubr.bf16.mxu0 0
      %2832 = vmatmul.mubr.bf16.gmra.mxu0 %v2674
      %v2833 = vpop.f32.mrf.mxu0
      %v2834 = vadd.f32 0.0, %v2833
      %v2835 = vpop.f32.mrf.mxu0
      %v2836 = vpop.f32.mrf.mxu0
      %v2837 = vadd.f32 0.0, %v2836
      %v2838 = vpop.f32.mrf.mxu0
      %2839 = vdwg.mxu0
      %v2840 = vadd.f32 %v2578, %v2714
      %v2841 = vadd.f32 %v2579, %v2717
      %v2842 = vadd.f32 %v2580, %v2722
      %v2843 = vadd.f32 %v2581, %v2725
      %v2844 = vadd.f32 %v2582, %v2730
      %v2845 = vadd.f32 %v2583, %v2733
      %v2846 = vadd.f32 %v2584, %v2738
      %v2847 = vadd.f32 %v2585, %v2741
      %v2848 = vadd.f32 %v2586, %v2746
      %v2849 = vadd.f32 %v2587, %v2749
      %v2850 = vadd.f32 %v2588, %v2754
      %v2851 = vadd.f32 %v2589, %v2757
      %v2852 = vadd.f32 %v2590, %v2762
      %v2853 = vadd.f32 %v2591, %v2765
      %v2854 = vadd.f32 %v2592, %v2770
      %v2855 = vadd.f32 %v2593, %v2773
      %v2856 = vadd.f32 %v2594, %v2778
      %v2857 = vadd.f32 %v2595, %v2781
      %v2858 = vadd.f32 %v2596, %v2786
      %v2859 = vadd.f32 %v2597, %v2789
      %v2860 = vadd.f32 %v2598, %v2794
      %v2861 = vadd.f32 %v2599, %v2797
      %v2862 = vadd.f32 %v2600, %v2802
      %v2863 = vadd.f32 %v2601, %v2805
      %v2864 = vadd.f32 %v2602, %v2810
      %v2865 = vadd.f32 %v2603, %v2813
      %v2866 = vadd.f32 %v2604, %v2818
      %v2867 = vadd.f32 %v2605, %v2821
      %v2868 = vadd.f32 %v2606, %v2826
      %v2869 = vadd.f32 %v2607, %v2829
      %v2870 = vadd.f32 %v2608, %v2834
      %v2871 = vadd.f32 %v2609, %v2837
      %2872 = vst.msk [vmem:[#allocation2] sm:$0xff] %vm1245, %v2840
      %2873 = vst.msk [vmem:[#allocation2 + $0x8] sm:$0xff] %vm1245, %v2841
      %2874 = vst.msk [vmem:[#allocation2 + $0x10] sm:$0xff] %vm1245, %v2842
      %2875 = vst.msk [vmem:[#allocation2 + $0x18] sm:$0xff] %vm1245, %v2843
      %2876 = vst.msk [vmem:[#allocation2 + $0x20] sm:$0xff] %vm1245, %v2844
      %2877 = vst.msk [vmem:[#allocation2 + $0x28] sm:$0xff] %vm1245, %v2845
      %2878 = vst.msk [vmem:[#allocation2 + $0x30] sm:$0xff] %vm1245, %v2846
      %2879 = vst.msk [vmem:[#allocation2 + $0x38] sm:$0xff] %vm1245, %v2847
      %2880 = vst.msk [vmem:[#allocation2 + $0x40] sm:$0xff] %vm1245, %v2848
      %2881 = vst.msk [vmem:[#allocation2 + $0x48] sm:$0xff] %vm1245, %v2849
      %2882 = vst.msk [vmem:[#allocation2 + $0x50] sm:$0xff] %vm1245, %v2850
      %2883 = vst.msk [vmem:[#allocation2 + $0x58] sm:$0xff] %vm1245, %v2851
      %2884 = vst.msk [vmem:[#allocation2 + $0x60] sm:$0xff] %vm1245, %v2852
      %2885 = vst.msk [vmem:[#allocation2 + $0x68] sm:$0xff] %vm1245, %v2853
      %2886 = vst.msk [vmem:[#allocation2 + $0x70] sm:$0xff] %vm1245, %v2854
      %2887 = vst.msk [vmem:[#allocation2 + $0x78] sm:$0xff] %vm1245, %v2855
      %2888 = vst.msk [vmem:[#allocation2 + $0x80] sm:$0xff] %vm1245, %v2856
      %2889 = vst.msk [vmem:[#allocation2 + $0x88] sm:$0xff] %vm1245, %v2857
      %2890 = vst.msk [vmem:[#allocation2 + $0x90] sm:$0xff] %vm1245, %v2858
      %2891 = vst.msk [vmem:[#allocation2 + $0x98] sm:$0xff] %vm1245, %v2859
      %2892 = vst.msk [vmem:[#allocation2 + $0xa0] sm:$0xff] %vm1245, %v2860
      %2893 = vst.msk [vmem:[#allocation2 + $0xa8] sm:$0xff] %vm1245, %v2861
      %2894 = vst.msk [vmem:[#allocation2 + $0xb0] sm:$0xff] %vm1245, %v2862
      %2895 = vst.msk [vmem:[#allocation2 + $0xb8] sm:$0xff] %vm1245, %v2863
      %2896 = vst.msk [vmem:[#allocation2 + $0xc0] sm:$0xff] %vm1245, %v2864
      %2897 = vst.msk [vmem:[#allocation2 + $0xc8] sm:$0xff] %vm1245, %v2865
      %2898 = vst.msk [vmem:[#allocation2 + $0xd0] sm:$0xff] %vm1245, %v2866
      %2899 = vst.msk [vmem:[#allocation2 + $0xd8] sm:$0xff] %vm1245, %v2867
      %2900 = vst.msk [vmem:[#allocation2 + $0xe0] sm:$0xff] %vm1245, %v2868
      %2901 = vst.msk [vmem:[#allocation2 + $0xe8] sm:$0xff] %vm1245, %v2869
      %2902 = vst.msk [vmem:[#allocation2 + $0xf0] sm:$0xff] %vm1245, %v2870
      %2903 = vst.msk [vmem:[#allocation2 + $0xf8] sm:$0xff] %vm1245, %v2871
      %v2904 = vld [vmem:[#allocation2] sm:$0xff]
      %v2905 = vld [vmem:[#allocation2 + $0x8] sm:$0xff]
      %v2906 = vld [vmem:[#allocation2 + $0x10] sm:$0xff]
      %v2907 = vld [vmem:[#allocation2 + $0x18] sm:$0xff]
      %v2908 = vld [vmem:[#allocation2 + $0x20] sm:$0xff]
      %v2909 = vld [vmem:[#allocation2 + $0x28] sm:$0xff]
      %v2910 = vld [vmem:[#allocation2 + $0x30] sm:$0xff]
      %v2911 = vld [vmem:[#allocation2 + $0x38] sm:$0xff]
      %v2912 = vld [vmem:[#allocation2 + $0x40] sm:$0xff]
      %v2913 = vld [vmem:[#allocation2 + $0x48] sm:$0xff]
      %v2914 = vld [vmem:[#allocation2 + $0x50] sm:$0xff]
      %v2915 = vld [vmem:[#allocation2 + $0x58] sm:$0xff]
      %v2916 = vld [vmem:[#allocation2 + $0x60] sm:$0xff]
      %v2917 = vld [vmem:[#allocation2 + $0x68] sm:$0xff]
      %v2918 = vld [vmem:[#allocation2 + $0x70] sm:$0xff]
      %v2919 = vld [vmem:[#allocation2 + $0x78] sm:$0xff]
      %v2920 = vld [vmem:[#allocation2 + $0x80] sm:$0xff]
      %v2921 = vld [vmem:[#allocation2 + $0x88] sm:$0xff]
      %v2922 = vld [vmem:[#allocation2 + $0x90] sm:$0xff]
      %v2923 = vld [vmem:[#allocation2 + $0x98] sm:$0xff]
      %v2924 = vld [vmem:[#allocation2 + $0xa0] sm:$0xff]
      %v2925 = vld [vmem:[#allocation2 + $0xa8] sm:$0xff]
      %v2926 = vld [vmem:[#allocation2 + $0xb0] sm:$0xff]
      %v2927 = vld [vmem:[#allocation2 + $0xb8] sm:$0xff]
      %v2928 = vld [vmem:[#allocation2 + $0xc0] sm:$0xff]
      %v2929 = vld [vmem:[#allocation2 + $0xc8] sm:$0xff]
      %v2930 = vld [vmem:[#allocation2 + $0xd0] sm:$0xff]
      %v2931 = vld [vmem:[#allocation2 + $0xd8] sm:$0xff]
      %v2932 = vld [vmem:[#allocation2 + $0xe0] sm:$0xff]
      %v2933 = vld [vmem:[#allocation2 + $0xe8] sm:$0xff]
      %v2934 = vld [vmem:[#allocation2 + $0xf0] sm:$0xff]
      %v2935 = vld [vmem:[#allocation2 + $0xf8] sm:$0xff]
      %v2936 = vpack.c.bf16 %v413, %v412
      %v2937 = vpack.c.bf16 %v415, %v414
      %v2938 = vpack.c.bf16 %v417, %v416
      %v2939 = vpack.c.bf16 %v419, %v418
      %v2940 = vpack.c.bf16 %v421, %v420
      %v2941 = vpack.c.bf16 %v423, %v422
      %v2942 = vpack.c.bf16 %v425, %v424
      %v2943 = vpack.c.bf16 %v427, %v426
      %v2944 = vpack.c.bf16 %v429, %v428
      %v2945 = vpack.c.bf16 %v431, %v430
      %v2946 = vpack.c.bf16 %v433, %v432
      %v2947 = vpack.c.bf16 %v435, %v434
      %v2948 = vpack.c.bf16 %v437, %v436
      %v2949 = vpack.c.bf16 %v439, %v438
      %v2950 = vpack.c.bf16 %v441, %v440
      %v2951 = vpack.c.bf16 %v443, %v442
      %s2952 = scalar_lea.vmem %s3, 16
      %v2953 = vld [vmem:[%s2952] sm:$0xf]
      %v2955 = vsel %vm1245, %v2936, 0
      %v2958 = vsel %vm1245, %v2937, 0
      %v2961 = vsel %vm1245, %v2938, 0
      %v2964 = vsel %vm1245, %v2939, 0
      %v2967 = vsel %vm1245, %v2940, 0
      %v2970 = vsel %vm1245, %v2941, 0
      %v2973 = vsel %vm1245, %v2942, 0
      %v2976 = vsel %vm1245, %v2943, 0
      %v2979 = vsel %vm1245, %v2944, 0
      %v2982 = vsel %vm1245, %v2945, 0
      %v2985 = vsel %vm1245, %v2946, 0
      %v2988 = vsel %vm1245, %v2947, 0
      %v2991 = vsel %vm1245, %v2948, 0
      %v2994 = vsel %vm1245, %v2949, 0
      %v2997 = vsel %vm1245, %v2950, 0
      %v3000 = vsel %vm1245, %v2951, 0
      %v3003 = vsel %vm1504, %v2953, 0
      %3005 = vmatprep.subr.bf16.mxu0 0
      %3006 = vmatpush1.bf16.msra.mxu0 0
      %3007 = vmatprep.subr.bf16.mxu0 0
      %3008 = vmatpush1.bf16.msra.mxu0 0
      %3009 = vmatprep.subr.bf16.mxu0 0
      %3010 = vmatpush1.bf16.msra.mxu0 0
      %3011 = vmatprep.subr.bf16.mxu0 0
      %3012 = vmatpush1.bf16.msra.mxu0 0
      %3013 = vmatprep.subr.bf16.mxu0 0
      %3014 = vmatpush1.bf16.msra.mxu0 0
      %3015 = vmatprep.subr.bf16.mxu0 0
      %3016 = vmatpush1.bf16.msra.mxu0 0
      %3017 = vmatprep.subr.bf16.mxu0 0
      %3018 = vmatpush1.bf16.msra.mxu0 0
      %3019 = vmatprep.subr.bf16.mxu0 0
      %3020 = vmatpush1.bf16.msra.mxu0 %v3003
      %3021 = vmatprep.subr.bf16.mxu0 0
      %3022 = vmatpush2.bf16.msra.mxu0 0
      %3023 = vmatprep.subr.bf16.mxu0 0
      %3024 = vmatpush2.bf16.msra.mxu0 0
      %3025 = vmatprep.subr.bf16.mxu0 0
      %3026 = vmatpush2.bf16.msra.mxu0 0
      %3027 = vmatprep.subr.bf16.mxu0 0
      %3028 = vmatpush2.bf16.msra.mxu0 0
      %3029 = vmatprep.subr.bf16.mxu0 0
      %3030 = vmatpush2.bf16.msra.mxu0 0
      %3031 = vmatprep.subr.bf16.mxu0 0
      %3032 = vmatpush2.bf16.msra.mxu0 0
      %3033 = vmatprep.subr.bf16.mxu0 0
      %3034 = vmatpush2.bf16.msra.mxu0 0
      %3035 = vmatprep.subr.bf16.mxu0 0
      %3036 = vmatpush2.bf16.msra.mxu0 0
      %3037 = vmatprep.mubr.bf16.mxu0 0
      %3038 = vmatmul.mubr.bf16.gmra.mxu0 %v2955
      %v3039 = vpop.f32.mrf.mxu0
      %v3040 = vadd.f32 0.0, %v3039
      %v3041 = vpop.f32.mrf.mxu0
      %v3042 = vpop.f32.mrf.mxu0
      %v3043 = vadd.f32 0.0, %v3042
      %v3044 = vpop.f32.mrf.mxu0
      %3045 = vmatprep.mubr.bf16.mxu0 0
      %3046 = vmatmul.mubr.bf16.gmra.mxu0 %v2958
      %v3047 = vpop.f32.mrf.mxu0
      %v3048 = vadd.f32 0.0, %v3047
      %v3049 = vpop.f32.mrf.mxu0
      %v3050 = vpop.f32.mrf.mxu0
      %v3051 = vadd.f32 0.0, %v3050
      %v3052 = vpop.f32.mrf.mxu0
      %3053 = vmatprep.mubr.bf16.mxu0 0
      %3054 = vmatmul.mubr.bf16.gmra.mxu0 %v2961
      %v3055 = vpop.f32.mrf.mxu0
      %v3056 = vadd.f32 0.0, %v3055
      %v3057 = vpop.f32.mrf.mxu0
      %v3058 = vpop.f32.mrf.mxu0
      %v3059 = vadd.f32 0.0, %v3058
      %v3060 = vpop.f32.mrf.mxu0
      %3061 = vmatprep.mubr.bf16.mxu0 0
      %3062 = vmatmul.mubr.bf16.gmra.mxu0 %v2964
      %v3063 = vpop.f32.mrf.mxu0
      %v3064 = vadd.f32 0.0, %v3063
      %v3065 = vpop.f32.mrf.mxu0
      %v3066 = vpop.f32.mrf.mxu0
      %v3067 = vadd.f32 0.0, %v3066
      %v3068 = vpop.f32.mrf.mxu0
      %3069 = vmatprep.mubr.bf16.mxu0 0
      %3070 = vmatmul.mubr.bf16.gmra.mxu0 %v2967
      %v3071 = vpop.f32.mrf.mxu0
      %v3072 = vadd.f32 0.0, %v3071
      %v3073 = vpop.f32.mrf.mxu0
      %v3074 = vpop.f32.mrf.mxu0
      %v3075 = vadd.f32 0.0, %v3074
      %v3076 = vpop.f32.mrf.mxu0
      %3077 = vmatprep.mubr.bf16.mxu0 0
      %3078 = vmatmul.mubr.bf16.gmra.mxu0 %v2970
      %v3079 = vpop.f32.mrf.mxu0
      %v3080 = vadd.f32 0.0, %v3079
      %v3081 = vpop.f32.mrf.mxu0
      %v3082 = vpop.f32.mrf.mxu0
      %v3083 = vadd.f32 0.0, %v3082
      %v3084 = vpop.f32.mrf.mxu0
      %3085 = vmatprep.mubr.bf16.mxu0 0
      %3086 = vmatmul.mubr.bf16.gmra.mxu0 %v2973
      %v3087 = vpop.f32.mrf.mxu0
      %v3088 = vadd.f32 0.0, %v3087
      %v3089 = vpop.f32.mrf.mxu0
      %v3090 = vpop.f32.mrf.mxu0
      %v3091 = vadd.f32 0.0, %v3090
      %v3092 = vpop.f32.mrf.mxu0
      %3093 = vmatprep.mubr.bf16.mxu0 0
      %3094 = vmatmul.mubr.bf16.gmra.mxu0 %v2976
      %v3095 = vpop.f32.mrf.mxu0
      %v3096 = vadd.f32 0.0, %v3095
      %v3097 = vpop.f32.mrf.mxu0
      %v3098 = vpop.f32.mrf.mxu0
      %v3099 = vadd.f32 0.0, %v3098
      %v3100 = vpop.f32.mrf.mxu0
      %3101 = vmatprep.mubr.bf16.mxu0 0
      %3102 = vmatmul.mubr.bf16.gmra.mxu0 %v2979
      %v3103 = vpop.f32.mrf.mxu0
      %v3104 = vadd.f32 0.0, %v3103
      %v3105 = vpop.f32.mrf.mxu0
      %v3106 = vpop.f32.mrf.mxu0
      %v3107 = vadd.f32 0.0, %v3106
      %v3108 = vpop.f32.mrf.mxu0
      %3109 = vmatprep.mubr.bf16.mxu0 0
      %3110 = vmatmul.mubr.bf16.gmra.mxu0 %v2982
      %v3111 = vpop.f32.mrf.mxu0
      %v3112 = vadd.f32 0.0, %v3111
      %v3113 = vpop.f32.mrf.mxu0
      %v3114 = vpop.f32.mrf.mxu0
      %v3115 = vadd.f32 0.0, %v3114
      %v3116 = vpop.f32.mrf.mxu0
      %3117 = vmatprep.mubr.bf16.mxu0 0
      %3118 = vmatmul.mubr.bf16.gmra.mxu0 %v2985
      %v3119 = vpop.f32.mrf.mxu0
      %v3120 = vadd.f32 0.0, %v3119
      %v3121 = vpop.f32.mrf.mxu0
      %v3122 = vpop.f32.mrf.mxu0
      %v3123 = vadd.f32 0.0, %v3122
      %v3124 = vpop.f32.mrf.mxu0
      %3125 = vmatprep.mubr.bf16.mxu0 0
      %3126 = vmatmul.mubr.bf16.gmra.mxu0 %v2988
      %v3127 = vpop.f32.mrf.mxu0
      %v3128 = vadd.f32 0.0, %v3127
      %v3129 = vpop.f32.mrf.mxu0
      %v3130 = vpop.f32.mrf.mxu0
      %v3131 = vadd.f32 0.0, %v3130
      %v3132 = vpop.f32.mrf.mxu0
      %3133 = vmatprep.mubr.bf16.mxu0 0
      %3134 = vmatmul.mubr.bf16.gmra.mxu0 %v2991
      %v3135 = vpop.f32.mrf.mxu0
      %v3136 = vadd.f32 0.0, %v3135
      %v3137 = vpop.f32.mrf.mxu0
      %v3138 = vpop.f32.mrf.mxu0
      %v3139 = vadd.f32 0.0, %v3138
      %v3140 = vpop.f32.mrf.mxu0
      %3141 = vmatprep.mubr.bf16.mxu0 0
      %3142 = vmatmul.mubr.bf16.gmra.mxu0 %v2994
      %v3143 = vpop.f32.mrf.mxu0
      %v3144 = vadd.f32 0.0, %v3143
      %v3145 = vpop.f32.mrf.mxu0
      %v3146 = vpop.f32.mrf.mxu0
      %v3147 = vadd.f32 0.0, %v3146
      %v3148 = vpop.f32.mrf.mxu0
      %3149 = vmatprep.mubr.bf16.mxu0 0
      %3150 = vmatmul.mubr.bf16.gmra.mxu0 %v2997
      %v3151 = vpop.f32.mrf.mxu0
      %v3152 = vadd.f32 0.0, %v3151
      %v3153 = vpop.f32.mrf.mxu0
      %v3154 = vpop.f32.mrf.mxu0
      %v3155 = vadd.f32 0.0, %v3154
      %v3156 = vpop.f32.mrf.mxu0
      %3157 = vmatprep.mubr.bf16.mxu0 0
      %3158 = vmatmul.mubr.bf16.gmra.mxu0 %v3000
      %v3159 = vpop.f32.mrf.mxu0
      %v3160 = vadd.f32 0.0, %v3159
      %v3161 = vpop.f32.mrf.mxu0
      %v3162 = vpop.f32.mrf.mxu0
      %v3163 = vadd.f32 0.0, %v3162
      %v3164 = vpop.f32.mrf.mxu0
      %3165 = vdwg.mxu0
      %v3166 = vadd.f32 %v2904, %v3040
      %v3167 = vadd.f32 %v2905, %v3043
      %v3168 = vadd.f32 %v2906, %v3048
      %v3169 = vadd.f32 %v2907, %v3051
      %v3170 = vadd.f32 %v2908, %v3056
      %v3171 = vadd.f32 %v2909, %v3059
      %v3172 = vadd.f32 %v2910, %v3064
      %v3173 = vadd.f32 %v2911, %v3067
      %v3174 = vadd.f32 %v2912, %v3072
      %v3175 = vadd.f32 %v2913, %v3075
      %v3176 = vadd.f32 %v2914, %v3080
      %v3177 = vadd.f32 %v2915, %v3083
      %v3178 = vadd.f32 %v2916, %v3088
      %v3179 = vadd.f32 %v2917, %v3091
      %v3180 = vadd.f32 %v2918, %v3096
      %v3181 = vadd.f32 %v2919, %v3099
      %v3182 = vadd.f32 %v2920, %v3104
      %v3183 = vadd.f32 %v2921, %v3107
      %v3184 = vadd.f32 %v2922, %v3112
      %v3185 = vadd.f32 %v2923, %v3115
      %v3186 = vadd.f32 %v2924, %v3120
      %v3187 = vadd.f32 %v2925, %v3123
      %v3188 = vadd.f32 %v2926, %v3128
      %v3189 = vadd.f32 %v2927, %v3131
      %v3190 = vadd.f32 %v2928, %v3136
      %v3191 = vadd.f32 %v2929, %v3139
      %v3192 = vadd.f32 %v2930, %v3144
      %v3193 = vadd.f32 %v2931, %v3147
      %v3194 = vadd.f32 %v2932, %v3152
      %v3195 = vadd.f32 %v2933, %v3155
      %v3196 = vadd.f32 %v2934, %v3160
      %v3197 = vadd.f32 %v2935, %v3163
      %3198 = vst.msk [vmem:[#allocation2] sm:$0xff] %vm1245, %v3166
      %3199 = vst.msk [vmem:[#allocation2 + $0x8] sm:$0xff] %vm1245, %v3167
      %3200 = vst.msk [vmem:[#allocation2 + $0x10] sm:$0xff] %vm1245, %v3168
      %3201 = vst.msk [vmem:[#allocation2 + $0x18] sm:$0xff] %vm1245, %v3169
      %3202 = vst.msk [vmem:[#allocation2 + $0x20] sm:$0xff] %vm1245, %v3170
      %3203 = vst.msk [vmem:[#allocation2 + $0x28] sm:$0xff] %vm1245, %v3171
      %3204 = vst.msk [vmem:[#allocation2 + $0x30] sm:$0xff] %vm1245, %v3172
      %3205 = vst.msk [vmem:[#allocation2 + $0x38] sm:$0xff] %vm1245, %v3173
      %3206 = vst.msk [vmem:[#allocation2 + $0x40] sm:$0xff] %vm1245, %v3174
      %3207 = vst.msk [vmem:[#allocation2 + $0x48] sm:$0xff] %vm1245, %v3175
      %3208 = vst.msk [vmem:[#allocation2 + $0x50] sm:$0xff] %vm1245, %v3176
      %3209 = vst.msk [vmem:[#allocation2 + $0x58] sm:$0xff] %vm1245, %v3177
      %3210 = vst.msk [vmem:[#allocation2 + $0x60] sm:$0xff] %vm1245, %v3178
      %3211 = vst.msk [vmem:[#allocation2 + $0x68] sm:$0xff] %vm1245, %v3179
      %3212 = vst.msk [vmem:[#allocation2 + $0x70] sm:$0xff] %vm1245, %v3180
      %3213 = vst.msk [vmem:[#allocation2 + $0x78] sm:$0xff] %vm1245, %v3181
      %3214 = vst.msk [vmem:[#allocation2 + $0x80] sm:$0xff] %vm1245, %v3182
      %3215 = vst.msk [vmem:[#allocation2 + $0x88] sm:$0xff] %vm1245, %v3183
      %3216 = vst.msk [vmem:[#allocation2 + $0x90] sm:$0xff] %vm1245, %v3184
      %3217 = vst.msk [vmem:[#allocation2 + $0x98] sm:$0xff] %vm1245, %v3185
      %3218 = vst.msk [vmem:[#allocation2 + $0xa0] sm:$0xff] %vm1245, %v3186
      %3219 = vst.msk [vmem:[#allocation2 + $0xa8] sm:$0xff] %vm1245, %v3187
      %3220 = vst.msk [vmem:[#allocation2 + $0xb0] sm:$0xff] %vm1245, %v3188
      %3221 = vst.msk [vmem:[#allocation2 + $0xb8] sm:$0xff] %vm1245, %v3189
      %3222 = vst.msk [vmem:[#allocation2 + $0xc0] sm:$0xff] %vm1245, %v3190
      %3223 = vst.msk [vmem:[#allocation2 + $0xc8] sm:$0xff] %vm1245, %v3191
      %3224 = vst.msk [vmem:[#allocation2 + $0xd0] sm:$0xff] %vm1245, %v3192
      %3225 = vst.msk [vmem:[#allocation2 + $0xd8] sm:$0xff] %vm1245, %v3193
      %3226 = vst.msk [vmem:[#allocation2 + $0xe0] sm:$0xff] %vm1245, %v3194
      %3227 = vst.msk [vmem:[#allocation2 + $0xe8] sm:$0xff] %vm1245, %v3195
      %3228 = vst.msk [vmem:[#allocation2 + $0xf0] sm:$0xff] %vm1245, %v3196
      %3229 = vst.msk [vmem:[#allocation2 + $0xf8] sm:$0xff] %vm1245, %v3197
      %v3230 = vmul.f32 %v2154, %v1021
      %v3231 = vmul.f32 %v2153, %v1022
      %v3232 = vmul.f32 %v2152, %v1023
      %v3233 = vmul.f32 %v2151, %v1024
      %v3234 = vmul.f32 %v2150, %v1025
      %v3235 = vmul.f32 %v2149, %v1026
      %v3236 = vmul.f32 %v2148, %v1027
      %v3237 = vmul.f32 %v2147, %v1028
      %v3238 = vmul.f32 %v2146, %v1029
      %v3239 = vmul.f32 %v2145, %v1030
      %v3240 = vmul.f32 %v2144, %v1031
      %v3241 = vmul.f32 %v2143, %v1032
      %v3242 = vmul.f32 %v2142, %v1033
      %v3243 = vmul.f32 %v2141, %v1034
      %v3244 = vmul.f32 %v2140, %v1035
      %v3245 = vmul.f32 %v2139, %v1036
      %v3246 = vmul.f32 %v2138, %v1037
      %v3247 = vmul.f32 %v2137, %v1038
      %v3248 = vmul.f32 %v2136, %v1039
      %v3249 = vmul.f32 %v2135, %v1040
      %v3250 = vmul.f32 %v2134, %v1041
      %v3251 = vmul.f32 %v2133, %v1042
      %v3252 = vmul.f32 %v2132, %v1043
      %v3253 = vmul.f32 %v2131, %v1044
      %v3254 = vmul.f32 %v2130, %v1045
      %v3255 = vmul.f32 %v2129, %v1046
      %v3256 = vmul.f32 %v2128, %v1047
      %v3257 = vmul.f32 %v2127, %v1048
      %v3258 = vmul.f32 %v2126, %v1049
      %v3259 = vmul.f32 %v2125, %v1050
      %v3260 = vmul.f32 %v2124, %v1051
      %v3261 = vmul.f32 %v2155, %v1052
      %v3262 = vld [vmem:[#allocation2] sm:$0xff]
      %v3263 = vld [vmem:[#allocation2 + $0x8] sm:$0xff]
      %v3264 = vld [vmem:[#allocation2 + $0x10] sm:$0xff]
      %v3265 = vld [vmem:[#allocation2 + $0x18] sm:$0xff]
      %v3266 = vld [vmem:[#allocation2 + $0x20] sm:$0xff]
      %v3267 = vld [vmem:[#allocation2 + $0x28] sm:$0xff]
      %v3268 = vld [vmem:[#allocation2 + $0x30] sm:$0xff]
      %v3269 = vld [vmem:[#allocation2 + $0x38] sm:$0xff]
      %v3270 = vld [vmem:[#allocation2 + $0x40] sm:$0xff]
      %v3271 = vld [vmem:[#allocation2 + $0x48] sm:$0xff]
      %v3272 = vld [vmem:[#allocation2 + $0x50] sm:$0xff]
      %v3273 = vld [vmem:[#allocation2 + $0x58] sm:$0xff]
      %v3274 = vld [vmem:[#allocation2 + $0x60] sm:$0xff]
      %v3275 = vld [vmem:[#allocation2 + $0x68] sm:$0xff]
      %v3276 = vld [vmem:[#allocation2 + $0x70] sm:$0xff]
      %v3277 = vld [vmem:[#allocation2 + $0x78] sm:$0xff]
      %v3278 = vld [vmem:[#allocation2 + $0x80] sm:$0xff]
      %v3279 = vld [vmem:[#allocation2 + $0x88] sm:$0xff]
      %v3280 = vld [vmem:[#allocation2 + $0x90] sm:$0xff]
      %v3281 = vld [vmem:[#allocation2 + $0x98] sm:$0xff]
      %v3282 = vld [vmem:[#allocation2 + $0xa0] sm:$0xff]
      %v3283 = vld [vmem:[#allocation2 + $0xa8] sm:$0xff]
      %v3284 = vld [vmem:[#allocation2 + $0xb0] sm:$0xff]
      %v3285 = vld [vmem:[#allocation2 + $0xb8] sm:$0xff]
      %v3286 = vld [vmem:[#allocation2 + $0xc0] sm:$0xff]
      %v3287 = vld [vmem:[#allocation2 + $0xc8] sm:$0xff]
      %v3288 = vld [vmem:[#allocation2 + $0xd0] sm:$0xff]
      %v3289 = vld [vmem:[#allocation2 + $0xd8] sm:$0xff]
      %v3290 = vld [vmem:[#allocation2 + $0xe0] sm:$0xff]
      %v3291 = vld [vmem:[#allocation2 + $0xe8] sm:$0xff]
      %v3292 = vld [vmem:[#allocation2 + $0xf0] sm:$0xff]
      %v3293 = vld [vmem:[#allocation2 + $0xf8] sm:$0xff]
      %v3294 = vpack.c.bf16 %v3231, %v3230
      %v3295 = vpack.c.bf16 %v3233, %v3232
      %v3296 = vpack.c.bf16 %v3235, %v3234
      %v3297 = vpack.c.bf16 %v3237, %v3236
      %v3298 = vpack.c.bf16 %v3239, %v3238
      %v3299 = vpack.c.bf16 %v3241, %v3240
      %v3300 = vpack.c.bf16 %v3243, %v3242
      %v3301 = vpack.c.bf16 %v3245, %v3244
      %v3302 = vpack.c.bf16 %v3247, %v3246
      %v3303 = vpack.c.bf16 %v3249, %v3248
      %v3304 = vpack.c.bf16 %v3251, %v3250
      %v3305 = vpack.c.bf16 %v3253, %v3252
      %v3306 = vpack.c.bf16 %v3255, %v3254
      %v3307 = vpack.c.bf16 %v3257, %v3256
      %v3308 = vpack.c.bf16 %v3259, %v3258
      %v3309 = vpack.c.bf16 %v3261, %v3260
      %s3310 = scalar_lea.vmem %s3, 20
      %v3311 = vld [vmem:[%s3310] sm:$0xf]
      %v3313 = vsel %vm1245, %v3294, 0
      %v3316 = vsel %vm1245, %v3295, 0
      %v3319 = vsel %vm1245, %v3296, 0
      %v3322 = vsel %vm1245, %v3297, 0
      %v3325 = vsel %vm1245, %v3298, 0
      %v3328 = vsel %vm1245, %v3299, 0
      %v3331 = vsel %vm1245, %v3300, 0
      %v3334 = vsel %vm1245, %v3301, 0
      %v3337 = vsel %vm1245, %v3302, 0
      %v3340 = vsel %vm1245, %v3303, 0
      %v3343 = vsel %vm1245, %v3304, 0
      %v3346 = vsel %vm1245, %v3305, 0
      %v3349 = vsel %vm1245, %v3306, 0
      %v3352 = vsel %vm1245, %v3307, 0
      %v3355 = vsel %vm1245, %v3308, 0
      %v3358 = vsel %vm1245, %v3309, 0
      %v3361 = vsel %vm1504, %v3311, 0
      %3363 = vmatprep.subr.bf16.mxu0 0
      %3364 = vmatpush1.bf16.msra.mxu0 0
      %3365 = vmatprep.subr.bf16.mxu0 0
      %3366 = vmatpush1.bf16.msra.mxu0 0
      %3367 = vmatprep.subr.bf16.mxu0 0
      %3368 = vmatpush1.bf16.msra.mxu0 0
      %3369 = vmatprep.subr.bf16.mxu0 0
      %3370 = vmatpush1.bf16.msra.mxu0 0
      %3371 = vmatprep.subr.bf16.mxu0 0
      %3372 = vmatpush1.bf16.msra.mxu0 0
      %3373 = vmatprep.subr.bf16.mxu0 0
      %3374 = vmatpush1.bf16.msra.mxu0 0
      %3375 = vmatprep.subr.bf16.mxu0 0
      %3376 = vmatpush1.bf16.msra.mxu0 0
      %3377 = vmatprep.subr.bf16.mxu0 0
      %3378 = vmatpush1.bf16.msra.mxu0 %v3361
      %3379 = vmatprep.subr.bf16.mxu0 0
      %3380 = vmatpush2.bf16.msra.mxu0 0
      %3381 = vmatprep.subr.bf16.mxu0 0
      %3382 = vmatpush2.bf16.msra.mxu0 0
      %3383 = vmatprep.subr.bf16.mxu0 0
      %3384 = vmatpush2.bf16.msra.mxu0 0
      %3385 = vmatprep.subr.bf16.mxu0 0
      %3386 = vmatpush2.bf16.msra.mxu0 0
      %3387 = vmatprep.subr.bf16.mxu0 0
      %3388 = vmatpush2.bf16.msra.mxu0 0
      %3389 = vmatprep.subr.bf16.mxu0 0
      %3390 = vmatpush2.bf16.msra.mxu0 0
      %3391 = vmatprep.subr.bf16.mxu0 0
      %3392 = vmatpush2.bf16.msra.mxu0 0
      %3393 = vmatprep.subr.bf16.mxu0 0
      %3394 = vmatpush2.bf16.msra.mxu0 0
      %3395 = vmatprep.mubr.bf16.mxu0 0
      %3396 = vmatmul.mubr.bf16.gmra.mxu0 %v3313
      %v3397 = vpop.f32.mrf.mxu0
      %v3398 = vadd.f32 0.0, %v3397
      %v3399 = vpop.f32.mrf.mxu0
      %v3400 = vpop.f32.mrf.mxu0
      %v3401 = vadd.f32 0.0, %v3400
      %v3402 = vpop.f32.mrf.mxu0
      %3403 = vmatprep.mubr.bf16.mxu0 0
      %3404 = vmatmul.mubr.bf16.gmra.mxu0 %v3316
      %v3405 = vpop.f32.mrf.mxu0
      %v3406 = vadd.f32 0.0, %v3405
      %v3407 = vpop.f32.mrf.mxu0
      %v3408 = vpop.f32.mrf.mxu0
      %v3409 = vadd.f32 0.0, %v3408
      %v3410 = vpop.f32.mrf.mxu0
      %3411 = vmatprep.mubr.bf16.mxu0 0
      %3412 = vmatmul.mubr.bf16.gmra.mxu0 %v3319
      %v3413 = vpop.f32.mrf.mxu0
      %v3414 = vadd.f32 0.0, %v3413
      %v3415 = vpop.f32.mrf.mxu0
      %v3416 = vpop.f32.mrf.mxu0
      %v3417 = vadd.f32 0.0, %v3416
      %v3418 = vpop.f32.mrf.mxu0
      %3419 = vmatprep.mubr.bf16.mxu0 0
      %3420 = vmatmul.mubr.bf16.gmra.mxu0 %v3322
      %v3421 = vpop.f32.mrf.mxu0
      %v3422 = vadd.f32 0.0, %v3421
      %v3423 = vpop.f32.mrf.mxu0
      %v3424 = vpop.f32.mrf.mxu0
      %v3425 = vadd.f32 0.0, %v3424
      %v3426 = vpop.f32.mrf.mxu0
      %3427 = vmatprep.mubr.bf16.mxu0 0
      %3428 = vmatmul.mubr.bf16.gmra.mxu0 %v3325
      %v3429 = vpop.f32.mrf.mxu0
      %v3430 = vadd.f32 0.0, %v3429
      %v3431 = vpop.f32.mrf.mxu0
      %v3432 = vpop.f32.mrf.mxu0
      %v3433 = vadd.f32 0.0, %v3432
      %v3434 = vpop.f32.mrf.mxu0
      %3435 = vmatprep.mubr.bf16.mxu0 0
      %3436 = vmatmul.mubr.bf16.gmra.mxu0 %v3328
      %v3437 = vpop.f32.mrf.mxu0
      %v3438 = vadd.f32 0.0, %v3437
      %v3439 = vpop.f32.mrf.mxu0
      %v3440 = vpop.f32.mrf.mxu0
      %v3441 = vadd.f32 0.0, %v3440
      %v3442 = vpop.f32.mrf.mxu0
      %3443 = vmatprep.mubr.bf16.mxu0 0
      %3444 = vmatmul.mubr.bf16.gmra.mxu0 %v3331
      %v3445 = vpop.f32.mrf.mxu0
      %v3446 = vadd.f32 0.0, %v3445
      %v3447 = vpop.f32.mrf.mxu0
      %v3448 = vpop.f32.mrf.mxu0
      %v3449 = vadd.f32 0.0, %v3448
      %v3450 = vpop.f32.mrf.mxu0
      %3451 = vmatprep.mubr.bf16.mxu0 0
      %3452 = vmatmul.mubr.bf16.gmra.mxu0 %v3334
      %v3453 = vpop.f32.mrf.mxu0
      %v3454 = vadd.f32 0.0, %v3453
      %v3455 = vpop.f32.mrf.mxu0
      %v3456 = vpop.f32.mrf.mxu0
      %v3457 = vadd.f32 0.0, %v3456
      %v3458 = vpop.f32.mrf.mxu0
      %3459 = vmatprep.mubr.bf16.mxu0 0
      %3460 = vmatmul.mubr.bf16.gmra.mxu0 %v3337
      %v3461 = vpop.f32.mrf.mxu0
      %v3462 = vadd.f32 0.0, %v3461
      %v3463 = vpop.f32.mrf.mxu0
      %v3464 = vpop.f32.mrf.mxu0
      %v3465 = vadd.f32 0.0, %v3464
      %v3466 = vpop.f32.mrf.mxu0
      %3467 = vmatprep.mubr.bf16.mxu0 0
      %3468 = vmatmul.mubr.bf16.gmra.mxu0 %v3340
      %v3469 = vpop.f32.mrf.mxu0
      %v3470 = vadd.f32 0.0, %v3469
      %v3471 = vpop.f32.mrf.mxu0
      %v3472 = vpop.f32.mrf.mxu0
      %v3473 = vadd.f32 0.0, %v3472
      %v3474 = vpop.f32.mrf.mxu0
      %3475 = vmatprep.mubr.bf16.mxu0 0
      %3476 = vmatmul.mubr.bf16.gmra.mxu0 %v3343
      %v3477 = vpop.f32.mrf.mxu0
      %v3478 = vadd.f32 0.0, %v3477
      %v3479 = vpop.f32.mrf.mxu0
      %v3480 = vpop.f32.mrf.mxu0
      %v3481 = vadd.f32 0.0, %v3480
      %v3482 = vpop.f32.mrf.mxu0
      %3483 = vmatprep.mubr.bf16.mxu0 0
      %3484 = vmatmul.mubr.bf16.gmra.mxu0 %v3346
      %v3485 = vpop.f32.mrf.mxu0
      %v3486 = vadd.f32 0.0, %v3485
      %v3487 = vpop.f32.mrf.mxu0
      %v3488 = vpop.f32.mrf.mxu0
      %v3489 = vadd.f32 0.0, %v3488
      %v3490 = vpop.f32.mrf.mxu0
      %3491 = vmatprep.mubr.bf16.mxu0 0
      %3492 = vmatmul.mubr.bf16.gmra.mxu0 %v3349
      %v3493 = vpop.f32.mrf.mxu0
      %v3494 = vadd.f32 0.0, %v3493
      %v3495 = vpop.f32.mrf.mxu0
      %v3496 = vpop.f32.mrf.mxu0
      %v3497 = vadd.f32 0.0, %v3496
      %v3498 = vpop.f32.mrf.mxu0
      %3499 = vmatprep.mubr.bf16.mxu0 0
      %3500 = vmatmul.mubr.bf16.gmra.mxu0 %v3352
      %v3501 = vpop.f32.mrf.mxu0
      %v3502 = vadd.f32 0.0, %v3501
      %v3503 = vpop.f32.mrf.mxu0
      %v3504 = vpop.f32.mrf.mxu0
      %v3505 = vadd.f32 0.0, %v3504
      %v3506 = vpop.f32.mrf.mxu0
      %3507 = vmatprep.mubr.bf16.mxu0 0
      %3508 = vmatmul.mubr.bf16.gmra.mxu0 %v3355
      %v3509 = vpop.f32.mrf.mxu0
      %v3510 = vadd.f32 0.0, %v3509
      %v3511 = vpop.f32.mrf.mxu0
      %v3512 = vpop.f32.mrf.mxu0
      %v3513 = vadd.f32 0.0, %v3512
      %v3514 = vpop.f32.mrf.mxu0
      %3515 = vmatprep.mubr.bf16.mxu0 0
      %3516 = vmatmul.mubr.bf16.gmra.mxu0 %v3358
      %v3517 = vpop.f32.mrf.mxu0
      %v3518 = vadd.f32 0.0, %v3517
      %v3519 = vpop.f32.mrf.mxu0
      %v3520 = vpop.f32.mrf.mxu0
      %v3521 = vadd.f32 0.0, %v3520
      %v3522 = vpop.f32.mrf.mxu0
      %3523 = vdwg.mxu0
      %v3524 = vadd.f32 %v3262, %v3398
      %v3525 = vadd.f32 %v3263, %v3401
      %v3526 = vadd.f32 %v3264, %v3406
      %v3527 = vadd.f32 %v3265, %v3409
      %v3528 = vadd.f32 %v3266, %v3414
      %v3529 = vadd.f32 %v3267, %v3417
      %v3530 = vadd.f32 %v3268, %v3422
      %v3531 = vadd.f32 %v3269, %v3425
      %v3532 = vadd.f32 %v3270, %v3430
      %v3533 = vadd.f32 %v3271, %v3433
      %v3534 = vadd.f32 %v3272, %v3438
      %v3535 = vadd.f32 %v3273, %v3441
      %v3536 = vadd.f32 %v3274, %v3446
      %v3537 = vadd.f32 %v3275, %v3449
      %v3538 = vadd.f32 %v3276, %v3454
      %v3539 = vadd.f32 %v3277, %v3457
      %v3540 = vadd.f32 %v3278, %v3462
      %v3541 = vadd.f32 %v3279, %v3465
      %v3542 = vadd.f32 %v3280, %v3470
      %v3543 = vadd.f32 %v3281, %v3473
      %v3544 = vadd.f32 %v3282, %v3478
      %v3545 = vadd.f32 %v3283, %v3481
      %v3546 = vadd.f32 %v3284, %v3486
      %v3547 = vadd.f32 %v3285, %v3489
      %v3548 = vadd.f32 %v3286, %v3494
      %v3549 = vadd.f32 %v3287, %v3497
      %v3550 = vadd.f32 %v3288, %v3502
      %v3551 = vadd.f32 %v3289, %v3505
      %v3552 = vadd.f32 %v3290, %v3510
      %v3553 = vadd.f32 %v3291, %v3513
      %v3554 = vadd.f32 %v3292, %v3518
      %v3555 = vadd.f32 %v3293, %v3521
      %3556 = vst.msk [vmem:[#allocation2] sm:$0xff] %vm1245, %v3524
      %3557 = vst.msk [vmem:[#allocation2 + $0x8] sm:$0xff] %vm1245, %v3525
      %3558 = vst.msk [vmem:[#allocation2 + $0x10] sm:$0xff] %vm1245, %v3526
      %3559 = vst.msk [vmem:[#allocation2 + $0x18] sm:$0xff] %vm1245, %v3527
      %3560 = vst.msk [vmem:[#allocation2 + $0x20] sm:$0xff] %vm1245, %v3528
      %3561 = vst.msk [vmem:[#allocation2 + $0x28] sm:$0xff] %vm1245, %v3529
      %3562 = vst.msk [vmem:[#allocation2 + $0x30] sm:$0xff] %vm1245, %v3530
      %3563 = vst.msk [vmem:[#allocation2 + $0x38] sm:$0xff] %vm1245, %v3531
      %3564 = vst.msk [vmem:[#allocation2 + $0x40] sm:$0xff] %vm1245, %v3532
      %3565 = vst.msk [vmem:[#allocation2 + $0x48] sm:$0xff] %vm1245, %v3533
      %3566 = vst.msk [vmem:[#allocation2 + $0x50] sm:$0xff] %vm1245, %v3534
      %3567 = vst.msk [vmem:[#allocation2 + $0x58] sm:$0xff] %vm1245, %v3535
      %3568 = vst.msk [vmem:[#allocation2 + $0x60] sm:$0xff] %vm1245, %v3536
      %3569 = vst.msk [vmem:[#allocation2 + $0x68] sm:$0xff] %vm1245, %v3537
      %3570 = vst.msk [vmem:[#allocation2 + $0x70] sm:$0xff] %vm1245, %v3538
      %3571 = vst.msk [vmem:[#allocation2 + $0x78] sm:$0xff] %vm1245, %v3539
      %3572 = vst.msk [vmem:[#allocation2 + $0x80] sm:$0xff] %vm1245, %v3540
      %3573 = vst.msk [vmem:[#allocation2 + $0x88] sm:$0xff] %vm1245, %v3541
      %3574 = vst.msk [vmem:[#allocation2 + $0x90] sm:$0xff] %vm1245, %v3542
      %3575 = vst.msk [vmem:[#allocation2 + $0x98] sm:$0xff] %vm1245, %v3543
      %3576 = vst.msk [vmem:[#allocation2 + $0xa0] sm:$0xff] %vm1245, %v3544
      %3577 = vst.msk [vmem:[#allocation2 + $0xa8] sm:$0xff] %vm1245, %v3545
      %3578 = vst.msk [vmem:[#allocation2 + $0xb0] sm:$0xff] %vm1245, %v3546
      %3579 = vst.msk [vmem:[#allocation2 + $0xb8] sm:$0xff] %vm1245, %v3547
      %3580 = vst.msk [vmem:[#allocation2 + $0xc0] sm:$0xff] %vm1245, %v3548
      %3581 = vst.msk [vmem:[#allocation2 + $0xc8] sm:$0xff] %vm1245, %v3549
      %3582 = vst.msk [vmem:[#allocation2 + $0xd0] sm:$0xff] %vm1245, %v3550
      %3583 = vst.msk [vmem:[#allocation2 + $0xd8] sm:$0xff] %vm1245, %v3551
      %3584 = vst.msk [vmem:[#allocation2 + $0xe0] sm:$0xff] %vm1245, %v3552
      %3585 = vst.msk [vmem:[#allocation2 + $0xe8] sm:$0xff] %vm1245, %v3553
      %3586 = vst.msk [vmem:[#allocation2 + $0xf0] sm:$0xff] %vm1245, %v3554
      %3587 = vst.msk [vmem:[#allocation2 + $0xf8] sm:$0xff] %vm1245, %v3555
      %v3588 = vmul.f32 %v1213, %v925
      %v3589 = vmul.f32 %v1214, %v926
      %v3590 = vmul.f32 %v1215, %v927
      %v3591 = vmul.f32 %v1216, %v928
      %v3592 = vmul.f32 %v1217, %v929
      %v3593 = vmul.f32 %v1218, %v930
      %v3594 = vmul.f32 %v1219, %v931
      %v3595 = vmul.f32 %v1220, %v932
      %v3596 = vmul.f32 %v1221, %v933
      %v3597 = vmul.f32 %v1222, %v934
      %v3598 = vmul.f32 %v1223, %v935
      %v3599 = vmul.f32 %v1224, %v936
      %v3600 = vmul.f32 %v1225, %v937
      %v3601 = vmul.f32 %v1226, %v938
      %v3602 = vmul.f32 %v1227, %v939
      %v3603 = vmul.f32 %v1228, %v940
      %v3604 = vmul.f32 %v1229, %v941
      %v3605 = vmul.f32 %v1230, %v942
      %v3606 = vmul.f32 %v1231, %v943
      %v3607 = vmul.f32 %v1232, %v944
      %v3608 = vmul.f32 %v1233, %v945
      %v3609 = vmul.f32 %v1234, %v946
      %v3610 = vmul.f32 %v1235, %v947
      %v3611 = vmul.f32 %v1236, %v948
      %v3612 = vmul.f32 %v1237, %v949
      %v3613 = vmul.f32 %v1238, %v950
      %v3614 = vmul.f32 %v1239, %v951
      %v3615 = vmul.f32 %v1240, %v952
      %v3616 = vmul.f32 %v1241, %v953
      %v3617 = vmul.f32 %v1242, %v954
      %v3618 = vmul.f32 %v1243, %v955
      %v3619 = vmul.f32 %v1244, %v956
      %v3620 = vmul.f32 %v1340, %v3588
      %v3621 = vmul.f32 %v1339, %v3589
      %v3622 = vmul.f32 %v1338, %v3590
      %v3623 = vmul.f32 %v1337, %v3591
      %v3624 = vmul.f32 %v1336, %v3592
      %v3625 = vmul.f32 %v1335, %v3593
      %v3626 = vmul.f32 %v1334, %v3594
      %v3627 = vmul.f32 %v1333, %v3595
      %v3628 = vmul.f32 %v1332, %v3596
      %v3629 = vmul.f32 %v1331, %v3597
      %v3630 = vmul.f32 %v1330, %v3598
      %v3631 = vmul.f32 %v1329, %v3599
      %v3632 = vmul.f32 %v1328, %v3600
      %v3633 = vmul.f32 %v1327, %v3601
      %v3634 = vmul.f32 %v1326, %v3602
      %v3635 = vmul.f32 %v1325, %v3603
      %v3636 = vmul.f32 %v1324, %v3604
      %v3637 = vmul.f32 %v1323, %v3605
      %v3638 = vmul.f32 %v1322, %v3606
      %v3639 = vmul.f32 %v1321, %v3607
      %v3640 = vmul.f32 %v1320, %v3608
      %v3641 = vmul.f32 %v1319, %v3609
      %v3642 = vmul.f32 %v1318, %v3610
      %v3643 = vmul.f32 %v1317, %v3611
      %v3644 = vmul.f32 %v1316, %v3612
      %v3645 = vmul.f32 %v1315, %v3613
      %v3646 = vmul.f32 %v1314, %v3614
      %v3647 = vmul.f32 %v1313, %v3615
      %v3648 = vmul.f32 %v1312, %v3616
      %v3649 = vmul.f32 %v1311, %v3617
      %v3650 = vmul.f32 %v1342, %v3618
      %v3651 = vmul.f32 %v1341, %v3619
      %v3652 = vld [vmem:[#allocation2] sm:$0xff]
      %v3653 = vld [vmem:[#allocation2 + $0x8] sm:$0xff]
      %v3654 = vld [vmem:[#allocation2 + $0x10] sm:$0xff]
      %v3655 = vld [vmem:[#allocation2 + $0x18] sm:$0xff]
      %v3656 = vld [vmem:[#allocation2 + $0x20] sm:$0xff]
      %v3657 = vld [vmem:[#allocation2 + $0x28] sm:$0xff]
      %v3658 = vld [vmem:[#allocation2 + $0x30] sm:$0xff]
      %v3659 = vld [vmem:[#allocation2 + $0x38] sm:$0xff]
      %v3660 = vld [vmem:[#allocation2 + $0x40] sm:$0xff]
      %v3661 = vld [vmem:[#allocation2 + $0x48] sm:$0xff]
      %v3662 = vld [vmem:[#allocation2 + $0x50] sm:$0xff]
      %v3663 = vld [vmem:[#allocation2 + $0x58] sm:$0xff]
      %v3664 = vld [vmem:[#allocation2 + $0x60] sm:$0xff]
      %v3665 = vld [vmem:[#allocation2 + $0x68] sm:$0xff]
      %v3666 = vld [vmem:[#allocation2 + $0x70] sm:$0xff]
      %v3667 = vld [vmem:[#allocation2 + $0x78] sm:$0xff]
      %v3668 = vld [vmem:[#allocation2 + $0x80] sm:$0xff]
      %v3669 = vld [vmem:[#allocation2 + $0x88] sm:$0xff]
      %v3670 = vld [vmem:[#allocation2 + $0x90] sm:$0xff]
      %v3671 = vld [vmem:[#allocation2 + $0x98] sm:$0xff]
      %v3672 = vld [vmem:[#allocation2 + $0xa0] sm:$0xff]
      %v3673 = vld [vmem:[#allocation2 + $0xa8] sm:$0xff]
      %v3674 = vld [vmem:[#allocation2 + $0xb0] sm:$0xff]
      %v3675 = vld [vmem:[#allocation2 + $0xb8] sm:$0xff]
      %v3676 = vld [vmem:[#allocation2 + $0xc0] sm:$0xff]
      %v3677 = vld [vmem:[#allocation2 + $0xc8] sm:$0xff]
      %v3678 = vld [vmem:[#allocation2 + $0xd0] sm:$0xff]
      %v3679 = vld [vmem:[#allocation2 + $0xd8] sm:$0xff]
      %v3680 = vld [vmem:[#allocation2 + $0xe0] sm:$0xff]
      %v3681 = vld [vmem:[#allocation2 + $0xe8] sm:$0xff]
      %v3682 = vld [vmem:[#allocation2 + $0xf0] sm:$0xff]
      %v3683 = vld [vmem:[#allocation2 + $0xf8] sm:$0xff]
      %v3684 = vpack.c.bf16 %v3621, %v3620
      %v3685 = vpack.c.bf16 %v3623, %v3622
      %v3686 = vpack.c.bf16 %v3625, %v3624
      %v3687 = vpack.c.bf16 %v3627, %v3626
      %v3688 = vpack.c.bf16 %v3629, %v3628
      %v3689 = vpack.c.bf16 %v3631, %v3630
      %v3690 = vpack.c.bf16 %v3633, %v3632
      %v3691 = vpack.c.bf16 %v3635, %v3634
      %v3692 = vpack.c.bf16 %v3637, %v3636
      %v3693 = vpack.c.bf16 %v3639, %v3638
      %v3694 = vpack.c.bf16 %v3641, %v3640
      %v3695 = vpack.c.bf16 %v3643, %v3642
      %v3696 = vpack.c.bf16 %v3645, %v3644
      %v3697 = vpack.c.bf16 %v3647, %v3646
      %v3698 = vpack.c.bf16 %v3649, %v3648
      %v3699 = vpack.c.bf16 %v3651, %v3650
      %s3700 = scalar_lea.vmem %s3, 24
      %v3701 = vld [vmem:[%s3700] sm:$0xf]
      %v3703 = vsel %vm1245, %v3684, 0
      %v3706 = vsel %vm1245, %v3685, 0
      %v3709 = vsel %vm1245, %v3686, 0
      %v3712 = vsel %vm1245, %v3687, 0
      %v3715 = vsel %vm1245, %v3688, 0
      %v3718 = vsel %vm1245, %v3689, 0
      %v3721 = vsel %vm1245, %v3690, 0
      %v3724 = vsel %vm1245, %v3691, 0
      %v3727 = vsel %vm1245, %v3692, 0
      %v3730 = vsel %vm1245, %v3693, 0
      %v3733 = vsel %vm1245, %v3694, 0
      %v3736 = vsel %vm1245, %v3695, 0
      %v3739 = vsel %vm1245, %v3696, 0
      %v3742 = vsel %vm1245, %v3697, 0
      %v3745 = vsel %vm1245, %v3698, 0
      %v3748 = vsel %vm1245, %v3699, 0
      %v3751 = vsel %vm1504, %v3701, 0
      %3753 = vmatprep.subr.bf16.mxu0 0
      %3754 = vmatpush1.bf16.msra.mxu0 0
      %3755 = vmatprep.subr.bf16.mxu0 0
      %3756 = vmatpush1.bf16.msra.mxu0 0
      %3757 = vmatprep.subr.bf16.mxu0 0
      %3758 = vmatpush1.bf16.msra.mxu0 0
      %3759 = vmatprep.subr.bf16.mxu0 0
      %3760 = vmatpush1.bf16.msra.mxu0 0
      %3761 = vmatprep.subr.bf16.mxu0 0
      %3762 = vmatpush1.bf16.msra.mxu0 0
      %3763 = vmatprep.subr.bf16.mxu0 0
      %3764 = vmatpush1.bf16.msra.mxu0 0
      %3765 = vmatprep.subr.bf16.mxu0 0
      %3766 = vmatpush1.bf16.msra.mxu0 0
      %3767 = vmatprep.subr.bf16.mxu0 0
      %3768 = vmatpush1.bf16.msra.mxu0 %v3751
      %3769 = vmatprep.subr.bf16.mxu0 0
      %3770 = vmatpush2.bf16.msra.mxu0 0
      %3771 = vmatprep.subr.bf16.mxu0 0
      %3772 = vmatpush2.bf16.msra.mxu0 0
      %3773 = vmatprep.subr.bf16.mxu0 0
      %3774 = vmatpush2.bf16.msra.mxu0 0
      %3775 = vmatprep.subr.bf16.mxu0 0
      %3776 = vmatpush2.bf16.msra.mxu0 0
      %3777 = vmatprep.subr.bf16.mxu0 0
      %3778 = vmatpush2.bf16.msra.mxu0 0
      %3779 = vmatprep.subr.bf16.mxu0 0
      %3780 = vmatpush2.bf16.msra.mxu0 0
      %3781 = vmatprep.subr.bf16.mxu0 0
      %3782 = vmatpush2.bf16.msra.mxu0 0
      %3783 = vmatprep.subr.bf16.mxu0 0
      %3784 = vmatpush2.bf16.msra.mxu0 0
      %3785 = vmatprep.mubr.bf16.mxu0 0
      %3786 = vmatmul.mubr.bf16.gmra.mxu0 %v3703
      %v3787 = vpop.f32.mrf.mxu0
      %v3788 = vadd.f32 0.0, %v3787
      %v3789 = vpop.f32.mrf.mxu0
      %v3790 = vpop.f32.mrf.mxu0
      %v3791 = vadd.f32 0.0, %v3790
      %v3792 = vpop.f32.mrf.mxu0
      %3793 = vmatprep.mubr.bf16.mxu0 0
      %3794 = vmatmul.mubr.bf16.gmra.mxu0 %v3706
      %v3795 = vpop.f32.mrf.mxu0
      %v3796 = vadd.f32 0.0, %v3795
      %v3797 = vpop.f32.mrf.mxu0
      %v3798 = vpop.f32.mrf.mxu0
      %v3799 = vadd.f32 0.0, %v3798
      %v3800 = vpop.f32.mrf.mxu0
      %3801 = vmatprep.mubr.bf16.mxu0 0
      %3802 = vmatmul.mubr.bf16.gmra.mxu0 %v3709
      %v3803 = vpop.f32.mrf.mxu0
      %v3804 = vadd.f32 0.0, %v3803
      %v3805 = vpop.f32.mrf.mxu0
      %v3806 = vpop.f32.mrf.mxu0
      %v3807 = vadd.f32 0.0, %v3806
      %v3808 = vpop.f32.mrf.mxu0
      %3809 = vmatprep.mubr.bf16.mxu0 0
      %3810 = vmatmul.mubr.bf16.gmra.mxu0 %v3712
      %v3811 = vpop.f32.mrf.mxu0
      %v3812 = vadd.f32 0.0, %v3811
      %v3813 = vpop.f32.mrf.mxu0
      %v3814 = vpop.f32.mrf.mxu0
      %v3815 = vadd.f32 0.0, %v3814
      %v3816 = vpop.f32.mrf.mxu0
      %3817 = vmatprep.mubr.bf16.mxu0 0
      %3818 = vmatmul.mubr.bf16.gmra.mxu0 %v3715
      %v3819 = vpop.f32.mrf.mxu0
      %v3820 = vadd.f32 0.0, %v3819
      %v3821 = vpop.f32.mrf.mxu0
      %v3822 = vpop.f32.mrf.mxu0
      %v3823 = vadd.f32 0.0, %v3822
      %v3824 = vpop.f32.mrf.mxu0
      %3825 = vmatprep.mubr.bf16.mxu0 0
      %3826 = vmatmul.mubr.bf16.gmra.mxu0 %v3718
      %v3827 = vpop.f32.mrf.mxu0
      %v3828 = vadd.f32 0.0, %v3827
      %v3829 = vpop.f32.mrf.mxu0
      %v3830 = vpop.f32.mrf.mxu0
      %v3831 = vadd.f32 0.0, %v3830
      %v3832 = vpop.f32.mrf.mxu0
      %3833 = vmatprep.mubr.bf16.mxu0 0
      %3834 = vmatmul.mubr.bf16.gmra.mxu0 %v3721
      %v3835 = vpop.f32.mrf.mxu0
      %v3836 = vadd.f32 0.0, %v3835
      %v3837 = vpop.f32.mrf.mxu0
      %v3838 = vpop.f32.mrf.mxu0
      %v3839 = vadd.f32 0.0, %v3838
      %v3840 = vpop.f32.mrf.mxu0
      %3841 = vmatprep.mubr.bf16.mxu0 0
      %3842 = vmatmul.mubr.bf16.gmra.mxu0 %v3724
      %v3843 = vpop.f32.mrf.mxu0
      %v3844 = vadd.f32 0.0, %v3843
      %v3845 = vpop.f32.mrf.mxu0
      %v3846 = vpop.f32.mrf.mxu0
      %v3847 = vadd.f32 0.0, %v3846
      %v3848 = vpop.f32.mrf.mxu0
      %3849 = vmatprep.mubr.bf16.mxu0 0
      %3850 = vmatmul.mubr.bf16.gmra.mxu0 %v3727
      %v3851 = vpop.f32.mrf.mxu0
      %v3852 = vadd.f32 0.0, %v3851
      %v3853 = vpop.f32.mrf.mxu0
      %v3854 = vpop.f32.mrf.mxu0
      %v3855 = vadd.f32 0.0, %v3854
      %v3856 = vpop.f32.mrf.mxu0
      %3857 = vmatprep.mubr.bf16.mxu0 0
      %3858 = vmatmul.mubr.bf16.gmra.mxu0 %v3730
      %v3859 = vpop.f32.mrf.mxu0
      %v3860 = vadd.f32 0.0, %v3859
      %v3861 = vpop.f32.mrf.mxu0
      %v3862 = vpop.f32.mrf.mxu0
      %v3863 = vadd.f32 0.0, %v3862
      %v3864 = vpop.f32.mrf.mxu0
      %3865 = vmatprep.mubr.bf16.mxu0 0
      %3866 = vmatmul.mubr.bf16.gmra.mxu0 %v3733
      %v3867 = vpop.f32.mrf.mxu0
      %v3868 = vadd.f32 0.0, %v3867
      %v3869 = vpop.f32.mrf.mxu0
      %v3870 = vpop.f32.mrf.mxu0
      %v3871 = vadd.f32 0.0, %v3870
      %v3872 = vpop.f32.mrf.mxu0
      %3873 = vmatprep.mubr.bf16.mxu0 0
      %3874 = vmatmul.mubr.bf16.gmra.mxu0 %v3736
      %v3875 = vpop.f32.mrf.mxu0
      %v3876 = vadd.f32 0.0, %v3875
      %v3877 = vpop.f32.mrf.mxu0
      %v3878 = vpop.f32.mrf.mxu0
      %v3879 = vadd.f32 0.0, %v3878
      %v3880 = vpop.f32.mrf.mxu0
      %3881 = vmatprep.mubr.bf16.mxu0 0
      %3882 = vmatmul.mubr.bf16.gmra.mxu0 %v3739
      %v3883 = vpop.f32.mrf.mxu0
      %v3884 = vadd.f32 0.0, %v3883
      %v3885 = vpop.f32.mrf.mxu0
      %v3886 = vpop.f32.mrf.mxu0
      %v3887 = vadd.f32 0.0, %v3886
      %v3888 = vpop.f32.mrf.mxu0
      %3889 = vmatprep.mubr.bf16.mxu0 0
      %3890 = vmatmul.mubr.bf16.gmra.mxu0 %v3742
      %v3891 = vpop.f32.mrf.mxu0
      %v3892 = vadd.f32 0.0, %v3891
      %v3893 = vpop.f32.mrf.mxu0
      %v3894 = vpop.f32.mrf.mxu0
      %v3895 = vadd.f32 0.0, %v3894
      %v3896 = vpop.f32.mrf.mxu0
      %3897 = vmatprep.mubr.bf16.mxu0 0
      %3898 = vmatmul.mubr.bf16.gmra.mxu0 %v3745
      %v3899 = vpop.f32.mrf.mxu0
      %v3900 = vadd.f32 0.0, %v3899
      %v3901 = vpop.f32.mrf.mxu0
      %v3902 = vpop.f32.mrf.mxu0
      %v3903 = vadd.f32 0.0, %v3902
      %v3904 = vpop.f32.mrf.mxu0
      %3905 = vmatprep.mubr.bf16.mxu0 0
      %3906 = vmatmul.mubr.bf16.gmra.mxu0 %v3748
      %v3907 = vpop.f32.mrf.mxu0
      %v3908 = vadd.f32 0.0, %v3907
      %v3909 = vpop.f32.mrf.mxu0
      %v3910 = vpop.f32.mrf.mxu0
      %v3911 = vadd.f32 0.0, %v3910
      %v3912 = vpop.f32.mrf.mxu0
      %3913 = vdwg.mxu0
      %v3914 = vadd.f32 %v3652, %v3788
      %v3915 = vadd.f32 %v3653, %v3791
      %v3916 = vadd.f32 %v3654, %v3796
      %v3917 = vadd.f32 %v3655, %v3799
      %v3918 = vadd.f32 %v3656, %v3804
      %v3919 = vadd.f32 %v3657, %v3807
      %v3920 = vadd.f32 %v3658, %v3812
      %v3921 = vadd.f32 %v3659, %v3815
      %v3922 = vadd.f32 %v3660, %v3820
      %v3923 = vadd.f32 %v3661, %v3823
      %v3924 = vadd.f32 %v3662, %v3828
      %v3925 = vadd.f32 %v3663, %v3831
      %v3926 = vadd.f32 %v3664, %v3836
      %v3927 = vadd.f32 %v3665, %v3839
      %v3928 = vadd.f32 %v3666, %v3844
      %v3929 = vadd.f32 %v3667, %v3847
      %v3930 = vadd.f32 %v3668, %v3852
      %v3931 = vadd.f32 %v3669, %v3855
      %v3932 = vadd.f32 %v3670, %v3860
      %v3933 = vadd.f32 %v3671, %v3863
      %v3934 = vadd.f32 %v3672, %v3868
      %v3935 = vadd.f32 %v3673, %v3871
      %v3936 = vadd.f32 %v3674, %v3876
      %v3937 = vadd.f32 %v3675, %v3879
      %v3938 = vadd.f32 %v3676, %v3884
      %v3939 = vadd.f32 %v3677, %v3887
      %v3940 = vadd.f32 %v3678, %v3892
      %v3941 = vadd.f32 %v3679, %v3895
      %v3942 = vadd.f32 %v3680, %v3900
      %v3943 = vadd.f32 %v3681, %v3903
      %v3944 = vadd.f32 %v3682, %v3908
      %v3945 = vadd.f32 %v3683, %v3911
      %3946 = vst.msk [vmem:[#allocation2] sm:$0xff] %vm1245, %v3914
      %3947 = vst.msk [vmem:[#allocation2 + $0x8] sm:$0xff] %vm1245, %v3915
      %3948 = vst.msk [vmem:[#allocation2 + $0x10] sm:$0xff] %vm1245, %v3916
      %3949 = vst.msk [vmem:[#allocation2 + $0x18] sm:$0xff] %vm1245, %v3917
      %3950 = vst.msk [vmem:[#allocation2 + $0x20] sm:$0xff] %vm1245, %v3918
      %3951 = vst.msk [vmem:[#allocation2 + $0x28] sm:$0xff] %vm1245, %v3919
      %3952 = vst.msk [vmem:[#allocation2 + $0x30] sm:$0xff] %vm1245, %v3920
      %3953 = vst.msk [vmem:[#allocation2 + $0x38] sm:$0xff] %vm1245, %v3921
      %3954 = vst.msk [vmem:[#allocation2 + $0x40] sm:$0xff] %vm1245, %v3922
      %3955 = vst.msk [vmem:[#allocation2 + $0x48] sm:$0xff] %vm1245, %v3923
      %3956 = vst.msk [vmem:[#allocation2 + $0x50] sm:$0xff] %vm1245, %v3924
      %3957 = vst.msk [vmem:[#allocation2 + $0x58] sm:$0xff] %vm1245, %v3925
      %3958 = vst.msk [vmem:[#allocation2 + $0x60] sm:$0xff] %vm1245, %v3926
      %3959 = vst.msk [vmem:[#allocation2 + $0x68] sm:$0xff] %vm1245, %v3927
      %3960 = vst.msk [vmem:[#allocation2 + $0x70] sm:$0xff] %vm1245, %v3928
      %3961 = vst.msk [vmem:[#allocation2 + $0x78] sm:$0xff] %vm1245, %v3929
      %3962 = vst.msk [vmem:[#allocation2 + $0x80] sm:$0xff] %vm1245, %v3930
      %3963 = vst.msk [vmem:[#allocation2 + $0x88] sm:$0xff] %vm1245, %v3931
      %3964 = vst.msk [vmem:[#allocation2 + $0x90] sm:$0xff] %vm1245, %v3932
      %3965 = vst.msk [vmem:[#allocation2 + $0x98] sm:$0xff] %vm1245, %v3933
      %3966 = vst.msk [vmem:[#allocation2 + $0xa0] sm:$0xff] %vm1245, %v3934
      %3967 = vst.msk [vmem:[#allocation2 + $0xa8] sm:$0xff] %vm1245, %v3935
      %3968 = vst.msk [vmem:[#allocation2 + $0xb0] sm:$0xff] %vm1245, %v3936
      %3969 = vst.msk [vmem:[#allocation2 + $0xb8] sm:$0xff] %vm1245, %v3937
      %3970 = vst.msk [vmem:[#allocation2 + $0xc0] sm:$0xff] %vm1245, %v3938
      %3971 = vst.msk [vmem:[#allocation2 + $0xc8] sm:$0xff] %vm1245, %v3939
      %3972 = vst.msk [vmem:[#allocation2 + $0xd0] sm:$0xff] %vm1245, %v3940
      %3973 = vst.msk [vmem:[#allocation2 + $0xd8] sm:$0xff] %vm1245, %v3941
      %3974 = vst.msk [vmem:[#allocation2 + $0xe0] sm:$0xff] %vm1245, %v3942
      %3975 = vst.msk [vmem:[#allocation2 + $0xe8] sm:$0xff] %vm1245, %v3943
      %3976 = vst.msk [vmem:[#allocation2 + $0xf0] sm:$0xff] %vm1245, %v3944
      %3977 = vst.msk [vmem:[#allocation2 + $0xf8] sm:$0xff] %vm1245, %v3945
      %v3978 = vmul.f32 %v414, %v1213
      %v3979 = vmul.f32 %v415, %v1214
      %v3980 = vmul.f32 %v416, %v1215
      %v3981 = vmul.f32 %v417, %v1216
      %v3982 = vmul.f32 %v418, %v1217
      %v3983 = vmul.f32 %v419, %v1218
      %v3984 = vmul.f32 %v420, %v1219
      %v3985 = vmul.f32 %v421, %v1220
      %v3986 = vmul.f32 %v422, %v1221
      %v3987 = vmul.f32 %v423, %v1222
      %v3988 = vmul.f32 %v424, %v1223
      %v3989 = vmul.f32 %v425, %v1224
      %v3990 = vmul.f32 %v426, %v1225
      %v3991 = vmul.f32 %v427, %v1226
      %v3992 = vmul.f32 %v428, %v1227
      %v3993 = vmul.f32 %v429, %v1228
      %v3994 = vmul.f32 %v430, %v1229
      %v3995 = vmul.f32 %v431, %v1230
      %v3996 = vmul.f32 %v432, %v1231
      %v3997 = vmul.f32 %v433, %v1232
      %v3998 = vmul.f32 %v434, %v1233
      %v3999 = vmul.f32 %v435, %v1234
      %v4000 = vmul.f32 %v436, %v1235
      %v4001 = vmul.f32 %v437, %v1236
      %v4002 = vmul.f32 %v438, %v1237
      %v4003 = vmul.f32 %v439, %v1238
      %v4004 = vmul.f32 %v440, %v1239
      %v4005 = vmul.f32 %v441, %v1240
      %v4006 = vmul.f32 %v442, %v1241
      %v4007 = vmul.f32 %v443, %v1242
      %v4008 = vmul.f32 %v412, %v1243
      %v4009 = vmul.f32 %v413, %v1244
      %v4010 = vld [vmem:[#allocation2] sm:$0xff]
      %v4011 = vld [vmem:[#allocation2 + $0x8] sm:$0xff]
      %v4012 = vld [vmem:[#allocation2 + $0x10] sm:$0xff]
      %v4013 = vld [vmem:[#allocation2 + $0x18] sm:$0xff]
      %v4014 = vld [vmem:[#allocation2 + $0x20] sm:$0xff]
      %v4015 = vld [vmem:[#allocation2 + $0x28] sm:$0xff]
      %v4016 = vld [vmem:[#allocation2 + $0x30] sm:$0xff]
      %v4017 = vld [vmem:[#allocation2 + $0x38] sm:$0xff]
      %v4018 = vld [vmem:[#allocation2 + $0x40] sm:$0xff]
      %v4019 = vld [vmem:[#allocation2 + $0x48] sm:$0xff]
      %v4020 = vld [vmem:[#allocation2 + $0x50] sm:$0xff]
      %v4021 = vld [vmem:[#allocation2 + $0x58] sm:$0xff]
      %v4022 = vld [vmem:[#allocation2 + $0x60] sm:$0xff]
      %v4023 = vld [vmem:[#allocation2 + $0x68] sm:$0xff]
      %v4024 = vld [vmem:[#allocation2 + $0x70] sm:$0xff]
      %v4025 = vld [vmem:[#allocation2 + $0x78] sm:$0xff]
      %v4026 = vld [vmem:[#allocation2 + $0x80] sm:$0xff]
      %v4027 = vld [vmem:[#allocation2 + $0x88] sm:$0xff]
      %v4028 = vld [vmem:[#allocation2 + $0x90] sm:$0xff]
      %v4029 = vld [vmem:[#allocation2 + $0x98] sm:$0xff]
      %v4030 = vld [vmem:[#allocation2 + $0xa0] sm:$0xff]
      %v4031 = vld [vmem:[#allocation2 + $0xa8] sm:$0xff]
      %v4032 = vld [vmem:[#allocation2 + $0xb0] sm:$0xff]
      %v4033 = vld [vmem:[#allocation2 + $0xb8] sm:$0xff]
      %v4034 = vld [vmem:[#allocation2 + $0xc0] sm:$0xff]
      %v4035 = vld [vmem:[#allocation2 + $0xc8] sm:$0xff]
      %v4036 = vld [vmem:[#allocation2 + $0xd0] sm:$0xff]
      %v4037 = vld [vmem:[#allocation2 + $0xd8] sm:$0xff]
      %v4038 = vld [vmem:[#allocation2 + $0xe0] sm:$0xff]
      %v4039 = vld [vmem:[#allocation2 + $0xe8] sm:$0xff]
      %v4040 = vld [vmem:[#allocation2 + $0xf0] sm:$0xff]
      %v4041 = vld [vmem:[#allocation2 + $0xf8] sm:$0xff]
      %v4042 = vpack.c.bf16 %v3979, %v3978
      %v4043 = vpack.c.bf16 %v3981, %v3980
      %v4044 = vpack.c.bf16 %v3983, %v3982
      %v4045 = vpack.c.bf16 %v3985, %v3984
      %v4046 = vpack.c.bf16 %v3987, %v3986
      %v4047 = vpack.c.bf16 %v3989, %v3988
      %v4048 = vpack.c.bf16 %v3991, %v3990
      %v4049 = vpack.c.bf16 %v3993, %v3992
      %v4050 = vpack.c.bf16 %v3995, %v3994
      %v4051 = vpack.c.bf16 %v3997, %v3996
      %v4052 = vpack.c.bf16 %v3999, %v3998
      %v4053 = vpack.c.bf16 %v4001, %v4000
      %v4054 = vpack.c.bf16 %v4003, %v4002
      %v4055 = vpack.c.bf16 %v4005, %v4004
      %v4056 = vpack.c.bf16 %v4007, %v4006
      %v4057 = vpack.c.bf16 %v4009, %v4008
      %s4058 = scalar_lea.vmem %s3, 28
      %v4059 = vld [vmem:[%s4058] sm:$0xf]
      %v4061 = vsel %vm1245, %v4042, 0
      %v4064 = vsel %vm1245, %v4043, 0
      %v4067 = vsel %vm1245, %v4044, 0
      %v4070 = vsel %vm1245, %v4045, 0
      %v4073 = vsel %vm1245, %v4046, 0
      %v4076 = vsel %vm1245, %v4047, 0
      %v4079 = vsel %vm1245, %v4048, 0
      %v4082 = vsel %vm1245, %v4049, 0
      %v4085 = vsel %vm1245, %v4050, 0
      %v4088 = vsel %vm1245, %v4051, 0
      %v4091 = vsel %vm1245, %v4052, 0
      %v4094 = vsel %vm1245, %v4053, 0
      %v4097 = vsel %vm1245, %v4054, 0
      %v4100 = vsel %vm1245, %v4055, 0
      %v4103 = vsel %vm1245, %v4056, 0
      %v4106 = vsel %vm1245, %v4057, 0
      %v4109 = vsel %vm1504, %v4059, 0
      %4111 = vmatprep.subr.bf16.mxu0 0
      %4112 = vmatpush1.bf16.msra.mxu0 0
      %4113 = vmatprep.subr.bf16.mxu0 0
      %4114 = vmatpush1.bf16.msra.mxu0 0
      %4115 = vmatprep.subr.bf16.mxu0 0
      %4116 = vmatpush1.bf16.msra.mxu0 0
      %4117 = vmatprep.subr.bf16.mxu0 0
      %4118 = vmatpush1.bf16.msra.mxu0 0
      %4119 = vmatprep.subr.bf16.mxu0 0
      %4120 = vmatpush1.bf16.msra.mxu0 0
      %4121 = vmatprep.subr.bf16.mxu0 0
      %4122 = vmatpush1.bf16.msra.mxu0 0
      %4123 = vmatprep.subr.bf16.mxu0 0
      %4124 = vmatpush1.bf16.msra.mxu0 0
      %4125 = vmatprep.subr.bf16.mxu0 0
      %4126 = vmatpush1.bf16.msra.mxu0 %v4109
      %4127 = vmatprep.subr.bf16.mxu0 0
      %4128 = vmatpush2.bf16.msra.mxu0 0
      %4129 = vmatprep.subr.bf16.mxu0 0
      %4130 = vmatpush2.bf16.msra.mxu0 0
      %4131 = vmatprep.subr.bf16.mxu0 0
      %4132 = vmatpush2.bf16.msra.mxu0 0
      %4133 = vmatprep.subr.bf16.mxu0 0
      %4134 = vmatpush2.bf16.msra.mxu0 0
      %4135 = vmatprep.subr.bf16.mxu0 0
      %4136 = vmatpush2.bf16.msra.mxu0 0
      %4137 = vmatprep.subr.bf16.mxu0 0
      %4138 = vmatpush2.bf16.msra.mxu0 0
      %4139 = vmatprep.subr.bf16.mxu0 0
      %4140 = vmatpush2.bf16.msra.mxu0 0
      %4141 = vmatprep.subr.bf16.mxu0 0
      %4142 = vmatpush2.bf16.msra.mxu0 0
      %4143 = vmatprep.mubr.bf16.mxu0 0
      %4144 = vmatmul.mubr.bf16.gmra.mxu0 %v4061
      %v4145 = vpop.f32.mrf.mxu0
      %v4146 = vadd.f32 0.0, %v4145
      %v4147 = vpop.f32.mrf.mxu0
      %v4148 = vpop.f32.mrf.mxu0
      %v4149 = vadd.f32 0.0, %v4148
      %v4150 = vpop.f32.mrf.mxu0
      %4151 = vmatprep.mubr.bf16.mxu0 0
      %4152 = vmatmul.mubr.bf16.gmra.mxu0 %v4064
      %v4153 = vpop.f32.mrf.mxu0
      %v4154 = vadd.f32 0.0, %v4153
      %v4155 = vpop.f32.mrf.mxu0
      %v4156 = vpop.f32.mrf.mxu0
      %v4157 = vadd.f32 0.0, %v4156
      %v4158 = vpop.f32.mrf.mxu0
      %4159 = vmatprep.mubr.bf16.mxu0 0
      %4160 = vmatmul.mubr.bf16.gmra.mxu0 %v4067
      %v4161 = vpop.f32.mrf.mxu0
      %v4162 = vadd.f32 0.0, %v4161
      %v4163 = vpop.f32.mrf.mxu0
      %v4164 = vpop.f32.mrf.mxu0
      %v4165 = vadd.f32 0.0, %v4164
      %v4166 = vpop.f32.mrf.mxu0
      %4167 = vmatprep.mubr.bf16.mxu0 0
      %4168 = vmatmul.mubr.bf16.gmra.mxu0 %v4070
      %v4169 = vpop.f32.mrf.mxu0
      %v4170 = vadd.f32 0.0, %v4169
      %v4171 = vpop.f32.mrf.mxu0
      %v4172 = vpop.f32.mrf.mxu0
      %v4173 = vadd.f32 0.0, %v4172
      %v4174 = vpop.f32.mrf.mxu0
      %4175 = vmatprep.mubr.bf16.mxu0 0
      %4176 = vmatmul.mubr.bf16.gmra.mxu0 %v4073
      %v4177 = vpop.f32.mrf.mxu0
      %v4178 = vadd.f32 0.0, %v4177
      %v4179 = vpop.f32.mrf.mxu0
      %v4180 = vpop.f32.mrf.mxu0
      %v4181 = vadd.f32 0.0, %v4180
      %v4182 = vpop.f32.mrf.mxu0
      %4183 = vmatprep.mubr.bf16.mxu0 0
      %4184 = vmatmul.mubr.bf16.gmra.mxu0 %v4076
      %v4185 = vpop.f32.mrf.mxu0
      %v4186 = vadd.f32 0.0, %v4185
      %v4187 = vpop.f32.mrf.mxu0
      %v4188 = vpop.f32.mrf.mxu0
      %v4189 = vadd.f32 0.0, %v4188
      %v4190 = vpop.f32.mrf.mxu0
      %4191 = vmatprep.mubr.bf16.mxu0 0
      %4192 = vmatmul.mubr.bf16.gmra.mxu0 %v4079
      %v4193 = vpop.f32.mrf.mxu0
      %v4194 = vadd.f32 0.0, %v4193
      %v4195 = vpop.f32.mrf.mxu0
      %v4196 = vpop.f32.mrf.mxu0
      %v4197 = vadd.f32 0.0, %v4196
      %v4198 = vpop.f32.mrf.mxu0
      %4199 = vmatprep.mubr.bf16.mxu0 0
      %4200 = vmatmul.mubr.bf16.gmra.mxu0 %v4082
      %v4201 = vpop.f32.mrf.mxu0
      %v4202 = vadd.f32 0.0, %v4201
      %v4203 = vpop.f32.mrf.mxu0
      %v4204 = vpop.f32.mrf.mxu0
      %v4205 = vadd.f32 0.0, %v4204
      %v4206 = vpop.f32.mrf.mxu0
      %4207 = vmatprep.mubr.bf16.mxu0 0
      %4208 = vmatmul.mubr.bf16.gmra.mxu0 %v4085
      %v4209 = vpop.f32.mrf.mxu0
      %v4210 = vadd.f32 0.0, %v4209
      %v4211 = vpop.f32.mrf.mxu0
      %v4212 = vpop.f32.mrf.mxu0
      %v4213 = vadd.f32 0.0, %v4212
      %v4214 = vpop.f32.mrf.mxu0
      %4215 = vmatprep.mubr.bf16.mxu0 0
      %4216 = vmatmul.mubr.bf16.gmra.mxu0 %v4088
      %v4217 = vpop.f32.mrf.mxu0
      %v4218 = vadd.f32 0.0, %v4217
      %v4219 = vpop.f32.mrf.mxu0
      %v4220 = vpop.f32.mrf.mxu0
      %v4221 = vadd.f32 0.0, %v4220
      %v4222 = vpop.f32.mrf.mxu0
      %4223 = vmatprep.mubr.bf16.mxu0 0
      %4224 = vmatmul.mubr.bf16.gmra.mxu0 %v4091
      %v4225 = vpop.f32.mrf.mxu0
      %v4226 = vadd.f32 0.0, %v4225
      %v4227 = vpop.f32.mrf.mxu0
      %v4228 = vpop.f32.mrf.mxu0
      %v4229 = vadd.f32 0.0, %v4228
      %v4230 = vpop.f32.mrf.mxu0
      %4231 = vmatprep.mubr.bf16.mxu0 0
      %4232 = vmatmul.mubr.bf16.gmra.mxu0 %v4094
      %v4233 = vpop.f32.mrf.mxu0
      %v4234 = vadd.f32 0.0, %v4233
      %v4235 = vpop.f32.mrf.mxu0
      %v4236 = vpop.f32.mrf.mxu0
      %v4237 = vadd.f32 0.0, %v4236
      %v4238 = vpop.f32.mrf.mxu0
      %4239 = vmatprep.mubr.bf16.mxu0 0
      %4240 = vmatmul.mubr.bf16.gmra.mxu0 %v4097
      %v4241 = vpop.f32.mrf.mxu0
      %v4242 = vadd.f32 0.0, %v4241
      %v4243 = vpop.f32.mrf.mxu0
      %v4244 = vpop.f32.mrf.mxu0
      %v4245 = vadd.f32 0.0, %v4244
      %v4246 = vpop.f32.mrf.mxu0
      %4247 = vmatprep.mubr.bf16.mxu0 0
      %4248 = vmatmul.mubr.bf16.gmra.mxu0 %v4100
      %v4249 = vpop.f32.mrf.mxu0
      %v4250 = vadd.f32 0.0, %v4249
      %v4251 = vpop.f32.mrf.mxu0
      %v4252 = vpop.f32.mrf.mxu0
      %v4253 = vadd.f32 0.0, %v4252
      %v4254 = vpop.f32.mrf.mxu0
      %4255 = vmatprep.mubr.bf16.mxu0 0
      %4256 = vmatmul.mubr.bf16.gmra.mxu0 %v4103
      %v4257 = vpop.f32.mrf.mxu0
      %v4258 = vadd.f32 0.0, %v4257
      %v4259 = vpop.f32.mrf.mxu0
      %v4260 = vpop.f32.mrf.mxu0
      %v4261 = vadd.f32 0.0, %v4260
      %v4262 = vpop.f32.mrf.mxu0
      %4263 = vmatprep.mubr.bf16.mxu0 0
      %4264 = vmatmul.mubr.bf16.gmra.mxu0 %v4106
      %v4265 = vpop.f32.mrf.mxu0
      %v4266 = vadd.f32 0.0, %v4265
      %v4267 = vpop.f32.mrf.mxu0
      %v4268 = vpop.f32.mrf.mxu0
      %v4269 = vadd.f32 0.0, %v4268
      %v4270 = vpop.f32.mrf.mxu0
      %4271 = vdwg.mxu0
      %v4272 = vadd.f32 %v4010, %v4146
      %v4273 = vadd.f32 %v4011, %v4149
      %v4274 = vadd.f32 %v4012, %v4154
      %v4275 = vadd.f32 %v4013, %v4157
      %v4276 = vadd.f32 %v4014, %v4162
      %v4277 = vadd.f32 %v4015, %v4165
      %v4278 = vadd.f32 %v4016, %v4170
      %v4279 = vadd.f32 %v4017, %v4173
      %v4280 = vadd.f32 %v4018, %v4178
      %v4281 = vadd.f32 %v4019, %v4181
      %v4282 = vadd.f32 %v4020, %v4186
      %v4283 = vadd.f32 %v4021, %v4189
      %v4284 = vadd.f32 %v4022, %v4194
      %v4285 = vadd.f32 %v4023, %v4197
      %v4286 = vadd.f32 %v4024, %v4202
      %v4287 = vadd.f32 %v4025, %v4205
      %v4288 = vadd.f32 %v4026, %v4210
      %v4289 = vadd.f32 %v4027, %v4213
      %v4290 = vadd.f32 %v4028, %v4218
      %v4291 = vadd.f32 %v4029, %v4221
      %v4292 = vadd.f32 %v4030, %v4226
      %v4293 = vadd.f32 %v4031, %v4229
      %v4294 = vadd.f32 %v4032, %v4234
      %v4295 = vadd.f32 %v4033, %v4237
      %v4296 = vadd.f32 %v4034, %v4242
      %v4297 = vadd.f32 %v4035, %v4245
      %v4298 = vadd.f32 %v4036, %v4250
      %v4299 = vadd.f32 %v4037, %v4253
      %v4300 = vadd.f32 %v4038, %v4258
      %v4301 = vadd.f32 %v4039, %v4261
      %v4302 = vadd.f32 %v4040, %v4266
      %v4303 = vadd.f32 %v4041, %v4269
      %4304 = vst.msk [vmem:[#allocation2] sm:$0xff] %vm1245, %v4272
      %4305 = vst.msk [vmem:[#allocation2 + $0x8] sm:$0xff] %vm1245, %v4273
      %4306 = vst.msk [vmem:[#allocation2 + $0x10] sm:$0xff] %vm1245, %v4274
      %4307 = vst.msk [vmem:[#allocation2 + $0x18] sm:$0xff] %vm1245, %v4275
      %4308 = vst.msk [vmem:[#allocation2 + $0x20] sm:$0xff] %vm1245, %v4276
      %4309 = vst.msk [vmem:[#allocation2 + $0x28] sm:$0xff] %vm1245, %v4277
      %4310 = vst.msk [vmem:[#allocation2 + $0x30] sm:$0xff] %vm1245, %v4278
      %4311 = vst.msk [vmem:[#allocation2 + $0x38] sm:$0xff] %vm1245, %v4279
      %4312 = vst.msk [vmem:[#allocation2 + $0x40] sm:$0xff] %vm1245, %v4280
      %4313 = vst.msk [vmem:[#allocation2 + $0x48] sm:$0xff] %vm1245, %v4281
      %4314 = vst.msk [vmem:[#allocation2 + $0x50] sm:$0xff] %vm1245, %v4282
      %4315 = vst.msk [vmem:[#allocation2 + $0x58] sm:$0xff] %vm1245, %v4283
      %4316 = vst.msk [vmem:[#allocation2 + $0x60] sm:$0xff] %vm1245, %v4284
      %4317 = vst.msk [vmem:[#allocation2 + $0x68] sm:$0xff] %vm1245, %v4285
      %4318 = vst.msk [vmem:[#allocation2 + $0x70] sm:$0xff] %vm1245, %v4286
      %4319 = vst.msk [vmem:[#allocation2 + $0x78] sm:$0xff] %vm1245, %v4287
      %4320 = vst.msk [vmem:[#allocation2 + $0x80] sm:$0xff] %vm1245, %v4288
      %4321 = vst.msk [vmem:[#allocation2 + $0x88] sm:$0xff] %vm1245, %v4289
      %4322 = vst.msk [vmem:[#allocation2 + $0x90] sm:$0xff] %vm1245, %v4290
      %4323 = vst.msk [vmem:[#allocation2 + $0x98] sm:$0xff] %vm1245, %v4291
      %4324 = vst.msk [vmem:[#allocation2 + $0xa0] sm:$0xff] %vm1245, %v4292
      %4325 = vst.msk [vmem:[#allocation2 + $0xa8] sm:$0xff] %vm1245, %v4293
      %4326 = vst.msk [vmem:[#allocation2 + $0xb0] sm:$0xff] %vm1245, %v4294
      %4327 = vst.msk [vmem:[#allocation2 + $0xb8] sm:$0xff] %vm1245, %v4295
      %4328 = vst.msk [vmem:[#allocation2 + $0xc0] sm:$0xff] %vm1245, %v4296
      %4329 = vst.msk [vmem:[#allocation2 + $0xc8] sm:$0xff] %vm1245, %v4297
      %4330 = vst.msk [vmem:[#allocation2 + $0xd0] sm:$0xff] %vm1245, %v4298
      %4331 = vst.msk [vmem:[#allocation2 + $0xd8] sm:$0xff] %vm1245, %v4299
      %4332 = vst.msk [vmem:[#allocation2 + $0xe0] sm:$0xff] %vm1245, %v4300
      %4333 = vst.msk [vmem:[#allocation2 + $0xe8] sm:$0xff] %vm1245, %v4301
      %4334 = vst.msk [vmem:[#allocation2 + $0xf0] sm:$0xff] %vm1245, %v4302
      %4335 = vst.msk [vmem:[#allocation2 + $0xf8] sm:$0xff] %vm1245, %v4303
      %v4336 = vmul.f32 %v1213, %v1021
      %v4337 = vmul.f32 %v1214, %v1022
      %v4338 = vmul.f32 %v1215, %v1023
      %v4339 = vmul.f32 %v1216, %v1024
      %v4340 = vmul.f32 %v1217, %v1025
      %v4341 = vmul.f32 %v1218, %v1026
      %v4342 = vmul.f32 %v1219, %v1027
      %v4343 = vmul.f32 %v1220, %v1028
      %v4344 = vmul.f32 %v1221, %v1029
      %v4345 = vmul.f32 %v1222, %v1030
      %v4346 = vmul.f32 %v1223, %v1031
      %v4347 = vmul.f32 %v1224, %v1032
      %v4348 = vmul.f32 %v1225, %v1033
      %v4349 = vmul.f32 %v1226, %v1034
      %v4350 = vmul.f32 %v1227, %v1035
      %v4351 = vmul.f32 %v1228, %v1036
      %v4352 = vmul.f32 %v1229, %v1037
      %v4353 = vmul.f32 %v1230, %v1038
      %v4354 = vmul.f32 %v1231, %v1039
      %v4355 = vmul.f32 %v1232, %v1040
      %v4356 = vmul.f32 %v1233, %v1041
      %v4357 = vmul.f32 %v1234, %v1042
      %v4358 = vmul.f32 %v1235, %v1043
      %v4359 = vmul.f32 %v1236, %v1044
      %v4360 = vmul.f32 %v1237, %v1045
      %v4361 = vmul.f32 %v1238, %v1046
      %v4362 = vmul.f32 %v1239, %v1047
      %v4363 = vmul.f32 %v1240, %v1048
      %v4364 = vmul.f32 %v1241, %v1049
      %v4365 = vmul.f32 %v1242, %v1050
      %v4366 = vmul.f32 %v1243, %v1051
      %v4367 = vmul.f32 %v1244, %v1052
      %v4368 = vmul.f32 %v2152, %v4336
      %v4369 = vmul.f32 %v2151, %v4337
      %v4370 = vmul.f32 %v2150, %v4338
      %v4371 = vmul.f32 %v2149, %v4339
      %v4372 = vmul.f32 %v2148, %v4340
      %v4373 = vmul.f32 %v2147, %v4341
      %v4374 = vmul.f32 %v2146, %v4342
      %v4375 = vmul.f32 %v2145, %v4343
      %v4376 = vmul.f32 %v2144, %v4344
      %v4377 = vmul.f32 %v2143, %v4345
      %v4378 = vmul.f32 %v2142, %v4346
      %v4379 = vmul.f32 %v2141, %v4347
      %v4380 = vmul.f32 %v2140, %v4348
      %v4381 = vmul.f32 %v2139, %v4349
      %v4382 = vmul.f32 %v2138, %v4350
      %v4383 = vmul.f32 %v2137, %v4351
      %v4384 = vmul.f32 %v2136, %v4352
      %v4385 = vmul.f32 %v2135, %v4353
      %v4386 = vmul.f32 %v2134, %v4354
      %v4387 = vmul.f32 %v2133, %v4355
      %v4388 = vmul.f32 %v2132, %v4356
      %v4389 = vmul.f32 %v2131, %v4357
      %v4390 = vmul.f32 %v2130, %v4358
      %v4391 = vmul.f32 %v2129, %v4359
      %v4392 = vmul.f32 %v2128, %v4360
      %v4393 = vmul.f32 %v2127, %v4361
      %v4394 = vmul.f32 %v2126, %v4362
      %v4395 = vmul.f32 %v2125, %v4363
      %v4396 = vmul.f32 %v2124, %v4364
      %v4397 = vmul.f32 %v2155, %v4365
      %v4398 = vmul.f32 %v2154, %v4366
      %v4399 = vmul.f32 %v2153, %v4367
      %v4400 = vld [vmem:[#allocation2] sm:$0xff]
      %v4401 = vld [vmem:[#allocation2 + $0x8] sm:$0xff]
      %v4402 = vld [vmem:[#allocation2 + $0x10] sm:$0xff]
      %v4403 = vld [vmem:[#allocation2 + $0x18] sm:$0xff]
      %v4404 = vld [vmem:[#allocation2 + $0x20] sm:$0xff]
      %v4405 = vld [vmem:[#allocation2 + $0x28] sm:$0xff]
      %v4406 = vld [vmem:[#allocation2 + $0x30] sm:$0xff]
      %v4407 = vld [vmem:[#allocation2 + $0x38] sm:$0xff]
      %v4408 = vld [vmem:[#allocation2 + $0x40] sm:$0xff]
      %v4409 = vld [vmem:[#allocation2 + $0x48] sm:$0xff]
      %v4410 = vld [vmem:[#allocation2 + $0x50] sm:$0xff]
      %v4411 = vld [vmem:[#allocation2 + $0x58] sm:$0xff]
      %v4412 = vld [vmem:[#allocation2 + $0x60] sm:$0xff]
      %v4413 = vld [vmem:[#allocation2 + $0x68] sm:$0xff]
      %v4414 = vld [vmem:[#allocation2 + $0x70] sm:$0xff]
      %v4415 = vld [vmem:[#allocation2 + $0x78] sm:$0xff]
      %v4416 = vld [vmem:[#allocation2 + $0x80] sm:$0xff]
      %v4417 = vld [vmem:[#allocation2 + $0x88] sm:$0xff]
      %v4418 = vld [vmem:[#allocation2 + $0x90] sm:$0xff]
      %v4419 = vld [vmem:[#allocation2 + $0x98] sm:$0xff]
      %v4420 = vld [vmem:[#allocation2 + $0xa0] sm:$0xff]
      %v4421 = vld [vmem:[#allocation2 + $0xa8] sm:$0xff]
      %v4422 = vld [vmem:[#allocation2 + $0xb0] sm:$0xff]
      %v4423 = vld [vmem:[#allocation2 + $0xb8] sm:$0xff]
      %v4424 = vld [vmem:[#allocation2 + $0xc0] sm:$0xff]
      %v4425 = vld [vmem:[#allocation2 + $0xc8] sm:$0xff]
      %v4426 = vld [vmem:[#allocation2 + $0xd0] sm:$0xff]
      %v4427 = vld [vmem:[#allocation2 + $0xd8] sm:$0xff]
      %v4428 = vld [vmem:[#allocation2 + $0xe0] sm:$0xff]
      %v4429 = vld [vmem:[#allocation2 + $0xe8] sm:$0xff]
      %v4430 = vld [vmem:[#allocation2 + $0xf0] sm:$0xff]
      %v4431 = vld [vmem:[#allocation2 + $0xf8] sm:$0xff]
      %v4432 = vpack.c.bf16 %v4369, %v4368
      %v4433 = vpack.c.bf16 %v4371, %v4370
      %v4434 = vpack.c.bf16 %v4373, %v4372
      %v4435 = vpack.c.bf16 %v4375, %v4374
      %v4436 = vpack.c.bf16 %v4377, %v4376
      %v4437 = vpack.c.bf16 %v4379, %v4378
      %v4438 = vpack.c.bf16 %v4381, %v4380
      %v4439 = vpack.c.bf16 %v4383, %v4382
      %v4440 = vpack.c.bf16 %v4385, %v4384
      %v4441 = vpack.c.bf16 %v4387, %v4386
      %v4442 = vpack.c.bf16 %v4389, %v4388
      %v4443 = vpack.c.bf16 %v4391, %v4390
      %v4444 = vpack.c.bf16 %v4393, %v4392
      %v4445 = vpack.c.bf16 %v4395, %v4394
      %v4446 = vpack.c.bf16 %v4397, %v4396
      %v4447 = vpack.c.bf16 %v4399, %v4398
      %s4448 = scalar_lea.vmem %s3, 32
      %v4449 = vld [vmem:[%s4448] sm:$0xf]
      %v4451 = vsel %vm1245, %v4432, 0
      %v4454 = vsel %vm1245, %v4433, 0
      %v4457 = vsel %vm1245, %v4434, 0
      %v4460 = vsel %vm1245, %v4435, 0
      %v4463 = vsel %vm1245, %v4436, 0
      %v4466 = vsel %vm1245, %v4437, 0
      %v4469 = vsel %vm1245, %v4438, 0
      %v4472 = vsel %vm1245, %v4439, 0
      %v4475 = vsel %vm1245, %v4440, 0
      %v4478 = vsel %vm1245, %v4441, 0
      %v4481 = vsel %vm1245, %v4442, 0
      %v4484 = vsel %vm1245, %v4443, 0
      %v4487 = vsel %vm1245, %v4444, 0
      %v4490 = vsel %vm1245, %v4445, 0
      %v4493 = vsel %vm1245, %v4446, 0
      %v4496 = vsel %vm1245, %v4447, 0
      %v4499 = vsel %vm1504, %v4449, 0
      %4501 = vmatprep.subr.bf16.mxu0 0
      %4502 = vmatpush1.bf16.msra.mxu0 0
      %4503 = vmatprep.subr.bf16.mxu0 0
      %4504 = vmatpush1.bf16.msra.mxu0 0
      %4505 = vmatprep.subr.bf16.mxu0 0
      %4506 = vmatpush1.bf16.msra.mxu0 0
      %4507 = vmatprep.subr.bf16.mxu0 0
      %4508 = vmatpush1.bf16.msra.mxu0 0
      %4509 = vmatprep.subr.bf16.mxu0 0
      %4510 = vmatpush1.bf16.msra.mxu0 0
      %4511 = vmatprep.subr.bf16.mxu0 0
      %4512 = vmatpush1.bf16.msra.mxu0 0
      %4513 = vmatprep.subr.bf16.mxu0 0
      %4514 = vmatpush1.bf16.msra.mxu0 0
      %4515 = vmatprep.subr.bf16.mxu0 0
      %4516 = vmatpush1.bf16.msra.mxu0 %v4499
      %4517 = vmatprep.subr.bf16.mxu0 0
      %4518 = vmatpush2.bf16.msra.mxu0 0
      %4519 = vmatprep.subr.bf16.mxu0 0
      %4520 = vmatpush2.bf16.msra.mxu0 0
      %4521 = vmatprep.subr.bf16.mxu0 0
      %4522 = vmatpush2.bf16.msra.mxu0 0
      %4523 = vmatprep.subr.bf16.mxu0 0
      %4524 = vmatpush2.bf16.msra.mxu0 0
      %4525 = vmatprep.subr.bf16.mxu0 0
      %4526 = vmatpush2.bf16.msra.mxu0 0
      %4527 = vmatprep.subr.bf16.mxu0 0
      %4528 = vmatpush2.bf16.msra.mxu0 0
      %4529 = vmatprep.subr.bf16.mxu0 0
      %4530 = vmatpush2.bf16.msra.mxu0 0
      %4531 = vmatprep.subr.bf16.mxu0 0
      %4532 = vmatpush2.bf16.msra.mxu0 0
      %4533 = vmatprep.mubr.bf16.mxu0 0
      %4534 = vmatmul.mubr.bf16.gmra.mxu0 %v4451
      %v4535 = vpop.f32.mrf.mxu0
      %v4536 = vadd.f32 0.0, %v4535
      %v4537 = vpop.f32.mrf.mxu0
      %v4538 = vpop.f32.mrf.mxu0
      %v4539 = vadd.f32 0.0, %v4538
      %v4540 = vpop.f32.mrf.mxu0
      %4541 = vmatprep.mubr.bf16.mxu0 0
      %4542 = vmatmul.mubr.bf16.gmra.mxu0 %v4454
      %v4543 = vpop.f32.mrf.mxu0
      %v4544 = vadd.f32 0.0, %v4543
      %v4545 = vpop.f32.mrf.mxu0
      %v4546 = vpop.f32.mrf.mxu0
      %v4547 = vadd.f32 0.0, %v4546
      %v4548 = vpop.f32.mrf.mxu0
      %4549 = vmatprep.mubr.bf16.mxu0 0
      %4550 = vmatmul.mubr.bf16.gmra.mxu0 %v4457
      %v4551 = vpop.f32.mrf.mxu0
      %v4552 = vadd.f32 0.0, %v4551
      %v4553 = vpop.f32.mrf.mxu0
      %v4554 = vpop.f32.mrf.mxu0
      %v4555 = vadd.f32 0.0, %v4554
      %v4556 = vpop.f32.mrf.mxu0
      %4557 = vmatprep.mubr.bf16.mxu0 0
      %4558 = vmatmul.mubr.bf16.gmra.mxu0 %v4460
      %v4559 = vpop.f32.mrf.mxu0
      %v4560 = vadd.f32 0.0, %v4559
      %v4561 = vpop.f32.mrf.mxu0
      %v4562 = vpop.f32.mrf.mxu0
      %v4563 = vadd.f32 0.0, %v4562
      %v4564 = vpop.f32.mrf.mxu0
      %4565 = vmatprep.mubr.bf16.mxu0 0
      %4566 = vmatmul.mubr.bf16.gmra.mxu0 %v4463
      %v4567 = vpop.f32.mrf.mxu0
      %v4568 = vadd.f32 0.0, %v4567
      %v4569 = vpop.f32.mrf.mxu0
      %v4570 = vpop.f32.mrf.mxu0
      %v4571 = vadd.f32 0.0, %v4570
      %v4572 = vpop.f32.mrf.mxu0
      %4573 = vmatprep.mubr.bf16.mxu0 0
      %4574 = vmatmul.mubr.bf16.gmra.mxu0 %v4466
      %v4575 = vpop.f32.mrf.mxu0
      %v4576 = vadd.f32 0.0, %v4575
      %v4577 = vpop.f32.mrf.mxu0
      %v4578 = vpop.f32.mrf.mxu0
      %v4579 = vadd.f32 0.0, %v4578
      %v4580 = vpop.f32.mrf.mxu0
      %4581 = vmatprep.mubr.bf16.mxu0 0
      %4582 = vmatmul.mubr.bf16.gmra.mxu0 %v4469
      %v4583 = vpop.f32.mrf.mxu0
      %v4584 = vadd.f32 0.0, %v4583
      %v4585 = vpop.f32.mrf.mxu0
      %v4586 = vpop.f32.mrf.mxu0
      %v4587 = vadd.f32 0.0, %v4586
      %v4588 = vpop.f32.mrf.mxu0
      %4589 = vmatprep.mubr.bf16.mxu0 0
      %4590 = vmatmul.mubr.bf16.gmra.mxu0 %v4472
      %v4591 = vpop.f32.mrf.mxu0
      %v4592 = vadd.f32 0.0, %v4591
      %v4593 = vpop.f32.mrf.mxu0
      %v4594 = vpop.f32.mrf.mxu0
      %v4595 = vadd.f32 0.0, %v4594
      %v4596 = vpop.f32.mrf.mxu0
      %4597 = vmatprep.mubr.bf16.mxu0 0
      %4598 = vmatmul.mubr.bf16.gmra.mxu0 %v4475
      %v4599 = vpop.f32.mrf.mxu0
      %v4600 = vadd.f32 0.0, %v4599
      %v4601 = vpop.f32.mrf.mxu0
      %v4602 = vpop.f32.mrf.mxu0
      %v4603 = vadd.f32 0.0, %v4602
      %v4604 = vpop.f32.mrf.mxu0
      %4605 = vmatprep.mubr.bf16.mxu0 0
      %4606 = vmatmul.mubr.bf16.gmra.mxu0 %v4478
      %v4607 = vpop.f32.mrf.mxu0
      %v4608 = vadd.f32 0.0, %v4607
      %v4609 = vpop.f32.mrf.mxu0
      %v4610 = vpop.f32.mrf.mxu0
      %v4611 = vadd.f32 0.0, %v4610
      %v4612 = vpop.f32.mrf.mxu0
      %4613 = vmatprep.mubr.bf16.mxu0 0
      %4614 = vmatmul.mubr.bf16.gmra.mxu0 %v4481
      %v4615 = vpop.f32.mrf.mxu0
      %v4616 = vadd.f32 0.0, %v4615
      %v4617 = vpop.f32.mrf.mxu0
      %v4618 = vpop.f32.mrf.mxu0
      %v4619 = vadd.f32 0.0, %v4618
      %v4620 = vpop.f32.mrf.mxu0
      %4621 = vmatprep.mubr.bf16.mxu0 0
      %4622 = vmatmul.mubr.bf16.gmra.mxu0 %v4484
      %v4623 = vpop.f32.mrf.mxu0
      %v4624 = vadd.f32 0.0, %v4623
      %v4625 = vpop.f32.mrf.mxu0
      %v4626 = vpop.f32.mrf.mxu0
      %v4627 = vadd.f32 0.0, %v4626
      %v4628 = vpop.f32.mrf.mxu0
      %4629 = vmatprep.mubr.bf16.mxu0 0
      %4630 = vmatmul.mubr.bf16.gmra.mxu0 %v4487
      %v4631 = vpop.f32.mrf.mxu0
      %v4632 = vadd.f32 0.0, %v4631
      %v4633 = vpop.f32.mrf.mxu0
      %v4634 = vpop.f32.mrf.mxu0
      %v4635 = vadd.f32 0.0, %v4634
      %v4636 = vpop.f32.mrf.mxu0
      %4637 = vmatprep.mubr.bf16.mxu0 0
      %4638 = vmatmul.mubr.bf16.gmra.mxu0 %v4490
      %v4639 = vpop.f32.mrf.mxu0
      %v4640 = vadd.f32 0.0, %v4639
      %v4641 = vpop.f32.mrf.mxu0
      %v4642 = vpop.f32.mrf.mxu0
      %v4643 = vadd.f32 0.0, %v4642
      %v4644 = vpop.f32.mrf.mxu0
      %4645 = vmatprep.mubr.bf16.mxu0 0
      %4646 = vmatmul.mubr.bf16.gmra.mxu0 %v4493
      %v4647 = vpop.f32.mrf.mxu0
      %v4648 = vadd.f32 0.0, %v4647
      %v4649 = vpop.f32.mrf.mxu0
      %v4650 = vpop.f32.mrf.mxu0
      %v4651 = vadd.f32 0.0, %v4650
      %v4652 = vpop.f32.mrf.mxu0
      %4653 = vmatprep.mubr.bf16.mxu0 0
      %4654 = vmatmul.mubr.bf16.gmra.mxu0 %v4496
      %v4655 = vpop.f32.mrf.mxu0
      %v4656 = vadd.f32 0.0, %v4655
      %v4657 = vpop.f32.mrf.mxu0
      %v4658 = vpop.f32.mrf.mxu0
      %v4659 = vadd.f32 0.0, %v4658
      %v4660 = vpop.f32.mrf.mxu0
      %4661 = vdwg.mxu0
      %v4662 = vadd.f32 %v4400, %v4536
      %v4663 = vadd.f32 %v4401, %v4539
      %v4664 = vadd.f32 %v4402, %v4544
      %v4665 = vadd.f32 %v4403, %v4547
      %v4666 = vadd.f32 %v4404, %v4552
      %v4667 = vadd.f32 %v4405, %v4555
      %v4668 = vadd.f32 %v4406, %v4560
      %v4669 = vadd.f32 %v4407, %v4563
      %v4670 = vadd.f32 %v4408, %v4568
      %v4671 = vadd.f32 %v4409, %v4571
      %v4672 = vadd.f32 %v4410, %v4576
      %v4673 = vadd.f32 %v4411, %v4579
      %v4674 = vadd.f32 %v4412, %v4584
      %v4675 = vadd.f32 %v4413, %v4587
      %v4676 = vadd.f32 %v4414, %v4592
      %v4677 = vadd.f32 %v4415, %v4595
      %v4678 = vadd.f32 %v4416, %v4600
      %v4679 = vadd.f32 %v4417, %v4603
      %v4680 = vadd.f32 %v4418, %v4608
      %v4681 = vadd.f32 %v4419, %v4611
      %v4682 = vadd.f32 %v4420, %v4616
      %v4683 = vadd.f32 %v4421, %v4619
      %v4684 = vadd.f32 %v4422, %v4624
      %v4685 = vadd.f32 %v4423, %v4627
      %v4686 = vadd.f32 %v4424, %v4632
      %v4687 = vadd.f32 %v4425, %v4635
      %v4688 = vadd.f32 %v4426, %v4640
      %v4689 = vadd.f32 %v4427, %v4643
      %v4690 = vadd.f32 %v4428, %v4648
      %v4691 = vadd.f32 %v4429, %v4651
      %v4692 = vadd.f32 %v4430, %v4656
      %v4693 = vadd.f32 %v4431, %v4659
      %4694 = vst.msk [vmem:[#allocation2] sm:$0xff] %vm1245, %v4662
      %4695 = vst.msk [vmem:[#allocation2 + $0x8] sm:$0xff] %vm1245, %v4663
      %4696 = vst.msk [vmem:[#allocation2 + $0x10] sm:$0xff] %vm1245, %v4664
      %4697 = vst.msk [vmem:[#allocation2 + $0x18] sm:$0xff] %vm1245, %v4665
      %4698 = vst.msk [vmem:[#allocation2 + $0x20] sm:$0xff] %vm1245, %v4666
      %4699 = vst.msk [vmem:[#allocation2 + $0x28] sm:$0xff] %vm1245, %v4667
      %4700 = vst.msk [vmem:[#allocation2 + $0x30] sm:$0xff] %vm1245, %v4668
      %4701 = vst.msk [vmem:[#allocation2 + $0x38] sm:$0xff] %vm1245, %v4669
      %4702 = vst.msk [vmem:[#allocation2 + $0x40] sm:$0xff] %vm1245, %v4670
      %4703 = vst.msk [vmem:[#allocation2 + $0x48] sm:$0xff] %vm1245, %v4671
      %4704 = vst.msk [vmem:[#allocation2 + $0x50] sm:$0xff] %vm1245, %v4672
      %4705 = vst.msk [vmem:[#allocation2 + $0x58] sm:$0xff] %vm1245, %v4673
      %4706 = vst.msk [vmem:[#allocation2 + $0x60] sm:$0xff] %vm1245, %v4674
      %4707 = vst.msk [vmem:[#allocation2 + $0x68] sm:$0xff] %vm1245, %v4675
      %4708 = vst.msk [vmem:[#allocation2 + $0x70] sm:$0xff] %vm1245, %v4676
      %4709 = vst.msk [vmem:[#allocation2 + $0x78] sm:$0xff] %vm1245, %v4677
      %4710 = vst.msk [vmem:[#allocation2 + $0x80] sm:$0xff] %vm1245, %v4678
      %4711 = vst.msk [vmem:[#allocation2 + $0x88] sm:$0xff] %vm1245, %v4679
      %4712 = vst.msk [vmem:[#allocation2 + $0x90] sm:$0xff] %vm1245, %v4680
      %4713 = vst.msk [vmem:[#allocation2 + $0x98] sm:$0xff] %vm1245, %v4681
      %4714 = vst.msk [vmem:[#allocation2 + $0xa0] sm:$0xff] %vm1245, %v4682
      %4715 = vst.msk [vmem:[#allocation2 + $0xa8] sm:$0xff] %vm1245, %v4683
      %4716 = vst.msk [vmem:[#allocation2 + $0xb0] sm:$0xff] %vm1245, %v4684
      %4717 = vst.msk [vmem:[#allocation2 + $0xb8] sm:$0xff] %vm1245, %v4685
      %4718 = vst.msk [vmem:[#allocation2 + $0xc0] sm:$0xff] %vm1245, %v4686
      %4719 = vst.msk [vmem:[#allocation2 + $0xc8] sm:$0xff] %vm1245, %v4687
      %4720 = vst.msk [vmem:[#allocation2 + $0xd0] sm:$0xff] %vm1245, %v4688
      %4721 = vst.msk [vmem:[#allocation2 + $0xd8] sm:$0xff] %vm1245, %v4689
      %4722 = vst.msk [vmem:[#allocation2 + $0xe0] sm:$0xff] %vm1245, %v4690
      %4723 = vst.msk [vmem:[#allocation2 + $0xe8] sm:$0xff] %vm1245, %v4691
      %4724 = vst.msk [vmem:[#allocation2 + $0xf0] sm:$0xff] %vm1245, %v4692
      %4725 = vst.msk [vmem:[#allocation2 + $0xf8] sm:$0xff] %vm1245, %v4693
      %v4726 = vld [vmem:[#allocation2] sm:$0xff]
      %v4727 = vld [vmem:[#allocation2 + $0x8] sm:$0xff]
      %v4728 = vld [vmem:[#allocation2 + $0x10] sm:$0xff]
      %v4729 = vld [vmem:[#allocation2 + $0x18] sm:$0xff]
      %v4730 = vld [vmem:[#allocation2 + $0x20] sm:$0xff]
      %v4731 = vld [vmem:[#allocation2 + $0x28] sm:$0xff]
      %v4732 = vld [vmem:[#allocation2 + $0x30] sm:$0xff]
      %v4733 = vld [vmem:[#allocation2 + $0x38] sm:$0xff]
      %v4734 = vld [vmem:[#allocation2 + $0x40] sm:$0xff]
      %v4735 = vld [vmem:[#allocation2 + $0x48] sm:$0xff]
      %v4736 = vld [vmem:[#allocation2 + $0x50] sm:$0xff]
      %v4737 = vld [vmem:[#allocation2 + $0x58] sm:$0xff]
      %v4738 = vld [vmem:[#allocation2 + $0x60] sm:$0xff]
      %v4739 = vld [vmem:[#allocation2 + $0x68] sm:$0xff]
      %v4740 = vld [vmem:[#allocation2 + $0x70] sm:$0xff]
      %v4741 = vld [vmem:[#allocation2 + $0x78] sm:$0xff]
      %v4742 = vld [vmem:[#allocation2 + $0x80] sm:$0xff]
      %v4743 = vld [vmem:[#allocation2 + $0x88] sm:$0xff]
      %v4744 = vld [vmem:[#allocation2 + $0x90] sm:$0xff]
      %v4745 = vld [vmem:[#allocation2 + $0x98] sm:$0xff]
      %v4746 = vld [vmem:[#allocation2 + $0xa0] sm:$0xff]
      %v4747 = vld [vmem:[#allocation2 + $0xa8] sm:$0xff]
      %v4748 = vld [vmem:[#allocation2 + $0xb0] sm:$0xff]
      %v4749 = vld [vmem:[#allocation2 + $0xb8] sm:$0xff]
      %v4750 = vld [vmem:[#allocation2 + $0xc0] sm:$0xff]
      %v4751 = vld [vmem:[#allocation2 + $0xc8] sm:$0xff]
      %v4752 = vld [vmem:[#allocation2 + $0xd0] sm:$0xff]
      %v4753 = vld [vmem:[#allocation2 + $0xd8] sm:$0xff]
      %v4754 = vld [vmem:[#allocation2 + $0xe0] sm:$0xff]
      %v4755 = vld [vmem:[#allocation2 + $0xe8] sm:$0xff]
      %v4756 = vld [vmem:[#allocation2 + $0xf0] sm:$0xff]
      %v4757 = vld [vmem:[#allocation2 + $0xf8] sm:$0xff]
      %v4758 = vpack.c.bf16 %v4727, %v4726
      %v4759 = vpack.c.bf16 %v4729, %v4728
      %v4760 = vpack.c.bf16 %v4731, %v4730
      %v4761 = vpack.c.bf16 %v4733, %v4732
      %v4762 = vpack.c.bf16 %v4735, %v4734
      %v4763 = vpack.c.bf16 %v4737, %v4736
      %v4764 = vpack.c.bf16 %v4739, %v4738
      %v4765 = vpack.c.bf16 %v4741, %v4740
      %v4766 = vpack.c.bf16 %v4743, %v4742
      %v4767 = vpack.c.bf16 %v4745, %v4744
      %v4768 = vpack.c.bf16 %v4747, %v4746
      %v4769 = vpack.c.bf16 %v4749, %v4748
      %v4770 = vpack.c.bf16 %v4751, %v4750
      %v4771 = vpack.c.bf16 %v4753, %v4752
      %v4772 = vpack.c.bf16 %v4755, %v4754
      %v4773 = vpack.c.bf16 %v4757, %v4756
      %v4790 = vunpack.c.l.b16 %v4758
      %v4791 = vunpack.c.h.b16 %v4758
      %v4792 = vunpack.c.l.b16 %v4759
      %v4793 = vunpack.c.h.b16 %v4759
      %v4794 = vunpack.c.l.b16 %v4760
      %v4795 = vunpack.c.h.b16 %v4760
      %v4796 = vunpack.c.l.b16 %v4761
      %v4797 = vunpack.c.h.b16 %v4761
      %v4798 = vunpack.c.l.b16 %v4762
      %v4799 = vunpack.c.h.b16 %v4762
      %v4800 = vunpack.c.l.b16 %v4763
      %v4801 = vunpack.c.h.b16 %v4763
      %v4802 = vunpack.c.l.b16 %v4764
      %v4803 = vunpack.c.h.b16 %v4764
      %v4804 = vunpack.c.l.b16 %v4765
      %v4805 = vunpack.c.h.b16 %v4765
      %v4806 = vunpack.c.l.b16 %v4766
      %v4807 = vunpack.c.h.b16 %v4766
      %v4808 = vunpack.c.l.b16 %v4767
      %v4809 = vunpack.c.h.b16 %v4767
      %v4810 = vunpack.c.l.b16 %v4768
      %v4811 = vunpack.c.h.b16 %v4768
      %v4812 = vunpack.c.l.b16 %v4769
      %v4813 = vunpack.c.h.b16 %v4769
      %v4814 = vunpack.c.l.b16 %v4770
      %v4815 = vunpack.c.h.b16 %v4770
      %v4816 = vunpack.c.l.b16 %v4771
      %v4817 = vunpack.c.h.b16 %v4771
      %v4818 = vunpack.c.l.b16 %v4772
      %v4819 = vunpack.c.h.b16 %v4772
      %v4820 = vunpack.c.l.b16 %v4773
      %v4821 = vunpack.c.h.b16 %v4773
      %v4822 = vpack.c.b16 %v4790, %v4790
      %v4823 = vpack.c.b16 %v4791, %v4791
      %v4824 = vpack.c.b16 %v4792, %v4792
      %v4825 = vpack.c.b16 %v4793, %v4793
      %v4826 = vpack.c.b16 %v4794, %v4794
      %v4827 = vpack.c.b16 %v4795, %v4795
      %v4828 = vpack.c.b16 %v4796, %v4796
      %v4829 = vpack.c.b16 %v4797, %v4797
      %v4830 = vpack.c.b16 %v4798, %v4798
      %v4831 = vpack.c.b16 %v4799, %v4799
      %v4832 = vpack.c.b16 %v4800, %v4800
      %v4833 = vpack.c.b16 %v4801, %v4801
      %v4834 = vpack.c.b16 %v4802, %v4802
      %v4835 = vpack.c.b16 %v4803, %v4803
      %v4836 = vpack.c.b16 %v4804, %v4804
      %v4837 = vpack.c.b16 %v4805, %v4805
      %v4838 = vpack.c.b16 %v4806, %v4806
      %v4839 = vpack.c.b16 %v4807, %v4807
      %v4840 = vpack.c.b16 %v4808, %v4808
      %v4841 = vpack.c.b16 %v4809, %v4809
      %v4842 = vpack.c.b16 %v4810, %v4810
      %v4843 = vpack.c.b16 %v4811, %v4811
      %v4844 = vpack.c.b16 %v4812, %v4812
      %v4845 = vpack.c.b16 %v4813, %v4813
      %v4846 = vpack.c.b16 %v4814, %v4814
      %v4847 = vpack.c.b16 %v4815, %v4815
      %v4848 = vpack.c.b16 %v4816, %v4816
      %v4849 = vpack.c.b16 %v4817, %v4817
      %v4850 = vpack.c.b16 %v4818, %v4818
      %v4851 = vpack.c.b16 %v4819, %v4819
      %v4852 = vpack.c.b16 %v4820, %v4820
      %v4853 = vpack.c.b16 %v4821, %v4821
      %vm4886 = vcmask 60416
      %4887 = vst.msk [vmem:[%s262] sm:$0xf] %vm4886, %v4822
      %4888 = vst.msk [vmem:[%s262 + $0x4] sm:$0xf] %vm4886, %v4823
      %4889 = vst.msk [vmem:[%s262 + $0x8] sm:$0xf] %vm4886, %v4824
      %4890 = vst.msk [vmem:[%s262 + $0xc] sm:$0xf] %vm4886, %v4825
      %4891 = vst.msk [vmem:[%s262 + $0x10] sm:$0xf] %vm4886, %v4826
      %4892 = vst.msk [vmem:[%s262 + $0x14] sm:$0xf] %vm4886, %v4827
      %4893 = vst.msk [vmem:[%s262 + $0x18] sm:$0xf] %vm4886, %v4828
      %4894 = vst.msk [vmem:[%s262 + $0x1c] sm:$0xf] %vm4886, %v4829
      %4895 = vst.msk [vmem:[%s262 + $0x20] sm:$0xf] %vm4886, %v4830
      %4896 = vst.msk [vmem:[%s262 + $0x24] sm:$0xf] %vm4886, %v4831
      %4897 = vst.msk [vmem:[%s262 + $0x28] sm:$0xf] %vm4886, %v4832
      %4898 = vst.msk [vmem:[%s262 + $0x2c] sm:$0xf] %vm4886, %v4833
      %4899 = vst.msk [vmem:[%s262 + $0x30] sm:$0xf] %vm4886, %v4834
      %4900 = vst.msk [vmem:[%s262 + $0x34] sm:$0xf] %vm4886, %v4835
      %4901 = vst.msk [vmem:[%s262 + $0x38] sm:$0xf] %vm4886, %v4836
      %4902 = vst.msk [vmem:[%s262 + $0x3c] sm:$0xf] %vm4886, %v4837
      %4903 = vst.msk [vmem:[%s262 + $0x40] sm:$0xf] %vm4886, %v4838
      %4904 = vst.msk [vmem:[%s262 + $0x44] sm:$0xf] %vm4886, %v4839
      %4905 = vst.msk [vmem:[%s262 + $0x48] sm:$0xf] %vm4886, %v4840
      %4906 = vst.msk [vmem:[%s262 + $0x4c] sm:$0xf] %vm4886, %v4841
      %4907 = vst.msk [vmem:[%s262 + $0x50] sm:$0xf] %vm4886, %v4842
      %4908 = vst.msk [vmem:[%s262 + $0x54] sm:$0xf] %vm4886, %v4843
      %4909 = vst.msk [vmem:[%s262 + $0x58] sm:$0xf] %vm4886, %v4844
      %4910 = vst.msk [vmem:[%s262 + $0x5c] sm:$0xf] %vm4886, %v4845
      %4911 = vst.msk [vmem:[%s262 + $0x60] sm:$0xf] %vm4886, %v4846
      %4912 = vst.msk [vmem:[%s262 + $0x64] sm:$0xf] %vm4886, %v4847
      %4913 = vst.msk [vmem:[%s262 + $0x68] sm:$0xf] %vm4886, %v4848
      %4914 = vst.msk [vmem:[%s262 + $0x6c] sm:$0xf] %vm4886, %v4849
      %4915 = vst.msk [vmem:[%s262 + $0x70] sm:$0xf] %vm4886, %v4850
      %4916 = vst.msk [vmem:[%s262 + $0x74] sm:$0xf] %vm4886, %v4851
      %4917 = vst.msk [vmem:[%s262 + $0x78] sm:$0xf] %vm4886, %v4852
      %4918 = vst.msk [vmem:[%s262 + $0x7c] sm:$0xf] %vm4886, %v4853
      %v4919 = vsel %vm1245, %v4726, 0.0
      %v4920 = vsel %vm1245, %v4727, 0.0
      %v4921 = vadd.f32 %v4919, %v4920
      %v4922 = vsel %vm1245, %v4728, 0.0
      %v4923 = vadd.f32 %v4921, %v4922
      %v4924 = vsel %vm1245, %v4729, 0.0
      %v4925 = vadd.f32 %v4923, %v4924
      %v4926 = vsel %vm1245, %v4730, 0.0
      %v4927 = vadd.f32 %v4925, %v4926
      %v4928 = vsel %vm1245, %v4731, 0.0
      %v4929 = vadd.f32 %v4927, %v4928
      %v4930 = vsel %vm1245, %v4732, 0.0
      %v4931 = vadd.f32 %v4929, %v4930
      %v4932 = vsel %vm1245, %v4733, 0.0
      %v4933 = vadd.f32 %v4931, %v4932
      %v4934 = vsel %vm1245, %v4734, 0.0
      %v4935 = vadd.f32 %v4933, %v4934
      %v4936 = vsel %vm1245, %v4735, 0.0
      %v4937 = vadd.f32 %v4935, %v4936
      %v4938 = vsel %vm1245, %v4736, 0.0
      %v4939 = vadd.f32 %v4937, %v4938
      %v4940 = vsel %vm1245, %v4737, 0.0
      %v4941 = vadd.f32 %v4939, %v4940
      %v4942 = vsel %vm1245, %v4738, 0.0
      %v4943 = vadd.f32 %v4941, %v4942
      %v4944 = vsel %vm1245, %v4739, 0.0
      %v4945 = vadd.f32 %v4943, %v4944
      %v4946 = vsel %vm1245, %v4740, 0.0
      %v4947 = vadd.f32 %v4945, %v4946
      %v4948 = vsel %vm1245, %v4741, 0.0
      %v4949 = vadd.f32 %v4947, %v4948
      %v4950 = vsel %vm1245, %v4742, 0.0
      %v4951 = vadd.f32 %v4949, %v4950
      %v4952 = vsel %vm1245, %v4743, 0.0
      %v4953 = vadd.f32 %v4951, %v4952
      %v4954 = vsel %vm1245, %v4744, 0.0
      %v4955 = vadd.f32 %v4953, %v4954
      %v4956 = vsel %vm1245, %v4745, 0.0
      %v4957 = vadd.f32 %v4955, %v4956
      %v4958 = vsel %vm1245, %v4746, 0.0
      %v4959 = vadd.f32 %v4957, %v4958
      %v4960 = vsel %vm1245, %v4747, 0.0
      %v4961 = vadd.f32 %v4959, %v4960
      %v4962 = vsel %vm1245, %v4748, 0.0
      %v4963 = vadd.f32 %v4961, %v4962
      %v4964 = vsel %vm1245, %v4749, 0.0
      %v4965 = vadd.f32 %v4963, %v4964
      %v4966 = vsel %vm1245, %v4750, 0.0
      %v4967 = vadd.f32 %v4965, %v4966
      %v4968 = vsel %vm1245, %v4751, 0.0
      %v4969 = vadd.f32 %v4967, %v4968
      %v4970 = vsel %vm1245, %v4752, 0.0
      %v4971 = vadd.f32 %v4969, %v4970
      %v4972 = vsel %vm1245, %v4753, 0.0
      %v4973 = vadd.f32 %v4971, %v4972
      %v4974 = vsel %vm1245, %v4754, 0.0
      %v4975 = vadd.f32 %v4973, %v4974
      %v4976 = vsel %vm1245, %v4755, 0.0
      %v4977 = vadd.f32 %v4975, %v4976
      %v4978 = vsel %vm1245, %v4756, 0.0
      %v4979 = vadd.f32 %v4977, %v4978
      %v4980 = vsel %vm1245, %v4757, 0.0
      %v4981 = vadd.f32 %v4979, %v4980
      %v4982 = vrot.slane %v4981, 4
      %v4983 = vadd.f32 %v4981, %v4982
      %v4984 = vrot.slane %v4983, 2
      %v4985 = vadd.f32 %v4983, %v4984
      %v4986 = vrot.slane %v4985, 1
      %v4987 = vadd.f32 %v4985, %v4986
      %vm4988 = vcmask 57344
      %4989 = vst.msk [vmem:[%s265] sm:$0x1] %vm4988, %v4987
      %v4990 = vmul.f32 %v4726, %v4726
      %v4991 = vmul.f32 %v4727, %v4727
      %v4992 = vmul.f32 %v4728, %v4728
      %v4993 = vmul.f32 %v4729, %v4729
      %v4994 = vmul.f32 %v4730, %v4730
      %v4995 = vmul.f32 %v4731, %v4731
      %v4996 = vmul.f32 %v4732, %v4732
      %v4997 = vmul.f32 %v4733, %v4733
      %v4998 = vmul.f32 %v4734, %v4734
      %v4999 = vmul.f32 %v4735, %v4735
      %v5000 = vmul.f32 %v4736, %v4736
      %v5001 = vmul.f32 %v4737, %v4737
      %v5002 = vmul.f32 %v4738, %v4738
      %v5003 = vmul.f32 %v4739, %v4739
      %v5004 = vmul.f32 %v4740, %v4740
      %v5005 = vmul.f32 %v4741, %v4741
      %v5006 = vmul.f32 %v4742, %v4742
      %v5007 = vmul.f32 %v4743, %v4743
      %v5008 = vmul.f32 %v4744, %v4744
      %v5009 = vmul.f32 %v4745, %v4745
      %v5010 = vmul.f32 %v4746, %v4746
      %v5011 = vmul.f32 %v4747, %v4747
      %v5012 = vmul.f32 %v4748, %v4748
      %v5013 = vmul.f32 %v4749, %v4749
      %v5014 = vmul.f32 %v4750, %v4750
      %v5015 = vmul.f32 %v4751, %v4751
      %v5016 = vmul.f32 %v4752, %v4752
      %v5017 = vmul.f32 %v4753, %v4753
      %v5018 = vmul.f32 %v4754, %v4754
      %v5019 = vmul.f32 %v4755, %v4755
      %v5020 = vmul.f32 %v4756, %v4756
      %v5021 = vmul.f32 %v4757, %v4757
      %v5022 = vsel %vm1245, %v4990, 0.0
      %v5023 = vsel %vm1245, %v4991, 0.0
      %v5024 = vadd.f32 %v5022, %v5023
      %v5025 = vsel %vm1245, %v4992, 0.0
      %v5026 = vadd.f32 %v5024, %v5025
      %v5027 = vsel %vm1245, %v4993, 0.0
      %v5028 = vadd.f32 %v5026, %v5027
      %v5029 = vsel %vm1245, %v4994, 0.0
      %v5030 = vadd.f32 %v5028, %v5029
      %v5031 = vsel %vm1245, %v4995, 0.0
      %v5032 = vadd.f32 %v5030, %v5031
      %v5033 = vsel %vm1245, %v4996, 0.0
      %v5034 = vadd.f32 %v5032, %v5033
      %v5035 = vsel %vm1245, %v4997, 0.0
      %v5036 = vadd.f32 %v5034, %v5035
      %v5037 = vsel %vm1245, %v4998, 0.0
      %v5038 = vadd.f32 %v5036, %v5037
      %v5039 = vsel %vm1245, %v4999, 0.0
      %v5040 = vadd.f32 %v5038, %v5039
      %v5041 = vsel %vm1245, %v5000, 0.0
      %v5042 = vadd.f32 %v5040, %v5041
      %v5043 = vsel %vm1245, %v5001, 0.0
      %v5044 = vadd.f32 %v5042, %v5043
      %v5045 = vsel %vm1245, %v5002, 0.0
      %v5046 = vadd.f32 %v5044, %v5045
      %v5047 = vsel %vm1245, %v5003, 0.0
      %v5048 = vadd.f32 %v5046, %v5047
      %v5049 = vsel %vm1245, %v5004, 0.0
      %v5050 = vadd.f32 %v5048, %v5049
      %v5051 = vsel %vm1245, %v5005, 0.0
      %v5052 = vadd.f32 %v5050, %v5051
      %v5053 = vsel %vm1245, %v5006, 0.0
      %v5054 = vadd.f32 %v5052, %v5053
      %v5055 = vsel %vm1245, %v5007, 0.0
      %v5056 = vadd.f32 %v5054, %v5055
      %v5057 = vsel %vm1245, %v5008, 0.0
      %v5058 = vadd.f32 %v5056, %v5057
      %v5059 = vsel %vm1245, %v5009, 0.0
      %v5060 = vadd.f32 %v5058, %v5059
      %v5061 = vsel %vm1245, %v5010, 0.0
      %v5062 = vadd.f32 %v5060, %v5061
      %v5063 = vsel %vm1245, %v5011, 0.0
      %v5064 = vadd.f32 %v5062, %v5063
      %v5065 = vsel %vm1245, %v5012, 0.0
      %v5066 = vadd.f32 %v5064, %v5065
      %v5067 = vsel %vm1245, %v5013, 0.0
      %v5068 = vadd.f32 %v5066, %v5067
      %v5069 = vsel %vm1245, %v5014, 0.0
      %v5070 = vadd.f32 %v5068, %v5069
      %v5071 = vsel %vm1245, %v5015, 0.0
      %v5072 = vadd.f32 %v5070, %v5071
      %v5073 = vsel %vm1245, %v5016, 0.0
      %v5074 = vadd.f32 %v5072, %v5073
      %v5075 = vsel %vm1245, %v5017, 0.0
      %v5076 = vadd.f32 %v5074, %v5075
      %v5077 = vsel %vm1245, %v5018, 0.0
      %v5078 = vadd.f32 %v5076, %v5077
      %v5079 = vsel %vm1245, %v5019, 0.0
      %v5080 = vadd.f32 %v5078, %v5079
      %v5081 = vsel %vm1245, %v5020, 0.0
      %v5082 = vadd.f32 %v5080, %v5081
      %v5083 = vsel %vm1245, %v5021, 0.0
      %v5084 = vadd.f32 %v5082, %v5083
      %v5085 = vrot.slane %v5084, 4
      %v5086 = vadd.f32 %v5084, %v5085
      %v5087 = vrot.slane %v5086, 2
      %v5088 = vadd.f32 %v5086, %v5087
      %v5089 = vrot.slane %v5088, 1
      %v5090 = vadd.f32 %v5088, %v5089
      %5091 = vst.msk [vmem:[%s268] sm:$0x1] %vm4988, %v5090
      %p5092 = scmp.lt.s32.totalorder %s18, 1
      %s5093 = scalar_select %p5092, %s18, 1
      %s5094 = smul.addr %s5093, 32
      %s5095 = smul.addr %s5094, 4
      %s5096 = scalar_lea.vmem %s4, %s5095
      %p5097 = scmp.lt.s32.totalorder %s18, 1
      %s5098 = scalar_select %p5097, %s18, 1
      %s5099 = scalar_lea.vmem %s5, %s5098
      %p5100 = scmp.lt.s32.totalorder %s18, 1
      %s5101 = scalar_select %p5100, %s18, 1
      %s5102 = scalar_lea.vmem %s6, %s5101
      // Predicated region
      $region37: #{bottleneck_forward.5} parent=35 // pred_check
        %p5103 = pneg %p125
      $region38: #{bottleneck_forward.5} parent=35 // pred_check_branch
        %5105 = sbr.rel (%p5103) target = $region40
      $region39: #{bottleneck_forward.5} parent=35 // pred_region
        _
      $region40: #{bottleneck_forward.5} parent=35 // pred_fallthru
        _
      // Predicated region
      $region41: #{bottleneck_forward.5} parent=35 // pred_check
        %p5106 = pneg %p151
      $region42: #{bottleneck_forward.5} parent=35 // pred_check_branch
        %5108 = sbr.rel (%p5106) target = $region44
      $region43: #{bottleneck_forward.5} parent=35 // pred_region
        _
      $region44: #{bottleneck_forward.5} parent=35 // pred_fallthru
        _
      // Predicated region
      $region45: #{bottleneck_forward.5} parent=35 // pred_check
        %p5109 = pneg %p177
      $region46: #{bottleneck_forward.5} parent=35 // pred_check_branch
        %5111 = sbr.rel (%p5109) target = $region48
      $region47: #{bottleneck_forward.5} parent=35 // pred_region
        _
      $region48: #{bottleneck_forward.5} parent=35 // pred_fallthru
        _
    $region36: #{bottleneck_forward.5} parent=5 // pred_fallthru
      _
    %p5112 = scmp.le.s32.totalorder 2, %s13
    // Predicated region
    $region49: #{bottleneck_forward.5} parent=5 // pred_check
      %p5113 = pneg %p5112
    $region50: #{bottleneck_forward.5} parent=5 // pred_check_branch
      %5115 = sbr.rel (%p5113) target = $region52
    $region51: #{bottleneck_forward.5} parent=5 // pred_region
      %s5116 = ssub.s32 %s13, 2
      // Predicated region
      $region53: #{bottleneck_forward.5} parent=51 // pred_check
        %p5117 = pneg %p131
      $region54: #{bottleneck_forward.5} parent=51 // pred_check_branch
        %5119 = sbr.rel (%p5117) target = $region56
      $region55: #{bottleneck_forward.5} parent=51 // pred_region
        %p5120 = scmp.lt.s32.totalorder %s19, 1
        %s5121 = scalar_select %p5120, %s19, 1
        %s5122 = smul.addr %s5121, 32
        %s5123 = smul.addr %s5122, 4
        %s5124 = scalar_lea.vmem %s4, %s5123
      $region56: #{bottleneck_forward.5} parent=51 // pred_fallthru
        _
      // Predicated region
      $region57: #{bottleneck_forward.5} parent=51 // pred_check
        %p5125 = pneg %p157
      $region58: #{bottleneck_forward.5} parent=51 // pred_check_branch
        %5127 = sbr.rel (%p5125) target = $region60
      $region59: #{bottleneck_forward.5} parent=51 // pred_region
        %p5128 = scmp.lt.s32.totalorder %s19, 1
        %s5129 = scalar_select %p5128, %s19, 1
        %s5130 = scalar_lea.vmem %s5, %s5129
      $region60: #{bottleneck_forward.5} parent=51 // pred_fallthru
        _
      // Predicated region
      $region61: #{bottleneck_forward.5} parent=51 // pred_check
        %p5131 = pneg %p183
      $region62: #{bottleneck_forward.5} parent=51 // pred_check_branch
        %5133 = sbr.rel (%p5131) target = $region64
      $region63: #{bottleneck_forward.5} parent=51 // pred_region
        %p5134 = scmp.lt.s32.totalorder %s19, 1
        %s5135 = scalar_select %p5134, %s19, 1
        %s5136 = scalar_lea.vmem %s6, %s5135
      $region64: #{bottleneck_forward.5} parent=51 // pred_fallthru
        _
    $region52: #{bottleneck_forward.5} parent=5 // pred_fallthru
      _
  $region6: #{bottleneck_forward.5} parent=0 // loop_footer
    %s17 = sadd.s32 1, %s13
  $region7: #{bottleneck_forward.5} parent=0 // loop_footer_branch
    %12 = sbr.rel target = $region3
  $region8: #{bottleneck_forward.5} parent=0 // loop_exit
    _

</llo_original>
